<compile_context>
chip_gen: v7x
topology: tpu7x:2x2x1
jax: 0.10.0
libtpu: 0.0.40
codegen_flags: <defaults>
</compile_context>

<pallas_src>
import functools

import numpy as np
import jax
import jax.numpy as jnp
from jax import lax
from jax.experimental import pallas as pl
from jax.experimental.pallas import tpu as pltpu


# Tap ordering shared by kernel + wrapper:  t = 3*(dh+1) + (dw+1)
OFFS = tuple((dh, dw) for dh in (-1, 0, 1) for dw in (-1, 0, 1))
# Single-plane stacks (up input x, bp hidden): 9 taps + 1 duplicated-center pad row-block
# so K = 10*C is a multiple of 8 (the pad columns of the matching weights are zero).
ITEMS_X = tuple((4, dh, dw) for (dh, dw) in OFFS) + ((4, 0, 0),)
# Phase stacks (down + sr layers): 4 phases x 9 taps  -> K = 36*C.
ITEMS_PH = tuple((q, dh, dw) for q in range(4) for (dh, dw) in OFFS)

NSLOT = 5  # scratch slots: 0..3 = phases of the 2x-res tensor, 4 = x / bp hidden


# ----------------------------------------------------------------------------
# Fused BRM kernel (one packed batch group per grid step)
# ----------------------------------------------------------------------------
def _brm_kernel(x_ref, msk_ref, wup_ref, bup_ref, wdn_ref, bdn_ref,
                wsr_ref, bsr_ref, asr_ref, wbp_ref, bbp_ref, abp_ref,
                ix_ref, ox_ref, scr_ref, stk_ref, *, C, H, W, B, M):
    L = H * W
    N = B * L
    f32 = jnp.float32

    # Zero only the margins of the shift scratch (they provide the conv zero padding /
    # keep masked-out reads NaN-free).  Done every step (cheap, ~6 vst) so it is correct
    # on both cores under megacore grid splitting.
    zmarg = jnp.zeros((NSLOT * C, M), f32)
    scr_ref[pl.ds(0, NSLOT * C), pl.ds(0, M)] = zmarg
    scr_ref[pl.ds(0, NSLOT * C), pl.ds(M + N, M)] = zmarg

    def put(slot, v):
        scr_ref[pl.ds(slot * C, C), pl.ds(M, N)] = v

    def build_stack(items):
        # Hoisted shifted/masked planes: each plane is read, masked and stored exactly
        # once per stage, then consumed by the MXU matmul below.
        for i, (slot, dh, dw) in enumerate(items):
            v = scr_ref[pl.ds(slot * C, C), pl.ds(M + dh * W + dw, N)]
            if (dh, dw) != (0, 0):
                v = v * msk_ref[3 * (dh + 1) + (dw + 1)]
            stk_ref[pl.ds(i * C, C), :] = v

    def matmul(w, k_rows):
        # One MXU matmul per stage (chunked over lanes to bound vreg pressure when B>1).
        outs = []
        for n0 in range(0, N, L):
            outs.append(jnp.dot(w, stk_ref[pl.ds(0, k_rows), pl.ds(n0, L)],
                                preferred_element_type=f32))
        return outs[0] if len(outs) == 1 else jnp.concatenate(outs, axis=-1)

    def prelu(v, a):
        return jnp.where(v >= 0.0, v, a * v)

    x = x_ref[0]                                          # (C, N)

    # ---- up = ConvTranspose2d(k=6, s=2, p=2): 4 phase convs as one (4C, 10C) matmul ----
    put(4, x)
    build_stack(ITEMS_X)
    up = matmul(wup_ref[...], 10 * C) + bup_ref[...]      # (4C, N), rows = q*C + co
    for q in range(4):
        put(q, up[q * C:(q + 1) * C, :])                  # slots 0..3 <- phases of `up`

    # ---- down (Conv2d k=6,s=2,p=2 on up) and sr layer 0 share the same phase stack ----
    build_stack(ITEMS_PH)
    down = matmul(wdn_ref[...], 36 * C) + bdn_ref[...]    # (C, N)
    h = prelu(matmul(wsr_ref[0], 36 * C) + bsr_ref[0], asr_ref[0])
    for q in range(4):
        put(q, h[q * C:(q + 1) * C, :])

    # ---- sr layers 1, 2 (full-res 3x3 convs evaluated in phase space) ------------------
    build_stack(ITEMS_PH)
    h = prelu(matmul(wsr_ref[1], 36 * C) + bsr_ref[1], asr_ref[1])
    for q in range(4):
        put(q, h[q * C:(q + 1) * C, :])
    build_stack(ITEMS_PH)
    h = prelu(matmul(wsr_ref[2], 36 * C) + bsr_ref[2], asr_ref[2])
    ox_ref[0] = h                                         # phase layout; un-phased outside

    # ---- bp_flow on sub = x - down, then ix = bp(sub) + sub ----------------------------
    sub = x - down
    h = sub
    for l in range(3):
        put(4, h)
        build_stack(ITEMS_X)
        h = prelu(matmul(wbp_ref[l], 10 * C) + bbp_ref[l], abp_ref[l])
    ix_ref[0] = h + sub


# ----------------------------------------------------------------------------
# Wrapper-side weight / mask re-layout (pure glue, runs at trace time)
# ----------------------------------------------------------------------------
def _prep_up_weight(w_t, c):
    # PyTorch ConvTranspose2d weight (Cin, Cout, 6, 6) -> (4*C, 10*C)
    # up_phase[2py+px][co,u,v] = sum_{ci,dh,dw} x[ci,u+dh,v+dw] * w_t[ci,co,2(1-dh)+py,2(1-dw)+px]
    rows = []
    for py in (0, 1):
        for px in (0, 1):
            blocks = [w_t[:, :, 2 * (1 - dh) + py, 2 * (1 - dw) + px].T
                      for (dh, dw) in OFFS]
            blocks.append(jnp.zeros((c, c), jnp.float32))      # duplicated-center pad
            rows.append(jnp.concatenate(blocks, axis=1))
    return jnp.concatenate(rows, axis=0)


def _prep_down_weight(wd, c):
    # Conv2d weight (Cout, Cin, 6, 6), stride 2, pad 2 -> (C, 36*C)
    # down[co,h,w] = sum_{ph,pw,ci,dh,dw} up_ph[2ph+pw][ci,h+dh,w+dw] * wd[co,ci,2(dh+1)+ph,2(dw+1)+pw]
    blocks = []
    for ph in (0, 1):
        for pw in (0, 1):
            for (dh, dw) in OFFS:
                blocks.append(wd[:, :, 2 * (dh + 1) + ph, 2 * (dw + 1) + pw])
    return jnp.concatenate(blocks, axis=1)


def _prep_sr_weight(wc, c):
    # Full-res 3x3 conv (Cout, Cin, 3, 3) expressed in phase space -> (4*C, 36*C)
    def find(qc, r, o):
        for a in (-1, 0, 1):
            if (qc + a) % 2 == r and (qc + a - r) // 2 == o:
                return a
        return None
    rows = []
    for qy in (0, 1):
        for qx in (0, 1):
            blocks = []
            for q_in in range(4):
                ry, rx = q_in // 2, q_in % 2
                for (dh, dw) in OFFS:
                    a = find(qy, ry, dh)
                    b = find(qx, rx, dw)
                    if a is None or b is None:
                        blocks.append(jnp.zeros((c, c), jnp.float32))
                    else:
                        blocks.append(wc[:, :, a + 1, b + 1])
            rows.append(jnp.concatenate(blocks, axis=1))
    return jnp.concatenate(rows, axis=0)


def _prep_bp_weight(wc, c):
    # Low-res 3x3 conv (Cout, Cin, 3, 3) -> (C, 10*C)
    blocks = [wc[:, :, dh + 1, dw + 1] for (dh, dw) in OFFS]
    blocks.append(jnp.zeros((c, c), jnp.float32))
    return jnp.concatenate(blocks, axis=1)


def _make_tap_masks(H, W, B, c):
    # Per-tap validity masks over the packed (B*H*W) lane axis; pre-broadcast over C so
    # no in-kernel sublane broadcast is needed.  They zero image-border taps AND any tap
    # that would leak across a batch-element boundary in the packed lane layout.
    L = H * W
    l = np.arange(B * L) % L
    row, col = l // W, l % W
    m = np.zeros((9, c, B * L), np.float32)
    for t, (dh, dw) in enumerate(OFFS):
        ok = (row + dh >= 0) & (row + dh < H) & (col + dw >= 0) & (col + dw < W)
        m[t] = ok.astype(np.float32)[None, :]
    return jnp.asarray(m)


def _pick_batch_pack(n):
    # Pack B batch elements per grid step (lane axis becomes B*H*W) but keep the grid
    # length >= 2 so both TensorCores on v7x stay busy.
    for b in (4, 3, 2):
        if n % b == 0 and n // b >= 2:
            return b
    return 1


# ----------------------------------------------------------------------------
# Wrapper: single pallas_call
# ----------------------------------------------------------------------------
def brm_forward(x, p):
    n, c, hh, ww = x.shape
    L = hh * ww
    B = _pick_batch_pack(n)
    G = n // B
    N = B * L
    M = 128                                    # lane-aligned zero margin (>= W+1)

    # batch -> lane packing (pure layout glue)
    x_p = x.reshape(G, B, c, L).transpose(0, 2, 1, 3).reshape(G, c, N)

    masks = _make_tap_masks(hh, ww, B, c)                           # (9, c, N)

    w_up = _prep_up_weight(p['up_w'], c)                            # (4c, 10c)
    b_up = jnp.tile(p['up_b'], 4)[:, None]                          # (4c, 1)
    w_dn = _prep_down_weight(p['down_w'], c)                        # (c, 36c)
    b_dn = p['down_b'][:, None]
    w_sr = jnp.stack([_prep_sr_weight(p[f'sr{i}_w'], c) for i in range(3)])   # (3,4c,36c)
    b_sr = jnp.stack([jnp.tile(p[f'sr{i}_b'], 4)[:, None] for i in range(3)])
    a_sr = jnp.stack([jnp.tile(p[f'sr{i}_a'], 4)[:, None] for i in range(3)])
    w_bp = jnp.stack([_prep_bp_weight(p[f'bp{i}_w'], c) for i in range(3)])   # (3,c,10c)
    b_bp = jnp.stack([p[f'bp{i}_b'][:, None] for i in range(3)])
    a_bp = jnp.stack([p[f'bp{i}_a'][:, None] for i in range(3)])

    kernel = functools.partial(_brm_kernel, C=c, H=hh, W=ww, B=B, M=M)

    def const(rank):
        return lambda i: (0,) * rank

    ix_p, ox_ph = pl.pallas_call(
        kernel,
        out_shape=(jax.ShapeDtypeStruct((G, c, N), jnp.float32),
                   jax.ShapeDtypeStruct((G, 4 * c, N), jnp.float32)),
        grid=(G,),
        in_specs=[
            pl.BlockSpec((1, c, N), lambda i: (i, 0, 0)),           # x (packed lanes)
            pl.BlockSpec((9, c, N), const(3)),                      # tap masks
            pl.BlockSpec((4 * c, 10 * c), const(2)),                # up weights
            pl.BlockSpec((4 * c, 1), const(2)),                     # up bias (tiled)
            pl.BlockSpec((c, 36 * c), const(2)),                    # down weights
            pl.BlockSpec((c, 1), const(2)),                         # down bias
            pl.BlockSpec((3, 4 * c, 36 * c), const(3)),             # sr weights
            pl.BlockSpec((3, 4 * c, 1), const(3)),                  # sr biases (tiled)
            pl.BlockSpec((3, 4 * c, 1), const(3)),                  # sr PReLU slopes
            pl.BlockSpec((3, c, 10 * c), const(3)),                 # bp weights
            pl.BlockSpec((3, c, 1), const(3)),                      # bp biases
            pl.BlockSpec((3, c, 1), const(3)),                      # bp PReLU slopes
        ],
        out_specs=(pl.BlockSpec((1, c, N), lambda i: (i, 0, 0)),
                   pl.BlockSpec((1, 4 * c, N), lambda i: (i, 0, 0))),
        scratch_shapes=[pltpu.VMEM((NSLOT * c, N + 2 * M), jnp.float32),   # shift scratch
                        pltpu.VMEM((36 * c, N), jnp.float32)],             # stacked-K RHS
        compiler_params=pltpu.CompilerParams(
            dimension_semantics=("parallel",)),
    )(x_p, masks, w_up, b_up, w_dn, b_dn, w_sr, b_sr, a_sr, w_bp, b_bp, a_bp)

    # un-pack (layout glue only)
    ix = ix_p.reshape(G, c, B, L).transpose(0, 2, 1, 3).reshape(n, c, hh, ww)
    ox = (ox_ph.reshape(G, 2, 2, c, B, hh, ww)
               .transpose(0, 4, 3, 5, 1, 6, 2)
               .reshape(n, c, 2 * hh, 2 * ww))
    return ix, ox


# ----------------------------------------------------------------------------
# Pure-JAX reference (correctness check only)
# ----------------------------------------------------------------------------
def convT_equiv_weight(w_t):
    return jnp.transpose(jnp.flip(w_t, (2, 3)), (1, 0, 2, 3))


def _conv_ref(x, w, b, stride=1, padding=0, lhs_dil=1):
    dn = lax.conv_dimension_numbers(x.shape, w.shape, ('NCHW', 'OIHW', 'NCHW'))
    y = lax.conv_general_dilated(
        x, w, (stride, stride), [(padding, padding), (padding, padding)],
        lhs_dilation=(lhs_dil, lhs_dil), dimension_numbers=dn)
    return y + b[None, :, None, None]


def _prelu_ref(x, a):
    return jnp.where(x >= 0, x, a[None, :, None, None] * x)


def brm_reference(x, p):
    k, s, pad = 6, 2, 2
    up = _conv_ref(x, convT_equiv_weight(p['up_w']), p['up_b'],
                   stride=1, padding=k - 1 - pad, lhs_dil=s)
    h = up
    for i in range(3):
        h = _prelu_ref(_conv_ref(h, p[f'sr{i}_w'], p[f'sr{i}_b'], padding=1),
                       p[f'sr{i}_a'])
    ox = h
    down = _conv_ref(up, p['down_w'], p['down_b'], stride=s, padding=pad)
    sub = x - down
    h = sub
    for i in range(3):
        h = _prelu_ref(_conv_ref(h, p[f'bp{i}_w'], p[f'bp{i}_b'], padding=1),
                       p[f'bp{i}_a'])
    ix = h + sub
    return ix, ox


# ----------------------------------------------------------------------------
# Deterministic parameter init (synthetic, no checkpoint)
# ----------------------------------------------------------------------------
def init_params(key, c, k):
    keys = iter(jax.random.split(key, 16))
    p = {}
    p['up_w'] = 0.1 * jax.random.normal(next(keys), (c, c, k, k), jnp.float32)
    p['up_b'] = 0.1 * jax.random.normal(next(keys), (c,), jnp.float32)
    p['down_w'] = 0.1 * jax.random.normal(next(keys), (c, c, k, k), jnp.float32)
    p['down_b'] = 0.1 * jax.random.normal(next(keys), (c,), jnp.float32)
    for name in ('sr', 'bp'):
        for i in range(3):
            p[f'{name}{i}_w'] = 0.1 * jax.random.normal(
                next(keys), (c, c, 3, 3), jnp.float32)
            p[f'{name}{i}_b'] = 0.1 * jax.random.normal(
                next(keys), (c,), jnp.float32)
            p[f'{name}{i}_a'] = 0.25 * jnp.ones((c,), jnp.float32)   # PReLU init
    return p


# ----------------------------------------------------------------------------
if __name__ == "__main__":
    key = jax.random.PRNGKey(0)
    k_par, k_x = jax.random.split(key)

    C = 4
    params = init_params(k_par, C, 6)
    x = jax.random.normal(k_x, (2, C, 16, 16), jnp.float32)

    ix, ox = jax.jit(brm_forward)(x, params)
    jax.block_until_ready((ix, ox))

    assert ix.shape == (2, C, 16, 16) and ox.shape == (2, C, 32, 32)

    ix_ref, ox_ref = brm_reference(x, params)
    # Tolerances leave headroom for MXU f32 pass decomposition across the chained convs;
    # any structural / indexing bug would produce O(0.1-1) errors and still fail.
    np.testing.assert_allclose(np.asarray(ix), np.asarray(ix_ref),
                               rtol=5e-3, atol=5e-3)
    np.testing.assert_allclose(np.asarray(ox), np.asarray(ox_ref),
                               rtol=5e-3, atol=5e-3)

    print("KERNEL_OK")
</pallas_src>

<mosaic_0001>
module attributes {stable_mosaic.version = 11 : i64} {
  func.func @_brm_kernel(%arg0: i32, %arg1: memref<1x4x256xf32, #tpu.memory_space<vmem>>, %arg2: memref<9x4x256xf32, #tpu.memory_space<vmem>>, %arg3: memref<16x40xf32, #tpu.memory_space<vmem>>, %arg4: memref<16x1xf32, #tpu.memory_space<vmem>>, %arg5: memref<4x144xf32, #tpu.memory_space<vmem>>, %arg6: memref<4x1xf32, #tpu.memory_space<vmem>>, %arg7: memref<3x16x144xf32, #tpu.memory_space<vmem>>, %arg8: memref<3x16x1xf32, #tpu.memory_space<vmem>>, %arg9: memref<3x16x1xf32, #tpu.memory_space<vmem>>, %arg10: memref<3x4x40xf32, #tpu.memory_space<vmem>>, %arg11: memref<3x4x1xf32, #tpu.memory_space<vmem>>, %arg12: memref<3x4x1xf32, #tpu.memory_space<vmem>>, %arg13: memref<1x4x256xf32, #tpu.memory_space<vmem>>, %arg14: memref<1x16x256xf32, #tpu.memory_space<vmem>>, %arg15: memref<20x512xf32, #tpu.memory_space<vmem>>, %arg16: memref<144x256xf32, #tpu.memory_space<vmem>>) attributes {dimension_semantics = [#tpu.dimension_semantics<parallel>], iteration_bounds = array<i64: 2>, scalar_prefetch = 0 : i64, scratch_operands = 2 : i64, tpu.core_type = #tpu.core_type<tc>, window_params = [{transform_indices = @transform_0, window_bounds = array<i64: 1, 4, 256>}, {pipeline_mode = #tpu.pipeline_mode<synchronous>, transform_indices = @transform_1, window_bounds = array<i64: 9, 4, 256>}, {pipeline_mode = #tpu.pipeline_mode<synchronous>, transform_indices = @transform_2, window_bounds = array<i64: 16, 40>}, {pipeline_mode = #tpu.pipeline_mode<synchronous>, transform_indices = @transform_3, window_bounds = array<i64: 16, 1>}, {pipeline_mode = #tpu.pipeline_mode<synchronous>, transform_indices = @transform_4, window_bounds = array<i64: 4, 144>}, {pipeline_mode = #tpu.pipeline_mode<synchronous>, transform_indices = @transform_5, window_bounds = array<i64: 4, 1>}, {pipeline_mode = #tpu.pipeline_mode<synchronous>, transform_indices = @transform_6, window_bounds = array<i64: 3, 16, 144>}, {pipeline_mode = #tpu.pipeline_mode<synchronous>, transform_indices = @transform_7, window_bounds = array<i64: 3, 16, 1>}, {pipeline_mode = #tpu.pipeline_mode<synchronous>, transform_indices = @transform_8, window_bounds = array<i64: 3, 16, 1>}, {pipeline_mode = #tpu.pipeline_mode<synchronous>, transform_indices = @transform_9, window_bounds = array<i64: 3, 4, 40>}, {pipeline_mode = #tpu.pipeline_mode<synchronous>, transform_indices = @transform_10, window_bounds = array<i64: 3, 4, 1>}, {pipeline_mode = #tpu.pipeline_mode<synchronous>, transform_indices = @transform_11, window_bounds = array<i64: 3, 4, 1>}, {transform_indices = @transform_12, window_bounds = array<i64: 1, 4, 256>}, {transform_indices = @transform_13, window_bounds = array<i64: 1, 16, 256>}]} {
    %cst = arith.constant 0.000000e+00 : f32
    %0 = vector.broadcast %cst : f32 to vector<20x128xf32>
    %c0 = arith.constant 0 : index
    %c0_0 = arith.constant 0 : index
    %1 = vector.load %arg15[%c0, %c0_0] : memref<20x512xf32, #tpu.memory_space<vmem>>, vector<20x128xf32>
    tpu.vector_store %arg15[%c0, %c0_0], %0 {strides = array<i32>} : memref<20x512xf32, #tpu.memory_space<vmem>>, vector<20x128xf32>,
    %c0_1 = arith.constant 0 : index
    %c384 = arith.constant 384 : index
    %2 = vector.load %arg15[%c0_1, %c384] : memref<20x512xf32, #tpu.memory_space<vmem>>, vector<20x128xf32>
    tpu.vector_store %arg15[%c0_1, %c384], %0 {strides = array<i32>} : memref<20x512xf32, #tpu.memory_space<vmem>>, vector<20x128xf32>,
    %c0_2 = arith.constant 0 : index
    %c0_3 = arith.constant 0 : index
    %c0_4 = arith.constant 0 : index
    %3 = vector.load %arg1[%c0_2, %c0_3, %c0_4] : memref<1x4x256xf32, #tpu.memory_space<vmem>>, vector<1x4x256xf32>
    %4 = vector.shape_cast %3 : vector<1x4x256xf32> to vector<4x256xf32>
    %c16 = arith.constant 16 : index
    %c128 = arith.constant 128 : index
    %5 = vector.load %arg15[%c16, %c128] : memref<20x512xf32, #tpu.memory_space<vmem>>, vector<4x256xf32>
    tpu.vector_store %arg15[%c16, %c128], %4 {strides = array<i32>} : memref<20x512xf32, #tpu.memory_space<vmem>>, vector<4x256xf32>,
    %c16_5 = arith.constant 16 : index
    %c111 = arith.constant 111 : index
    %6 = vector.load %arg15[%c16_5, %c111] : memref<20x512xf32, #tpu.memory_space<vmem>>, vector<4x256xf32>
    %c0_6 = arith.constant 0 : index
    %c0_7 = arith.constant 0 : index
    %c0_8 = arith.constant 0 : index
    %7 = vector.load %arg2[%c0_6, %c0_7, %c0_8] : memref<9x4x256xf32, #tpu.memory_space<vmem>>, vector<1x4x256xf32>
    %8 = vector.shape_cast %7 : vector<1x4x256xf32> to vector<4x256xf32>
    %9 = arith.mulf %6, %8 : vector<4x256xf32>
    %c0_9 = arith.constant 0 : index
    %c0_10 = arith.constant 0 : index
    %10 = vector.load %arg16[%c0_9, %c0_10] : memref<144x256xf32, #tpu.memory_space<vmem>>, vector<4x256xf32>
    tpu.vector_store %arg16[%c0_9, %c0_10], %9 {strides = array<i32>} : memref<144x256xf32, #tpu.memory_space<vmem>>, vector<4x256xf32>,
    %c16_11 = arith.constant 16 : index
    %c112 = arith.constant 112 : index
    %11 = vector.load %arg15[%c16_11, %c112] : memref<20x512xf32, #tpu.memory_space<vmem>>, vector<4x256xf32>
    %c1 = arith.constant 1 : index
    %c0_12 = arith.constant 0 : index
    %c0_13 = arith.constant 0 : index
    %12 = vector.load %arg2[%c1, %c0_12, %c0_13] : memref<9x4x256xf32, #tpu.memory_space<vmem>>, vector<1x4x256xf32>
    %13 = vector.shape_cast %12 : vector<1x4x256xf32> to vector<4x256xf32>
    %14 = arith.mulf %11, %13 : vector<4x256xf32>
    %c4 = arith.constant 4 : index
    %c0_14 = arith.constant 0 : index
    %15 = vector.load %arg16[%c4, %c0_14] : memref<144x256xf32, #tpu.memory_space<vmem>>, vector<4x256xf32>
    tpu.vector_store %arg16[%c4, %c0_14], %14 {strides = array<i32>} : memref<144x256xf32, #tpu.memory_space<vmem>>, vector<4x256xf32>,
    %c16_15 = arith.constant 16 : index
    %c113 = arith.constant 113 : index
    %16 = vector.load %arg15[%c16_15, %c113] : memref<20x512xf32, #tpu.memory_space<vmem>>, vector<4x256xf32>
    %c2 = arith.constant 2 : index
    %c0_16 = arith.constant 0 : index
    %c0_17 = arith.constant 0 : index
    %17 = vector.load %arg2[%c2, %c0_16, %c0_17] : memref<9x4x256xf32, #tpu.memory_space<vmem>>, vector<1x4x256xf32>
    %18 = vector.shape_cast %17 : vector<1x4x256xf32> to vector<4x256xf32>
    %19 = arith.mulf %16, %18 : vector<4x256xf32>
    %c8 = arith.constant 8 : index
    %c0_18 = arith.constant 0 : index
    %20 = vector.load %arg16[%c8, %c0_18] : memref<144x256xf32, #tpu.memory_space<vmem>>, vector<4x256xf32>
    tpu.vector_store %arg16[%c8, %c0_18], %19 {strides = array<i32>} : memref<144x256xf32, #tpu.memory_space<vmem>>, vector<4x256xf32>,
    %c16_19 = arith.constant 16 : index
    %c127 = arith.constant 127 : index
    %21 = vector.load %arg15[%c16_19, %c127] : memref<20x512xf32, #tpu.memory_space<vmem>>, vector<4x256xf32>
    %c3 = arith.constant 3 : index
    %c0_20 = arith.constant 0 : index
    %c0_21 = arith.constant 0 : index
    %22 = vector.load %arg2[%c3, %c0_20, %c0_21] : memref<9x4x256xf32, #tpu.memory_space<vmem>>, vector<1x4x256xf32>
    %23 = vector.shape_cast %22 : vector<1x4x256xf32> to vector<4x256xf32>
    %24 = arith.mulf %21, %23 : vector<4x256xf32>
    %c12 = arith.constant 12 : index
    %c0_22 = arith.constant 0 : index
    %25 = vector.load %arg16[%c12, %c0_22] : memref<144x256xf32, #tpu.memory_space<vmem>>, vector<4x256xf32>
    tpu.vector_store %arg16[%c12, %c0_22], %24 {strides = array<i32>} : memref<144x256xf32, #tpu.memory_space<vmem>>, vector<4x256xf32>,
    %c16_23 = arith.constant 16 : index
    %c128_24 = arith.constant 128 : index
    %26 = vector.load %arg15[%c16_23, %c128_24] : memref<20x512xf32, #tpu.memory_space<vmem>>, vector<4x256xf32>
    %c16_25 = arith.constant 16 : index
    %c0_26 = arith.constant 0 : index
    %27 = vector.load %arg16[%c16_25, %c0_26] : memref<144x256xf32, #tpu.memory_space<vmem>>, vector<4x256xf32>
    tpu.vector_store %arg16[%c16_25, %c0_26], %26 {strides = array<i32>} : memref<144x256xf32, #tpu.memory_space<vmem>>, vector<4x256xf32>,
    %c16_27 = arith.constant 16 : index
    %c129 = arith.constant 129 : index
    %28 = vector.load %arg15[%c16_27, %c129] : memref<20x512xf32, #tpu.memory_space<vmem>>, vector<4x256xf32>
    %c5 = arith.constant 5 : index
    %c0_28 = arith.constant 0 : index
    %c0_29 = arith.constant 0 : index
    %29 = vector.load %arg2[%c5, %c0_28, %c0_29] : memref<9x4x256xf32, #tpu.memory_space<vmem>>, vector<1x4x256xf32>
    %30 = vector.shape_cast %29 : vector<1x4x256xf32> to vector<4x256xf32>
    %31 = arith.mulf %28, %30 : vector<4x256xf32>
    %c20 = arith.constant 20 : index
    %c0_30 = arith.constant 0 : index
    %32 = vector.load %arg16[%c20, %c0_30] : memref<144x256xf32, #tpu.memory_space<vmem>>, vector<4x256xf32>
    tpu.vector_store %arg16[%c20, %c0_30], %31 {strides = array<i32>} : memref<144x256xf32, #tpu.memory_space<vmem>>, vector<4x256xf32>,
    %c16_31 = arith.constant 16 : index
    %c143 = arith.constant 143 : index
    %33 = vector.load %arg15[%c16_31, %c143] : memref<20x512xf32, #tpu.memory_space<vmem>>, vector<4x256xf32>
    %c6 = arith.constant 6 : index
    %c0_32 = arith.constant 0 : index
    %c0_33 = arith.constant 0 : index
    %34 = vector.load %arg2[%c6, %c0_32, %c0_33] : memref<9x4x256xf32, #tpu.memory_space<vmem>>, vector<1x4x256xf32>
    %35 = vector.shape_cast %34 : vector<1x4x256xf32> to vector<4x256xf32>
    %36 = arith.mulf %33, %35 : vector<4x256xf32>
    %c24 = arith.constant 24 : index
    %c0_34 = arith.constant 0 : index
    %37 = vector.load %arg16[%c24, %c0_34] : memref<144x256xf32, #tpu.memory_space<vmem>>, vector<4x256xf32>
    tpu.vector_store %arg16[%c24, %c0_34], %36 {strides = array<i32>} : memref<144x256xf32, #tpu.memory_space<vmem>>, vector<4x256xf32>,
    %c16_35 = arith.constant 16 : index
    %c144 = arith.constant 144 : index
    %38 = vector.load %arg15[%c16_35, %c144] : memref<20x512xf32, #tpu.memory_space<vmem>>, vector<4x256xf32>
    %c7 = arith.constant 7 : index
    %c0_36 = arith.constant 0 : index
    %c0_37 = arith.constant 0 : index
    %39 = vector.load %arg2[%c7, %c0_36, %c0_37] : memref<9x4x256xf32, #tpu.memory_space<vmem>>, vector<1x4x256xf32>
    %40 = vector.shape_cast %39 : vector<1x4x256xf32> to vector<4x256xf32>
    %41 = arith.mulf %38, %40 : vector<4x256xf32>
    %c28 = arith.constant 28 : index
    %c0_38 = arith.constant 0 : index
    %42 = vector.load %arg16[%c28, %c0_38] : memref<144x256xf32, #tpu.memory_space<vmem>>, vector<4x256xf32>
    tpu.vector_store %arg16[%c28, %c0_38], %41 {strides = array<i32>} : memref<144x256xf32, #tpu.memory_space<vmem>>, vector<4x256xf32>,
    %c16_39 = arith.constant 16 : index
    %c145 = arith.constant 145 : index
    %43 = vector.load %arg15[%c16_39, %c145] : memref<20x512xf32, #tpu.memory_space<vmem>>, vector<4x256xf32>
    %c8_40 = arith.constant 8 : index
    %c0_41 = arith.constant 0 : index
    %c0_42 = arith.constant 0 : index
    %44 = vector.load %arg2[%c8_40, %c0_41, %c0_42] : memref<9x4x256xf32, #tpu.memory_space<vmem>>, vector<1x4x256xf32>
    %45 = vector.shape_cast %44 : vector<1x4x256xf32> to vector<4x256xf32>
    %46 = arith.mulf %43, %45 : vector<4x256xf32>
    %c32 = arith.constant 32 : index
    %c0_43 = arith.constant 0 : index
    %47 = vector.load %arg16[%c32, %c0_43] : memref<144x256xf32, #tpu.memory_space<vmem>>, vector<4x256xf32>
    tpu.vector_store %arg16[%c32, %c0_43], %46 {strides = array<i32>} : memref<144x256xf32, #tpu.memory_space<vmem>>, vector<4x256xf32>,
    %c16_44 = arith.constant 16 : index
    %c128_45 = arith.constant 128 : index
    %48 = vector.load %arg15[%c16_44, %c128_45] : memref<20x512xf32, #tpu.memory_space<vmem>>, vector<4x256xf32>
    %c36 = arith.constant 36 : index
    %c0_46 = arith.constant 0 : index
    %49 = vector.load %arg16[%c36, %c0_46] : memref<144x256xf32, #tpu.memory_space<vmem>>, vector<4x256xf32>
    tpu.vector_store %arg16[%c36, %c0_46], %48 {strides = array<i32>} : memref<144x256xf32, #tpu.memory_space<vmem>>, vector<4x256xf32>,
    %c0_47 = arith.constant 0 : index
    %c0_48 = arith.constant 0 : index
    %50 = vector.load %arg3[%c0_47, %c0_48] : memref<16x40xf32, #tpu.memory_space<vmem>>, vector<16x40xf32>
    %c0_49 = arith.constant 0 : index
    %c0_50 = arith.constant 0 : index
    %51 = vector.load %arg16[%c0_49, %c0_50] : memref<144x256xf32, #tpu.memory_space<vmem>>, vector<40x256xf32>
    %cst_51 = arith.constant dense<0.000000e+00> : vector<16x256xf32>
    %52 = tpu.matmul %50, %51, %cst_51 {dimension_numbers = #tpu.dot_dimension_numbers<[1], [0], [0], [1], [0, 0, 1, 1], [], []>} : vector<16x40xf32>, vector<40x256xf32>, vector<16x256xf32> -> vector<16x256xf32>
    %c0_52 = arith.constant 0 : index
    %c0_53 = arith.constant 0 : index
    %53 = vector.load %arg4[%c0_52, %c0_53] : memref<16x1xf32, #tpu.memory_space<vmem>>, vector<16x1xf32>
    %54 = vector.broadcast %53 : vector<16x1xf32> to vector<16x256xf32>
    %55 = arith.addf %52, %54 : vector<16x256xf32>
    %56 = vector.extract_strided_slice %55 {offsets = [0, 0], sizes = [4, 256], strides = [1, 1]} : vector<16x256xf32> to vector<4x256xf32>
    %c0_54 = arith.constant 0 : index
    %c128_55 = arith.constant 128 : index
    %57 = vector.load %arg15[%c0_54, %c128_55] : memref<20x512xf32, #tpu.memory_space<vmem>>, vector<4x256xf32>
    tpu.vector_store %arg15[%c0_54, %c128_55], %56 {strides = array<i32>} : memref<20x512xf32, #tpu.memory_space<vmem>>, vector<4x256xf32>,
    %58 = vector.extract_strided_slice %55 {offsets = [4, 0], sizes = [4, 256], strides = [1, 1]} : vector<16x256xf32> to vector<4x256xf32>
    %c4_56 = arith.constant 4 : index
    %c128_57 = arith.constant 128 : index
    %59 = vector.load %arg15[%c4_56, %c128_57] : memref<20x512xf32, #tpu.memory_space<vmem>>, vector<4x256xf32>
    tpu.vector_store %arg15[%c4_56, %c128_57], %58 {strides = array<i32>} : memref<20x512xf32, #tpu.memory_space<vmem>>, vector<4x256xf32>,
    %60 = vector.extract_strided_slice %55 {offsets = [8, 0], sizes = [4, 256], strides = [1, 1]} : vector<16x256xf32> to vector<4x256xf32>
    %c8_58 = arith.constant 8 : index
    %c128_59 = arith.constant 128 : index
    %61 = vector.load %arg15[%c8_58, %c128_59] : memref<20x512xf32, #tpu.memory_space<vmem>>, vector<4x256xf32>
    tpu.vector_store %arg15[%c8_58, %c128_59], %60 {strides = array<i32>} : memref<20x512xf32, #tpu.memory_space<vmem>>, vector<4x256xf32>,
    %62 = vector.extract_strided_slice %55 {offsets = [12, 0], sizes = [4, 256], strides = [1, 1]} : vector<16x256xf32> to vector<4x256xf32>
    %c12_60 = arith.constant 12 : index
    %c128_61 = arith.constant 128 : index
    %63 = vector.load %arg15[%c12_60, %c128_61] : memref<20x512xf32, #tpu.memory_space<vmem>>, vector<4x256xf32>
    tpu.vector_store %arg15[%c12_60, %c128_61], %62 {strides = array<i32>} : memref<20x512xf32, #tpu.memory_space<vmem>>, vector<4x256xf32>,
    %c0_62 = arith.constant 0 : index
    %c111_63 = arith.constant 111 : index
    %64 = vector.load %arg15[%c0_62, %c111_63] : memref<20x512xf32, #tpu.memory_space<vmem>>, vector<4x256xf32>
    %c0_64 = arith.constant 0 : index
    %c0_65 = arith.constant 0 : index
    %c0_66 = arith.constant 0 : index
    %65 = vector.load %arg2[%c0_64, %c0_65, %c0_66] : memref<9x4x256xf32, #tpu.memory_space<vmem>>, vector<1x4x256xf32>
    %66 = vector.shape_cast %65 : vector<1x4x256xf32> to vector<4x256xf32>
    %67 = arith.mulf %64, %66 : vector<4x256xf32>
    %c0_67 = arith.constant 0 : index
    %c0_68 = arith.constant 0 : index
    %68 = vector.load %arg16[%c0_67, %c0_68] : memref<144x256xf32, #tpu.memory_space<vmem>>, vector<4x256xf32>
    tpu.vector_store %arg16[%c0_67, %c0_68], %67 {strides = array<i32>} : memref<144x256xf32, #tpu.memory_space<vmem>>, vector<4x256xf32>,
    %c0_69 = arith.constant 0 : index
    %c112_70 = arith.constant 112 : index
    %69 = vector.load %arg15[%c0_69, %c112_70] : memref<20x512xf32, #tpu.memory_space<vmem>>, vector<4x256xf32>
    %c1_71 = arith.constant 1 : index
    %c0_72 = arith.constant 0 : index
    %c0_73 = arith.constant 0 : index
    %70 = vector.load %arg2[%c1_71, %c0_72, %c0_73] : memref<9x4x256xf32, #tpu.memory_space<vmem>>, vector<1x4x256xf32>
    %71 = vector.shape_cast %70 : vector<1x4x256xf32> to vector<4x256xf32>
    %72 = arith.mulf %69, %71 : vector<4x256xf32>
    %c4_74 = arith.constant 4 : index
    %c0_75 = arith.constant 0 : index
    %73 = vector.load %arg16[%c4_74, %c0_75] : memref<144x256xf32, #tpu.memory_space<vmem>>, vector<4x256xf32>
    tpu.vector_store %arg16[%c4_74, %c0_75], %72 {strides = array<i32>} : memref<144x256xf32, #tpu.memory_space<vmem>>, vector<4x256xf32>,
    %c0_76 = arith.constant 0 : index
    %c113_77 = arith.constant 113 : index
    %74 = vector.load %arg15[%c0_76, %c113_77] : memref<20x512xf32, #tpu.memory_space<vmem>>, vector<4x256xf32>
    %c2_78 = arith.constant 2 : index
    %c0_79 = arith.constant 0 : index
    %c0_80 = arith.constant 0 : index
    %75 = vector.load %arg2[%c2_78, %c0_79, %c0_80] : memref<9x4x256xf32, #tpu.memory_space<vmem>>, vector<1x4x256xf32>
    %76 = vector.shape_cast %75 : vector<1x4x256xf32> to vector<4x256xf32>
    %77 = arith.mulf %74, %76 : vector<4x256xf32>
    %c8_81 = arith.constant 8 : index
    %c0_82 = arith.constant 0 : index
    %78 = vector.load %arg16[%c8_81, %c0_82] : memref<144x256xf32, #tpu.memory_space<vmem>>, vector<4x256xf32>
    tpu.vector_store %arg16[%c8_81, %c0_82], %77 {strides = array<i32>} : memref<144x256xf32, #tpu.memory_space<vmem>>, vector<4x256xf32>,
    %c0_83 = arith.constant 0 : index
    %c127_84 = arith.constant 127 : index
    %79 = vector.load %arg15[%c0_83, %c127_84] : memref<20x512xf32, #tpu.memory_space<vmem>>, vector<4x256xf32>
    %c3_85 = arith.constant 3 : index
    %c0_86 = arith.constant 0 : index
    %c0_87 = arith.constant 0 : index
    %80 = vector.load %arg2[%c3_85, %c0_86, %c0_87] : memref<9x4x256xf32, #tpu.memory_space<vmem>>, vector<1x4x256xf32>
    %81 = vector.shape_cast %80 : vector<1x4x256xf32> to vector<4x256xf32>
    %82 = arith.mulf %79, %81 : vector<4x256xf32>
    %c12_88 = arith.constant 12 : index
    %c0_89 = arith.constant 0 : index
    %83 = vector.load %arg16[%c12_88, %c0_89] : memref<144x256xf32, #tpu.memory_space<vmem>>, vector<4x256xf32>
    tpu.vector_store %arg16[%c12_88, %c0_89], %82 {strides = array<i32>} : memref<144x256xf32, #tpu.memory_space<vmem>>, vector<4x256xf32>,
    %c0_90 = arith.constant 0 : index
    %c128_91 = arith.constant 128 : index
    %84 = vector.load %arg15[%c0_90, %c128_91] : memref<20x512xf32, #tpu.memory_space<vmem>>, vector<4x256xf32>
    %c16_92 = arith.constant 16 : index
    %c0_93 = arith.constant 0 : index
    %85 = vector.load %arg16[%c16_92, %c0_93] : memref<144x256xf32, #tpu.memory_space<vmem>>, vector<4x256xf32>
    tpu.vector_store %arg16[%c16_92, %c0_93], %84 {strides = array<i32>} : memref<144x256xf32, #tpu.memory_space<vmem>>, vector<4x256xf32>,
    %c0_94 = arith.constant 0 : index
    %c129_95 = arith.constant 129 : index
    %86 = vector.load %arg15[%c0_94, %c129_95] : memref<20x512xf32, #tpu.memory_space<vmem>>, vector<4x256xf32>
    %c5_96 = arith.constant 5 : index
    %c0_97 = arith.constant 0 : index
    %c0_98 = arith.constant 0 : index
    %87 = vector.load %arg2[%c5_96, %c0_97, %c0_98] : memref<9x4x256xf32, #tpu.memory_space<vmem>>, vector<1x4x256xf32>
    %88 = vector.shape_cast %87 : vector<1x4x256xf32> to vector<4x256xf32>
    %89 = arith.mulf %86, %88 : vector<4x256xf32>
    %c20_99 = arith.constant 20 : index
    %c0_100 = arith.constant 0 : index
    %90 = vector.load %arg16[%c20_99, %c0_100] : memref<144x256xf32, #tpu.memory_space<vmem>>, vector<4x256xf32>
    tpu.vector_store %arg16[%c20_99, %c0_100], %89 {strides = array<i32>} : memref<144x256xf32, #tpu.memory_space<vmem>>, vector<4x256xf32>,
    %c0_101 = arith.constant 0 : index
    %c143_102 = arith.constant 143 : index
    %91 = vector.load %arg15[%c0_101, %c143_102] : memref<20x512xf32, #tpu.memory_space<vmem>>, vector<4x256xf32>
    %c6_103 = arith.constant 6 : index
    %c0_104 = arith.constant 0 : index
    %c0_105 = arith.constant 0 : index
    %92 = vector.load %arg2[%c6_103, %c0_104, %c0_105] : memref<9x4x256xf32, #tpu.memory_space<vmem>>, vector<1x4x256xf32>
    %93 = vector.shape_cast %92 : vector<1x4x256xf32> to vector<4x256xf32>
    %94 = arith.mulf %91, %93 : vector<4x256xf32>
    %c24_106 = arith.constant 24 : index
    %c0_107 = arith.constant 0 : index
    %95 = vector.load %arg16[%c24_106, %c0_107] : memref<144x256xf32, #tpu.memory_space<vmem>>, vector<4x256xf32>
    tpu.vector_store %arg16[%c24_106, %c0_107], %94 {strides = array<i32>} : memref<144x256xf32, #tpu.memory_space<vmem>>, vector<4x256xf32>,
    %c0_108 = arith.constant 0 : index
    %c144_109 = arith.constant 144 : index
    %96 = vector.load %arg15[%c0_108, %c144_109] : memref<20x512xf32, #tpu.memory_space<vmem>>, vector<4x256xf32>
    %c7_110 = arith.constant 7 : index
    %c0_111 = arith.constant 0 : index
    %c0_112 = arith.constant 0 : index
    %97 = vector.load %arg2[%c7_110, %c0_111, %c0_112] : memref<9x4x256xf32, #tpu.memory_space<vmem>>, vector<1x4x256xf32>
    %98 = vector.shape_cast %97 : vector<1x4x256xf32> to vector<4x256xf32>
    %99 = arith.mulf %96, %98 : vector<4x256xf32>
    %c28_113 = arith.constant 28 : index
    %c0_114 = arith.constant 0 : index
    %100 = vector.load %arg16[%c28_113, %c0_114] : memref<144x256xf32, #tpu.memory_space<vmem>>, vector<4x256xf32>
    tpu.vector_store %arg16[%c28_113, %c0_114], %99 {strides = array<i32>} : memref<144x256xf32, #tpu.memory_space<vmem>>, vector<4x256xf32>,
    %c0_115 = arith.constant 0 : index
    %c145_116 = arith.constant 145 : index
    %101 = vector.load %arg15[%c0_115, %c145_116] : memref<20x512xf32, #tpu.memory_space<vmem>>, vector<4x256xf32>
    %c8_117 = arith.constant 8 : index
    %c0_118 = arith.constant 0 : index
    %c0_119 = arith.constant 0 : index
    %102 = vector.load %arg2[%c8_117, %c0_118, %c0_119] : memref<9x4x256xf32, #tpu.memory_space<vmem>>, vector<1x4x256xf32>
    %103 = vector.shape_cast %102 : vector<1x4x256xf32> to vector<4x256xf32>
    %104 = arith.mulf %101, %103 : vector<4x256xf32>
    %c32_120 = arith.constant 32 : index
    %c0_121 = arith.constant 0 : index
    %105 = vector.load %arg16[%c32_120, %c0_121] : memref<144x256xf32, #tpu.memory_space<vmem>>, vector<4x256xf32>
    tpu.vector_store %arg16[%c32_120, %c0_121], %104 {strides = array<i32>} : memref<144x256xf32, #tpu.memory_space<vmem>>, vector<4x256xf32>,
    %c4_122 = arith.constant 4 : index
    %c111_123 = arith.constant 111 : index
    %106 = vector.load %arg15[%c4_122, %c111_123] : memref<20x512xf32, #tpu.memory_space<vmem>>, vector<4x256xf32>
    %c0_124 = arith.constant 0 : index
    %c0_125 = arith.constant 0 : index
    %c0_126 = arith.constant 0 : index
    %107 = vector.load %arg2[%c0_124, %c0_125, %c0_126] : memref<9x4x256xf32, #tpu.memory_space<vmem>>, vector<1x4x256xf32>
    %108 = vector.shape_cast %107 : vector<1x4x256xf32> to vector<4x256xf32>
    %109 = arith.mulf %106, %108 : vector<4x256xf32>
    %c36_127 = arith.constant 36 : index
    %c0_128 = arith.constant 0 : index
    %110 = vector.load %arg16[%c36_127, %c0_128] : memref<144x256xf32, #tpu.memory_space<vmem>>, vector<4x256xf32>
    tpu.vector_store %arg16[%c36_127, %c0_128], %109 {strides = array<i32>} : memref<144x256xf32, #tpu.memory_space<vmem>>, vector<4x256xf32>,
    %c4_129 = arith.constant 4 : index
    %c112_130 = arith.constant 112 : index
    %111 = vector.load %arg15[%c4_129, %c112_130] : memref<20x512xf32, #tpu.memory_space<vmem>>, vector<4x256xf32>
    %c1_131 = arith.constant 1 : index
    %c0_132 = arith.constant 0 : index
    %c0_133 = arith.constant 0 : index
    %112 = vector.load %arg2[%c1_131, %c0_132, %c0_133] : memref<9x4x256xf32, #tpu.memory_space<vmem>>, vector<1x4x256xf32>
    %113 = vector.shape_cast %112 : vector<1x4x256xf32> to vector<4x256xf32>
    %114 = arith.mulf %111, %113 : vector<4x256xf32>
    %c40 = arith.constant 40 : index
    %c0_134 = arith.constant 0 : index
    %115 = vector.load %arg16[%c40, %c0_134] : memref<144x256xf32, #tpu.memory_space<vmem>>, vector<4x256xf32>
    tpu.vector_store %arg16[%c40, %c0_134], %114 {strides = array<i32>} : memref<144x256xf32, #tpu.memory_space<vmem>>, vector<4x256xf32>,
    %c4_135 = arith.constant 4 : index
    %c113_136 = arith.constant 113 : index
    %116 = vector.load %arg15[%c4_135, %c113_136] : memref<20x512xf32, #tpu.memory_space<vmem>>, vector<4x256xf32>
    %c2_137 = arith.constant 2 : index
    %c0_138 = arith.constant 0 : index
    %c0_139 = arith.constant 0 : index
    %117 = vector.load %arg2[%c2_137, %c0_138, %c0_139] : memref<9x4x256xf32, #tpu.memory_space<vmem>>, vector<1x4x256xf32>
    %118 = vector.shape_cast %117 : vector<1x4x256xf32> to vector<4x256xf32>
    %119 = arith.mulf %116, %118 : vector<4x256xf32>
    %c44 = arith.constant 44 : index
    %c0_140 = arith.constant 0 : index
    %120 = vector.load %arg16[%c44, %c0_140] : memref<144x256xf32, #tpu.memory_space<vmem>>, vector<4x256xf32>
    tpu.vector_store %arg16[%c44, %c0_140], %119 {strides = array<i32>} : memref<144x256xf32, #tpu.memory_space<vmem>>, vector<4x256xf32>,
    %c4_141 = arith.constant 4 : index
    %c127_142 = arith.constant 127 : index
    %121 = vector.load %arg15[%c4_141, %c127_142] : memref<20x512xf32, #tpu.memory_space<vmem>>, vector<4x256xf32>
    %c3_143 = arith.constant 3 : index
    %c0_144 = arith.constant 0 : index
    %c0_145 = arith.constant 0 : index
    %122 = vector.load %arg2[%c3_143, %c0_144, %c0_145] : memref<9x4x256xf32, #tpu.memory_space<vmem>>, vector<1x4x256xf32>
    %123 = vector.shape_cast %122 : vector<1x4x256xf32> to vector<4x256xf32>
    %124 = arith.mulf %121, %123 : vector<4x256xf32>
    %c48 = arith.constant 48 : index
    %c0_146 = arith.constant 0 : index
    %125 = vector.load %arg16[%c48, %c0_146] : memref<144x256xf32, #tpu.memory_space<vmem>>, vector<4x256xf32>
    tpu.vector_store %arg16[%c48, %c0_146], %124 {strides = array<i32>} : memref<144x256xf32, #tpu.memory_space<vmem>>, vector<4x256xf32>,
    %c4_147 = arith.constant 4 : index
    %c128_148 = arith.constant 128 : index
    %126 = vector.load %arg15[%c4_147, %c128_148] : memref<20x512xf32, #tpu.memory_space<vmem>>, vector<4x256xf32>
    %c52 = arith.constant 52 : index
    %c0_149 = arith.constant 0 : index
    %127 = vector.load %arg16[%c52, %c0_149] : memref<144x256xf32, #tpu.memory_space<vmem>>, vector<4x256xf32>
    tpu.vector_store %arg16[%c52, %c0_149], %126 {strides = array<i32>} : memref<144x256xf32, #tpu.memory_space<vmem>>, vector<4x256xf32>,
    %c4_150 = arith.constant 4 : index
    %c129_151 = arith.constant 129 : index
    %128 = vector.load %arg15[%c4_150, %c129_151] : memref<20x512xf32, #tpu.memory_space<vmem>>, vector<4x256xf32>
    %c5_152 = arith.constant 5 : index
    %c0_153 = arith.constant 0 : index
    %c0_154 = arith.constant 0 : index
    %129 = vector.load %arg2[%c5_152, %c0_153, %c0_154] : memref<9x4x256xf32, #tpu.memory_space<vmem>>, vector<1x4x256xf32>
    %130 = vector.shape_cast %129 : vector<1x4x256xf32> to vector<4x256xf32>
    %131 = arith.mulf %128, %130 : vector<4x256xf32>
    %c56 = arith.constant 56 : index
    %c0_155 = arith.constant 0 : index
    %132 = vector.load %arg16[%c56, %c0_155] : memref<144x256xf32, #tpu.memory_space<vmem>>, vector<4x256xf32>
    tpu.vector_store %arg16[%c56, %c0_155], %131 {strides = array<i32>} : memref<144x256xf32, #tpu.memory_space<vmem>>, vector<4x256xf32>,
    %c4_156 = arith.constant 4 : index
    %c143_157 = arith.constant 143 : index
    %133 = vector.load %arg15[%c4_156, %c143_157] : memref<20x512xf32, #tpu.memory_space<vmem>>, vector<4x256xf32>
    %c6_158 = arith.constant 6 : index
    %c0_159 = arith.constant 0 : index
    %c0_160 = arith.constant 0 : index
    %134 = vector.load %arg2[%c6_158, %c0_159, %c0_160] : memref<9x4x256xf32, #tpu.memory_space<vmem>>, vector<1x4x256xf32>
    %135 = vector.shape_cast %134 : vector<1x4x256xf32> to vector<4x256xf32>
    %136 = arith.mulf %133, %135 : vector<4x256xf32>
    %c60 = arith.constant 60 : index
    %c0_161 = arith.constant 0 : index
    %137 = vector.load %arg16[%c60, %c0_161] : memref<144x256xf32, #tpu.memory_space<vmem>>, vector<4x256xf32>
    tpu.vector_store %arg16[%c60, %c0_161], %136 {strides = array<i32>} : memref<144x256xf32, #tpu.memory_space<vmem>>, vector<4x256xf32>,
    %c4_162 = arith.constant 4 : index
    %c144_163 = arith.constant 144 : index
    %138 = vector.load %arg15[%c4_162, %c144_163] : memref<20x512xf32, #tpu.memory_space<vmem>>, vector<4x256xf32>
    %c7_164 = arith.constant 7 : index
    %c0_165 = arith.constant 0 : index
    %c0_166 = arith.constant 0 : index
    %139 = vector.load %arg2[%c7_164, %c0_165, %c0_166] : memref<9x4x256xf32, #tpu.memory_space<vmem>>, vector<1x4x256xf32>
    %140 = vector.shape_cast %139 : vector<1x4x256xf32> to vector<4x256xf32>
    %141 = arith.mulf %138, %140 : vector<4x256xf32>
    %c64 = arith.constant 64 : index
    %c0_167 = arith.constant 0 : index
    %142 = vector.load %arg16[%c64, %c0_167] : memref<144x256xf32, #tpu.memory_space<vmem>>, vector<4x256xf32>
    tpu.vector_store %arg16[%c64, %c0_167], %141 {strides = array<i32>} : memref<144x256xf32, #tpu.memory_space<vmem>>, vector<4x256xf32>,
    %c4_168 = arith.constant 4 : index
    %c145_169 = arith.constant 145 : index
    %143 = vector.load %arg15[%c4_168, %c145_169] : memref<20x512xf32, #tpu.memory_space<vmem>>, vector<4x256xf32>
    %c8_170 = arith.constant 8 : index
    %c0_171 = arith.constant 0 : index
    %c0_172 = arith.constant 0 : index
    %144 = vector.load %arg2[%c8_170, %c0_171, %c0_172] : memref<9x4x256xf32, #tpu.memory_space<vmem>>, vector<1x4x256xf32>
    %145 = vector.shape_cast %144 : vector<1x4x256xf32> to vector<4x256xf32>
    %146 = arith.mulf %143, %145 : vector<4x256xf32>
    %c68 = arith.constant 68 : index
    %c0_173 = arith.constant 0 : index
    %147 = vector.load %arg16[%c68, %c0_173] : memref<144x256xf32, #tpu.memory_space<vmem>>, vector<4x256xf32>
    tpu.vector_store %arg16[%c68, %c0_173], %146 {strides = array<i32>} : memref<144x256xf32, #tpu.memory_space<vmem>>, vector<4x256xf32>,
    %c8_174 = arith.constant 8 : index
    %c111_175 = arith.constant 111 : index
    %148 = vector.load %arg15[%c8_174, %c111_175] : memref<20x512xf32, #tpu.memory_space<vmem>>, vector<4x256xf32>
    %c0_176 = arith.constant 0 : index
    %c0_177 = arith.constant 0 : index
    %c0_178 = arith.constant 0 : index
    %149 = vector.load %arg2[%c0_176, %c0_177, %c0_178] : memref<9x4x256xf32, #tpu.memory_space<vmem>>, vector<1x4x256xf32>
    %150 = vector.shape_cast %149 : vector<1x4x256xf32> to vector<4x256xf32>
    %151 = arith.mulf %148, %150 : vector<4x256xf32>
    %c72 = arith.constant 72 : index
    %c0_179 = arith.constant 0 : index
    %152 = vector.load %arg16[%c72, %c0_179] : memref<144x256xf32, #tpu.memory_space<vmem>>, vector<4x256xf32>
    tpu.vector_store %arg16[%c72, %c0_179], %151 {strides = array<i32>} : memref<144x256xf32, #tpu.memory_space<vmem>>, vector<4x256xf32>,
    %c8_180 = arith.constant 8 : index
    %c112_181 = arith.constant 112 : index
    %153 = vector.load %arg15[%c8_180, %c112_181] : memref<20x512xf32, #tpu.memory_space<vmem>>, vector<4x256xf32>
    %c1_182 = arith.constant 1 : index
    %c0_183 = arith.constant 0 : index
    %c0_184 = arith.constant 0 : index
    %154 = vector.load %arg2[%c1_182, %c0_183, %c0_184] : memref<9x4x256xf32, #tpu.memory_space<vmem>>, vector<1x4x256xf32>
    %155 = vector.shape_cast %154 : vector<1x4x256xf32> to vector<4x256xf32>
    %156 = arith.mulf %153, %155 : vector<4x256xf32>
    %c76 = arith.constant 76 : index
    %c0_185 = arith.constant 0 : index
    %157 = vector.load %arg16[%c76, %c0_185] : memref<144x256xf32, #tpu.memory_space<vmem>>, vector<4x256xf32>
    tpu.vector_store %arg16[%c76, %c0_185], %156 {strides = array<i32>} : memref<144x256xf32, #tpu.memory_space<vmem>>, vector<4x256xf32>,
    %c8_186 = arith.constant 8 : index
    %c113_187 = arith.constant 113 : index
    %158 = vector.load %arg15[%c8_186, %c113_187] : memref<20x512xf32, #tpu.memory_space<vmem>>, vector<4x256xf32>
    %c2_188 = arith.constant 2 : index
    %c0_189 = arith.constant 0 : index
    %c0_190 = arith.constant 0 : index
    %159 = vector.load %arg2[%c2_188, %c0_189, %c0_190] : memref<9x4x256xf32, #tpu.memory_space<vmem>>, vector<1x4x256xf32>
    %160 = vector.shape_cast %159 : vector<1x4x256xf32> to vector<4x256xf32>
    %161 = arith.mulf %158, %160 : vector<4x256xf32>
    %c80 = arith.constant 80 : index
    %c0_191 = arith.constant 0 : index
    %162 = vector.load %arg16[%c80, %c0_191] : memref<144x256xf32, #tpu.memory_space<vmem>>, vector<4x256xf32>
    tpu.vector_store %arg16[%c80, %c0_191], %161 {strides = array<i32>} : memref<144x256xf32, #tpu.memory_space<vmem>>, vector<4x256xf32>,
    %c8_192 = arith.constant 8 : index
    %c127_193 = arith.constant 127 : index
    %163 = vector.load %arg15[%c8_192, %c127_193] : memref<20x512xf32, #tpu.memory_space<vmem>>, vector<4x256xf32>
    %c3_194 = arith.constant 3 : index
    %c0_195 = arith.constant 0 : index
    %c0_196 = arith.constant 0 : index
    %164 = vector.load %arg2[%c3_194, %c0_195, %c0_196] : memref<9x4x256xf32, #tpu.memory_space<vmem>>, vector<1x4x256xf32>
    %165 = vector.shape_cast %164 : vector<1x4x256xf32> to vector<4x256xf32>
    %166 = arith.mulf %163, %165 : vector<4x256xf32>
    %c84 = arith.constant 84 : index
    %c0_197 = arith.constant 0 : index
    %167 = vector.load %arg16[%c84, %c0_197] : memref<144x256xf32, #tpu.memory_space<vmem>>, vector<4x256xf32>
    tpu.vector_store %arg16[%c84, %c0_197], %166 {strides = array<i32>} : memref<144x256xf32, #tpu.memory_space<vmem>>, vector<4x256xf32>,
    %c8_198 = arith.constant 8 : index
    %c128_199 = arith.constant 128 : index
    %168 = vector.load %arg15[%c8_198, %c128_199] : memref<20x512xf32, #tpu.memory_space<vmem>>, vector<4x256xf32>
    %c88 = arith.constant 88 : index
    %c0_200 = arith.constant 0 : index
    %169 = vector.load %arg16[%c88, %c0_200] : memref<144x256xf32, #tpu.memory_space<vmem>>, vector<4x256xf32>
    tpu.vector_store %arg16[%c88, %c0_200], %168 {strides = array<i32>} : memref<144x256xf32, #tpu.memory_space<vmem>>, vector<4x256xf32>,
    %c8_201 = arith.constant 8 : index
    %c129_202 = arith.constant 129 : index
    %170 = vector.load %arg15[%c8_201, %c129_202] : memref<20x512xf32, #tpu.memory_space<vmem>>, vector<4x256xf32>
    %c5_203 = arith.constant 5 : index
    %c0_204 = arith.constant 0 : index
    %c0_205 = arith.constant 0 : index
    %171 = vector.load %arg2[%c5_203, %c0_204, %c0_205] : memref<9x4x256xf32, #tpu.memory_space<vmem>>, vector<1x4x256xf32>
    %172 = vector.shape_cast %171 : vector<1x4x256xf32> to vector<4x256xf32>
    %173 = arith.mulf %170, %172 : vector<4x256xf32>
    %c92 = arith.constant 92 : index
    %c0_206 = arith.constant 0 : index
    %174 = vector.load %arg16[%c92, %c0_206] : memref<144x256xf32, #tpu.memory_space<vmem>>, vector<4x256xf32>
    tpu.vector_store %arg16[%c92, %c0_206], %173 {strides = array<i32>} : memref<144x256xf32, #tpu.memory_space<vmem>>, vector<4x256xf32>,
    %c8_207 = arith.constant 8 : index
    %c143_208 = arith.constant 143 : index
    %175 = vector.load %arg15[%c8_207, %c143_208] : memref<20x512xf32, #tpu.memory_space<vmem>>, vector<4x256xf32>
    %c6_209 = arith.constant 6 : index
    %c0_210 = arith.constant 0 : index
    %c0_211 = arith.constant 0 : index
    %176 = vector.load %arg2[%c6_209, %c0_210, %c0_211] : memref<9x4x256xf32, #tpu.memory_space<vmem>>, vector<1x4x256xf32>
    %177 = vector.shape_cast %176 : vector<1x4x256xf32> to vector<4x256xf32>
    %178 = arith.mulf %175, %177 : vector<4x256xf32>
    %c96 = arith.constant 96 : index
    %c0_212 = arith.constant 0 : index
    %179 = vector.load %arg16[%c96, %c0_212] : memref<144x256xf32, #tpu.memory_space<vmem>>, vector<4x256xf32>
    tpu.vector_store %arg16[%c96, %c0_212], %178 {strides = array<i32>} : memref<144x256xf32, #tpu.memory_space<vmem>>, vector<4x256xf32>,
    %c8_213 = arith.constant 8 : index
    %c144_214 = arith.constant 144 : index
    %180 = vector.load %arg15[%c8_213, %c144_214] : memref<20x512xf32, #tpu.memory_space<vmem>>, vector<4x256xf32>
    %c7_215 = arith.constant 7 : index
    %c0_216 = arith.constant 0 : index
    %c0_217 = arith.constant 0 : index
    %181 = vector.load %arg2[%c7_215, %c0_216, %c0_217] : memref<9x4x256xf32, #tpu.memory_space<vmem>>, vector<1x4x256xf32>
    %182 = vector.shape_cast %181 : vector<1x4x256xf32> to vector<4x256xf32>
    %183 = arith.mulf %180, %182 : vector<4x256xf32>
    %c100 = arith.constant 100 : index
    %c0_218 = arith.constant 0 : index
    %184 = vector.load %arg16[%c100, %c0_218] : memref<144x256xf32, #tpu.memory_space<vmem>>, vector<4x256xf32>
    tpu.vector_store %arg16[%c100, %c0_218], %183 {strides = array<i32>} : memref<144x256xf32, #tpu.memory_space<vmem>>, vector<4x256xf32>,
    %c8_219 = arith.constant 8 : index
    %c145_220 = arith.constant 145 : index
    %185 = vector.load %arg15[%c8_219, %c145_220] : memref<20x512xf32, #tpu.memory_space<vmem>>, vector<4x256xf32>
    %c8_221 = arith.constant 8 : index
    %c0_222 = arith.constant 0 : index
    %c0_223 = arith.constant 0 : index
    %186 = vector.load %arg2[%c8_221, %c0_222, %c0_223] : memref<9x4x256xf32, #tpu.memory_space<vmem>>, vector<1x4x256xf32>
    %187 = vector.shape_cast %186 : vector<1x4x256xf32> to vector<4x256xf32>
    %188 = arith.mulf %185, %187 : vector<4x256xf32>
    %c104 = arith.constant 104 : index
    %c0_224 = arith.constant 0 : index
    %189 = vector.load %arg16[%c104, %c0_224] : memref<144x256xf32, #tpu.memory_space<vmem>>, vector<4x256xf32>
    tpu.vector_store %arg16[%c104, %c0_224], %188 {strides = array<i32>} : memref<144x256xf32, #tpu.memory_space<vmem>>, vector<4x256xf32>,
    %c12_225 = arith.constant 12 : index
    %c111_226 = arith.constant 111 : index
    %190 = vector.load %arg15[%c12_225, %c111_226] : memref<20x512xf32, #tpu.memory_space<vmem>>, vector<4x256xf32>
    %c0_227 = arith.constant 0 : index
    %c0_228 = arith.constant 0 : index
    %c0_229 = arith.constant 0 : index
    %191 = vector.load %arg2[%c0_227, %c0_228, %c0_229] : memref<9x4x256xf32, #tpu.memory_space<vmem>>, vector<1x4x256xf32>
    %192 = vector.shape_cast %191 : vector<1x4x256xf32> to vector<4x256xf32>
    %193 = arith.mulf %190, %192 : vector<4x256xf32>
    %c108 = arith.constant 108 : index
    %c0_230 = arith.constant 0 : index
    %194 = vector.load %arg16[%c108, %c0_230] : memref<144x256xf32, #tpu.memory_space<vmem>>, vector<4x256xf32>
    tpu.vector_store %arg16[%c108, %c0_230], %193 {strides = array<i32>} : memref<144x256xf32, #tpu.memory_space<vmem>>, vector<4x256xf32>,
    %c12_231 = arith.constant 12 : index
    %c112_232 = arith.constant 112 : index
    %195 = vector.load %arg15[%c12_231, %c112_232] : memref<20x512xf32, #tpu.memory_space<vmem>>, vector<4x256xf32>
    %c1_233 = arith.constant 1 : index
    %c0_234 = arith.constant 0 : index
    %c0_235 = arith.constant 0 : index
    %196 = vector.load %arg2[%c1_233, %c0_234, %c0_235] : memref<9x4x256xf32, #tpu.memory_space<vmem>>, vector<1x4x256xf32>
    %197 = vector.shape_cast %196 : vector<1x4x256xf32> to vector<4x256xf32>
    %198 = arith.mulf %195, %197 : vector<4x256xf32>
    %c112_236 = arith.constant 112 : index
    %c0_237 = arith.constant 0 : index
    %199 = vector.load %arg16[%c112_236, %c0_237] : memref<144x256xf32, #tpu.memory_space<vmem>>, vector<4x256xf32>
    tpu.vector_store %arg16[%c112_236, %c0_237], %198 {strides = array<i32>} : memref<144x256xf32, #tpu.memory_space<vmem>>, vector<4x256xf32>,
    %c12_238 = arith.constant 12 : index
    %c113_239 = arith.constant 113 : index
    %200 = vector.load %arg15[%c12_238, %c113_239] : memref<20x512xf32, #tpu.memory_space<vmem>>, vector<4x256xf32>
    %c2_240 = arith.constant 2 : index
    %c0_241 = arith.constant 0 : index
    %c0_242 = arith.constant 0 : index
    %201 = vector.load %arg2[%c2_240, %c0_241, %c0_242] : memref<9x4x256xf32, #tpu.memory_space<vmem>>, vector<1x4x256xf32>
    %202 = vector.shape_cast %201 : vector<1x4x256xf32> to vector<4x256xf32>
    %203 = arith.mulf %200, %202 : vector<4x256xf32>
    %c116 = arith.constant 116 : index
    %c0_243 = arith.constant 0 : index
    %204 = vector.load %arg16[%c116, %c0_243] : memref<144x256xf32, #tpu.memory_space<vmem>>, vector<4x256xf32>
    tpu.vector_store %arg16[%c116, %c0_243], %203 {strides = array<i32>} : memref<144x256xf32, #tpu.memory_space<vmem>>, vector<4x256xf32>,
    %c12_244 = arith.constant 12 : index
    %c127_245 = arith.constant 127 : index
    %205 = vector.load %arg15[%c12_244, %c127_245] : memref<20x512xf32, #tpu.memory_space<vmem>>, vector<4x256xf32>
    %c3_246 = arith.constant 3 : index
    %c0_247 = arith.constant 0 : index
    %c0_248 = arith.constant 0 : index
    %206 = vector.load %arg2[%c3_246, %c0_247, %c0_248] : memref<9x4x256xf32, #tpu.memory_space<vmem>>, vector<1x4x256xf32>
    %207 = vector.shape_cast %206 : vector<1x4x256xf32> to vector<4x256xf32>
    %208 = arith.mulf %205, %207 : vector<4x256xf32>
    %c120 = arith.constant 120 : index
    %c0_249 = arith.constant 0 : index
    %209 = vector.load %arg16[%c120, %c0_249] : memref<144x256xf32, #tpu.memory_space<vmem>>, vector<4x256xf32>
    tpu.vector_store %arg16[%c120, %c0_249], %208 {strides = array<i32>} : memref<144x256xf32, #tpu.memory_space<vmem>>, vector<4x256xf32>,
    %c12_250 = arith.constant 12 : index
    %c128_251 = arith.constant 128 : index
    %210 = vector.load %arg15[%c12_250, %c128_251] : memref<20x512xf32, #tpu.memory_space<vmem>>, vector<4x256xf32>
    %c124 = arith.constant 124 : index
    %c0_252 = arith.constant 0 : index
    %211 = vector.load %arg16[%c124, %c0_252] : memref<144x256xf32, #tpu.memory_space<vmem>>, vector<4x256xf32>
    tpu.vector_store %arg16[%c124, %c0_252], %210 {strides = array<i32>} : memref<144x256xf32, #tpu.memory_space<vmem>>, vector<4x256xf32>,
    %c12_253 = arith.constant 12 : index
    %c129_254 = arith.constant 129 : index
    %212 = vector.load %arg15[%c12_253, %c129_254] : memref<20x512xf32, #tpu.memory_space<vmem>>, vector<4x256xf32>
    %c5_255 = arith.constant 5 : index
    %c0_256 = arith.constant 0 : index
    %c0_257 = arith.constant 0 : index
    %213 = vector.load %arg2[%c5_255, %c0_256, %c0_257] : memref<9x4x256xf32, #tpu.memory_space<vmem>>, vector<1x4x256xf32>
    %214 = vector.shape_cast %213 : vector<1x4x256xf32> to vector<4x256xf32>
    %215 = arith.mulf %212, %214 : vector<4x256xf32>
    %c128_258 = arith.constant 128 : index
    %c0_259 = arith.constant 0 : index
    %216 = vector.load %arg16[%c128_258, %c0_259] : memref<144x256xf32, #tpu.memory_space<vmem>>, vector<4x256xf32>
    tpu.vector_store %arg16[%c128_258, %c0_259], %215 {strides = array<i32>} : memref<144x256xf32, #tpu.memory_space<vmem>>, vector<4x256xf32>,
    %c12_260 = arith.constant 12 : index
    %c143_261 = arith.constant 143 : index
    %217 = vector.load %arg15[%c12_260, %c143_261] : memref<20x512xf32, #tpu.memory_space<vmem>>, vector<4x256xf32>
    %c6_262 = arith.constant 6 : index
    %c0_263 = arith.constant 0 : index
    %c0_264 = arith.constant 0 : index
    %218 = vector.load %arg2[%c6_262, %c0_263, %c0_264] : memref<9x4x256xf32, #tpu.memory_space<vmem>>, vector<1x4x256xf32>
    %219 = vector.shape_cast %218 : vector<1x4x256xf32> to vector<4x256xf32>
    %220 = arith.mulf %217, %219 : vector<4x256xf32>
    %c132 = arith.constant 132 : index
    %c0_265 = arith.constant 0 : index
    %221 = vector.load %arg16[%c132, %c0_265] : memref<144x256xf32, #tpu.memory_space<vmem>>, vector<4x256xf32>
    tpu.vector_store %arg16[%c132, %c0_265], %220 {strides = array<i32>} : memref<144x256xf32, #tpu.memory_space<vmem>>, vector<4x256xf32>,
    %c12_266 = arith.constant 12 : index
    %c144_267 = arith.constant 144 : index
    %222 = vector.load %arg15[%c12_266, %c144_267] : memref<20x512xf32, #tpu.memory_space<vmem>>, vector<4x256xf32>
    %c7_268 = arith.constant 7 : index
    %c0_269 = arith.constant 0 : index
    %c0_270 = arith.constant 0 : index
    %223 = vector.load %arg2[%c7_268, %c0_269, %c0_270] : memref<9x4x256xf32, #tpu.memory_space<vmem>>, vector<1x4x256xf32>
    %224 = vector.shape_cast %223 : vector<1x4x256xf32> to vector<4x256xf32>
    %225 = arith.mulf %222, %224 : vector<4x256xf32>
    %c136 = arith.constant 136 : index
    %c0_271 = arith.constant 0 : index
    %226 = vector.load %arg16[%c136, %c0_271] : memref<144x256xf32, #tpu.memory_space<vmem>>, vector<4x256xf32>
    tpu.vector_store %arg16[%c136, %c0_271], %225 {strides = array<i32>} : memref<144x256xf32, #tpu.memory_space<vmem>>, vector<4x256xf32>,
    %c12_272 = arith.constant 12 : index
    %c145_273 = arith.constant 145 : index
    %227 = vector.load %arg15[%c12_272, %c145_273] : memref<20x512xf32, #tpu.memory_space<vmem>>, vector<4x256xf32>
    %c8_274 = arith.constant 8 : index
    %c0_275 = arith.constant 0 : index
    %c0_276 = arith.constant 0 : index
    %228 = vector.load %arg2[%c8_274, %c0_275, %c0_276] : memref<9x4x256xf32, #tpu.memory_space<vmem>>, vector<1x4x256xf32>
    %229 = vector.shape_cast %228 : vector<1x4x256xf32> to vector<4x256xf32>
    %230 = arith.mulf %227, %229 : vector<4x256xf32>
    %c140 = arith.constant 140 : index
    %c0_277 = arith.constant 0 : index
    %231 = vector.load %arg16[%c140, %c0_277] : memref<144x256xf32, #tpu.memory_space<vmem>>, vector<4x256xf32>
    tpu.vector_store %arg16[%c140, %c0_277], %230 {strides = array<i32>} : memref<144x256xf32, #tpu.memory_space<vmem>>, vector<4x256xf32>,
    %c0_278 = arith.constant 0 : index
    %c0_279 = arith.constant 0 : index
    %232 = vector.load %arg5[%c0_278, %c0_279] : memref<4x144xf32, #tpu.memory_space<vmem>>, vector<4x144xf32>
    %c0_280 = arith.constant 0 : index
    %c0_281 = arith.constant 0 : index
    %233 = vector.load %arg16[%c0_280, %c0_281] : memref<144x256xf32, #tpu.memory_space<vmem>>, vector<144x256xf32>
    %cst_282 = arith.constant dense<0.000000e+00> : vector<4x256xf32>
    %234 = tpu.matmul %232, %233, %cst_282 {dimension_numbers = #tpu.dot_dimension_numbers<[1], [0], [0], [1], [0, 0, 1, 1], [], []>} : vector<4x144xf32>, vector<144x256xf32>, vector<4x256xf32> -> vector<4x256xf32>
    %c0_283 = arith.constant 0 : index
    %c0_284 = arith.constant 0 : index
    %235 = vector.load %arg6[%c0_283, %c0_284] : memref<4x1xf32, #tpu.memory_space<vmem>>, vector<4x1xf32>
    %236 = vector.broadcast %235 : vector<4x1xf32> to vector<4x256xf32>
    %237 = arith.addf %234, %236 : vector<4x256xf32>
    %c0_285 = arith.constant 0 : index
    %c0_286 = arith.constant 0 : index
    %c0_287 = arith.constant 0 : index
    %238 = vector.load %arg7[%c0_285, %c0_286, %c0_287] : memref<3x16x144xf32, #tpu.memory_space<vmem>>, vector<1x16x144xf32>
    %239 = vector.shape_cast %238 : vector<1x16x144xf32> to vector<16x144xf32>
    %c0_288 = arith.constant 0 : index
    %c0_289 = arith.constant 0 : index
    %240 = vector.load %arg16[%c0_288, %c0_289] : memref<144x256xf32, #tpu.memory_space<vmem>>, vector<144x256xf32>
    %cst_290 = arith.constant dense<0.000000e+00> : vector<16x256xf32>
    %241 = tpu.matmul %239, %240, %cst_290 {dimension_numbers = #tpu.dot_dimension_numbers<[1], [0], [0], [1], [0, 0, 1, 1], [], []>} : vector<16x144xf32>, vector<144x256xf32>, vector<16x256xf32> -> vector<16x256xf32>
    %c0_291 = arith.constant 0 : index
    %c0_292 = arith.constant 0 : index
    %c0_293 = arith.constant 0 : index
    %242 = vector.load %arg8[%c0_291, %c0_292, %c0_293] : memref<3x16x1xf32, #tpu.memory_space<vmem>>, vector<1x16x1xf32>
    %243 = vector.shape_cast %242 : vector<1x16x1xf32> to vector<16x1xf32>
    %244 = vector.broadcast %243 : vector<16x1xf32> to vector<16x256xf32>
    %245 = arith.addf %241, %244 : vector<16x256xf32>
    %c0_294 = arith.constant 0 : index
    %c0_295 = arith.constant 0 : index
    %c0_296 = arith.constant 0 : index
    %246 = vector.load %arg9[%c0_294, %c0_295, %c0_296] : memref<3x16x1xf32, #tpu.memory_space<vmem>>, vector<1x16x1xf32>
    %247 = vector.shape_cast %246 : vector<1x16x1xf32> to vector<16x1xf32>
    %cst_297 = arith.constant 0.000000e+00 : f32
    %248 = vector.broadcast %cst_297 : f32 to vector<16x256xf32>
    %249 = arith.cmpf oge, %245, %248 : vector<16x256xf32>
    %250 = vector.broadcast %247 : vector<16x1xf32> to vector<16x256xf32>
    %251 = arith.mulf %250, %245 : vector<16x256xf32>
    %252 = arith.select %249, %245, %251 : vector<16x256xi1>, vector<16x256xf32>
    %253 = vector.extract_strided_slice %252 {offsets = [0, 0], sizes = [4, 256], strides = [1, 1]} : vector<16x256xf32> to vector<4x256xf32>
    %c0_298 = arith.constant 0 : index
    %c128_299 = arith.constant 128 : index
    %254 = vector.load %arg15[%c0_298, %c128_299] : memref<20x512xf32, #tpu.memory_space<vmem>>, vector<4x256xf32>
    tpu.vector_store %arg15[%c0_298, %c128_299], %253 {strides = array<i32>} : memref<20x512xf32, #tpu.memory_space<vmem>>, vector<4x256xf32>,
    %255 = vector.extract_strided_slice %252 {offsets = [4, 0], sizes = [4, 256], strides = [1, 1]} : vector<16x256xf32> to vector<4x256xf32>
    %c4_300 = arith.constant 4 : index
    %c128_301 = arith.constant 128 : index
    %256 = vector.load %arg15[%c4_300, %c128_301] : memref<20x512xf32, #tpu.memory_space<vmem>>, vector<4x256xf32>
    tpu.vector_store %arg15[%c4_300, %c128_301], %255 {strides = array<i32>} : memref<20x512xf32, #tpu.memory_space<vmem>>, vector<4x256xf32>,
    %257 = vector.extract_strided_slice %252 {offsets = [8, 0], sizes = [4, 256], strides = [1, 1]} : vector<16x256xf32> to vector<4x256xf32>
    %c8_302 = arith.constant 8 : index
    %c128_303 = arith.constant 128 : index
    %258 = vector.load %arg15[%c8_302, %c128_303] : memref<20x512xf32, #tpu.memory_space<vmem>>, vector<4x256xf32>
    tpu.vector_store %arg15[%c8_302, %c128_303], %257 {strides = array<i32>} : memref<20x512xf32, #tpu.memory_space<vmem>>, vector<4x256xf32>,
    %259 = vector.extract_strided_slice %252 {offsets = [12, 0], sizes = [4, 256], strides = [1, 1]} : vector<16x256xf32> to vector<4x256xf32>
    %c12_304 = arith.constant 12 : index
    %c128_305 = arith.constant 128 : index
    %260 = vector.load %arg15[%c12_304, %c128_305] : memref<20x512xf32, #tpu.memory_space<vmem>>, vector<4x256xf32>
    tpu.vector_store %arg15[%c12_304, %c128_305], %259 {strides = array<i32>} : memref<20x512xf32, #tpu.memory_space<vmem>>, vector<4x256xf32>,
    %c0_306 = arith.constant 0 : index
    %c111_307 = arith.constant 111 : index
    %261 = vector.load %arg15[%c0_306, %c111_307] : memref<20x512xf32, #tpu.memory_space<vmem>>, vector<4x256xf32>
    %c0_308 = arith.constant 0 : index
    %c0_309 = arith.constant 0 : index
    %c0_310 = arith.constant 0 : index
    %262 = vector.load %arg2[%c0_308, %c0_309, %c0_310] : memref<9x4x256xf32, #tpu.memory_space<vmem>>, vector<1x4x256xf32>
    %263 = vector.shape_cast %262 : vector<1x4x256xf32> to vector<4x256xf32>
    %264 = arith.mulf %261, %263 : vector<4x256xf32>
    %c0_311 = arith.constant 0 : index
    %c0_312 = arith.constant 0 : index
    %265 = vector.load %arg16[%c0_311, %c0_312] : memref<144x256xf32, #tpu.memory_space<vmem>>, vector<4x256xf32>
    tpu.vector_store %arg16[%c0_311, %c0_312], %264 {strides = array<i32>} : memref<144x256xf32, #tpu.memory_space<vmem>>, vector<4x256xf32>,
    %c0_313 = arith.constant 0 : index
    %c112_314 = arith.constant 112 : index
    %266 = vector.load %arg15[%c0_313, %c112_314] : memref<20x512xf32, #tpu.memory_space<vmem>>, vector<4x256xf32>
    %c1_315 = arith.constant 1 : index
    %c0_316 = arith.constant 0 : index
    %c0_317 = arith.constant 0 : index
    %267 = vector.load %arg2[%c1_315, %c0_316, %c0_317] : memref<9x4x256xf32, #tpu.memory_space<vmem>>, vector<1x4x256xf32>
    %268 = vector.shape_cast %267 : vector<1x4x256xf32> to vector<4x256xf32>
    %269 = arith.mulf %266, %268 : vector<4x256xf32>
    %c4_318 = arith.constant 4 : index
    %c0_319 = arith.constant 0 : index
    %270 = vector.load %arg16[%c4_318, %c0_319] : memref<144x256xf32, #tpu.memory_space<vmem>>, vector<4x256xf32>
    tpu.vector_store %arg16[%c4_318, %c0_319], %269 {strides = array<i32>} : memref<144x256xf32, #tpu.memory_space<vmem>>, vector<4x256xf32>,
    %c0_320 = arith.constant 0 : index
    %c113_321 = arith.constant 113 : index
    %271 = vector.load %arg15[%c0_320, %c113_321] : memref<20x512xf32, #tpu.memory_space<vmem>>, vector<4x256xf32>
    %c2_322 = arith.constant 2 : index
    %c0_323 = arith.constant 0 : index
    %c0_324 = arith.constant 0 : index
    %272 = vector.load %arg2[%c2_322, %c0_323, %c0_324] : memref<9x4x256xf32, #tpu.memory_space<vmem>>, vector<1x4x256xf32>
    %273 = vector.shape_cast %272 : vector<1x4x256xf32> to vector<4x256xf32>
    %274 = arith.mulf %271, %273 : vector<4x256xf32>
    %c8_325 = arith.constant 8 : index
    %c0_326 = arith.constant 0 : index
    %275 = vector.load %arg16[%c8_325, %c0_326] : memref<144x256xf32, #tpu.memory_space<vmem>>, vector<4x256xf32>
    tpu.vector_store %arg16[%c8_325, %c0_326], %274 {strides = array<i32>} : memref<144x256xf32, #tpu.memory_space<vmem>>, vector<4x256xf32>,
    %c0_327 = arith.constant 0 : index
    %c127_328 = arith.constant 127 : index
    %276 = vector.load %arg15[%c0_327, %c127_328] : memref<20x512xf32, #tpu.memory_space<vmem>>, vector<4x256xf32>
    %c3_329 = arith.constant 3 : index
    %c0_330 = arith.constant 0 : index
    %c0_331 = arith.constant 0 : index
    %277 = vector.load %arg2[%c3_329, %c0_330, %c0_331] : memref<9x4x256xf32, #tpu.memory_space<vmem>>, vector<1x4x256xf32>
    %278 = vector.shape_cast %277 : vector<1x4x256xf32> to vector<4x256xf32>
    %279 = arith.mulf %276, %278 : vector<4x256xf32>
    %c12_332 = arith.constant 12 : index
    %c0_333 = arith.constant 0 : index
    %280 = vector.load %arg16[%c12_332, %c0_333] : memref<144x256xf32, #tpu.memory_space<vmem>>, vector<4x256xf32>
    tpu.vector_store %arg16[%c12_332, %c0_333], %279 {strides = array<i32>} : memref<144x256xf32, #tpu.memory_space<vmem>>, vector<4x256xf32>,
    %c0_334 = arith.constant 0 : index
    %c128_335 = arith.constant 128 : index
    %281 = vector.load %arg15[%c0_334, %c128_335] : memref<20x512xf32, #tpu.memory_space<vmem>>, vector<4x256xf32>
    %c16_336 = arith.constant 16 : index
    %c0_337 = arith.constant 0 : index
    %282 = vector.load %arg16[%c16_336, %c0_337] : memref<144x256xf32, #tpu.memory_space<vmem>>, vector<4x256xf32>
    tpu.vector_store %arg16[%c16_336, %c0_337], %281 {strides = array<i32>} : memref<144x256xf32, #tpu.memory_space<vmem>>, vector<4x256xf32>,
    %c0_338 = arith.constant 0 : index
    %c129_339 = arith.constant 129 : index
    %283 = vector.load %arg15[%c0_338, %c129_339] : memref<20x512xf32, #tpu.memory_space<vmem>>, vector<4x256xf32>
    %c5_340 = arith.constant 5 : index
    %c0_341 = arith.constant 0 : index
    %c0_342 = arith.constant 0 : index
    %284 = vector.load %arg2[%c5_340, %c0_341, %c0_342] : memref<9x4x256xf32, #tpu.memory_space<vmem>>, vector<1x4x256xf32>
    %285 = vector.shape_cast %284 : vector<1x4x256xf32> to vector<4x256xf32>
    %286 = arith.mulf %283, %285 : vector<4x256xf32>
    %c20_343 = arith.constant 20 : index
    %c0_344 = arith.constant 0 : index
    %287 = vector.load %arg16[%c20_343, %c0_344] : memref<144x256xf32, #tpu.memory_space<vmem>>, vector<4x256xf32>
    tpu.vector_store %arg16[%c20_343, %c0_344], %286 {strides = array<i32>} : memref<144x256xf32, #tpu.memory_space<vmem>>, vector<4x256xf32>,
    %c0_345 = arith.constant 0 : index
    %c143_346 = arith.constant 143 : index
    %288 = vector.load %arg15[%c0_345, %c143_346] : memref<20x512xf32, #tpu.memory_space<vmem>>, vector<4x256xf32>
    %c6_347 = arith.constant 6 : index
    %c0_348 = arith.constant 0 : index
    %c0_349 = arith.constant 0 : index
    %289 = vector.load %arg2[%c6_347, %c0_348, %c0_349] : memref<9x4x256xf32, #tpu.memory_space<vmem>>, vector<1x4x256xf32>
    %290 = vector.shape_cast %289 : vector<1x4x256xf32> to vector<4x256xf32>
    %291 = arith.mulf %288, %290 : vector<4x256xf32>
    %c24_350 = arith.constant 24 : index
    %c0_351 = arith.constant 0 : index
    %292 = vector.load %arg16[%c24_350, %c0_351] : memref<144x256xf32, #tpu.memory_space<vmem>>, vector<4x256xf32>
    tpu.vector_store %arg16[%c24_350, %c0_351], %291 {strides = array<i32>} : memref<144x256xf32, #tpu.memory_space<vmem>>, vector<4x256xf32>,
    %c0_352 = arith.constant 0 : index
    %c144_353 = arith.constant 144 : index
    %293 = vector.load %arg15[%c0_352, %c144_353] : memref<20x512xf32, #tpu.memory_space<vmem>>, vector<4x256xf32>
    %c7_354 = arith.constant 7 : index
    %c0_355 = arith.constant 0 : index
    %c0_356 = arith.constant 0 : index
    %294 = vector.load %arg2[%c7_354, %c0_355, %c0_356] : memref<9x4x256xf32, #tpu.memory_space<vmem>>, vector<1x4x256xf32>
    %295 = vector.shape_cast %294 : vector<1x4x256xf32> to vector<4x256xf32>
    %296 = arith.mulf %293, %295 : vector<4x256xf32>
    %c28_357 = arith.constant 28 : index
    %c0_358 = arith.constant 0 : index
    %297 = vector.load %arg16[%c28_357, %c0_358] : memref<144x256xf32, #tpu.memory_space<vmem>>, vector<4x256xf32>
    tpu.vector_store %arg16[%c28_357, %c0_358], %296 {strides = array<i32>} : memref<144x256xf32, #tpu.memory_space<vmem>>, vector<4x256xf32>,
    %c0_359 = arith.constant 0 : index
    %c145_360 = arith.constant 145 : index
    %298 = vector.load %arg15[%c0_359, %c145_360] : memref<20x512xf32, #tpu.memory_space<vmem>>, vector<4x256xf32>
    %c8_361 = arith.constant 8 : index
    %c0_362 = arith.constant 0 : index
    %c0_363 = arith.constant 0 : index
    %299 = vector.load %arg2[%c8_361, %c0_362, %c0_363] : memref<9x4x256xf32, #tpu.memory_space<vmem>>, vector<1x4x256xf32>
    %300 = vector.shape_cast %299 : vector<1x4x256xf32> to vector<4x256xf32>
    %301 = arith.mulf %298, %300 : vector<4x256xf32>
    %c32_364 = arith.constant 32 : index
    %c0_365 = arith.constant 0 : index
    %302 = vector.load %arg16[%c32_364, %c0_365] : memref<144x256xf32, #tpu.memory_space<vmem>>, vector<4x256xf32>
    tpu.vector_store %arg16[%c32_364, %c0_365], %301 {strides = array<i32>} : memref<144x256xf32, #tpu.memory_space<vmem>>, vector<4x256xf32>,
    %c4_366 = arith.constant 4 : index
    %c111_367 = arith.constant 111 : index
    %303 = vector.load %arg15[%c4_366, %c111_367] : memref<20x512xf32, #tpu.memory_space<vmem>>, vector<4x256xf32>
    %c0_368 = arith.constant 0 : index
    %c0_369 = arith.constant 0 : index
    %c0_370 = arith.constant 0 : index
    %304 = vector.load %arg2[%c0_368, %c0_369, %c0_370] : memref<9x4x256xf32, #tpu.memory_space<vmem>>, vector<1x4x256xf32>
    %305 = vector.shape_cast %304 : vector<1x4x256xf32> to vector<4x256xf32>
    %306 = arith.mulf %303, %305 : vector<4x256xf32>
    %c36_371 = arith.constant 36 : index
    %c0_372 = arith.constant 0 : index
    %307 = vector.load %arg16[%c36_371, %c0_372] : memref<144x256xf32, #tpu.memory_space<vmem>>, vector<4x256xf32>
    tpu.vector_store %arg16[%c36_371, %c0_372], %306 {strides = array<i32>} : memref<144x256xf32, #tpu.memory_space<vmem>>, vector<4x256xf32>,
    %c4_373 = arith.constant 4 : index
    %c112_374 = arith.constant 112 : index
    %308 = vector.load %arg15[%c4_373, %c112_374] : memref<20x512xf32, #tpu.memory_space<vmem>>, vector<4x256xf32>
    %c1_375 = arith.constant 1 : index
    %c0_376 = arith.constant 0 : index
    %c0_377 = arith.constant 0 : index
    %309 = vector.load %arg2[%c1_375, %c0_376, %c0_377] : memref<9x4x256xf32, #tpu.memory_space<vmem>>, vector<1x4x256xf32>
    %310 = vector.shape_cast %309 : vector<1x4x256xf32> to vector<4x256xf32>
    %311 = arith.mulf %308, %310 : vector<4x256xf32>
    %c40_378 = arith.constant 40 : index
    %c0_379 = arith.constant 0 : index
    %312 = vector.load %arg16[%c40_378, %c0_379] : memref<144x256xf32, #tpu.memory_space<vmem>>, vector<4x256xf32>
    tpu.vector_store %arg16[%c40_378, %c0_379], %311 {strides = array<i32>} : memref<144x256xf32, #tpu.memory_space<vmem>>, vector<4x256xf32>,
    %c4_380 = arith.constant 4 : index
    %c113_381 = arith.constant 113 : index
    %313 = vector.load %arg15[%c4_380, %c113_381] : memref<20x512xf32, #tpu.memory_space<vmem>>, vector<4x256xf32>
    %c2_382 = arith.constant 2 : index
    %c0_383 = arith.constant 0 : index
    %c0_384 = arith.constant 0 : index
    %314 = vector.load %arg2[%c2_382, %c0_383, %c0_384] : memref<9x4x256xf32, #tpu.memory_space<vmem>>, vector<1x4x256xf32>
    %315 = vector.shape_cast %314 : vector<1x4x256xf32> to vector<4x256xf32>
    %316 = arith.mulf %313, %315 : vector<4x256xf32>
    %c44_385 = arith.constant 44 : index
    %c0_386 = arith.constant 0 : index
    %317 = vector.load %arg16[%c44_385, %c0_386] : memref<144x256xf32, #tpu.memory_space<vmem>>, vector<4x256xf32>
    tpu.vector_store %arg16[%c44_385, %c0_386], %316 {strides = array<i32>} : memref<144x256xf32, #tpu.memory_space<vmem>>, vector<4x256xf32>,
    %c4_387 = arith.constant 4 : index
    %c127_388 = arith.constant 127 : index
    %318 = vector.load %arg15[%c4_387, %c127_388] : memref<20x512xf32, #tpu.memory_space<vmem>>, vector<4x256xf32>
    %c3_389 = arith.constant 3 : index
    %c0_390 = arith.constant 0 : index
    %c0_391 = arith.constant 0 : index
    %319 = vector.load %arg2[%c3_389, %c0_390, %c0_391] : memref<9x4x256xf32, #tpu.memory_space<vmem>>, vector<1x4x256xf32>
    %320 = vector.shape_cast %319 : vector<1x4x256xf32> to vector<4x256xf32>
    %321 = arith.mulf %318, %320 : vector<4x256xf32>
    %c48_392 = arith.constant 48 : index
    %c0_393 = arith.constant 0 : index
    %322 = vector.load %arg16[%c48_392, %c0_393] : memref<144x256xf32, #tpu.memory_space<vmem>>, vector<4x256xf32>
    tpu.vector_store %arg16[%c48_392, %c0_393], %321 {strides = array<i32>} : memref<144x256xf32, #tpu.memory_space<vmem>>, vector<4x256xf32>,
    %c4_394 = arith.constant 4 : index
    %c128_395 = arith.constant 128 : index
    %323 = vector.load %arg15[%c4_394, %c128_395] : memref<20x512xf32, #tpu.memory_space<vmem>>, vector<4x256xf32>
    %c52_396 = arith.constant 52 : index
    %c0_397 = arith.constant 0 : index
    %324 = vector.load %arg16[%c52_396, %c0_397] : memref<144x256xf32, #tpu.memory_space<vmem>>, vector<4x256xf32>
    tpu.vector_store %arg16[%c52_396, %c0_397], %323 {strides = array<i32>} : memref<144x256xf32, #tpu.memory_space<vmem>>, vector<4x256xf32>,
    %c4_398 = arith.constant 4 : index
    %c129_399 = arith.constant 129 : index
    %325 = vector.load %arg15[%c4_398, %c129_399] : memref<20x512xf32, #tpu.memory_space<vmem>>, vector<4x256xf32>
    %c5_400 = arith.constant 5 : index
    %c0_401 = arith.constant 0 : index
    %c0_402 = arith.constant 0 : index
    %326 = vector.load %arg2[%c5_400, %c0_401, %c0_402] : memref<9x4x256xf32, #tpu.memory_space<vmem>>, vector<1x4x256xf32>
    %327 = vector.shape_cast %326 : vector<1x4x256xf32> to vector<4x256xf32>
    %328 = arith.mulf %325, %327 : vector<4x256xf32>
    %c56_403 = arith.constant 56 : index
    %c0_404 = arith.constant 0 : index
    %329 = vector.load %arg16[%c56_403, %c0_404] : memref<144x256xf32, #tpu.memory_space<vmem>>, vector<4x256xf32>
    tpu.vector_store %arg16[%c56_403, %c0_404], %328 {strides = array<i32>} : memref<144x256xf32, #tpu.memory_space<vmem>>, vector<4x256xf32>,
    %c4_405 = arith.constant 4 : index
    %c143_406 = arith.constant 143 : index
    %330 = vector.load %arg15[%c4_405, %c143_406] : memref<20x512xf32, #tpu.memory_space<vmem>>, vector<4x256xf32>
    %c6_407 = arith.constant 6 : index
    %c0_408 = arith.constant 0 : index
    %c0_409 = arith.constant 0 : index
    %331 = vector.load %arg2[%c6_407, %c0_408, %c0_409] : memref<9x4x256xf32, #tpu.memory_space<vmem>>, vector<1x4x256xf32>
    %332 = vector.shape_cast %331 : vector<1x4x256xf32> to vector<4x256xf32>
    %333 = arith.mulf %330, %332 : vector<4x256xf32>
    %c60_410 = arith.constant 60 : index
    %c0_411 = arith.constant 0 : index
    %334 = vector.load %arg16[%c60_410, %c0_411] : memref<144x256xf32, #tpu.memory_space<vmem>>, vector<4x256xf32>
    tpu.vector_store %arg16[%c60_410, %c0_411], %333 {strides = array<i32>} : memref<144x256xf32, #tpu.memory_space<vmem>>, vector<4x256xf32>,
    %c4_412 = arith.constant 4 : index
    %c144_413 = arith.constant 144 : index
    %335 = vector.load %arg15[%c4_412, %c144_413] : memref<20x512xf32, #tpu.memory_space<vmem>>, vector<4x256xf32>
    %c7_414 = arith.constant 7 : index
    %c0_415 = arith.constant 0 : index
    %c0_416 = arith.constant 0 : index
    %336 = vector.load %arg2[%c7_414, %c0_415, %c0_416] : memref<9x4x256xf32, #tpu.memory_space<vmem>>, vector<1x4x256xf32>
    %337 = vector.shape_cast %336 : vector<1x4x256xf32> to vector<4x256xf32>
    %338 = arith.mulf %335, %337 : vector<4x256xf32>
    %c64_417 = arith.constant 64 : index
    %c0_418 = arith.constant 0 : index
    %339 = vector.load %arg16[%c64_417, %c0_418] : memref<144x256xf32, #tpu.memory_space<vmem>>, vector<4x256xf32>
    tpu.vector_store %arg16[%c64_417, %c0_418], %338 {strides = array<i32>} : memref<144x256xf32, #tpu.memory_space<vmem>>, vector<4x256xf32>,
    %c4_419 = arith.constant 4 : index
    %c145_420 = arith.constant 145 : index
    %340 = vector.load %arg15[%c4_419, %c145_420] : memref<20x512xf32, #tpu.memory_space<vmem>>, vector<4x256xf32>
    %c8_421 = arith.constant 8 : index
    %c0_422 = arith.constant 0 : index
    %c0_423 = arith.constant 0 : index
    %341 = vector.load %arg2[%c8_421, %c0_422, %c0_423] : memref<9x4x256xf32, #tpu.memory_space<vmem>>, vector<1x4x256xf32>
    %342 = vector.shape_cast %341 : vector<1x4x256xf32> to vector<4x256xf32>
    %343 = arith.mulf %340, %342 : vector<4x256xf32>
    %c68_424 = arith.constant 68 : index
    %c0_425 = arith.constant 0 : index
    %344 = vector.load %arg16[%c68_424, %c0_425] : memref<144x256xf32, #tpu.memory_space<vmem>>, vector<4x256xf32>
    tpu.vector_store %arg16[%c68_424, %c0_425], %343 {strides = array<i32>} : memref<144x256xf32, #tpu.memory_space<vmem>>, vector<4x256xf32>,
    %c8_426 = arith.constant 8 : index
    %c111_427 = arith.constant 111 : index
    %345 = vector.load %arg15[%c8_426, %c111_427] : memref<20x512xf32, #tpu.memory_space<vmem>>, vector<4x256xf32>
    %c0_428 = arith.constant 0 : index
    %c0_429 = arith.constant 0 : index
    %c0_430 = arith.constant 0 : index
    %346 = vector.load %arg2[%c0_428, %c0_429, %c0_430] : memref<9x4x256xf32, #tpu.memory_space<vmem>>, vector<1x4x256xf32>
    %347 = vector.shape_cast %346 : vector<1x4x256xf32> to vector<4x256xf32>
    %348 = arith.mulf %345, %347 : vector<4x256xf32>
    %c72_431 = arith.constant 72 : index
    %c0_432 = arith.constant 0 : index
    %349 = vector.load %arg16[%c72_431, %c0_432] : memref<144x256xf32, #tpu.memory_space<vmem>>, vector<4x256xf32>
    tpu.vector_store %arg16[%c72_431, %c0_432], %348 {strides = array<i32>} : memref<144x256xf32, #tpu.memory_space<vmem>>, vector<4x256xf32>,
    %c8_433 = arith.constant 8 : index
    %c112_434 = arith.constant 112 : index
    %350 = vector.load %arg15[%c8_433, %c112_434] : memref<20x512xf32, #tpu.memory_space<vmem>>, vector<4x256xf32>
    %c1_435 = arith.constant 1 : index
    %c0_436 = arith.constant 0 : index
    %c0_437 = arith.constant 0 : index
    %351 = vector.load %arg2[%c1_435, %c0_436, %c0_437] : memref<9x4x256xf32, #tpu.memory_space<vmem>>, vector<1x4x256xf32>
    %352 = vector.shape_cast %351 : vector<1x4x256xf32> to vector<4x256xf32>
    %353 = arith.mulf %350, %352 : vector<4x256xf32>
    %c76_438 = arith.constant 76 : index
    %c0_439 = arith.constant 0 : index
    %354 = vector.load %arg16[%c76_438, %c0_439] : memref<144x256xf32, #tpu.memory_space<vmem>>, vector<4x256xf32>
    tpu.vector_store %arg16[%c76_438, %c0_439], %353 {strides = array<i32>} : memref<144x256xf32, #tpu.memory_space<vmem>>, vector<4x256xf32>,
    %c8_440 = arith.constant 8 : index
    %c113_441 = arith.constant 113 : index
    %355 = vector.load %arg15[%c8_440, %c113_441] : memref<20x512xf32, #tpu.memory_space<vmem>>, vector<4x256xf32>
    %c2_442 = arith.constant 2 : index
    %c0_443 = arith.constant 0 : index
    %c0_444 = arith.constant 0 : index
    %356 = vector.load %arg2[%c2_442, %c0_443, %c0_444] : memref<9x4x256xf32, #tpu.memory_space<vmem>>, vector<1x4x256xf32>
    %357 = vector.shape_cast %356 : vector<1x4x256xf32> to vector<4x256xf32>
    %358 = arith.mulf %355, %357 : vector<4x256xf32>
    %c80_445 = arith.constant 80 : index
    %c0_446 = arith.constant 0 : index
    %359 = vector.load %arg16[%c80_445, %c0_446] : memref<144x256xf32, #tpu.memory_space<vmem>>, vector<4x256xf32>
    tpu.vector_store %arg16[%c80_445, %c0_446], %358 {strides = array<i32>} : memref<144x256xf32, #tpu.memory_space<vmem>>, vector<4x256xf32>,
    %c8_447 = arith.constant 8 : index
    %c127_448 = arith.constant 127 : index
    %360 = vector.load %arg15[%c8_447, %c127_448] : memref<20x512xf32, #tpu.memory_space<vmem>>, vector<4x256xf32>
    %c3_449 = arith.constant 3 : index
    %c0_450 = arith.constant 0 : index
    %c0_451 = arith.constant 0 : index
    %361 = vector.load %arg2[%c3_449, %c0_450, %c0_451] : memref<9x4x256xf32, #tpu.memory_space<vmem>>, vector<1x4x256xf32>
    %362 = vector.shape_cast %361 : vector<1x4x256xf32> to vector<4x256xf32>
    %363 = arith.mulf %360, %362 : vector<4x256xf32>
    %c84_452 = arith.constant 84 : index
    %c0_453 = arith.constant 0 : index
    %364 = vector.load %arg16[%c84_452, %c0_453] : memref<144x256xf32, #tpu.memory_space<vmem>>, vector<4x256xf32>
    tpu.vector_store %arg16[%c84_452, %c0_453], %363 {strides = array<i32>} : memref<144x256xf32, #tpu.memory_space<vmem>>, vector<4x256xf32>,
    %c8_454 = arith.constant 8 : index
    %c128_455 = arith.constant 128 : index
    %365 = vector.load %arg15[%c8_454, %c128_455] : memref<20x512xf32, #tpu.memory_space<vmem>>, vector<4x256xf32>
    %c88_456 = arith.constant 88 : index
    %c0_457 = arith.constant 0 : index
    %366 = vector.load %arg16[%c88_456, %c0_457] : memref<144x256xf32, #tpu.memory_space<vmem>>, vector<4x256xf32>
    tpu.vector_store %arg16[%c88_456, %c0_457], %365 {strides = array<i32>} : memref<144x256xf32, #tpu.memory_space<vmem>>, vector<4x256xf32>,
    %c8_458 = arith.constant 8 : index
    %c129_459 = arith.constant 129 : index
    %367 = vector.load %arg15[%c8_458, %c129_459] : memref<20x512xf32, #tpu.memory_space<vmem>>, vector<4x256xf32>
    %c5_460 = arith.constant 5 : index
    %c0_461 = arith.constant 0 : index
    %c0_462 = arith.constant 0 : index
    %368 = vector.load %arg2[%c5_460, %c0_461, %c0_462] : memref<9x4x256xf32, #tpu.memory_space<vmem>>, vector<1x4x256xf32>
    %369 = vector.shape_cast %368 : vector<1x4x256xf32> to vector<4x256xf32>
    %370 = arith.mulf %367, %369 : vector<4x256xf32>
    %c92_463 = arith.constant 92 : index
    %c0_464 = arith.constant 0 : index
    %371 = vector.load %arg16[%c92_463, %c0_464] : memref<144x256xf32, #tpu.memory_space<vmem>>, vector<4x256xf32>
    tpu.vector_store %arg16[%c92_463, %c0_464], %370 {strides = array<i32>} : memref<144x256xf32, #tpu.memory_space<vmem>>, vector<4x256xf32>,
    %c8_465 = arith.constant 8 : index
    %c143_466 = arith.constant 143 : index
    %372 = vector.load %arg15[%c8_465, %c143_466] : memref<20x512xf32, #tpu.memory_space<vmem>>, vector<4x256xf32>
    %c6_467 = arith.constant 6 : index
    %c0_468 = arith.constant 0 : index
    %c0_469 = arith.constant 0 : index
    %373 = vector.load %arg2[%c6_467, %c0_468, %c0_469] : memref<9x4x256xf32, #tpu.memory_space<vmem>>, vector<1x4x256xf32>
    %374 = vector.shape_cast %373 : vector<1x4x256xf32> to vector<4x256xf32>
    %375 = arith.mulf %372, %374 : vector<4x256xf32>
    %c96_470 = arith.constant 96 : index
    %c0_471 = arith.constant 0 : index
    %376 = vector.load %arg16[%c96_470, %c0_471] : memref<144x256xf32, #tpu.memory_space<vmem>>, vector<4x256xf32>
    tpu.vector_store %arg16[%c96_470, %c0_471], %375 {strides = array<i32>} : memref<144x256xf32, #tpu.memory_space<vmem>>, vector<4x256xf32>,
    %c8_472 = arith.constant 8 : index
    %c144_473 = arith.constant 144 : index
    %377 = vector.load %arg15[%c8_472, %c144_473] : memref<20x512xf32, #tpu.memory_space<vmem>>, vector<4x256xf32>
    %c7_474 = arith.constant 7 : index
    %c0_475 = arith.constant 0 : index
    %c0_476 = arith.constant 0 : index
    %378 = vector.load %arg2[%c7_474, %c0_475, %c0_476] : memref<9x4x256xf32, #tpu.memory_space<vmem>>, vector<1x4x256xf32>
    %379 = vector.shape_cast %378 : vector<1x4x256xf32> to vector<4x256xf32>
    %380 = arith.mulf %377, %379 : vector<4x256xf32>
    %c100_477 = arith.constant 100 : index
    %c0_478 = arith.constant 0 : index
    %381 = vector.load %arg16[%c100_477, %c0_478] : memref<144x256xf32, #tpu.memory_space<vmem>>, vector<4x256xf32>
    tpu.vector_store %arg16[%c100_477, %c0_478], %380 {strides = array<i32>} : memref<144x256xf32, #tpu.memory_space<vmem>>, vector<4x256xf32>,
    %c8_479 = arith.constant 8 : index
    %c145_480 = arith.constant 145 : index
    %382 = vector.load %arg15[%c8_479, %c145_480] : memref<20x512xf32, #tpu.memory_space<vmem>>, vector<4x256xf32>
    %c8_481 = arith.constant 8 : index
    %c0_482 = arith.constant 0 : index
    %c0_483 = arith.constant 0 : index
    %383 = vector.load %arg2[%c8_481, %c0_482, %c0_483] : memref<9x4x256xf32, #tpu.memory_space<vmem>>, vector<1x4x256xf32>
    %384 = vector.shape_cast %383 : vector<1x4x256xf32> to vector<4x256xf32>
    %385 = arith.mulf %382, %384 : vector<4x256xf32>
    %c104_484 = arith.constant 104 : index
    %c0_485 = arith.constant 0 : index
    %386 = vector.load %arg16[%c104_484, %c0_485] : memref<144x256xf32, #tpu.memory_space<vmem>>, vector<4x256xf32>
    tpu.vector_store %arg16[%c104_484, %c0_485], %385 {strides = array<i32>} : memref<144x256xf32, #tpu.memory_space<vmem>>, vector<4x256xf32>,
    %c12_486 = arith.constant 12 : index
    %c111_487 = arith.constant 111 : index
    %387 = vector.load %arg15[%c12_486, %c111_487] : memref<20x512xf32, #tpu.memory_space<vmem>>, vector<4x256xf32>
    %c0_488 = arith.constant 0 : index
    %c0_489 = arith.constant 0 : index
    %c0_490 = arith.constant 0 : index
    %388 = vector.load %arg2[%c0_488, %c0_489, %c0_490] : memref<9x4x256xf32, #tpu.memory_space<vmem>>, vector<1x4x256xf32>
    %389 = vector.shape_cast %388 : vector<1x4x256xf32> to vector<4x256xf32>
    %390 = arith.mulf %387, %389 : vector<4x256xf32>
    %c108_491 = arith.constant 108 : index
    %c0_492 = arith.constant 0 : index
    %391 = vector.load %arg16[%c108_491, %c0_492] : memref<144x256xf32, #tpu.memory_space<vmem>>, vector<4x256xf32>
    tpu.vector_store %arg16[%c108_491, %c0_492], %390 {strides = array<i32>} : memref<144x256xf32, #tpu.memory_space<vmem>>, vector<4x256xf32>,
    %c12_493 = arith.constant 12 : index
    %c112_494 = arith.constant 112 : index
    %392 = vector.load %arg15[%c12_493, %c112_494] : memref<20x512xf32, #tpu.memory_space<vmem>>, vector<4x256xf32>
    %c1_495 = arith.constant 1 : index
    %c0_496 = arith.constant 0 : index
    %c0_497 = arith.constant 0 : index
    %393 = vector.load %arg2[%c1_495, %c0_496, %c0_497] : memref<9x4x256xf32, #tpu.memory_space<vmem>>, vector<1x4x256xf32>
    %394 = vector.shape_cast %393 : vector<1x4x256xf32> to vector<4x256xf32>
    %395 = arith.mulf %392, %394 : vector<4x256xf32>
    %c112_498 = arith.constant 112 : index
    %c0_499 = arith.constant 0 : index
    %396 = vector.load %arg16[%c112_498, %c0_499] : memref<144x256xf32, #tpu.memory_space<vmem>>, vector<4x256xf32>
    tpu.vector_store %arg16[%c112_498, %c0_499], %395 {strides = array<i32>} : memref<144x256xf32, #tpu.memory_space<vmem>>, vector<4x256xf32>,
    %c12_500 = arith.constant 12 : index
    %c113_501 = arith.constant 113 : index
    %397 = vector.load %arg15[%c12_500, %c113_501] : memref<20x512xf32, #tpu.memory_space<vmem>>, vector<4x256xf32>
    %c2_502 = arith.constant 2 : index
    %c0_503 = arith.constant 0 : index
    %c0_504 = arith.constant 0 : index
    %398 = vector.load %arg2[%c2_502, %c0_503, %c0_504] : memref<9x4x256xf32, #tpu.memory_space<vmem>>, vector<1x4x256xf32>
    %399 = vector.shape_cast %398 : vector<1x4x256xf32> to vector<4x256xf32>
    %400 = arith.mulf %397, %399 : vector<4x256xf32>
    %c116_505 = arith.constant 116 : index
    %c0_506 = arith.constant 0 : index
    %401 = vector.load %arg16[%c116_505, %c0_506] : memref<144x256xf32, #tpu.memory_space<vmem>>, vector<4x256xf32>
    tpu.vector_store %arg16[%c116_505, %c0_506], %400 {strides = array<i32>} : memref<144x256xf32, #tpu.memory_space<vmem>>, vector<4x256xf32>,
    %c12_507 = arith.constant 12 : index
    %c127_508 = arith.constant 127 : index
    %402 = vector.load %arg15[%c12_507, %c127_508] : memref<20x512xf32, #tpu.memory_space<vmem>>, vector<4x256xf32>
    %c3_509 = arith.constant 3 : index
    %c0_510 = arith.constant 0 : index
    %c0_511 = arith.constant 0 : index
    %403 = vector.load %arg2[%c3_509, %c0_510, %c0_511] : memref<9x4x256xf32, #tpu.memory_space<vmem>>, vector<1x4x256xf32>
    %404 = vector.shape_cast %403 : vector<1x4x256xf32> to vector<4x256xf32>
    %405 = arith.mulf %402, %404 : vector<4x256xf32>
    %c120_512 = arith.constant 120 : index
    %c0_513 = arith.constant 0 : index
    %406 = vector.load %arg16[%c120_512, %c0_513] : memref<144x256xf32, #tpu.memory_space<vmem>>, vector<4x256xf32>
    tpu.vector_store %arg16[%c120_512, %c0_513], %405 {strides = array<i32>} : memref<144x256xf32, #tpu.memory_space<vmem>>, vector<4x256xf32>,
    %c12_514 = arith.constant 12 : index
    %c128_515 = arith.constant 128 : index
    %407 = vector.load %arg15[%c12_514, %c128_515] : memref<20x512xf32, #tpu.memory_space<vmem>>, vector<4x256xf32>
    %c124_516 = arith.constant 124 : index
    %c0_517 = arith.constant 0 : index
    %408 = vector.load %arg16[%c124_516, %c0_517] : memref<144x256xf32, #tpu.memory_space<vmem>>, vector<4x256xf32>
    tpu.vector_store %arg16[%c124_516, %c0_517], %407 {strides = array<i32>} : memref<144x256xf32, #tpu.memory_space<vmem>>, vector<4x256xf32>,
    %c12_518 = arith.constant 12 : index
    %c129_519 = arith.constant 129 : index
    %409 = vector.load %arg15[%c12_518, %c129_519] : memref<20x512xf32, #tpu.memory_space<vmem>>, vector<4x256xf32>
    %c5_520 = arith.constant 5 : index
    %c0_521 = arith.constant 0 : index
    %c0_522 = arith.constant 0 : index
    %410 = vector.load %arg2[%c5_520, %c0_521, %c0_522] : memref<9x4x256xf32, #tpu.memory_space<vmem>>, vector<1x4x256xf32>
    %411 = vector.shape_cast %410 : vector<1x4x256xf32> to vector<4x256xf32>
    %412 = arith.mulf %409, %411 : vector<4x256xf32>
    %c128_523 = arith.constant 128 : index
    %c0_524 = arith.constant 0 : index
    %413 = vector.load %arg16[%c128_523, %c0_524] : memref<144x256xf32, #tpu.memory_space<vmem>>, vector<4x256xf32>
    tpu.vector_store %arg16[%c128_523, %c0_524], %412 {strides = array<i32>} : memref<144x256xf32, #tpu.memory_space<vmem>>, vector<4x256xf32>,
    %c12_525 = arith.constant 12 : index
    %c143_526 = arith.constant 143 : index
    %414 = vector.load %arg15[%c12_525, %c143_526] : memref<20x512xf32, #tpu.memory_space<vmem>>, vector<4x256xf32>
    %c6_527 = arith.constant 6 : index
    %c0_528 = arith.constant 0 : index
    %c0_529 = arith.constant 0 : index
    %415 = vector.load %arg2[%c6_527, %c0_528, %c0_529] : memref<9x4x256xf32, #tpu.memory_space<vmem>>, vector<1x4x256xf32>
    %416 = vector.shape_cast %415 : vector<1x4x256xf32> to vector<4x256xf32>
    %417 = arith.mulf %414, %416 : vector<4x256xf32>
    %c132_530 = arith.constant 132 : index
    %c0_531 = arith.constant 0 : index
    %418 = vector.load %arg16[%c132_530, %c0_531] : memref<144x256xf32, #tpu.memory_space<vmem>>, vector<4x256xf32>
    tpu.vector_store %arg16[%c132_530, %c0_531], %417 {strides = array<i32>} : memref<144x256xf32, #tpu.memory_space<vmem>>, vector<4x256xf32>,
    %c12_532 = arith.constant 12 : index
    %c144_533 = arith.constant 144 : index
    %419 = vector.load %arg15[%c12_532, %c144_533] : memref<20x512xf32, #tpu.memory_space<vmem>>, vector<4x256xf32>
    %c7_534 = arith.constant 7 : index
    %c0_535 = arith.constant 0 : index
    %c0_536 = arith.constant 0 : index
    %420 = vector.load %arg2[%c7_534, %c0_535, %c0_536] : memref<9x4x256xf32, #tpu.memory_space<vmem>>, vector<1x4x256xf32>
    %421 = vector.shape_cast %420 : vector<1x4x256xf32> to vector<4x256xf32>
    %422 = arith.mulf %419, %421 : vector<4x256xf32>
    %c136_537 = arith.constant 136 : index
    %c0_538 = arith.constant 0 : index
    %423 = vector.load %arg16[%c136_537, %c0_538] : memref<144x256xf32, #tpu.memory_space<vmem>>, vector<4x256xf32>
    tpu.vector_store %arg16[%c136_537, %c0_538], %422 {strides = array<i32>} : memref<144x256xf32, #tpu.memory_space<vmem>>, vector<4x256xf32>,
    %c12_539 = arith.constant 12 : index
    %c145_540 = arith.constant 145 : index
    %424 = vector.load %arg15[%c12_539, %c145_540] : memref<20x512xf32, #tpu.memory_space<vmem>>, vector<4x256xf32>
    %c8_541 = arith.constant 8 : index
    %c0_542 = arith.constant 0 : index
    %c0_543 = arith.constant 0 : index
    %425 = vector.load %arg2[%c8_541, %c0_542, %c0_543] : memref<9x4x256xf32, #tpu.memory_space<vmem>>, vector<1x4x256xf32>
    %426 = vector.shape_cast %425 : vector<1x4x256xf32> to vector<4x256xf32>
    %427 = arith.mulf %424, %426 : vector<4x256xf32>
    %c140_544 = arith.constant 140 : index
    %c0_545 = arith.constant 0 : index
    %428 = vector.load %arg16[%c140_544, %c0_545] : memref<144x256xf32, #tpu.memory_space<vmem>>, vector<4x256xf32>
    tpu.vector_store %arg16[%c140_544, %c0_545], %427 {strides = array<i32>} : memref<144x256xf32, #tpu.memory_space<vmem>>, vector<4x256xf32>,
    %c1_546 = arith.constant 1 : index
    %c0_547 = arith.constant 0 : index
    %c0_548 = arith.constant 0 : index
    %429 = vector.load %arg7[%c1_546, %c0_547, %c0_548] : memref<3x16x144xf32, #tpu.memory_space<vmem>>, vector<1x16x144xf32>
    %430 = vector.shape_cast %429 : vector<1x16x144xf32> to vector<16x144xf32>
    %c0_549 = arith.constant 0 : index
    %c0_550 = arith.constant 0 : index
    %431 = vector.load %arg16[%c0_549, %c0_550] : memref<144x256xf32, #tpu.memory_space<vmem>>, vector<144x256xf32>
    %cst_551 = arith.constant dense<0.000000e+00> : vector<16x256xf32>
    %432 = tpu.matmul %430, %431, %cst_551 {dimension_numbers = #tpu.dot_dimension_numbers<[1], [0], [0], [1], [0, 0, 1, 1], [], []>} : vector<16x144xf32>, vector<144x256xf32>, vector<16x256xf32> -> vector<16x256xf32>
    %c1_552 = arith.constant 1 : index
    %c0_553 = arith.constant 0 : index
    %c0_554 = arith.constant 0 : index
    %433 = vector.load %arg8[%c1_552, %c0_553, %c0_554] : memref<3x16x1xf32, #tpu.memory_space<vmem>>, vector<1x16x1xf32>
    %434 = vector.shape_cast %433 : vector<1x16x1xf32> to vector<16x1xf32>
    %435 = vector.broadcast %434 : vector<16x1xf32> to vector<16x256xf32>
    %436 = arith.addf %432, %435 : vector<16x256xf32>
    %c1_555 = arith.constant 1 : index
    %c0_556 = arith.constant 0 : index
    %c0_557 = arith.constant 0 : index
    %437 = vector.load %arg9[%c1_555, %c0_556, %c0_557] : memref<3x16x1xf32, #tpu.memory_space<vmem>>, vector<1x16x1xf32>
    %438 = vector.shape_cast %437 : vector<1x16x1xf32> to vector<16x1xf32>
    %cst_558 = arith.constant 0.000000e+00 : f32
    %439 = vector.broadcast %cst_558 : f32 to vector<16x256xf32>
    %440 = arith.cmpf oge, %436, %439 : vector<16x256xf32>
    %441 = vector.broadcast %438 : vector<16x1xf32> to vector<16x256xf32>
    %442 = arith.mulf %441, %436 : vector<16x256xf32>
    %443 = arith.select %440, %436, %442 : vector<16x256xi1>, vector<16x256xf32>
    %444 = vector.extract_strided_slice %443 {offsets = [0, 0], sizes = [4, 256], strides = [1, 1]} : vector<16x256xf32> to vector<4x256xf32>
    %c0_559 = arith.constant 0 : index
    %c128_560 = arith.constant 128 : index
    %445 = vector.load %arg15[%c0_559, %c128_560] : memref<20x512xf32, #tpu.memory_space<vmem>>, vector<4x256xf32>
    tpu.vector_store %arg15[%c0_559, %c128_560], %444 {strides = array<i32>} : memref<20x512xf32, #tpu.memory_space<vmem>>, vector<4x256xf32>,
    %446 = vector.extract_strided_slice %443 {offsets = [4, 0], sizes = [4, 256], strides = [1, 1]} : vector<16x256xf32> to vector<4x256xf32>
    %c4_561 = arith.constant 4 : index
    %c128_562 = arith.constant 128 : index
    %447 = vector.load %arg15[%c4_561, %c128_562] : memref<20x512xf32, #tpu.memory_space<vmem>>, vector<4x256xf32>
    tpu.vector_store %arg15[%c4_561, %c128_562], %446 {strides = array<i32>} : memref<20x512xf32, #tpu.memory_space<vmem>>, vector<4x256xf32>,
    %448 = vector.extract_strided_slice %443 {offsets = [8, 0], sizes = [4, 256], strides = [1, 1]} : vector<16x256xf32> to vector<4x256xf32>
    %c8_563 = arith.constant 8 : index
    %c128_564 = arith.constant 128 : index
    %449 = vector.load %arg15[%c8_563, %c128_564] : memref<20x512xf32, #tpu.memory_space<vmem>>, vector<4x256xf32>
    tpu.vector_store %arg15[%c8_563, %c128_564], %448 {strides = array<i32>} : memref<20x512xf32, #tpu.memory_space<vmem>>, vector<4x256xf32>,
    %450 = vector.extract_strided_slice %443 {offsets = [12, 0], sizes = [4, 256], strides = [1, 1]} : vector<16x256xf32> to vector<4x256xf32>
    %c12_565 = arith.constant 12 : index
    %c128_566 = arith.constant 128 : index
    %451 = vector.load %arg15[%c12_565, %c128_566] : memref<20x512xf32, #tpu.memory_space<vmem>>, vector<4x256xf32>
    tpu.vector_store %arg15[%c12_565, %c128_566], %450 {strides = array<i32>} : memref<20x512xf32, #tpu.memory_space<vmem>>, vector<4x256xf32>,
    %c0_567 = arith.constant 0 : index
    %c111_568 = arith.constant 111 : index
    %452 = vector.load %arg15[%c0_567, %c111_568] : memref<20x512xf32, #tpu.memory_space<vmem>>, vector<4x256xf32>
    %c0_569 = arith.constant 0 : index
    %c0_570 = arith.constant 0 : index
    %c0_571 = arith.constant 0 : index
    %453 = vector.load %arg2[%c0_569, %c0_570, %c0_571] : memref<9x4x256xf32, #tpu.memory_space<vmem>>, vector<1x4x256xf32>
    %454 = vector.shape_cast %453 : vector<1x4x256xf32> to vector<4x256xf32>
    %455 = arith.mulf %452, %454 : vector<4x256xf32>
    %c0_572 = arith.constant 0 : index
    %c0_573 = arith.constant 0 : index
    %456 = vector.load %arg16[%c0_572, %c0_573] : memref<144x256xf32, #tpu.memory_space<vmem>>, vector<4x256xf32>
    tpu.vector_store %arg16[%c0_572, %c0_573], %455 {strides = array<i32>} : memref<144x256xf32, #tpu.memory_space<vmem>>, vector<4x256xf32>,
    %c0_574 = arith.constant 0 : index
    %c112_575 = arith.constant 112 : index
    %457 = vector.load %arg15[%c0_574, %c112_575] : memref<20x512xf32, #tpu.memory_space<vmem>>, vector<4x256xf32>
    %c1_576 = arith.constant 1 : index
    %c0_577 = arith.constant 0 : index
    %c0_578 = arith.constant 0 : index
    %458 = vector.load %arg2[%c1_576, %c0_577, %c0_578] : memref<9x4x256xf32, #tpu.memory_space<vmem>>, vector<1x4x256xf32>
    %459 = vector.shape_cast %458 : vector<1x4x256xf32> to vector<4x256xf32>
    %460 = arith.mulf %457, %459 : vector<4x256xf32>
    %c4_579 = arith.constant 4 : index
    %c0_580 = arith.constant 0 : index
    %461 = vector.load %arg16[%c4_579, %c0_580] : memref<144x256xf32, #tpu.memory_space<vmem>>, vector<4x256xf32>
    tpu.vector_store %arg16[%c4_579, %c0_580], %460 {strides = array<i32>} : memref<144x256xf32, #tpu.memory_space<vmem>>, vector<4x256xf32>,
    %c0_581 = arith.constant 0 : index
    %c113_582 = arith.constant 113 : index
    %462 = vector.load %arg15[%c0_581, %c113_582] : memref<20x512xf32, #tpu.memory_space<vmem>>, vector<4x256xf32>
    %c2_583 = arith.constant 2 : index
    %c0_584 = arith.constant 0 : index
    %c0_585 = arith.constant 0 : index
    %463 = vector.load %arg2[%c2_583, %c0_584, %c0_585] : memref<9x4x256xf32, #tpu.memory_space<vmem>>, vector<1x4x256xf32>
    %464 = vector.shape_cast %463 : vector<1x4x256xf32> to vector<4x256xf32>
    %465 = arith.mulf %462, %464 : vector<4x256xf32>
    %c8_586 = arith.constant 8 : index
    %c0_587 = arith.constant 0 : index
    %466 = vector.load %arg16[%c8_586, %c0_587] : memref<144x256xf32, #tpu.memory_space<vmem>>, vector<4x256xf32>
    tpu.vector_store %arg16[%c8_586, %c0_587], %465 {strides = array<i32>} : memref<144x256xf32, #tpu.memory_space<vmem>>, vector<4x256xf32>,
    %c0_588 = arith.constant 0 : index
    %c127_589 = arith.constant 127 : index
    %467 = vector.load %arg15[%c0_588, %c127_589] : memref<20x512xf32, #tpu.memory_space<vmem>>, vector<4x256xf32>
    %c3_590 = arith.constant 3 : index
    %c0_591 = arith.constant 0 : index
    %c0_592 = arith.constant 0 : index
    %468 = vector.load %arg2[%c3_590, %c0_591, %c0_592] : memref<9x4x256xf32, #tpu.memory_space<vmem>>, vector<1x4x256xf32>
    %469 = vector.shape_cast %468 : vector<1x4x256xf32> to vector<4x256xf32>
    %470 = arith.mulf %467, %469 : vector<4x256xf32>
    %c12_593 = arith.constant 12 : index
    %c0_594 = arith.constant 0 : index
    %471 = vector.load %arg16[%c12_593, %c0_594] : memref<144x256xf32, #tpu.memory_space<vmem>>, vector<4x256xf32>
    tpu.vector_store %arg16[%c12_593, %c0_594], %470 {strides = array<i32>} : memref<144x256xf32, #tpu.memory_space<vmem>>, vector<4x256xf32>,
    %c0_595 = arith.constant 0 : index
    %c128_596 = arith.constant 128 : index
    %472 = vector.load %arg15[%c0_595, %c128_596] : memref<20x512xf32, #tpu.memory_space<vmem>>, vector<4x256xf32>
    %c16_597 = arith.constant 16 : index
    %c0_598 = arith.constant 0 : index
    %473 = vector.load %arg16[%c16_597, %c0_598] : memref<144x256xf32, #tpu.memory_space<vmem>>, vector<4x256xf32>
    tpu.vector_store %arg16[%c16_597, %c0_598], %472 {strides = array<i32>} : memref<144x256xf32, #tpu.memory_space<vmem>>, vector<4x256xf32>,
    %c0_599 = arith.constant 0 : index
    %c129_600 = arith.constant 129 : index
    %474 = vector.load %arg15[%c0_599, %c129_600] : memref<20x512xf32, #tpu.memory_space<vmem>>, vector<4x256xf32>
    %c5_601 = arith.constant 5 : index
    %c0_602 = arith.constant 0 : index
    %c0_603 = arith.constant 0 : index
    %475 = vector.load %arg2[%c5_601, %c0_602, %c0_603] : memref<9x4x256xf32, #tpu.memory_space<vmem>>, vector<1x4x256xf32>
    %476 = vector.shape_cast %475 : vector<1x4x256xf32> to vector<4x256xf32>
    %477 = arith.mulf %474, %476 : vector<4x256xf32>
    %c20_604 = arith.constant 20 : index
    %c0_605 = arith.constant 0 : index
    %478 = vector.load %arg16[%c20_604, %c0_605] : memref<144x256xf32, #tpu.memory_space<vmem>>, vector<4x256xf32>
    tpu.vector_store %arg16[%c20_604, %c0_605], %477 {strides = array<i32>} : memref<144x256xf32, #tpu.memory_space<vmem>>, vector<4x256xf32>,
    %c0_606 = arith.constant 0 : index
    %c143_607 = arith.constant 143 : index
    %479 = vector.load %arg15[%c0_606, %c143_607] : memref<20x512xf32, #tpu.memory_space<vmem>>, vector<4x256xf32>
    %c6_608 = arith.constant 6 : index
    %c0_609 = arith.constant 0 : index
    %c0_610 = arith.constant 0 : index
    %480 = vector.load %arg2[%c6_608, %c0_609, %c0_610] : memref<9x4x256xf32, #tpu.memory_space<vmem>>, vector<1x4x256xf32>
    %481 = vector.shape_cast %480 : vector<1x4x256xf32> to vector<4x256xf32>
    %482 = arith.mulf %479, %481 : vector<4x256xf32>
    %c24_611 = arith.constant 24 : index
    %c0_612 = arith.constant 0 : index
    %483 = vector.load %arg16[%c24_611, %c0_612] : memref<144x256xf32, #tpu.memory_space<vmem>>, vector<4x256xf32>
    tpu.vector_store %arg16[%c24_611, %c0_612], %482 {strides = array<i32>} : memref<144x256xf32, #tpu.memory_space<vmem>>, vector<4x256xf32>,
    %c0_613 = arith.constant 0 : index
    %c144_614 = arith.constant 144 : index
    %484 = vector.load %arg15[%c0_613, %c144_614] : memref<20x512xf32, #tpu.memory_space<vmem>>, vector<4x256xf32>
    %c7_615 = arith.constant 7 : index
    %c0_616 = arith.constant 0 : index
    %c0_617 = arith.constant 0 : index
    %485 = vector.load %arg2[%c7_615, %c0_616, %c0_617] : memref<9x4x256xf32, #tpu.memory_space<vmem>>, vector<1x4x256xf32>
    %486 = vector.shape_cast %485 : vector<1x4x256xf32> to vector<4x256xf32>
    %487 = arith.mulf %484, %486 : vector<4x256xf32>
    %c28_618 = arith.constant 28 : index
    %c0_619 = arith.constant 0 : index
    %488 = vector.load %arg16[%c28_618, %c0_619] : memref<144x256xf32, #tpu.memory_space<vmem>>, vector<4x256xf32>
    tpu.vector_store %arg16[%c28_618, %c0_619], %487 {strides = array<i32>} : memref<144x256xf32, #tpu.memory_space<vmem>>, vector<4x256xf32>,
    %c0_620 = arith.constant 0 : index
    %c145_621 = arith.constant 145 : index
    %489 = vector.load %arg15[%c0_620, %c145_621] : memref<20x512xf32, #tpu.memory_space<vmem>>, vector<4x256xf32>
    %c8_622 = arith.constant 8 : index
    %c0_623 = arith.constant 0 : index
    %c0_624 = arith.constant 0 : index
    %490 = vector.load %arg2[%c8_622, %c0_623, %c0_624] : memref<9x4x256xf32, #tpu.memory_space<vmem>>, vector<1x4x256xf32>
    %491 = vector.shape_cast %490 : vector<1x4x256xf32> to vector<4x256xf32>
    %492 = arith.mulf %489, %491 : vector<4x256xf32>
    %c32_625 = arith.constant 32 : index
    %c0_626 = arith.constant 0 : index
    %493 = vector.load %arg16[%c32_625, %c0_626] : memref<144x256xf32, #tpu.memory_space<vmem>>, vector<4x256xf32>
    tpu.vector_store %arg16[%c32_625, %c0_626], %492 {strides = array<i32>} : memref<144x256xf32, #tpu.memory_space<vmem>>, vector<4x256xf32>,
    %c4_627 = arith.constant 4 : index
    %c111_628 = arith.constant 111 : index
    %494 = vector.load %arg15[%c4_627, %c111_628] : memref<20x512xf32, #tpu.memory_space<vmem>>, vector<4x256xf32>
    %c0_629 = arith.constant 0 : index
    %c0_630 = arith.constant 0 : index
    %c0_631 = arith.constant 0 : index
    %495 = vector.load %arg2[%c0_629, %c0_630, %c0_631] : memref<9x4x256xf32, #tpu.memory_space<vmem>>, vector<1x4x256xf32>
    %496 = vector.shape_cast %495 : vector<1x4x256xf32> to vector<4x256xf32>
    %497 = arith.mulf %494, %496 : vector<4x256xf32>
    %c36_632 = arith.constant 36 : index
    %c0_633 = arith.constant 0 : index
    %498 = vector.load %arg16[%c36_632, %c0_633] : memref<144x256xf32, #tpu.memory_space<vmem>>, vector<4x256xf32>
    tpu.vector_store %arg16[%c36_632, %c0_633], %497 {strides = array<i32>} : memref<144x256xf32, #tpu.memory_space<vmem>>, vector<4x256xf32>,
    %c4_634 = arith.constant 4 : index
    %c112_635 = arith.constant 112 : index
    %499 = vector.load %arg15[%c4_634, %c112_635] : memref<20x512xf32, #tpu.memory_space<vmem>>, vector<4x256xf32>
    %c1_636 = arith.constant 1 : index
    %c0_637 = arith.constant 0 : index
    %c0_638 = arith.constant 0 : index
    %500 = vector.load %arg2[%c1_636, %c0_637, %c0_638] : memref<9x4x256xf32, #tpu.memory_space<vmem>>, vector<1x4x256xf32>
    %501 = vector.shape_cast %500 : vector<1x4x256xf32> to vector<4x256xf32>
    %502 = arith.mulf %499, %501 : vector<4x256xf32>
    %c40_639 = arith.constant 40 : index
    %c0_640 = arith.constant 0 : index
    %503 = vector.load %arg16[%c40_639, %c0_640] : memref<144x256xf32, #tpu.memory_space<vmem>>, vector<4x256xf32>
    tpu.vector_store %arg16[%c40_639, %c0_640], %502 {strides = array<i32>} : memref<144x256xf32, #tpu.memory_space<vmem>>, vector<4x256xf32>,
    %c4_641 = arith.constant 4 : index
    %c113_642 = arith.constant 113 : index
    %504 = vector.load %arg15[%c4_641, %c113_642] : memref<20x512xf32, #tpu.memory_space<vmem>>, vector<4x256xf32>
    %c2_643 = arith.constant 2 : index
    %c0_644 = arith.constant 0 : index
    %c0_645 = arith.constant 0 : index
    %505 = vector.load %arg2[%c2_643, %c0_644, %c0_645] : memref<9x4x256xf32, #tpu.memory_space<vmem>>, vector<1x4x256xf32>
    %506 = vector.shape_cast %505 : vector<1x4x256xf32> to vector<4x256xf32>
    %507 = arith.mulf %504, %506 : vector<4x256xf32>
    %c44_646 = arith.constant 44 : index
    %c0_647 = arith.constant 0 : index
    %508 = vector.load %arg16[%c44_646, %c0_647] : memref<144x256xf32, #tpu.memory_space<vmem>>, vector<4x256xf32>
    tpu.vector_store %arg16[%c44_646, %c0_647], %507 {strides = array<i32>} : memref<144x256xf32, #tpu.memory_space<vmem>>, vector<4x256xf32>,
    %c4_648 = arith.constant 4 : index
    %c127_649 = arith.constant 127 : index
    %509 = vector.load %arg15[%c4_648, %c127_649] : memref<20x512xf32, #tpu.memory_space<vmem>>, vector<4x256xf32>
    %c3_650 = arith.constant 3 : index
    %c0_651 = arith.constant 0 : index
    %c0_652 = arith.constant 0 : index
    %510 = vector.load %arg2[%c3_650, %c0_651, %c0_652] : memref<9x4x256xf32, #tpu.memory_space<vmem>>, vector<1x4x256xf32>
    %511 = vector.shape_cast %510 : vector<1x4x256xf32> to vector<4x256xf32>
    %512 = arith.mulf %509, %511 : vector<4x256xf32>
    %c48_653 = arith.constant 48 : index
    %c0_654 = arith.constant 0 : index
    %513 = vector.load %arg16[%c48_653, %c0_654] : memref<144x256xf32, #tpu.memory_space<vmem>>, vector<4x256xf32>
    tpu.vector_store %arg16[%c48_653, %c0_654], %512 {strides = array<i32>} : memref<144x256xf32, #tpu.memory_space<vmem>>, vector<4x256xf32>,
    %c4_655 = arith.constant 4 : index
    %c128_656 = arith.constant 128 : index
    %514 = vector.load %arg15[%c4_655, %c128_656] : memref<20x512xf32, #tpu.memory_space<vmem>>, vector<4x256xf32>
    %c52_657 = arith.constant 52 : index
    %c0_658 = arith.constant 0 : index
    %515 = vector.load %arg16[%c52_657, %c0_658] : memref<144x256xf32, #tpu.memory_space<vmem>>, vector<4x256xf32>
    tpu.vector_store %arg16[%c52_657, %c0_658], %514 {strides = array<i32>} : memref<144x256xf32, #tpu.memory_space<vmem>>, vector<4x256xf32>,
    %c4_659 = arith.constant 4 : index
    %c129_660 = arith.constant 129 : index
    %516 = vector.load %arg15[%c4_659, %c129_660] : memref<20x512xf32, #tpu.memory_space<vmem>>, vector<4x256xf32>
    %c5_661 = arith.constant 5 : index
    %c0_662 = arith.constant 0 : index
    %c0_663 = arith.constant 0 : index
    %517 = vector.load %arg2[%c5_661, %c0_662, %c0_663] : memref<9x4x256xf32, #tpu.memory_space<vmem>>, vector<1x4x256xf32>
    %518 = vector.shape_cast %517 : vector<1x4x256xf32> to vector<4x256xf32>
    %519 = arith.mulf %516, %518 : vector<4x256xf32>
    %c56_664 = arith.constant 56 : index
    %c0_665 = arith.constant 0 : index
    %520 = vector.load %arg16[%c56_664, %c0_665] : memref<144x256xf32, #tpu.memory_space<vmem>>, vector<4x256xf32>
    tpu.vector_store %arg16[%c56_664, %c0_665], %519 {strides = array<i32>} : memref<144x256xf32, #tpu.memory_space<vmem>>, vector<4x256xf32>,
    %c4_666 = arith.constant 4 : index
    %c143_667 = arith.constant 143 : index
    %521 = vector.load %arg15[%c4_666, %c143_667] : memref<20x512xf32, #tpu.memory_space<vmem>>, vector<4x256xf32>
    %c6_668 = arith.constant 6 : index
    %c0_669 = arith.constant 0 : index
    %c0_670 = arith.constant 0 : index
    %522 = vector.load %arg2[%c6_668, %c0_669, %c0_670] : memref<9x4x256xf32, #tpu.memory_space<vmem>>, vector<1x4x256xf32>
    %523 = vector.shape_cast %522 : vector<1x4x256xf32> to vector<4x256xf32>
    %524 = arith.mulf %521, %523 : vector<4x256xf32>
    %c60_671 = arith.constant 60 : index
    %c0_672 = arith.constant 0 : index
    %525 = vector.load %arg16[%c60_671, %c0_672] : memref<144x256xf32, #tpu.memory_space<vmem>>, vector<4x256xf32>
    tpu.vector_store %arg16[%c60_671, %c0_672], %524 {strides = array<i32>} : memref<144x256xf32, #tpu.memory_space<vmem>>, vector<4x256xf32>,
    %c4_673 = arith.constant 4 : index
    %c144_674 = arith.constant 144 : index
    %526 = vector.load %arg15[%c4_673, %c144_674] : memref<20x512xf32, #tpu.memory_space<vmem>>, vector<4x256xf32>
    %c7_675 = arith.constant 7 : index
    %c0_676 = arith.constant 0 : index
    %c0_677 = arith.constant 0 : index
    %527 = vector.load %arg2[%c7_675, %c0_676, %c0_677] : memref<9x4x256xf32, #tpu.memory_space<vmem>>, vector<1x4x256xf32>
    %528 = vector.shape_cast %527 : vector<1x4x256xf32> to vector<4x256xf32>
    %529 = arith.mulf %526, %528 : vector<4x256xf32>
    %c64_678 = arith.constant 64 : index
    %c0_679 = arith.constant 0 : index
    %530 = vector.load %arg16[%c64_678, %c0_679] : memref<144x256xf32, #tpu.memory_space<vmem>>, vector<4x256xf32>
    tpu.vector_store %arg16[%c64_678, %c0_679], %529 {strides = array<i32>} : memref<144x256xf32, #tpu.memory_space<vmem>>, vector<4x256xf32>,
    %c4_680 = arith.constant 4 : index
    %c145_681 = arith.constant 145 : index
    %531 = vector.load %arg15[%c4_680, %c145_681] : memref<20x512xf32, #tpu.memory_space<vmem>>, vector<4x256xf32>
    %c8_682 = arith.constant 8 : index
    %c0_683 = arith.constant 0 : index
    %c0_684 = arith.constant 0 : index
    %532 = vector.load %arg2[%c8_682, %c0_683, %c0_684] : memref<9x4x256xf32, #tpu.memory_space<vmem>>, vector<1x4x256xf32>
    %533 = vector.shape_cast %532 : vector<1x4x256xf32> to vector<4x256xf32>
    %534 = arith.mulf %531, %533 : vector<4x256xf32>
    %c68_685 = arith.constant 68 : index
    %c0_686 = arith.constant 0 : index
    %535 = vector.load %arg16[%c68_685, %c0_686] : memref<144x256xf32, #tpu.memory_space<vmem>>, vector<4x256xf32>
    tpu.vector_store %arg16[%c68_685, %c0_686], %534 {strides = array<i32>} : memref<144x256xf32, #tpu.memory_space<vmem>>, vector<4x256xf32>,
    %c8_687 = arith.constant 8 : index
    %c111_688 = arith.constant 111 : index
    %536 = vector.load %arg15[%c8_687, %c111_688] : memref<20x512xf32, #tpu.memory_space<vmem>>, vector<4x256xf32>
    %c0_689 = arith.constant 0 : index
    %c0_690 = arith.constant 0 : index
    %c0_691 = arith.constant 0 : index
    %537 = vector.load %arg2[%c0_689, %c0_690, %c0_691] : memref<9x4x256xf32, #tpu.memory_space<vmem>>, vector<1x4x256xf32>
    %538 = vector.shape_cast %537 : vector<1x4x256xf32> to vector<4x256xf32>
    %539 = arith.mulf %536, %538 : vector<4x256xf32>
    %c72_692 = arith.constant 72 : index
    %c0_693 = arith.constant 0 : index
    %540 = vector.load %arg16[%c72_692, %c0_693] : memref<144x256xf32, #tpu.memory_space<vmem>>, vector<4x256xf32>
    tpu.vector_store %arg16[%c72_692, %c0_693], %539 {strides = array<i32>} : memref<144x256xf32, #tpu.memory_space<vmem>>, vector<4x256xf32>,
    %c8_694 = arith.constant 8 : index
    %c112_695 = arith.constant 112 : index
    %541 = vector.load %arg15[%c8_694, %c112_695] : memref<20x512xf32, #tpu.memory_space<vmem>>, vector<4x256xf32>
    %c1_696 = arith.constant 1 : index
    %c0_697 = arith.constant 0 : index
    %c0_698 = arith.constant 0 : index
    %542 = vector.load %arg2[%c1_696, %c0_697, %c0_698] : memref<9x4x256xf32, #tpu.memory_space<vmem>>, vector<1x4x256xf32>
    %543 = vector.shape_cast %542 : vector<1x4x256xf32> to vector<4x256xf32>
    %544 = arith.mulf %541, %543 : vector<4x256xf32>
    %c76_699 = arith.constant 76 : index
    %c0_700 = arith.constant 0 : index
    %545 = vector.load %arg16[%c76_699, %c0_700] : memref<144x256xf32, #tpu.memory_space<vmem>>, vector<4x256xf32>
    tpu.vector_store %arg16[%c76_699, %c0_700], %544 {strides = array<i32>} : memref<144x256xf32, #tpu.memory_space<vmem>>, vector<4x256xf32>,
    %c8_701 = arith.constant 8 : index
    %c113_702 = arith.constant 113 : index
    %546 = vector.load %arg15[%c8_701, %c113_702] : memref<20x512xf32, #tpu.memory_space<vmem>>, vector<4x256xf32>
    %c2_703 = arith.constant 2 : index
    %c0_704 = arith.constant 0 : index
    %c0_705 = arith.constant 0 : index
    %547 = vector.load %arg2[%c2_703, %c0_704, %c0_705] : memref<9x4x256xf32, #tpu.memory_space<vmem>>, vector<1x4x256xf32>
    %548 = vector.shape_cast %547 : vector<1x4x256xf32> to vector<4x256xf32>
    %549 = arith.mulf %546, %548 : vector<4x256xf32>
    %c80_706 = arith.constant 80 : index
    %c0_707 = arith.constant 0 : index
    %550 = vector.load %arg16[%c80_706, %c0_707] : memref<144x256xf32, #tpu.memory_space<vmem>>, vector<4x256xf32>
    tpu.vector_store %arg16[%c80_706, %c0_707], %549 {strides = array<i32>} : memref<144x256xf32, #tpu.memory_space<vmem>>, vector<4x256xf32>,
    %c8_708 = arith.constant 8 : index
    %c127_709 = arith.constant 127 : index
    %551 = vector.load %arg15[%c8_708, %c127_709] : memref<20x512xf32, #tpu.memory_space<vmem>>, vector<4x256xf32>
    %c3_710 = arith.constant 3 : index
    %c0_711 = arith.constant 0 : index
    %c0_712 = arith.constant 0 : index
    %552 = vector.load %arg2[%c3_710, %c0_711, %c0_712] : memref<9x4x256xf32, #tpu.memory_space<vmem>>, vector<1x4x256xf32>
    %553 = vector.shape_cast %552 : vector<1x4x256xf32> to vector<4x256xf32>
    %554 = arith.mulf %551, %553 : vector<4x256xf32>
    %c84_713 = arith.constant 84 : index
    %c0_714 = arith.constant 0 : index
    %555 = vector.load %arg16[%c84_713, %c0_714] : memref<144x256xf32, #tpu.memory_space<vmem>>, vector<4x256xf32>
    tpu.vector_store %arg16[%c84_713, %c0_714], %554 {strides = array<i32>} : memref<144x256xf32, #tpu.memory_space<vmem>>, vector<4x256xf32>,
    %c8_715 = arith.constant 8 : index
    %c128_716 = arith.constant 128 : index
    %556 = vector.load %arg15[%c8_715, %c128_716] : memref<20x512xf32, #tpu.memory_space<vmem>>, vector<4x256xf32>
    %c88_717 = arith.constant 88 : index
    %c0_718 = arith.constant 0 : index
    %557 = vector.load %arg16[%c88_717, %c0_718] : memref<144x256xf32, #tpu.memory_space<vmem>>, vector<4x256xf32>
    tpu.vector_store %arg16[%c88_717, %c0_718], %556 {strides = array<i32>} : memref<144x256xf32, #tpu.memory_space<vmem>>, vector<4x256xf32>,
    %c8_719 = arith.constant 8 : index
    %c129_720 = arith.constant 129 : index
    %558 = vector.load %arg15[%c8_719, %c129_720] : memref<20x512xf32, #tpu.memory_space<vmem>>, vector<4x256xf32>
    %c5_721 = arith.constant 5 : index
    %c0_722 = arith.constant 0 : index
    %c0_723 = arith.constant 0 : index
    %559 = vector.load %arg2[%c5_721, %c0_722, %c0_723] : memref<9x4x256xf32, #tpu.memory_space<vmem>>, vector<1x4x256xf32>
    %560 = vector.shape_cast %559 : vector<1x4x256xf32> to vector<4x256xf32>
    %561 = arith.mulf %558, %560 : vector<4x256xf32>
    %c92_724 = arith.constant 92 : index
    %c0_725 = arith.constant 0 : index
    %562 = vector.load %arg16[%c92_724, %c0_725] : memref<144x256xf32, #tpu.memory_space<vmem>>, vector<4x256xf32>
    tpu.vector_store %arg16[%c92_724, %c0_725], %561 {strides = array<i32>} : memref<144x256xf32, #tpu.memory_space<vmem>>, vector<4x256xf32>,
    %c8_726 = arith.constant 8 : index
    %c143_727 = arith.constant 143 : index
    %563 = vector.load %arg15[%c8_726, %c143_727] : memref<20x512xf32, #tpu.memory_space<vmem>>, vector<4x256xf32>
    %c6_728 = arith.constant 6 : index
    %c0_729 = arith.constant 0 : index
    %c0_730 = arith.constant 0 : index
    %564 = vector.load %arg2[%c6_728, %c0_729, %c0_730] : memref<9x4x256xf32, #tpu.memory_space<vmem>>, vector<1x4x256xf32>
    %565 = vector.shape_cast %564 : vector<1x4x256xf32> to vector<4x256xf32>
    %566 = arith.mulf %563, %565 : vector<4x256xf32>
    %c96_731 = arith.constant 96 : index
    %c0_732 = arith.constant 0 : index
    %567 = vector.load %arg16[%c96_731, %c0_732] : memref<144x256xf32, #tpu.memory_space<vmem>>, vector<4x256xf32>
    tpu.vector_store %arg16[%c96_731, %c0_732], %566 {strides = array<i32>} : memref<144x256xf32, #tpu.memory_space<vmem>>, vector<4x256xf32>,
    %c8_733 = arith.constant 8 : index
    %c144_734 = arith.constant 144 : index
    %568 = vector.load %arg15[%c8_733, %c144_734] : memref<20x512xf32, #tpu.memory_space<vmem>>, vector<4x256xf32>
    %c7_735 = arith.constant 7 : index
    %c0_736 = arith.constant 0 : index
    %c0_737 = arith.constant 0 : index
    %569 = vector.load %arg2[%c7_735, %c0_736, %c0_737] : memref<9x4x256xf32, #tpu.memory_space<vmem>>, vector<1x4x256xf32>
    %570 = vector.shape_cast %569 : vector<1x4x256xf32> to vector<4x256xf32>
    %571 = arith.mulf %568, %570 : vector<4x256xf32>
    %c100_738 = arith.constant 100 : index
    %c0_739 = arith.constant 0 : index
    %572 = vector.load %arg16[%c100_738, %c0_739] : memref<144x256xf32, #tpu.memory_space<vmem>>, vector<4x256xf32>
    tpu.vector_store %arg16[%c100_738, %c0_739], %571 {strides = array<i32>} : memref<144x256xf32, #tpu.memory_space<vmem>>, vector<4x256xf32>,
    %c8_740 = arith.constant 8 : index
    %c145_741 = arith.constant 145 : index
    %573 = vector.load %arg15[%c8_740, %c145_741] : memref<20x512xf32, #tpu.memory_space<vmem>>, vector<4x256xf32>
    %c8_742 = arith.constant 8 : index
    %c0_743 = arith.constant 0 : index
    %c0_744 = arith.constant 0 : index
    %574 = vector.load %arg2[%c8_742, %c0_743, %c0_744] : memref<9x4x256xf32, #tpu.memory_space<vmem>>, vector<1x4x256xf32>
    %575 = vector.shape_cast %574 : vector<1x4x256xf32> to vector<4x256xf32>
    %576 = arith.mulf %573, %575 : vector<4x256xf32>
    %c104_745 = arith.constant 104 : index
    %c0_746 = arith.constant 0 : index
    %577 = vector.load %arg16[%c104_745, %c0_746] : memref<144x256xf32, #tpu.memory_space<vmem>>, vector<4x256xf32>
    tpu.vector_store %arg16[%c104_745, %c0_746], %576 {strides = array<i32>} : memref<144x256xf32, #tpu.memory_space<vmem>>, vector<4x256xf32>,
    %c12_747 = arith.constant 12 : index
    %c111_748 = arith.constant 111 : index
    %578 = vector.load %arg15[%c12_747, %c111_748] : memref<20x512xf32, #tpu.memory_space<vmem>>, vector<4x256xf32>
    %c0_749 = arith.constant 0 : index
    %c0_750 = arith.constant 0 : index
    %c0_751 = arith.constant 0 : index
    %579 = vector.load %arg2[%c0_749, %c0_750, %c0_751] : memref<9x4x256xf32, #tpu.memory_space<vmem>>, vector<1x4x256xf32>
    %580 = vector.shape_cast %579 : vector<1x4x256xf32> to vector<4x256xf32>
    %581 = arith.mulf %578, %580 : vector<4x256xf32>
    %c108_752 = arith.constant 108 : index
    %c0_753 = arith.constant 0 : index
    %582 = vector.load %arg16[%c108_752, %c0_753] : memref<144x256xf32, #tpu.memory_space<vmem>>, vector<4x256xf32>
    tpu.vector_store %arg16[%c108_752, %c0_753], %581 {strides = array<i32>} : memref<144x256xf32, #tpu.memory_space<vmem>>, vector<4x256xf32>,
    %c12_754 = arith.constant 12 : index
    %c112_755 = arith.constant 112 : index
    %583 = vector.load %arg15[%c12_754, %c112_755] : memref<20x512xf32, #tpu.memory_space<vmem>>, vector<4x256xf32>
    %c1_756 = arith.constant 1 : index
    %c0_757 = arith.constant 0 : index
    %c0_758 = arith.constant 0 : index
    %584 = vector.load %arg2[%c1_756, %c0_757, %c0_758] : memref<9x4x256xf32, #tpu.memory_space<vmem>>, vector<1x4x256xf32>
    %585 = vector.shape_cast %584 : vector<1x4x256xf32> to vector<4x256xf32>
    %586 = arith.mulf %583, %585 : vector<4x256xf32>
    %c112_759 = arith.constant 112 : index
    %c0_760 = arith.constant 0 : index
    %587 = vector.load %arg16[%c112_759, %c0_760] : memref<144x256xf32, #tpu.memory_space<vmem>>, vector<4x256xf32>
    tpu.vector_store %arg16[%c112_759, %c0_760], %586 {strides = array<i32>} : memref<144x256xf32, #tpu.memory_space<vmem>>, vector<4x256xf32>,
    %c12_761 = arith.constant 12 : index
    %c113_762 = arith.constant 113 : index
    %588 = vector.load %arg15[%c12_761, %c113_762] : memref<20x512xf32, #tpu.memory_space<vmem>>, vector<4x256xf32>
    %c2_763 = arith.constant 2 : index
    %c0_764 = arith.constant 0 : index
    %c0_765 = arith.constant 0 : index
    %589 = vector.load %arg2[%c2_763, %c0_764, %c0_765] : memref<9x4x256xf32, #tpu.memory_space<vmem>>, vector<1x4x256xf32>
    %590 = vector.shape_cast %589 : vector<1x4x256xf32> to vector<4x256xf32>
    %591 = arith.mulf %588, %590 : vector<4x256xf32>
    %c116_766 = arith.constant 116 : index
    %c0_767 = arith.constant 0 : index
    %592 = vector.load %arg16[%c116_766, %c0_767] : memref<144x256xf32, #tpu.memory_space<vmem>>, vector<4x256xf32>
    tpu.vector_store %arg16[%c116_766, %c0_767], %591 {strides = array<i32>} : memref<144x256xf32, #tpu.memory_space<vmem>>, vector<4x256xf32>,
    %c12_768 = arith.constant 12 : index
    %c127_769 = arith.constant 127 : index
    %593 = vector.load %arg15[%c12_768, %c127_769] : memref<20x512xf32, #tpu.memory_space<vmem>>, vector<4x256xf32>
    %c3_770 = arith.constant 3 : index
    %c0_771 = arith.constant 0 : index
    %c0_772 = arith.constant 0 : index
    %594 = vector.load %arg2[%c3_770, %c0_771, %c0_772] : memref<9x4x256xf32, #tpu.memory_space<vmem>>, vector<1x4x256xf32>
    %595 = vector.shape_cast %594 : vector<1x4x256xf32> to vector<4x256xf32>
    %596 = arith.mulf %593, %595 : vector<4x256xf32>
    %c120_773 = arith.constant 120 : index
    %c0_774 = arith.constant 0 : index
    %597 = vector.load %arg16[%c120_773, %c0_774] : memref<144x256xf32, #tpu.memory_space<vmem>>, vector<4x256xf32>
    tpu.vector_store %arg16[%c120_773, %c0_774], %596 {strides = array<i32>} : memref<144x256xf32, #tpu.memory_space<vmem>>, vector<4x256xf32>,
    %c12_775 = arith.constant 12 : index
    %c128_776 = arith.constant 128 : index
    %598 = vector.load %arg15[%c12_775, %c128_776] : memref<20x512xf32, #tpu.memory_space<vmem>>, vector<4x256xf32>
    %c124_777 = arith.constant 124 : index
    %c0_778 = arith.constant 0 : index
    %599 = vector.load %arg16[%c124_777, %c0_778] : memref<144x256xf32, #tpu.memory_space<vmem>>, vector<4x256xf32>
    tpu.vector_store %arg16[%c124_777, %c0_778], %598 {strides = array<i32>} : memref<144x256xf32, #tpu.memory_space<vmem>>, vector<4x256xf32>,
    %c12_779 = arith.constant 12 : index
    %c129_780 = arith.constant 129 : index
    %600 = vector.load %arg15[%c12_779, %c129_780] : memref<20x512xf32, #tpu.memory_space<vmem>>, vector<4x256xf32>
    %c5_781 = arith.constant 5 : index
    %c0_782 = arith.constant 0 : index
    %c0_783 = arith.constant 0 : index
    %601 = vector.load %arg2[%c5_781, %c0_782, %c0_783] : memref<9x4x256xf32, #tpu.memory_space<vmem>>, vector<1x4x256xf32>
    %602 = vector.shape_cast %601 : vector<1x4x256xf32> to vector<4x256xf32>
    %603 = arith.mulf %600, %602 : vector<4x256xf32>
    %c128_784 = arith.constant 128 : index
    %c0_785 = arith.constant 0 : index
    %604 = vector.load %arg16[%c128_784, %c0_785] : memref<144x256xf32, #tpu.memory_space<vmem>>, vector<4x256xf32>
    tpu.vector_store %arg16[%c128_784, %c0_785], %603 {strides = array<i32>} : memref<144x256xf32, #tpu.memory_space<vmem>>, vector<4x256xf32>,
    %c12_786 = arith.constant 12 : index
    %c143_787 = arith.constant 143 : index
    %605 = vector.load %arg15[%c12_786, %c143_787] : memref<20x512xf32, #tpu.memory_space<vmem>>, vector<4x256xf32>
    %c6_788 = arith.constant 6 : index
    %c0_789 = arith.constant 0 : index
    %c0_790 = arith.constant 0 : index
    %606 = vector.load %arg2[%c6_788, %c0_789, %c0_790] : memref<9x4x256xf32, #tpu.memory_space<vmem>>, vector<1x4x256xf32>
    %607 = vector.shape_cast %606 : vector<1x4x256xf32> to vector<4x256xf32>
    %608 = arith.mulf %605, %607 : vector<4x256xf32>
    %c132_791 = arith.constant 132 : index
    %c0_792 = arith.constant 0 : index
    %609 = vector.load %arg16[%c132_791, %c0_792] : memref<144x256xf32, #tpu.memory_space<vmem>>, vector<4x256xf32>
    tpu.vector_store %arg16[%c132_791, %c0_792], %608 {strides = array<i32>} : memref<144x256xf32, #tpu.memory_space<vmem>>, vector<4x256xf32>,
    %c12_793 = arith.constant 12 : index
    %c144_794 = arith.constant 144 : index
    %610 = vector.load %arg15[%c12_793, %c144_794] : memref<20x512xf32, #tpu.memory_space<vmem>>, vector<4x256xf32>
    %c7_795 = arith.constant 7 : index
    %c0_796 = arith.constant 0 : index
    %c0_797 = arith.constant 0 : index
    %611 = vector.load %arg2[%c7_795, %c0_796, %c0_797] : memref<9x4x256xf32, #tpu.memory_space<vmem>>, vector<1x4x256xf32>
    %612 = vector.shape_cast %611 : vector<1x4x256xf32> to vector<4x256xf32>
    %613 = arith.mulf %610, %612 : vector<4x256xf32>
    %c136_798 = arith.constant 136 : index
    %c0_799 = arith.constant 0 : index
    %614 = vector.load %arg16[%c136_798, %c0_799] : memref<144x256xf32, #tpu.memory_space<vmem>>, vector<4x256xf32>
    tpu.vector_store %arg16[%c136_798, %c0_799], %613 {strides = array<i32>} : memref<144x256xf32, #tpu.memory_space<vmem>>, vector<4x256xf32>,
    %c12_800 = arith.constant 12 : index
    %c145_801 = arith.constant 145 : index
    %615 = vector.load %arg15[%c12_800, %c145_801] : memref<20x512xf32, #tpu.memory_space<vmem>>, vector<4x256xf32>
    %c8_802 = arith.constant 8 : index
    %c0_803 = arith.constant 0 : index
    %c0_804 = arith.constant 0 : index
    %616 = vector.load %arg2[%c8_802, %c0_803, %c0_804] : memref<9x4x256xf32, #tpu.memory_space<vmem>>, vector<1x4x256xf32>
    %617 = vector.shape_cast %616 : vector<1x4x256xf32> to vector<4x256xf32>
    %618 = arith.mulf %615, %617 : vector<4x256xf32>
    %c140_805 = arith.constant 140 : index
    %c0_806 = arith.constant 0 : index
    %619 = vector.load %arg16[%c140_805, %c0_806] : memref<144x256xf32, #tpu.memory_space<vmem>>, vector<4x256xf32>
    tpu.vector_store %arg16[%c140_805, %c0_806], %618 {strides = array<i32>} : memref<144x256xf32, #tpu.memory_space<vmem>>, vector<4x256xf32>,
    %c2_807 = arith.constant 2 : index
    %c0_808 = arith.constant 0 : index
    %c0_809 = arith.constant 0 : index
    %620 = vector.load %arg7[%c2_807, %c0_808, %c0_809] : memref<3x16x144xf32, #tpu.memory_space<vmem>>, vector<1x16x144xf32>
    %621 = vector.shape_cast %620 : vector<1x16x144xf32> to vector<16x144xf32>
    %c0_810 = arith.constant 0 : index
    %c0_811 = arith.constant 0 : index
    %622 = vector.load %arg16[%c0_810, %c0_811] : memref<144x256xf32, #tpu.memory_space<vmem>>, vector<144x256xf32>
    %cst_812 = arith.constant dense<0.000000e+00> : vector<16x256xf32>
    %623 = tpu.matmul %621, %622, %cst_812 {dimension_numbers = #tpu.dot_dimension_numbers<[1], [0], [0], [1], [0, 0, 1, 1], [], []>} : vector<16x144xf32>, vector<144x256xf32>, vector<16x256xf32> -> vector<16x256xf32>
    %c2_813 = arith.constant 2 : index
    %c0_814 = arith.constant 0 : index
    %c0_815 = arith.constant 0 : index
    %624 = vector.load %arg8[%c2_813, %c0_814, %c0_815] : memref<3x16x1xf32, #tpu.memory_space<vmem>>, vector<1x16x1xf32>
    %625 = vector.shape_cast %624 : vector<1x16x1xf32> to vector<16x1xf32>
    %626 = vector.broadcast %625 : vector<16x1xf32> to vector<16x256xf32>
    %627 = arith.addf %623, %626 : vector<16x256xf32>
    %c2_816 = arith.constant 2 : index
    %c0_817 = arith.constant 0 : index
    %c0_818 = arith.constant 0 : index
    %628 = vector.load %arg9[%c2_816, %c0_817, %c0_818] : memref<3x16x1xf32, #tpu.memory_space<vmem>>, vector<1x16x1xf32>
    %629 = vector.shape_cast %628 : vector<1x16x1xf32> to vector<16x1xf32>
    %cst_819 = arith.constant 0.000000e+00 : f32
    %630 = vector.broadcast %cst_819 : f32 to vector<16x256xf32>
    %631 = arith.cmpf oge, %627, %630 : vector<16x256xf32>
    %632 = vector.broadcast %629 : vector<16x1xf32> to vector<16x256xf32>
    %633 = arith.mulf %632, %627 : vector<16x256xf32>
    %634 = arith.select %631, %627, %633 : vector<16x256xi1>, vector<16x256xf32>
    %c0_820 = arith.constant 0 : index
    %c0_821 = arith.constant 0 : index
    %c0_822 = arith.constant 0 : index
    %635 = vector.load %arg14[%c0_820, %c0_821, %c0_822] : memref<1x16x256xf32, #tpu.memory_space<vmem>>, vector<1x16x256xf32>
    %636 = vector.shape_cast %635 : vector<1x16x256xf32> to vector<16x256xf32>
    %637 = vector.shape_cast %634 : vector<16x256xf32> to vector<1x16x256xf32>
    tpu.vector_store %arg14[%c0_820, %c0_821, %c0_822], %637 {strides = array<i32>} : memref<1x16x256xf32, #tpu.memory_space<vmem>>, vector<1x16x256xf32>,
    %638 = arith.subf %4, %237 : vector<4x256xf32>
    %c16_823 = arith.constant 16 : index
    %c128_824 = arith.constant 128 : index
    %639 = vector.load %arg15[%c16_823, %c128_824] : memref<20x512xf32, #tpu.memory_space<vmem>>, vector<4x256xf32>
    tpu.vector_store %arg15[%c16_823, %c128_824], %638 {strides = array<i32>} : memref<20x512xf32, #tpu.memory_space<vmem>>, vector<4x256xf32>,
    %c16_825 = arith.constant 16 : index
    %c111_826 = arith.constant 111 : index
    %640 = vector.load %arg15[%c16_825, %c111_826] : memref<20x512xf32, #tpu.memory_space<vmem>>, vector<4x256xf32>
    %c0_827 = arith.constant 0 : index
    %c0_828 = arith.constant 0 : index
    %c0_829 = arith.constant 0 : index
    %641 = vector.load %arg2[%c0_827, %c0_828, %c0_829] : memref<9x4x256xf32, #tpu.memory_space<vmem>>, vector<1x4x256xf32>
    %642 = vector.shape_cast %641 : vector<1x4x256xf32> to vector<4x256xf32>
    %643 = arith.mulf %640, %642 : vector<4x256xf32>
    %c0_830 = arith.constant 0 : index
    %c0_831 = arith.constant 0 : index
    %644 = vector.load %arg16[%c0_830, %c0_831] : memref<144x256xf32, #tpu.memory_space<vmem>>, vector<4x256xf32>
    tpu.vector_store %arg16[%c0_830, %c0_831], %643 {strides = array<i32>} : memref<144x256xf32, #tpu.memory_space<vmem>>, vector<4x256xf32>,
    %c16_832 = arith.constant 16 : index
    %c112_833 = arith.constant 112 : index
    %645 = vector.load %arg15[%c16_832, %c112_833] : memref<20x512xf32, #tpu.memory_space<vmem>>, vector<4x256xf32>
    %c1_834 = arith.constant 1 : index
    %c0_835 = arith.constant 0 : index
    %c0_836 = arith.constant 0 : index
    %646 = vector.load %arg2[%c1_834, %c0_835, %c0_836] : memref<9x4x256xf32, #tpu.memory_space<vmem>>, vector<1x4x256xf32>
    %647 = vector.shape_cast %646 : vector<1x4x256xf32> to vector<4x256xf32>
    %648 = arith.mulf %645, %647 : vector<4x256xf32>
    %c4_837 = arith.constant 4 : index
    %c0_838 = arith.constant 0 : index
    %649 = vector.load %arg16[%c4_837, %c0_838] : memref<144x256xf32, #tpu.memory_space<vmem>>, vector<4x256xf32>
    tpu.vector_store %arg16[%c4_837, %c0_838], %648 {strides = array<i32>} : memref<144x256xf32, #tpu.memory_space<vmem>>, vector<4x256xf32>,
    %c16_839 = arith.constant 16 : index
    %c113_840 = arith.constant 113 : index
    %650 = vector.load %arg15[%c16_839, %c113_840] : memref<20x512xf32, #tpu.memory_space<vmem>>, vector<4x256xf32>
    %c2_841 = arith.constant 2 : index
    %c0_842 = arith.constant 0 : index
    %c0_843 = arith.constant 0 : index
    %651 = vector.load %arg2[%c2_841, %c0_842, %c0_843] : memref<9x4x256xf32, #tpu.memory_space<vmem>>, vector<1x4x256xf32>
    %652 = vector.shape_cast %651 : vector<1x4x256xf32> to vector<4x256xf32>
    %653 = arith.mulf %650, %652 : vector<4x256xf32>
    %c8_844 = arith.constant 8 : index
    %c0_845 = arith.constant 0 : index
    %654 = vector.load %arg16[%c8_844, %c0_845] : memref<144x256xf32, #tpu.memory_space<vmem>>, vector<4x256xf32>
    tpu.vector_store %arg16[%c8_844, %c0_845], %653 {strides = array<i32>} : memref<144x256xf32, #tpu.memory_space<vmem>>, vector<4x256xf32>,
    %c16_846 = arith.constant 16 : index
    %c127_847 = arith.constant 127 : index
    %655 = vector.load %arg15[%c16_846, %c127_847] : memref<20x512xf32, #tpu.memory_space<vmem>>, vector<4x256xf32>
    %c3_848 = arith.constant 3 : index
    %c0_849 = arith.constant 0 : index
    %c0_850 = arith.constant 0 : index
    %656 = vector.load %arg2[%c3_848, %c0_849, %c0_850] : memref<9x4x256xf32, #tpu.memory_space<vmem>>, vector<1x4x256xf32>
    %657 = vector.shape_cast %656 : vector<1x4x256xf32> to vector<4x256xf32>
    %658 = arith.mulf %655, %657 : vector<4x256xf32>
    %c12_851 = arith.constant 12 : index
    %c0_852 = arith.constant 0 : index
    %659 = vector.load %arg16[%c12_851, %c0_852] : memref<144x256xf32, #tpu.memory_space<vmem>>, vector<4x256xf32>
    tpu.vector_store %arg16[%c12_851, %c0_852], %658 {strides = array<i32>} : memref<144x256xf32, #tpu.memory_space<vmem>>, vector<4x256xf32>,
    %c16_853 = arith.constant 16 : index
    %c128_854 = arith.constant 128 : index
    %660 = vector.load %arg15[%c16_853, %c128_854] : memref<20x512xf32, #tpu.memory_space<vmem>>, vector<4x256xf32>
    %c16_855 = arith.constant 16 : index
    %c0_856 = arith.constant 0 : index
    %661 = vector.load %arg16[%c16_855, %c0_856] : memref<144x256xf32, #tpu.memory_space<vmem>>, vector<4x256xf32>
    tpu.vector_store %arg16[%c16_855, %c0_856], %660 {strides = array<i32>} : memref<144x256xf32, #tpu.memory_space<vmem>>, vector<4x256xf32>,
    %c16_857 = arith.constant 16 : index
    %c129_858 = arith.constant 129 : index
    %662 = vector.load %arg15[%c16_857, %c129_858] : memref<20x512xf32, #tpu.memory_space<vmem>>, vector<4x256xf32>
    %c5_859 = arith.constant 5 : index
    %c0_860 = arith.constant 0 : index
    %c0_861 = arith.constant 0 : index
    %663 = vector.load %arg2[%c5_859, %c0_860, %c0_861] : memref<9x4x256xf32, #tpu.memory_space<vmem>>, vector<1x4x256xf32>
    %664 = vector.shape_cast %663 : vector<1x4x256xf32> to vector<4x256xf32>
    %665 = arith.mulf %662, %664 : vector<4x256xf32>
    %c20_862 = arith.constant 20 : index
    %c0_863 = arith.constant 0 : index
    %666 = vector.load %arg16[%c20_862, %c0_863] : memref<144x256xf32, #tpu.memory_space<vmem>>, vector<4x256xf32>
    tpu.vector_store %arg16[%c20_862, %c0_863], %665 {strides = array<i32>} : memref<144x256xf32, #tpu.memory_space<vmem>>, vector<4x256xf32>,
    %c16_864 = arith.constant 16 : index
    %c143_865 = arith.constant 143 : index
    %667 = vector.load %arg15[%c16_864, %c143_865] : memref<20x512xf32, #tpu.memory_space<vmem>>, vector<4x256xf32>
    %c6_866 = arith.constant 6 : index
    %c0_867 = arith.constant 0 : index
    %c0_868 = arith.constant 0 : index
    %668 = vector.load %arg2[%c6_866, %c0_867, %c0_868] : memref<9x4x256xf32, #tpu.memory_space<vmem>>, vector<1x4x256xf32>
    %669 = vector.shape_cast %668 : vector<1x4x256xf32> to vector<4x256xf32>
    %670 = arith.mulf %667, %669 : vector<4x256xf32>
    %c24_869 = arith.constant 24 : index
    %c0_870 = arith.constant 0 : index
    %671 = vector.load %arg16[%c24_869, %c0_870] : memref<144x256xf32, #tpu.memory_space<vmem>>, vector<4x256xf32>
    tpu.vector_store %arg16[%c24_869, %c0_870], %670 {strides = array<i32>} : memref<144x256xf32, #tpu.memory_space<vmem>>, vector<4x256xf32>,
    %c16_871 = arith.constant 16 : index
    %c144_872 = arith.constant 144 : index
    %672 = vector.load %arg15[%c16_871, %c144_872] : memref<20x512xf32, #tpu.memory_space<vmem>>, vector<4x256xf32>
    %c7_873 = arith.constant 7 : index
    %c0_874 = arith.constant 0 : index
    %c0_875 = arith.constant 0 : index
    %673 = vector.load %arg2[%c7_873, %c0_874, %c0_875] : memref<9x4x256xf32, #tpu.memory_space<vmem>>, vector<1x4x256xf32>
    %674 = vector.shape_cast %673 : vector<1x4x256xf32> to vector<4x256xf32>
    %675 = arith.mulf %672, %674 : vector<4x256xf32>
    %c28_876 = arith.constant 28 : index
    %c0_877 = arith.constant 0 : index
    %676 = vector.load %arg16[%c28_876, %c0_877] : memref<144x256xf32, #tpu.memory_space<vmem>>, vector<4x256xf32>
    tpu.vector_store %arg16[%c28_876, %c0_877], %675 {strides = array<i32>} : memref<144x256xf32, #tpu.memory_space<vmem>>, vector<4x256xf32>,
    %c16_878 = arith.constant 16 : index
    %c145_879 = arith.constant 145 : index
    %677 = vector.load %arg15[%c16_878, %c145_879] : memref<20x512xf32, #tpu.memory_space<vmem>>, vector<4x256xf32>
    %c8_880 = arith.constant 8 : index
    %c0_881 = arith.constant 0 : index
    %c0_882 = arith.constant 0 : index
    %678 = vector.load %arg2[%c8_880, %c0_881, %c0_882] : memref<9x4x256xf32, #tpu.memory_space<vmem>>, vector<1x4x256xf32>
    %679 = vector.shape_cast %678 : vector<1x4x256xf32> to vector<4x256xf32>
    %680 = arith.mulf %677, %679 : vector<4x256xf32>
    %c32_883 = arith.constant 32 : index
    %c0_884 = arith.constant 0 : index
    %681 = vector.load %arg16[%c32_883, %c0_884] : memref<144x256xf32, #tpu.memory_space<vmem>>, vector<4x256xf32>
    tpu.vector_store %arg16[%c32_883, %c0_884], %680 {strides = array<i32>} : memref<144x256xf32, #tpu.memory_space<vmem>>, vector<4x256xf32>,
    %c16_885 = arith.constant 16 : index
    %c128_886 = arith.constant 128 : index
    %682 = vector.load %arg15[%c16_885, %c128_886] : memref<20x512xf32, #tpu.memory_space<vmem>>, vector<4x256xf32>
    %c36_887 = arith.constant 36 : index
    %c0_888 = arith.constant 0 : index
    %683 = vector.load %arg16[%c36_887, %c0_888] : memref<144x256xf32, #tpu.memory_space<vmem>>, vector<4x256xf32>
    tpu.vector_store %arg16[%c36_887, %c0_888], %682 {strides = array<i32>} : memref<144x256xf32, #tpu.memory_space<vmem>>, vector<4x256xf32>,
    %c0_889 = arith.constant 0 : index
    %c0_890 = arith.constant 0 : index
    %c0_891 = arith.constant 0 : index
    %684 = vector.load %arg10[%c0_889, %c0_890, %c0_891] : memref<3x4x40xf32, #tpu.memory_space<vmem>>, vector<1x4x40xf32>
    %685 = vector.shape_cast %684 : vector<1x4x40xf32> to vector<4x40xf32>
    %c0_892 = arith.constant 0 : index
    %c0_893 = arith.constant 0 : index
    %686 = vector.load %arg16[%c0_892, %c0_893] : memref<144x256xf32, #tpu.memory_space<vmem>>, vector<40x256xf32>
    %cst_894 = arith.constant dense<0.000000e+00> : vector<4x256xf32>
    %687 = tpu.matmul %685, %686, %cst_894 {dimension_numbers = #tpu.dot_dimension_numbers<[1], [0], [0], [1], [0, 0, 1, 1], [], []>} : vector<4x40xf32>, vector<40x256xf32>, vector<4x256xf32> -> vector<4x256xf32>
    %c0_895 = arith.constant 0 : index
    %c0_896 = arith.constant 0 : index
    %c0_897 = arith.constant 0 : index
    %688 = vector.load %arg11[%c0_895, %c0_896, %c0_897] : memref<3x4x1xf32, #tpu.memory_space<vmem>>, vector<1x4x1xf32>
    %689 = vector.shape_cast %688 : vector<1x4x1xf32> to vector<4x1xf32>
    %690 = vector.broadcast %689 : vector<4x1xf32> to vector<4x256xf32>
    %691 = arith.addf %687, %690 : vector<4x256xf32>
    %c0_898 = arith.constant 0 : index
    %c0_899 = arith.constant 0 : index
    %c0_900 = arith.constant 0 : index
    %692 = vector.load %arg12[%c0_898, %c0_899, %c0_900] : memref<3x4x1xf32, #tpu.memory_space<vmem>>, vector<1x4x1xf32>
    %693 = vector.shape_cast %692 : vector<1x4x1xf32> to vector<4x1xf32>
    %cst_901 = arith.constant 0.000000e+00 : f32
    %694 = vector.broadcast %cst_901 : f32 to vector<4x256xf32>
    %695 = arith.cmpf oge, %691, %694 : vector<4x256xf32>
    %696 = vector.broadcast %693 : vector<4x1xf32> to vector<4x256xf32>
    %697 = arith.mulf %696, %691 : vector<4x256xf32>
    %698 = arith.select %695, %691, %697 : vector<4x256xi1>, vector<4x256xf32>
    %c16_902 = arith.constant 16 : index
    %c128_903 = arith.constant 128 : index
    %699 = vector.load %arg15[%c16_902, %c128_903] : memref<20x512xf32, #tpu.memory_space<vmem>>, vector<4x256xf32>
    tpu.vector_store %arg15[%c16_902, %c128_903], %698 {strides = array<i32>} : memref<20x512xf32, #tpu.memory_space<vmem>>, vector<4x256xf32>,
    %c16_904 = arith.constant 16 : index
    %c111_905 = arith.constant 111 : index
    %700 = vector.load %arg15[%c16_904, %c111_905] : memref<20x512xf32, #tpu.memory_space<vmem>>, vector<4x256xf32>
    %c0_906 = arith.constant 0 : index
    %c0_907 = arith.constant 0 : index
    %c0_908 = arith.constant 0 : index
    %701 = vector.load %arg2[%c0_906, %c0_907, %c0_908] : memref<9x4x256xf32, #tpu.memory_space<vmem>>, vector<1x4x256xf32>
    %702 = vector.shape_cast %701 : vector<1x4x256xf32> to vector<4x256xf32>
    %703 = arith.mulf %700, %702 : vector<4x256xf32>
    %c0_909 = arith.constant 0 : index
    %c0_910 = arith.constant 0 : index
    %704 = vector.load %arg16[%c0_909, %c0_910] : memref<144x256xf32, #tpu.memory_space<vmem>>, vector<4x256xf32>
    tpu.vector_store %arg16[%c0_909, %c0_910], %703 {strides = array<i32>} : memref<144x256xf32, #tpu.memory_space<vmem>>, vector<4x256xf32>,
    %c16_911 = arith.constant 16 : index
    %c112_912 = arith.constant 112 : index
    %705 = vector.load %arg15[%c16_911, %c112_912] : memref<20x512xf32, #tpu.memory_space<vmem>>, vector<4x256xf32>
    %c1_913 = arith.constant 1 : index
    %c0_914 = arith.constant 0 : index
    %c0_915 = arith.constant 0 : index
    %706 = vector.load %arg2[%c1_913, %c0_914, %c0_915] : memref<9x4x256xf32, #tpu.memory_space<vmem>>, vector<1x4x256xf32>
    %707 = vector.shape_cast %706 : vector<1x4x256xf32> to vector<4x256xf32>
    %708 = arith.mulf %705, %707 : vector<4x256xf32>
    %c4_916 = arith.constant 4 : index
    %c0_917 = arith.constant 0 : index
    %709 = vector.load %arg16[%c4_916, %c0_917] : memref<144x256xf32, #tpu.memory_space<vmem>>, vector<4x256xf32>
    tpu.vector_store %arg16[%c4_916, %c0_917], %708 {strides = array<i32>} : memref<144x256xf32, #tpu.memory_space<vmem>>, vector<4x256xf32>,
    %c16_918 = arith.constant 16 : index
    %c113_919 = arith.constant 113 : index
    %710 = vector.load %arg15[%c16_918, %c113_919] : memref<20x512xf32, #tpu.memory_space<vmem>>, vector<4x256xf32>
    %c2_920 = arith.constant 2 : index
    %c0_921 = arith.constant 0 : index
    %c0_922 = arith.constant 0 : index
    %711 = vector.load %arg2[%c2_920, %c0_921, %c0_922] : memref<9x4x256xf32, #tpu.memory_space<vmem>>, vector<1x4x256xf32>
    %712 = vector.shape_cast %711 : vector<1x4x256xf32> to vector<4x256xf32>
    %713 = arith.mulf %710, %712 : vector<4x256xf32>
    %c8_923 = arith.constant 8 : index
    %c0_924 = arith.constant 0 : index
    %714 = vector.load %arg16[%c8_923, %c0_924] : memref<144x256xf32, #tpu.memory_space<vmem>>, vector<4x256xf32>
    tpu.vector_store %arg16[%c8_923, %c0_924], %713 {strides = array<i32>} : memref<144x256xf32, #tpu.memory_space<vmem>>, vector<4x256xf32>,
    %c16_925 = arith.constant 16 : index
    %c127_926 = arith.constant 127 : index
    %715 = vector.load %arg15[%c16_925, %c127_926] : memref<20x512xf32, #tpu.memory_space<vmem>>, vector<4x256xf32>
    %c3_927 = arith.constant 3 : index
    %c0_928 = arith.constant 0 : index
    %c0_929 = arith.constant 0 : index
    %716 = vector.load %arg2[%c3_927, %c0_928, %c0_929] : memref<9x4x256xf32, #tpu.memory_space<vmem>>, vector<1x4x256xf32>
    %717 = vector.shape_cast %716 : vector<1x4x256xf32> to vector<4x256xf32>
    %718 = arith.mulf %715, %717 : vector<4x256xf32>
    %c12_930 = arith.constant 12 : index
    %c0_931 = arith.constant 0 : index
    %719 = vector.load %arg16[%c12_930, %c0_931] : memref<144x256xf32, #tpu.memory_space<vmem>>, vector<4x256xf32>
    tpu.vector_store %arg16[%c12_930, %c0_931], %718 {strides = array<i32>} : memref<144x256xf32, #tpu.memory_space<vmem>>, vector<4x256xf32>,
    %c16_932 = arith.constant 16 : index
    %c128_933 = arith.constant 128 : index
    %720 = vector.load %arg15[%c16_932, %c128_933] : memref<20x512xf32, #tpu.memory_space<vmem>>, vector<4x256xf32>
    %c16_934 = arith.constant 16 : index
    %c0_935 = arith.constant 0 : index
    %721 = vector.load %arg16[%c16_934, %c0_935] : memref<144x256xf32, #tpu.memory_space<vmem>>, vector<4x256xf32>
    tpu.vector_store %arg16[%c16_934, %c0_935], %720 {strides = array<i32>} : memref<144x256xf32, #tpu.memory_space<vmem>>, vector<4x256xf32>,
    %c16_936 = arith.constant 16 : index
    %c129_937 = arith.constant 129 : index
    %722 = vector.load %arg15[%c16_936, %c129_937] : memref<20x512xf32, #tpu.memory_space<vmem>>, vector<4x256xf32>
    %c5_938 = arith.constant 5 : index
    %c0_939 = arith.constant 0 : index
    %c0_940 = arith.constant 0 : index
    %723 = vector.load %arg2[%c5_938, %c0_939, %c0_940] : memref<9x4x256xf32, #tpu.memory_space<vmem>>, vector<1x4x256xf32>
    %724 = vector.shape_cast %723 : vector<1x4x256xf32> to vector<4x256xf32>
    %725 = arith.mulf %722, %724 : vector<4x256xf32>
    %c20_941 = arith.constant 20 : index
    %c0_942 = arith.constant 0 : index
    %726 = vector.load %arg16[%c20_941, %c0_942] : memref<144x256xf32, #tpu.memory_space<vmem>>, vector<4x256xf32>
    tpu.vector_store %arg16[%c20_941, %c0_942], %725 {strides = array<i32>} : memref<144x256xf32, #tpu.memory_space<vmem>>, vector<4x256xf32>,
    %c16_943 = arith.constant 16 : index
    %c143_944 = arith.constant 143 : index
    %727 = vector.load %arg15[%c16_943, %c143_944] : memref<20x512xf32, #tpu.memory_space<vmem>>, vector<4x256xf32>
    %c6_945 = arith.constant 6 : index
    %c0_946 = arith.constant 0 : index
    %c0_947 = arith.constant 0 : index
    %728 = vector.load %arg2[%c6_945, %c0_946, %c0_947] : memref<9x4x256xf32, #tpu.memory_space<vmem>>, vector<1x4x256xf32>
    %729 = vector.shape_cast %728 : vector<1x4x256xf32> to vector<4x256xf32>
    %730 = arith.mulf %727, %729 : vector<4x256xf32>
    %c24_948 = arith.constant 24 : index
    %c0_949 = arith.constant 0 : index
    %731 = vector.load %arg16[%c24_948, %c0_949] : memref<144x256xf32, #tpu.memory_space<vmem>>, vector<4x256xf32>
    tpu.vector_store %arg16[%c24_948, %c0_949], %730 {strides = array<i32>} : memref<144x256xf32, #tpu.memory_space<vmem>>, vector<4x256xf32>,
    %c16_950 = arith.constant 16 : index
    %c144_951 = arith.constant 144 : index
    %732 = vector.load %arg15[%c16_950, %c144_951] : memref<20x512xf32, #tpu.memory_space<vmem>>, vector<4x256xf32>
    %c7_952 = arith.constant 7 : index
    %c0_953 = arith.constant 0 : index
    %c0_954 = arith.constant 0 : index
    %733 = vector.load %arg2[%c7_952, %c0_953, %c0_954] : memref<9x4x256xf32, #tpu.memory_space<vmem>>, vector<1x4x256xf32>
    %734 = vector.shape_cast %733 : vector<1x4x256xf32> to vector<4x256xf32>
    %735 = arith.mulf %732, %734 : vector<4x256xf32>
    %c28_955 = arith.constant 28 : index
    %c0_956 = arith.constant 0 : index
    %736 = vector.load %arg16[%c28_955, %c0_956] : memref<144x256xf32, #tpu.memory_space<vmem>>, vector<4x256xf32>
    tpu.vector_store %arg16[%c28_955, %c0_956], %735 {strides = array<i32>} : memref<144x256xf32, #tpu.memory_space<vmem>>, vector<4x256xf32>,
    %c16_957 = arith.constant 16 : index
    %c145_958 = arith.constant 145 : index
    %737 = vector.load %arg15[%c16_957, %c145_958] : memref<20x512xf32, #tpu.memory_space<vmem>>, vector<4x256xf32>
    %c8_959 = arith.constant 8 : index
    %c0_960 = arith.constant 0 : index
    %c0_961 = arith.constant 0 : index
    %738 = vector.load %arg2[%c8_959, %c0_960, %c0_961] : memref<9x4x256xf32, #tpu.memory_space<vmem>>, vector<1x4x256xf32>
    %739 = vector.shape_cast %738 : vector<1x4x256xf32> to vector<4x256xf32>
    %740 = arith.mulf %737, %739 : vector<4x256xf32>
    %c32_962 = arith.constant 32 : index
    %c0_963 = arith.constant 0 : index
    %741 = vector.load %arg16[%c32_962, %c0_963] : memref<144x256xf32, #tpu.memory_space<vmem>>, vector<4x256xf32>
    tpu.vector_store %arg16[%c32_962, %c0_963], %740 {strides = array<i32>} : memref<144x256xf32, #tpu.memory_space<vmem>>, vector<4x256xf32>,
    %c16_964 = arith.constant 16 : index
    %c128_965 = arith.constant 128 : index
    %742 = vector.load %arg15[%c16_964, %c128_965] : memref<20x512xf32, #tpu.memory_space<vmem>>, vector<4x256xf32>
    %c36_966 = arith.constant 36 : index
    %c0_967 = arith.constant 0 : index
    %743 = vector.load %arg16[%c36_966, %c0_967] : memref<144x256xf32, #tpu.memory_space<vmem>>, vector<4x256xf32>
    tpu.vector_store %arg16[%c36_966, %c0_967], %742 {strides = array<i32>} : memref<144x256xf32, #tpu.memory_space<vmem>>, vector<4x256xf32>,
    %c1_968 = arith.constant 1 : index
    %c0_969 = arith.constant 0 : index
    %c0_970 = arith.constant 0 : index
    %744 = vector.load %arg10[%c1_968, %c0_969, %c0_970] : memref<3x4x40xf32, #tpu.memory_space<vmem>>, vector<1x4x40xf32>
    %745 = vector.shape_cast %744 : vector<1x4x40xf32> to vector<4x40xf32>
    %c0_971 = arith.constant 0 : index
    %c0_972 = arith.constant 0 : index
    %746 = vector.load %arg16[%c0_971, %c0_972] : memref<144x256xf32, #tpu.memory_space<vmem>>, vector<40x256xf32>
    %cst_973 = arith.constant dense<0.000000e+00> : vector<4x256xf32>
    %747 = tpu.matmul %745, %746, %cst_973 {dimension_numbers = #tpu.dot_dimension_numbers<[1], [0], [0], [1], [0, 0, 1, 1], [], []>} : vector<4x40xf32>, vector<40x256xf32>, vector<4x256xf32> -> vector<4x256xf32>
    %c1_974 = arith.constant 1 : index
    %c0_975 = arith.constant 0 : index
    %c0_976 = arith.constant 0 : index
    %748 = vector.load %arg11[%c1_974, %c0_975, %c0_976] : memref<3x4x1xf32, #tpu.memory_space<vmem>>, vector<1x4x1xf32>
    %749 = vector.shape_cast %748 : vector<1x4x1xf32> to vector<4x1xf32>
    %750 = vector.broadcast %749 : vector<4x1xf32> to vector<4x256xf32>
    %751 = arith.addf %747, %750 : vector<4x256xf32>
    %c1_977 = arith.constant 1 : index
    %c0_978 = arith.constant 0 : index
    %c0_979 = arith.constant 0 : index
    %752 = vector.load %arg12[%c1_977, %c0_978, %c0_979] : memref<3x4x1xf32, #tpu.memory_space<vmem>>, vector<1x4x1xf32>
    %753 = vector.shape_cast %752 : vector<1x4x1xf32> to vector<4x1xf32>
    %cst_980 = arith.constant 0.000000e+00 : f32
    %754 = vector.broadcast %cst_980 : f32 to vector<4x256xf32>
    %755 = arith.cmpf oge, %751, %754 : vector<4x256xf32>
    %756 = vector.broadcast %753 : vector<4x1xf32> to vector<4x256xf32>
    %757 = arith.mulf %756, %751 : vector<4x256xf32>
    %758 = arith.select %755, %751, %757 : vector<4x256xi1>, vector<4x256xf32>
    %c16_981 = arith.constant 16 : index
    %c128_982 = arith.constant 128 : index
    %759 = vector.load %arg15[%c16_981, %c128_982] : memref<20x512xf32, #tpu.memory_space<vmem>>, vector<4x256xf32>
    tpu.vector_store %arg15[%c16_981, %c128_982], %758 {strides = array<i32>} : memref<20x512xf32, #tpu.memory_space<vmem>>, vector<4x256xf32>,
    %c16_983 = arith.constant 16 : index
    %c111_984 = arith.constant 111 : index
    %760 = vector.load %arg15[%c16_983, %c111_984] : memref<20x512xf32, #tpu.memory_space<vmem>>, vector<4x256xf32>
    %c0_985 = arith.constant 0 : index
    %c0_986 = arith.constant 0 : index
    %c0_987 = arith.constant 0 : index
    %761 = vector.load %arg2[%c0_985, %c0_986, %c0_987] : memref<9x4x256xf32, #tpu.memory_space<vmem>>, vector<1x4x256xf32>
    %762 = vector.shape_cast %761 : vector<1x4x256xf32> to vector<4x256xf32>
    %763 = arith.mulf %760, %762 : vector<4x256xf32>
    %c0_988 = arith.constant 0 : index
    %c0_989 = arith.constant 0 : index
    %764 = vector.load %arg16[%c0_988, %c0_989] : memref<144x256xf32, #tpu.memory_space<vmem>>, vector<4x256xf32>
    tpu.vector_store %arg16[%c0_988, %c0_989], %763 {strides = array<i32>} : memref<144x256xf32, #tpu.memory_space<vmem>>, vector<4x256xf32>,
    %c16_990 = arith.constant 16 : index
    %c112_991 = arith.constant 112 : index
    %765 = vector.load %arg15[%c16_990, %c112_991] : memref<20x512xf32, #tpu.memory_space<vmem>>, vector<4x256xf32>
    %c1_992 = arith.constant 1 : index
    %c0_993 = arith.constant 0 : index
    %c0_994 = arith.constant 0 : index
    %766 = vector.load %arg2[%c1_992, %c0_993, %c0_994] : memref<9x4x256xf32, #tpu.memory_space<vmem>>, vector<1x4x256xf32>
    %767 = vector.shape_cast %766 : vector<1x4x256xf32> to vector<4x256xf32>
    %768 = arith.mulf %765, %767 : vector<4x256xf32>
    %c4_995 = arith.constant 4 : index
    %c0_996 = arith.constant 0 : index
    %769 = vector.load %arg16[%c4_995, %c0_996] : memref<144x256xf32, #tpu.memory_space<vmem>>, vector<4x256xf32>
    tpu.vector_store %arg16[%c4_995, %c0_996], %768 {strides = array<i32>} : memref<144x256xf32, #tpu.memory_space<vmem>>, vector<4x256xf32>,
    %c16_997 = arith.constant 16 : index
    %c113_998 = arith.constant 113 : index
    %770 = vector.load %arg15[%c16_997, %c113_998] : memref<20x512xf32, #tpu.memory_space<vmem>>, vector<4x256xf32>
    %c2_999 = arith.constant 2 : index
    %c0_1000 = arith.constant 0 : index
    %c0_1001 = arith.constant 0 : index
    %771 = vector.load %arg2[%c2_999, %c0_1000, %c0_1001] : memref<9x4x256xf32, #tpu.memory_space<vmem>>, vector<1x4x256xf32>
    %772 = vector.shape_cast %771 : vector<1x4x256xf32> to vector<4x256xf32>
    %773 = arith.mulf %770, %772 : vector<4x256xf32>
    %c8_1002 = arith.constant 8 : index
    %c0_1003 = arith.constant 0 : index
    %774 = vector.load %arg16[%c8_1002, %c0_1003] : memref<144x256xf32, #tpu.memory_space<vmem>>, vector<4x256xf32>
    tpu.vector_store %arg16[%c8_1002, %c0_1003], %773 {strides = array<i32>} : memref<144x256xf32, #tpu.memory_space<vmem>>, vector<4x256xf32>,
    %c16_1004 = arith.constant 16 : index
    %c127_1005 = arith.constant 127 : index
    %775 = vector.load %arg15[%c16_1004, %c127_1005] : memref<20x512xf32, #tpu.memory_space<vmem>>, vector<4x256xf32>
    %c3_1006 = arith.constant 3 : index
    %c0_1007 = arith.constant 0 : index
    %c0_1008 = arith.constant 0 : index
    %776 = vector.load %arg2[%c3_1006, %c0_1007, %c0_1008] : memref<9x4x256xf32, #tpu.memory_space<vmem>>, vector<1x4x256xf32>
    %777 = vector.shape_cast %776 : vector<1x4x256xf32> to vector<4x256xf32>
    %778 = arith.mulf %775, %777 : vector<4x256xf32>
    %c12_1009 = arith.constant 12 : index
    %c0_1010 = arith.constant 0 : index
    %779 = vector.load %arg16[%c12_1009, %c0_1010] : memref<144x256xf32, #tpu.memory_space<vmem>>, vector<4x256xf32>
    tpu.vector_store %arg16[%c12_1009, %c0_1010], %778 {strides = array<i32>} : memref<144x256xf32, #tpu.memory_space<vmem>>, vector<4x256xf32>,
    %c16_1011 = arith.constant 16 : index
    %c128_1012 = arith.constant 128 : index
    %780 = vector.load %arg15[%c16_1011, %c128_1012] : memref<20x512xf32, #tpu.memory_space<vmem>>, vector<4x256xf32>
    %c16_1013 = arith.constant 16 : index
    %c0_1014 = arith.constant 0 : index
    %781 = vector.load %arg16[%c16_1013, %c0_1014] : memref<144x256xf32, #tpu.memory_space<vmem>>, vector<4x256xf32>
    tpu.vector_store %arg16[%c16_1013, %c0_1014], %780 {strides = array<i32>} : memref<144x256xf32, #tpu.memory_space<vmem>>, vector<4x256xf32>,
    %c16_1015 = arith.constant 16 : index
    %c129_1016 = arith.constant 129 : index
    %782 = vector.load %arg15[%c16_1015, %c129_1016] : memref<20x512xf32, #tpu.memory_space<vmem>>, vector<4x256xf32>
    %c5_1017 = arith.constant 5 : index
    %c0_1018 = arith.constant 0 : index
    %c0_1019 = arith.constant 0 : index
    %783 = vector.load %arg2[%c5_1017, %c0_1018, %c0_1019] : memref<9x4x256xf32, #tpu.memory_space<vmem>>, vector<1x4x256xf32>
    %784 = vector.shape_cast %783 : vector<1x4x256xf32> to vector<4x256xf32>
    %785 = arith.mulf %782, %784 : vector<4x256xf32>
    %c20_1020 = arith.constant 20 : index
    %c0_1021 = arith.constant 0 : index
    %786 = vector.load %arg16[%c20_1020, %c0_1021] : memref<144x256xf32, #tpu.memory_space<vmem>>, vector<4x256xf32>
    tpu.vector_store %arg16[%c20_1020, %c0_1021], %785 {strides = array<i32>} : memref<144x256xf32, #tpu.memory_space<vmem>>, vector<4x256xf32>,
    %c16_1022 = arith.constant 16 : index
    %c143_1023 = arith.constant 143 : index
    %787 = vector.load %arg15[%c16_1022, %c143_1023] : memref<20x512xf32, #tpu.memory_space<vmem>>, vector<4x256xf32>
    %c6_1024 = arith.constant 6 : index
    %c0_1025 = arith.constant 0 : index
    %c0_1026 = arith.constant 0 : index
    %788 = vector.load %arg2[%c6_1024, %c0_1025, %c0_1026] : memref<9x4x256xf32, #tpu.memory_space<vmem>>, vector<1x4x256xf32>
    %789 = vector.shape_cast %788 : vector<1x4x256xf32> to vector<4x256xf32>
    %790 = arith.mulf %787, %789 : vector<4x256xf32>
    %c24_1027 = arith.constant 24 : index
    %c0_1028 = arith.constant 0 : index
    %791 = vector.load %arg16[%c24_1027, %c0_1028] : memref<144x256xf32, #tpu.memory_space<vmem>>, vector<4x256xf32>
    tpu.vector_store %arg16[%c24_1027, %c0_1028], %790 {strides = array<i32>} : memref<144x256xf32, #tpu.memory_space<vmem>>, vector<4x256xf32>,
    %c16_1029 = arith.constant 16 : index
    %c144_1030 = arith.constant 144 : index
    %792 = vector.load %arg15[%c16_1029, %c144_1030] : memref<20x512xf32, #tpu.memory_space<vmem>>, vector<4x256xf32>
    %c7_1031 = arith.constant 7 : index
    %c0_1032 = arith.constant 0 : index
    %c0_1033 = arith.constant 0 : index
    %793 = vector.load %arg2[%c7_1031, %c0_1032, %c0_1033] : memref<9x4x256xf32, #tpu.memory_space<vmem>>, vector<1x4x256xf32>
    %794 = vector.shape_cast %793 : vector<1x4x256xf32> to vector<4x256xf32>
    %795 = arith.mulf %792, %794 : vector<4x256xf32>
    %c28_1034 = arith.constant 28 : index
    %c0_1035 = arith.constant 0 : index
    %796 = vector.load %arg16[%c28_1034, %c0_1035] : memref<144x256xf32, #tpu.memory_space<vmem>>, vector<4x256xf32>
    tpu.vector_store %arg16[%c28_1034, %c0_1035], %795 {strides = array<i32>} : memref<144x256xf32, #tpu.memory_space<vmem>>, vector<4x256xf32>,
    %c16_1036 = arith.constant 16 : index
    %c145_1037 = arith.constant 145 : index
    %797 = vector.load %arg15[%c16_1036, %c145_1037] : memref<20x512xf32, #tpu.memory_space<vmem>>, vector<4x256xf32>
    %c8_1038 = arith.constant 8 : index
    %c0_1039 = arith.constant 0 : index
    %c0_1040 = arith.constant 0 : index
    %798 = vector.load %arg2[%c8_1038, %c0_1039, %c0_1040] : memref<9x4x256xf32, #tpu.memory_space<vmem>>, vector<1x4x256xf32>
    %799 = vector.shape_cast %798 : vector<1x4x256xf32> to vector<4x256xf32>
    %800 = arith.mulf %797, %799 : vector<4x256xf32>
    %c32_1041 = arith.constant 32 : index
    %c0_1042 = arith.constant 0 : index
    %801 = vector.load %arg16[%c32_1041, %c0_1042] : memref<144x256xf32, #tpu.memory_space<vmem>>, vector<4x256xf32>
    tpu.vector_store %arg16[%c32_1041, %c0_1042], %800 {strides = array<i32>} : memref<144x256xf32, #tpu.memory_space<vmem>>, vector<4x256xf32>,
    %c16_1043 = arith.constant 16 : index
    %c128_1044 = arith.constant 128 : index
    %802 = vector.load %arg15[%c16_1043, %c128_1044] : memref<20x512xf32, #tpu.memory_space<vmem>>, vector<4x256xf32>
    %c36_1045 = arith.constant 36 : index
    %c0_1046 = arith.constant 0 : index
    %803 = vector.load %arg16[%c36_1045, %c0_1046] : memref<144x256xf32, #tpu.memory_space<vmem>>, vector<4x256xf32>
    tpu.vector_store %arg16[%c36_1045, %c0_1046], %802 {strides = array<i32>} : memref<144x256xf32, #tpu.memory_space<vmem>>, vector<4x256xf32>,
    %c2_1047 = arith.constant 2 : index
    %c0_1048 = arith.constant 0 : index
    %c0_1049 = arith.constant 0 : index
    %804 = vector.load %arg10[%c2_1047, %c0_1048, %c0_1049] : memref<3x4x40xf32, #tpu.memory_space<vmem>>, vector<1x4x40xf32>
    %805 = vector.shape_cast %804 : vector<1x4x40xf32> to vector<4x40xf32>
    %c0_1050 = arith.constant 0 : index
    %c0_1051 = arith.constant 0 : index
    %806 = vector.load %arg16[%c0_1050, %c0_1051] : memref<144x256xf32, #tpu.memory_space<vmem>>, vector<40x256xf32>
    %cst_1052 = arith.constant dense<0.000000e+00> : vector<4x256xf32>
    %807 = tpu.matmul %805, %806, %cst_1052 {dimension_numbers = #tpu.dot_dimension_numbers<[1], [0], [0], [1], [0, 0, 1, 1], [], []>} : vector<4x40xf32>, vector<40x256xf32>, vector<4x256xf32> -> vector<4x256xf32>
    %c2_1053 = arith.constant 2 : index
    %c0_1054 = arith.constant 0 : index
    %c0_1055 = arith.constant 0 : index
    %808 = vector.load %arg11[%c2_1053, %c0_1054, %c0_1055] : memref<3x4x1xf32, #tpu.memory_space<vmem>>, vector<1x4x1xf32>
    %809 = vector.shape_cast %808 : vector<1x4x1xf32> to vector<4x1xf32>
    %810 = vector.broadcast %809 : vector<4x1xf32> to vector<4x256xf32>
    %811 = arith.addf %807, %810 : vector<4x256xf32>
    %c2_1056 = arith.constant 2 : index
    %c0_1057 = arith.constant 0 : index
    %c0_1058 = arith.constant 0 : index
    %812 = vector.load %arg12[%c2_1056, %c0_1057, %c0_1058] : memref<3x4x1xf32, #tpu.memory_space<vmem>>, vector<1x4x1xf32>
    %813 = vector.shape_cast %812 : vector<1x4x1xf32> to vector<4x1xf32>
    %cst_1059 = arith.constant 0.000000e+00 : f32
    %814 = vector.broadcast %cst_1059 : f32 to vector<4x256xf32>
    %815 = arith.cmpf oge, %811, %814 : vector<4x256xf32>
    %816 = vector.broadcast %813 : vector<4x1xf32> to vector<4x256xf32>
    %817 = arith.mulf %816, %811 : vector<4x256xf32>
    %818 = arith.select %815, %811, %817 : vector<4x256xi1>, vector<4x256xf32>
    %819 = arith.addf %818, %638 : vector<4x256xf32>
    %c0_1060 = arith.constant 0 : index
    %c0_1061 = arith.constant 0 : index
    %c0_1062 = arith.constant 0 : index
    %820 = vector.load %arg13[%c0_1060, %c0_1061, %c0_1062] : memref<1x4x256xf32, #tpu.memory_space<vmem>>, vector<1x4x256xf32>
    %821 = vector.shape_cast %820 : vector<1x4x256xf32> to vector<4x256xf32>
    %822 = vector.shape_cast %819 : vector<4x256xf32> to vector<1x4x256xf32>
    tpu.vector_store %arg13[%c0_1060, %c0_1061, %c0_1062], %822 {strides = array<i32>} : memref<1x4x256xf32, #tpu.memory_space<vmem>>, vector<1x4x256xf32>,
    return
  }
  func.func @transform_0(%arg0: i32) -> (i32, i32, i32) {
    %c0_i32 = arith.constant 0 : i32
    %c0_i32_0 = arith.constant 0 : i32
    %c0_i32_1 = arith.constant 0 : i32
    return %arg0, %c0_i32, %c0_i32_0 : i32, i32, i32
  }
  func.func @transform_1(%arg0: i32) -> (i32, i32, i32) {
    %c0_i32 = arith.constant 0 : i32
    %c0_i32_0 = arith.constant 0 : i32
    %c0_i32_1 = arith.constant 0 : i32
    %c0_i32_2 = arith.constant 0 : i32
    return %c0_i32, %c0_i32_0, %c0_i32_1 : i32, i32, i32
  }
  func.func @transform_2(%arg0: i32) -> (i32, i32) {
    %c0_i32 = arith.constant 0 : i32
    %c0_i32_0 = arith.constant 0 : i32
    %c0_i32_1 = arith.constant 0 : i32
    return %c0_i32, %c0_i32_0 : i32, i32
  }
  func.func @transform_3(%arg0: i32) -> (i32, i32) {
    %c0_i32 = arith.constant 0 : i32
    %c0_i32_0 = arith.constant 0 : i32
    %c0_i32_1 = arith.constant 0 : i32
    return %c0_i32, %c0_i32_0 : i32, i32
  }
  func.func @transform_4(%arg0: i32) -> (i32, i32) {
    %c0_i32 = arith.constant 0 : i32
    %c0_i32_0 = arith.constant 0 : i32
    %c0_i32_1 = arith.constant 0 : i32
    return %c0_i32, %c0_i32_0 : i32, i32
  }
  func.func @transform_5(%arg0: i32) -> (i32, i32) {
    %c0_i32 = arith.constant 0 : i32
    %c0_i32_0 = arith.constant 0 : i32
    %c0_i32_1 = arith.constant 0 : i32
    return %c0_i32, %c0_i32_0 : i32, i32
  }
  func.func @transform_6(%arg0: i32) -> (i32, i32, i32) {
    %c0_i32 = arith.constant 0 : i32
    %c0_i32_0 = arith.constant 0 : i32
    %c0_i32_1 = arith.constant 0 : i32
    %c0_i32_2 = arith.constant 0 : i32
    return %c0_i32, %c0_i32_0, %c0_i32_1 : i32, i32, i32
  }
  func.func @transform_7(%arg0: i32) -> (i32, i32, i32) {
    %c0_i32 = arith.constant 0 : i32
    %c0_i32_0 = arith.constant 0 : i32
    %c0_i32_1 = arith.constant 0 : i32
    %c0_i32_2 = arith.constant 0 : i32
    return %c0_i32, %c0_i32_0, %c0_i32_1 : i32, i32, i32
  }
  func.func @transform_8(%arg0: i32) -> (i32, i32, i32) {
    %c0_i32 = arith.constant 0 : i32
    %c0_i32_0 = arith.constant 0 : i32
    %c0_i32_1 = arith.constant 0 : i32
    %c0_i32_2 = arith.constant 0 : i32
    return %c0_i32, %c0_i32_0, %c0_i32_1 : i32, i32, i32
  }
  func.func @transform_9(%arg0: i32) -> (i32, i32, i32) {
    %c0_i32 = arith.constant 0 : i32
    %c0_i32_0 = arith.constant 0 : i32
    %c0_i32_1 = arith.constant 0 : i32
    %c0_i32_2 = arith.constant 0 : i32
    return %c0_i32, %c0_i32_0, %c0_i32_1 : i32, i32, i32
  }
  func.func @transform_10(%arg0: i32) -> (i32, i32, i32) {
    %c0_i32 = arith.constant 0 : i32
    %c0_i32_0 = arith.constant 0 : i32
    %c0_i32_1 = arith.constant 0 : i32
    %c0_i32_2 = arith.constant 0 : i32
    return %c0_i32, %c0_i32_0, %c0_i32_1 : i32, i32, i32
  }
  func.func @transform_11(%arg0: i32) -> (i32, i32, i32) {
    %c0_i32 = arith.constant 0 : i32
    %c0_i32_0 = arith.constant 0 : i32
    %c0_i32_1 = arith.constant 0 : i32
    %c0_i32_2 = arith.constant 0 : i32
    return %c0_i32, %c0_i32_0, %c0_i32_1 : i32, i32, i32
  }
  func.func @transform_12(%arg0: i32) -> (i32, i32, i32) {
    %c0_i32 = arith.constant 0 : i32
    %c0_i32_0 = arith.constant 0 : i32
    %c0_i32_1 = arith.constant 0 : i32
    return %arg0, %c0_i32, %c0_i32_0 : i32, i32, i32
  }
  func.func @transform_13(%arg0: i32) -> (i32, i32, i32) {
    %c0_i32 = arith.constant 0 : i32
    %c0_i32_0 = arith.constant 0 : i32
    %c0_i32_1 = arith.constant 0 : i32
    return %arg0, %c0_i32, %c0_i32_0 : i32, i32, i32
  }
}

</mosaic_0001>

<llo_original>
// kernel: tile.43
$region0: #{tile.43}
  #allocation0 [shape = 's32[1]{0}', space=sflag, size = 0x4, scoped, tag = 'scoped memory for tile.43']
  %s0 = inlined_call_operand.vmem [shape: f32[4], index: 0, kind: input, shape index: {}]
  %s1 = inlined_call_operand.vmem [shape: f32[4,4], index: 1, kind: output, shape index: {}]
  // Predicated region
  $region2: #{tile.43} parent=0 // pred_check
    _
  $region3: #{tile.43} parent=0 // pred_check_branch
    %3 = sbr.rel (0) target = $region5
  $region4: #{tile.43} parent=0 // pred_region
    _
  $region5: #{tile.43} parent=0 // pred_fallthru
    _
  %v4 = vld [vmem:[%s0] ss:$0 sm:$0xff]
  %5 = vst [vmem:[%s1] sm:$0xf] %v4

// kernel: tile.52
$region0: #{tile.52}
  %s0 = inlined_call_operand.vmem [shape: f32[4,4], index: 0, kind: input, shape index: {}]
  %s1 = inlined_call_operand.vmem [shape: f32[1,16,1], index: 1, kind: output, shape index: {}]
  $region1: #{tile.52} parent=0
    #allocation0 [shape = 'u8[4096]{0}', space=vmem, size = 0x1000, scoped, tag = 'scoped mem for output reshape']
    #allocation1 [shape = 'u8[4096]{0}', space=vmem, size = 0x1000, scoped, tag = 'scoped mem for input reshape']
    %s3 = sshllo.u32 0, 4
    %v4 = vld [vmem:[%s0] sm:%s3]
    %5 = vst [vmem:[#allocation1] sm:%s3] %v4
    %v6 = vld [vmem:[#allocation1] sm:$0x1]
    %vm7 = vcmask 31744
    %8 = vst.msk [vmem:[#allocation0] sm:$0x1] %vm7, %v6
    %s9 = scalar_lea.vmem [#allocation1], 3
    %v10 = vld [vmem:[%s9] sm:$0x1]
    %11 = vrot.lane.b32.xlu0 %v10, 12
    %v12 = vpop.permute.xlu0 %11
    %vm13 = vcmask 130144
    %14 = vst.msk [vmem:[#allocation0] sm:$0x1] %vm13, %v12
    %s15 = scalar_lea.vmem [#allocation1], 2
    %v16 = vld [vmem:[%s15] sm:$0x1]
    %17 = vrot.lane.b32.xlu0 %v16, 8
    %v18 = vpop.permute.xlu0 %17
    %vm19 = vcmask 97344
    %20 = vst.msk [vmem:[#allocation0] sm:$0x1] %vm19, %v18
    %s21 = scalar_lea.vmem [#allocation1], 1
    %v22 = vld [vmem:[%s21] sm:$0x1]
    %23 = vrot.lane.b32.xlu0 %v22, 4
    %v24 = vpop.permute.xlu0 %23
    %vm25 = vcmask 64544
    %26 = vst.msk [vmem:[#allocation0] sm:$0x1] %vm25, %v24
    %s28 = sshllo.u32 0, 1
    %v30 = vld [vmem:[#allocation0] sm:%s28]
    %s31 = sshllo.u32 0, 1
    %32 = vst [vmem:[%s1] sm:%s31] %v30

// kernel: tile.0
$region0: #{tile.0}
  %s0 = inlined_call_operand.vmem [shape: f32[4,4], index: 0, kind: input, shape index: {}]
  %s1 = inlined_call_operand.vmem [shape: f32[16,1], index: 1, kind: output, shape index: {}]
  $region1: #{tile.0} parent=0
    #allocation0 [shape = 'u8[4096]{0}', space=vmem, size = 0x1000, scoped, tag = 'scoped mem for input reshape']
    %s3 = sshllo.u32 0, 4
    %v4 = vld [vmem:[%s0] sm:%s3]
    %5 = vst [vmem:[#allocation0] sm:%s3] %v4
    %v6 = vld [vmem:[#allocation0] sm:$0xf]
    %vm7 = vcmask 7168
    %8 = vst.msk [vmem:[%s1] ss:$4 sm:$0xf] %vm7, %v6
    %v9 = vld [vmem:[#allocation0] sm:$0xf]
    %10 = vrot.lane.b32.xlu0 %v9, 127
    %v11 = vpop.permute.xlu0 %10
    %vm12 = vcmask 7168
    %s13 = scalar_lea.vmem %s1, 1
    %14 = vst.msk [vmem:[%s13] ss:$4 sm:$0xf] %vm12, %v11
    %v15 = vld [vmem:[#allocation0] sm:$0xf]
    %16 = vrot.lane.b32.xlu0 %v15, 126
    %v17 = vpop.permute.xlu0 %16
    %vm18 = vcmask 7168
    %s19 = scalar_lea.vmem %s1, 2
    %20 = vst.msk [vmem:[%s19] ss:$4 sm:$0xf] %vm18, %v17
    %v21 = vld [vmem:[#allocation0] sm:$0xf]
    %22 = vrot.lane.b32.xlu0 %v21, 125
    %v23 = vpop.permute.xlu0 %22
    %vm24 = vcmask 7168
    %s25 = scalar_lea.vmem %s1, 3
    %26 = vst.msk [vmem:[%s25] ss:$4 sm:$0xf] %vm24, %v23

// kernel: brm_forward.1
$region0: #{brm_forward.1}
  #allocation0 [shape = 'u32[]', space=smem, size = 0x4, offset = 0x4, fixed_abs, tag = 'smem constant byte address 0x4 - core index']
  #allocation1 [shape = 'u32[144,128]{1,0:T(1,128)}', space=vmem, size = 0x12000, scoped, tag = 'internal scratch']
  #allocation2 [shape = 'f32[20,512]{1,0:T(8,128)}', space=vmem, size = 0xc000, scoped, tag = 'scratch operand']
  #allocation3 [shape = 'f32[144,256]{1,0:T(8,128)}', space=vmem, size = 0x24000, scoped, tag = 'scratch operand']
  %s0 = inlined_call_operand.vmem [shape: f32[2,4,256], index: 0, kind: input, shape index: {}]
  %s1 = inlined_call_operand.vmem [shape: f32[9,4,256], index: 1, kind: input, shape index: {}]
  %s2 = inlined_call_operand.vmem [shape: f32[16,40], index: 2, kind: input, shape index: {}]
  %s3 = inlined_call_operand.vmem [shape: f32[16,1], index: 3, kind: input, shape index: {}]
  %s4 = inlined_call_operand.vmem [shape: f32[4,144], index: 4, kind: input, shape index: {}]
  %s5 = inlined_call_operand.vmem [shape: f32[4,1], index: 5, kind: input, shape index: {}]
  %s6 = inlined_call_operand.vmem [shape: f32[3,16,144], index: 6, kind: input, shape index: {}]
  %s7 = inlined_call_operand.vmem [shape: f32[3,16,1], index: 7, kind: input, shape index: {}]
  %s8 = inlined_call_operand.vmem [shape: f32[3,16,1], index: 8, kind: input, shape index: {}]
  %s9 = inlined_call_operand.vmem [shape: f32[3,4,40], index: 9, kind: input, shape index: {}]
  %s10 = inlined_call_operand.vmem [shape: f32[3,4,1], index: 10, kind: input, shape index: {}]
  %s11 = inlined_call_operand.vmem [shape: f32[3,4,1], index: 11, kind: input, shape index: {}]
  %s12 = inlined_call_operand.vmem [shape: f32[2,4,256], index: 12, kind: output, shape index: {0}]
  %s13 = inlined_call_operand.vmem [shape: f32[2,16,256], index: 13, kind: output, shape index: {1}]
  %14 = xla_tuple %s12, %s13
  %s15 = sld [smem:[#allocation0]]
  $region89: #{brm_forward.1} parent=0
    _
  %s17 = ssub.s32 1, %s15
  %s18 = scalar_select 0, %s17, %s15
  loop: start=0, step=1, limit=4
  $region2: #{brm_forward.1} parent=0 // loop_pre_header
    _
  $region3: #{brm_forward.1} parent=0 // loop_header
    %s20 = sphi 0, %s24
    %p21 = scmp.ge.s32.totalorder %s20, 4
    %s30 = sphi 0, %s32
    %s33 = sphi 0, %s30
    %s34 = sphi 0, %s33
    %s50 = sphi 0, %s34
    %s54 = sphi 0, %s54
    %s56 = sphi 0, %s54
    %s57 = sphi 0, %s56
    %s71 = sphi 0, %s57
    %s75 = sphi 0, %s75
    %s77 = sphi 0, %s75
    %s78 = sphi 0, %s77
    %s92 = sphi 0, %s78
    %s96 = sphi 0, %s96
    %s98 = sphi 0, %s96
    %s99 = sphi 0, %s98
    %s113 = sphi 0, %s99
    %s117 = sphi 0, %s117
    %s119 = sphi 0, %s117
    %s120 = sphi 0, %s119
    %s134 = sphi 0, %s120
    %s138 = sphi 0, %s138
    %s140 = sphi 0, %s138
    %s141 = sphi 0, %s140
    %s155 = sphi 0, %s141
    %s159 = sphi 0, %s159
    %s161 = sphi 0, %s159
    %s162 = sphi 0, %s161
    %s176 = sphi 0, %s162
    %s180 = sphi 0, %s180
    %s182 = sphi 0, %s180
    %s183 = sphi 0, %s182
    %s197 = sphi 0, %s183
    %s201 = sphi 0, %s201
    %s203 = sphi 0, %s201
    %s204 = sphi 0, %s203
    %s218 = sphi 0, %s204
    %s222 = sphi 0, %s222
    %s224 = sphi 0, %s222
    %s225 = sphi 0, %s224
    %s239 = sphi 0, %s225
    %s243 = sphi 0, %s243
    %s245 = sphi 0, %s243
    %s246 = sphi 0, %s245
    %s260 = sphi 0, %s246
    %s264 = sphi 0, %s264
    %s266 = sphi 0, %s264
    %s267 = sphi 0, %s266
    %s281 = sphi 0, %s267
    %s287 = sphi 0, %s289
    %s290 = sphi 0, %s287
    %s291 = sphi 0, %s290
    %s307 = sphi 0, %s291
    %s313 = sphi 0, %s315
    %s316 = sphi 0, %s313
    %s317 = sphi 0, %s316
    %s333 = sphi 0, %s317
  $region4: #{brm_forward.1} parent=0 // loop_header_branch
    %23 = sbr.rel (%p21) target = $region8
  $region5: #{brm_forward.1} parent=0 // loop_body
    %s25 = ssub.s32 %s20, 1
    %s26 = ssub.s32 %s20, 2
    %s27 = sadd.s32 %s20, 1
    %s28 = ssub.s32 %s20, %s27
    %p29 = scmp.eq.s32.totalorder %s28, 0
    %s31 = sadd.s32 %s30, 1
    %s32 = scalar_select %p29, %s30, %s31
    %p35 = pneg %p29
    %p36 = scmp.eq.s32.totalorder %s20, 1
    %p37 = por %p35, %p36
    %p38 = scmp.ne.s32.totalorder %s30, %s33
    %p39 = scmp.eq.s32.totalorder %s20, 0
    %p40 = por %p38, %p39
    %p41 = scmp.ne.s32.totalorder %s30, %s33
    %p42 = scmp.eq.s32.totalorder %s25, 1
    %p43 = por %p41, %p42
    %p44 = scmp.ne.s32.totalorder %s33, %s34
    %p45 = scmp.eq.s32.totalorder %s25, 0
    %p46 = por %p44, %p45
    %p47 = scmp.ne.s32.totalorder %s33, %s34
    %p48 = scmp.eq.s32.totalorder %s26, 1
    %p49 = por %p47, %p48
    %p51 = scmp.ne.s32.totalorder %s34, %s50
    %p52 = scmp.eq.s32.totalorder %s26, 0
    %p53 = por %p51, %p52
    %s55 = sadd.s32 %s54, 1
    %p58 = scmp.eq.s32.totalorder %s20, 1
    %p59 = scmp.ne.s32.totalorder %s54, %s56
    %p60 = scmp.eq.s32.totalorder %s20, 0
    %p61 = por %p59, %p60
    %p62 = scmp.ne.s32.totalorder %s54, %s56
    %p63 = scmp.eq.s32.totalorder %s25, 1
    %p64 = por %p62, %p63
    %p65 = scmp.ne.s32.totalorder %s56, %s57
    %p66 = scmp.eq.s32.totalorder %s25, 0
    %p67 = por %p65, %p66
    %p68 = scmp.ne.s32.totalorder %s56, %s57
    %p69 = scmp.eq.s32.totalorder %s26, 1
    %p70 = por %p68, %p69
    %p72 = scmp.ne.s32.totalorder %s57, %s71
    %p73 = scmp.eq.s32.totalorder %s26, 0
    %p74 = por %p72, %p73
    %s76 = sadd.s32 %s75, 1
    %p79 = scmp.eq.s32.totalorder %s20, 1
    %p80 = scmp.ne.s32.totalorder %s75, %s77
    %p81 = scmp.eq.s32.totalorder %s20, 0
    %p82 = por %p80, %p81
    %p83 = scmp.ne.s32.totalorder %s75, %s77
    %p84 = scmp.eq.s32.totalorder %s25, 1
    %p85 = por %p83, %p84
    %p86 = scmp.ne.s32.totalorder %s77, %s78
    %p87 = scmp.eq.s32.totalorder %s25, 0
    %p88 = por %p86, %p87
    %p89 = scmp.ne.s32.totalorder %s77, %s78
    %p90 = scmp.eq.s32.totalorder %s26, 1
    %p91 = por %p89, %p90
    %p93 = scmp.ne.s32.totalorder %s78, %s92
    %p94 = scmp.eq.s32.totalorder %s26, 0
    %p95 = por %p93, %p94
    %s97 = sadd.s32 %s96, 1
    %p100 = scmp.eq.s32.totalorder %s20, 1
    %p101 = scmp.ne.s32.totalorder %s96, %s98
    %p102 = scmp.eq.s32.totalorder %s20, 0
    %p103 = por %p101, %p102
    %p104 = scmp.ne.s32.totalorder %s96, %s98
    %p105 = scmp.eq.s32.totalorder %s25, 1
    %p106 = por %p104, %p105
    %p107 = scmp.ne.s32.totalorder %s98, %s99
    %p108 = scmp.eq.s32.totalorder %s25, 0
    %p109 = por %p107, %p108
    %p110 = scmp.ne.s32.totalorder %s98, %s99
    %p111 = scmp.eq.s32.totalorder %s26, 1
    %p112 = por %p110, %p111
    %p114 = scmp.ne.s32.totalorder %s99, %s113
    %p115 = scmp.eq.s32.totalorder %s26, 0
    %p116 = por %p114, %p115
    %s118 = sadd.s32 %s117, 1
    %p121 = scmp.eq.s32.totalorder %s20, 1
    %p122 = scmp.ne.s32.totalorder %s117, %s119
    %p123 = scmp.eq.s32.totalorder %s20, 0
    %p124 = por %p122, %p123
    %p125 = scmp.ne.s32.totalorder %s117, %s119
    %p126 = scmp.eq.s32.totalorder %s25, 1
    %p127 = por %p125, %p126
    %p128 = scmp.ne.s32.totalorder %s119, %s120
    %p129 = scmp.eq.s32.totalorder %s25, 0
    %p130 = por %p128, %p129
    %p131 = scmp.ne.s32.totalorder %s119, %s120
    %p132 = scmp.eq.s32.totalorder %s26, 1
    %p133 = por %p131, %p132
    %p135 = scmp.ne.s32.totalorder %s120, %s134
    %p136 = scmp.eq.s32.totalorder %s26, 0
    %p137 = por %p135, %p136
    %s139 = sadd.s32 %s138, 1
    %p142 = scmp.eq.s32.totalorder %s20, 1
    %p143 = scmp.ne.s32.totalorder %s138, %s140
    %p144 = scmp.eq.s32.totalorder %s20, 0
    %p145 = por %p143, %p144
    %p146 = scmp.ne.s32.totalorder %s138, %s140
    %p147 = scmp.eq.s32.totalorder %s25, 1
    %p148 = por %p146, %p147
    %p149 = scmp.ne.s32.totalorder %s140, %s141
    %p150 = scmp.eq.s32.totalorder %s25, 0
    %p151 = por %p149, %p150
    %p152 = scmp.ne.s32.totalorder %s140, %s141
    %p153 = scmp.eq.s32.totalorder %s26, 1
    %p154 = por %p152, %p153
    %p156 = scmp.ne.s32.totalorder %s141, %s155
    %p157 = scmp.eq.s32.totalorder %s26, 0
    %p158 = por %p156, %p157
    %s160 = sadd.s32 %s159, 1
    %p163 = scmp.eq.s32.totalorder %s20, 1
    %p164 = scmp.ne.s32.totalorder %s159, %s161
    %p165 = scmp.eq.s32.totalorder %s20, 0
    %p166 = por %p164, %p165
    %p167 = scmp.ne.s32.totalorder %s159, %s161
    %p168 = scmp.eq.s32.totalorder %s25, 1
    %p169 = por %p167, %p168
    %p170 = scmp.ne.s32.totalorder %s161, %s162
    %p171 = scmp.eq.s32.totalorder %s25, 0
    %p172 = por %p170, %p171
    %p173 = scmp.ne.s32.totalorder %s161, %s162
    %p174 = scmp.eq.s32.totalorder %s26, 1
    %p175 = por %p173, %p174
    %p177 = scmp.ne.s32.totalorder %s162, %s176
    %p178 = scmp.eq.s32.totalorder %s26, 0
    %p179 = por %p177, %p178
    %s181 = sadd.s32 %s180, 1
    %p184 = scmp.eq.s32.totalorder %s20, 1
    %p185 = scmp.ne.s32.totalorder %s180, %s182
    %p186 = scmp.eq.s32.totalorder %s20, 0
    %p187 = por %p185, %p186
    %p188 = scmp.ne.s32.totalorder %s180, %s182
    %p189 = scmp.eq.s32.totalorder %s25, 1
    %p190 = por %p188, %p189
    %p191 = scmp.ne.s32.totalorder %s182, %s183
    %p192 = scmp.eq.s32.totalorder %s25, 0
    %p193 = por %p191, %p192
    %p194 = scmp.ne.s32.totalorder %s182, %s183
    %p195 = scmp.eq.s32.totalorder %s26, 1
    %p196 = por %p194, %p195
    %p198 = scmp.ne.s32.totalorder %s183, %s197
    %p199 = scmp.eq.s32.totalorder %s26, 0
    %p200 = por %p198, %p199
    %s202 = sadd.s32 %s201, 1
    %p205 = scmp.eq.s32.totalorder %s20, 1
    %p206 = scmp.ne.s32.totalorder %s201, %s203
    %p207 = scmp.eq.s32.totalorder %s20, 0
    %p208 = por %p206, %p207
    %p209 = scmp.ne.s32.totalorder %s201, %s203
    %p210 = scmp.eq.s32.totalorder %s25, 1
    %p211 = por %p209, %p210
    %p212 = scmp.ne.s32.totalorder %s203, %s204
    %p213 = scmp.eq.s32.totalorder %s25, 0
    %p214 = por %p212, %p213
    %p215 = scmp.ne.s32.totalorder %s203, %s204
    %p216 = scmp.eq.s32.totalorder %s26, 1
    %p217 = por %p215, %p216
    %p219 = scmp.ne.s32.totalorder %s204, %s218
    %p220 = scmp.eq.s32.totalorder %s26, 0
    %p221 = por %p219, %p220
    %s223 = sadd.s32 %s222, 1
    %p226 = scmp.eq.s32.totalorder %s20, 1
    %p227 = scmp.ne.s32.totalorder %s222, %s224
    %p228 = scmp.eq.s32.totalorder %s20, 0
    %p229 = por %p227, %p228
    %p230 = scmp.ne.s32.totalorder %s222, %s224
    %p231 = scmp.eq.s32.totalorder %s25, 1
    %p232 = por %p230, %p231
    %p233 = scmp.ne.s32.totalorder %s224, %s225
    %p234 = scmp.eq.s32.totalorder %s25, 0
    %p235 = por %p233, %p234
    %p236 = scmp.ne.s32.totalorder %s224, %s225
    %p237 = scmp.eq.s32.totalorder %s26, 1
    %p238 = por %p236, %p237
    %p240 = scmp.ne.s32.totalorder %s225, %s239
    %p241 = scmp.eq.s32.totalorder %s26, 0
    %p242 = por %p240, %p241
    %s244 = sadd.s32 %s243, 1
    %p247 = scmp.eq.s32.totalorder %s20, 1
    %p248 = scmp.ne.s32.totalorder %s243, %s245
    %p249 = scmp.eq.s32.totalorder %s20, 0
    %p250 = por %p248, %p249
    %p251 = scmp.ne.s32.totalorder %s243, %s245
    %p252 = scmp.eq.s32.totalorder %s25, 1
    %p253 = por %p251, %p252
    %p254 = scmp.ne.s32.totalorder %s245, %s246
    %p255 = scmp.eq.s32.totalorder %s25, 0
    %p256 = por %p254, %p255
    %p257 = scmp.ne.s32.totalorder %s245, %s246
    %p258 = scmp.eq.s32.totalorder %s26, 1
    %p259 = por %p257, %p258
    %p261 = scmp.ne.s32.totalorder %s246, %s260
    %p262 = scmp.eq.s32.totalorder %s26, 0
    %p263 = por %p261, %p262
    %s265 = sadd.s32 %s264, 1
    %p268 = scmp.eq.s32.totalorder %s20, 1
    %p269 = scmp.ne.s32.totalorder %s264, %s266
    %p270 = scmp.eq.s32.totalorder %s20, 0
    %p271 = por %p269, %p270
    %p272 = scmp.ne.s32.totalorder %s264, %s266
    %p273 = scmp.eq.s32.totalorder %s25, 1
    %p274 = por %p272, %p273
    %p275 = scmp.ne.s32.totalorder %s266, %s267
    %p276 = scmp.eq.s32.totalorder %s25, 0
    %p277 = por %p275, %p276
    %p278 = scmp.ne.s32.totalorder %s266, %s267
    %p279 = scmp.eq.s32.totalorder %s26, 1
    %p280 = por %p278, %p279
    %p282 = scmp.ne.s32.totalorder %s267, %s281
    %p283 = scmp.eq.s32.totalorder %s26, 0
    %p284 = por %p282, %p283
    %s285 = ssub.s32 %s20, %s27
    %p286 = scmp.eq.s32.totalorder %s285, 0
    %s288 = sadd.s32 %s287, 1
    %s289 = scalar_select %p286, %s287, %s288
    %p292 = pneg %p286
    %p293 = scmp.eq.s32.totalorder %s20, 1
    %p294 = por %p292, %p293
    %p295 = scmp.ne.s32.totalorder %s287, %s290
    %p296 = scmp.eq.s32.totalorder %s20, 0
    %p297 = por %p295, %p296
    %p298 = scmp.ne.s32.totalorder %s287, %s290
    %p299 = scmp.eq.s32.totalorder %s25, 1
    %p300 = por %p298, %p299
    %p301 = scmp.ne.s32.totalorder %s290, %s291
    %p302 = scmp.eq.s32.totalorder %s25, 0
    %p303 = por %p301, %p302
    %p304 = scmp.ne.s32.totalorder %s290, %s291
    %p305 = scmp.eq.s32.totalorder %s26, 1
    %p306 = por %p304, %p305
    %p308 = scmp.ne.s32.totalorder %s291, %s307
    %p309 = scmp.eq.s32.totalorder %s26, 0
    %p310 = por %p308, %p309
    %s311 = ssub.s32 %s20, %s27
    %p312 = scmp.eq.s32.totalorder %s311, 0
    %s314 = sadd.s32 %s313, 1
    %s315 = scalar_select %p312, %s313, %s314
    %p318 = pneg %p312
    %p319 = scmp.eq.s32.totalorder %s20, 1
    %p320 = por %p318, %p319
    %p321 = scmp.ne.s32.totalorder %s313, %s316
    %p322 = scmp.eq.s32.totalorder %s20, 0
    %p323 = por %p321, %p322
    %p324 = scmp.ne.s32.totalorder %s313, %s316
    %p325 = scmp.eq.s32.totalorder %s25, 1
    %p326 = por %p324, %p325
    %p327 = scmp.ne.s32.totalorder %s316, %s317
    %p328 = scmp.eq.s32.totalorder %s25, 0
    %p329 = por %p327, %p328
    %p330 = scmp.ne.s32.totalorder %s316, %s317
    %p331 = scmp.eq.s32.totalorder %s26, 1
    %p332 = por %p330, %p331
    %p334 = scmp.ne.s32.totalorder %s317, %s333
    %p335 = scmp.eq.s32.totalorder %s26, 0
    %p336 = por %p334, %p335
    %p337 = scmp.le.s32.totalorder 1, %s20
    %p338 = scmp.lt.s32.totalorder %s20, 3
    %p339 = pnand %p337, %p338
    %p340 = pneg %p339
    // Predicated region
    $region9: #{brm_forward.1} parent=5 // pred_check
      _
    $region10: #{brm_forward.1} parent=5 // pred_check_branch
      %342 = sbr.rel (%p339) target = $region12
    $region11: #{brm_forward.1} parent=5 // pred_region
      %s343 = ssub.s32 %s20, 1
      // Predicated region
      $region13: #{brm_forward.1} parent=11 // pred_check
        %p344 = pneg %p67
      $region14: #{brm_forward.1} parent=11 // pred_check_branch
        %346 = sbr.rel (%p344) target = $region16
      $region15: #{brm_forward.1} parent=11 // pred_region
        _
      $region16: #{brm_forward.1} parent=11 // pred_fallthru
        _
      // Predicated region
      $region17: #{brm_forward.1} parent=11 // pred_check
        %p347 = pneg %p88
      $region18: #{brm_forward.1} parent=11 // pred_check_branch
        %349 = sbr.rel (%p347) target = $region20
      $region19: #{brm_forward.1} parent=11 // pred_region
        _
      $region20: #{brm_forward.1} parent=11 // pred_fallthru
        _
      // Predicated region
      $region21: #{brm_forward.1} parent=11 // pred_check
        %p350 = pneg %p109
      $region22: #{brm_forward.1} parent=11 // pred_check_branch
        %352 = sbr.rel (%p350) target = $region24
      $region23: #{brm_forward.1} parent=11 // pred_region
        _
      $region24: #{brm_forward.1} parent=11 // pred_fallthru
        _
      // Predicated region
      $region25: #{brm_forward.1} parent=11 // pred_check
        %p353 = pneg %p130
      $region26: #{brm_forward.1} parent=11 // pred_check_branch
        %355 = sbr.rel (%p353) target = $region28
      $region27: #{brm_forward.1} parent=11 // pred_region
        _
      $region28: #{brm_forward.1} parent=11 // pred_fallthru
        _
      // Predicated region
      $region29: #{brm_forward.1} parent=11 // pred_check
        %p356 = pneg %p151
      $region30: #{brm_forward.1} parent=11 // pred_check_branch
        %358 = sbr.rel (%p356) target = $region32
      $region31: #{brm_forward.1} parent=11 // pred_region
        _
      $region32: #{brm_forward.1} parent=11 // pred_fallthru
        _
      // Predicated region
      $region33: #{brm_forward.1} parent=11 // pred_check
        %p359 = pneg %p172
      $region34: #{brm_forward.1} parent=11 // pred_check_branch
        %361 = sbr.rel (%p359) target = $region36
      $region35: #{brm_forward.1} parent=11 // pred_region
        _
      $region36: #{brm_forward.1} parent=11 // pred_fallthru
        _
      // Predicated region
      $region37: #{brm_forward.1} parent=11 // pred_check
        %p362 = pneg %p193
      $region38: #{brm_forward.1} parent=11 // pred_check_branch
        %364 = sbr.rel (%p362) target = $region40
      $region39: #{brm_forward.1} parent=11 // pred_region
        _
      $region40: #{brm_forward.1} parent=11 // pred_fallthru
        _
      // Predicated region
      $region41: #{brm_forward.1} parent=11 // pred_check
        %p365 = pneg %p214
      $region42: #{brm_forward.1} parent=11 // pred_check_branch
        %367 = sbr.rel (%p365) target = $region44
      $region43: #{brm_forward.1} parent=11 // pred_region
        _
      $region44: #{brm_forward.1} parent=11 // pred_fallthru
        _
      // Predicated region
      $region45: #{brm_forward.1} parent=11 // pred_check
        %p368 = pneg %p235
      $region46: #{brm_forward.1} parent=11 // pred_check_branch
        %370 = sbr.rel (%p368) target = $region48
      $region47: #{brm_forward.1} parent=11 // pred_region
        _
      $region48: #{brm_forward.1} parent=11 // pred_fallthru
        _
      // Predicated region
      $region49: #{brm_forward.1} parent=11 // pred_check
        %p371 = pneg %p256
      $region50: #{brm_forward.1} parent=11 // pred_check_branch
        %373 = sbr.rel (%p371) target = $region52
      $region51: #{brm_forward.1} parent=11 // pred_region
        _
      $region52: #{brm_forward.1} parent=11 // pred_fallthru
        _
      // Predicated region
      $region53: #{brm_forward.1} parent=11 // pred_check
        %p374 = pneg %p277
      $region54: #{brm_forward.1} parent=11 // pred_check_branch
        %376 = sbr.rel (%p374) target = $region56
      $region55: #{brm_forward.1} parent=11 // pred_region
        _
      $region56: #{brm_forward.1} parent=11 // pred_fallthru
        _
    $region12: #{brm_forward.1} parent=5 // pred_fallthru
      _
    %p377 = scmp.lt.s32.totalorder %s20, 2
    // Predicated region
    $region57: #{brm_forward.1} parent=5 // pred_check
      %p378 = pneg %p377
    $region58: #{brm_forward.1} parent=5 // pred_check_branch
      %380 = sbr.rel (%p378) target = $region60
    $region59: #{brm_forward.1} parent=5 // pred_region
      // Predicated region
      $region61: #{brm_forward.1} parent=59 // pred_check
        %p381 = pneg %p40
      $region62: #{brm_forward.1} parent=59 // pred_check_branch
        %383 = sbr.rel (%p381) target = $region64
      $region63: #{brm_forward.1} parent=59 // pred_region
        %p384 = scmp.lt.s32.totalorder %s20, 1
        %s385 = scalar_select %p384, %s20, 1
        %s386 = smul.addr %s385, 2
        %s387 = smul.addr %s386, 4
        %s388 = scalar_lea.vmem %s0, %s387
      $region64: #{brm_forward.1} parent=59 // pred_fallthru
        _
    $region60: #{brm_forward.1} parent=5 // pred_fallthru
      _
    %p389 = scmp.le.s32.totalorder 1, %s20
    %p390 = scmp.lt.s32.totalorder %s20, 3
    %p391 = pnand %p389, %p390
    %p392 = pneg %p391
    // Predicated region
    $region65: #{brm_forward.1} parent=5 // pred_check
      _
    $region66: #{brm_forward.1} parent=5 // pred_check_branch
      %394 = sbr.rel (%p391) target = $region68
    $region67: #{brm_forward.1} parent=5 // pred_region
      %s395 = ssub.s32 %s20, 1
      %p396 = scmp.lt.s32.totalorder %s25, 1
      %s397 = scalar_select %p396, %s25, 1
      %s398 = smul.addr %s397, 2
      %s399 = smul.addr %s398, 4
      %s400 = scalar_lea.vmem %s0, %s399
      %p401 = pneg %p46
      %p402 = pneg %p43
      %p403 = pneg %p67
      %p404 = pneg %p64
      %p405 = pneg %p88
      %p406 = pneg %p85
      %p407 = pneg %p109
      %p408 = pneg %p106
      %p409 = pneg %p130
      %p410 = pneg %p127
      %p411 = pneg %p151
      %p412 = pneg %p148
      %p413 = pneg %p172
      %p414 = pneg %p169
      %p415 = pneg %p193
      %p416 = pneg %p190
      %p417 = pneg %p214
      %p418 = pneg %p211
      %p419 = pneg %p235
      %p420 = pneg %p232
      %p421 = pneg %p256
      %p422 = pneg %p253
      %p423 = pneg %p277
      %p424 = pneg %p274
      %p425 = pneg %p303
      %p426 = pneg %p300
      %p427 = scmp.lt.s32.totalorder %s25, 1
      %s428 = scalar_select %p427, %s25, 1
      %s429 = smul.addr %s428, 2
      %s430 = smul.addr %s429, 4
      %s431 = scalar_lea.vmem %s12, %s430
      %p432 = pneg %p329
      %p433 = pneg %p326
      %p434 = scmp.lt.s32.totalorder %s25, 1
      %s435 = scalar_select %p434, %s25, 1
      %s436 = smul.addr %s435, 4
      %s437 = smul.addr %s436, 8
      %s438 = scalar_lea.vmem %s13, %s437
      %p439 = scmp.lt.s32.totalorder %s25, 1
      %s440 = scalar_select %p439, %s25, 1
      %s441 = smul.addr %s440, 2
      %s442 = smul.addr %s441, 4
      %s443 = scalar_lea.vmem %s0, %s442
      %p444 = scmp.lt.s32.totalorder %s25, 1
      %s445 = scalar_select %p444, %s25, 1
      %s446 = smul.addr %s445, 2
      %s447 = smul.addr %s446, 4
      %s448 = scalar_lea.vmem %s12, %s447
      %p449 = scmp.lt.s32.totalorder %s25, 1
      %s450 = scalar_select %p449, %s25, 1
      %s451 = smul.addr %s450, 4
      %s452 = smul.addr %s451, 8
      %s453 = scalar_lea.vmem %s13, %s452
      %454 = vst [vmem:[#allocation2] sm:$0xff] 0.0
      %455 = vst [vmem:[#allocation2 + $0x20] sm:$0xff] 0.0
      %456 = vst [vmem:[#allocation2 + $0x40] sm:$0xf] 0.0
      %457 = vst [vmem:[#allocation2 + $0x18] sm:$0xff] 0.0
      %458 = vst [vmem:[#allocation2 + $0x38] sm:$0xff] 0.0
      %459 = vst [vmem:[#allocation2 + $0x58] sm:$0xf] 0.0
      %v460 = vld [vmem:[%s443] sm:$0xff]
      %v462 = vcombine.high %v460, %v460
      %464 = vst [vmem:[#allocation2 + $0x48] sm:$0xf] %v460
      %465 = vst [vmem:[#allocation2 + $0x50] sm:$0xf] %v462
      %v466 = vld [vmem:[#allocation2 + $0x40] sm:$0xf]
      %v467 = vld [vmem:[#allocation2 + $0x48] sm:$0xf]
      %v468 = vld [vmem:[#allocation2 + $0x50] sm:$0xf]
      %v469 = vld [vmem:[%s1] sm:$0xff]
      %v471 = vcombine.high %v469, %v469
      %472 = vrot.lane.b32.xlu0 %v469, 111
      %v473 = vpop.permute.xlu0 %472
      %474 = vrot.lane.b32.xlu0 %v471, 111
      %v475 = vpop.permute.xlu0 %474
      %vm476 = vcmask 908288
      %v477 = vsel %vm476, %v473, %v475
      %v481 = vmul.f32 %v466, %v473
      %v482 = vmul.f32 %v467, %v477
      %v483 = vmul.f32 %v468, %v475
      %487 = vrot.lane.b32.xlu0 %v481, 17
      %v488 = vpop.permute.xlu0 %487
      %489 = vrot.lane.b32.xlu0 %v482, 17
      %v490 = vpop.permute.xlu0 %489
      %491 = vrot.lane.b32.xlu0 %v483, 17
      %v492 = vpop.permute.xlu0 %491
      %vm493 = vcmask 138240
      %v494 = vsel %vm493, %v488, %v490
      %v495 = vsel %vm493, %v490, %v492
      %498 = vst [vmem:[#allocation3] sm:$0xf] %v494
      %499 = vst [vmem:[#allocation3 + $0x8] sm:$0xf] %v495
      %v500 = vld [vmem:[#allocation2 + $0x40] sm:$0xf]
      %v501 = vld [vmem:[#allocation2 + $0x48] sm:$0xf]
      %v502 = vld [vmem:[#allocation2 + $0x50] sm:$0xf]
      %s503 = scalar_lea.vmem %s1, 8
      %v504 = vld [vmem:[%s503] sm:$0xff]
      %v506 = vcombine.high %v504, %v504
      %507 = vrot.lane.b32.xlu0 %v504, 112
      %v508 = vpop.permute.xlu0 %507
      %509 = vrot.lane.b32.xlu0 %v506, 112
      %v510 = vpop.permute.xlu0 %509
      %vm511 = vcmask 916480
      %v512 = vsel %vm511, %v508, %v510
      %v516 = vmul.f32 %v500, %v508
      %v517 = vmul.f32 %v501, %v512
      %v518 = vmul.f32 %v502, %v510
      %v522 = vrot.slane %v516, 4
      %v523 = vrot.slane %v517, 4
      %v524 = vrot.slane %v518, 4
      %525 = vrot.lane.b32.xlu0 %v522, 16
      %v526 = vpop.permute.xlu0 %525
      %527 = vrot.lane.b32.xlu0 %v523, 16
      %v528 = vpop.permute.xlu0 %527
      %529 = vrot.lane.b32.xlu0 %v524, 16
      %v530 = vpop.permute.xlu0 %529
      %vm531 = vcmask 130048
      %v532 = vsel %vm531, %v526, %v528
      %v533 = vsel %vm531, %v528, %v530
      %536 = vst [vmem:[#allocation3] sm:$0xf0] %v532
      %537 = vst [vmem:[#allocation3 + $0x8] sm:$0xf0] %v533
      %v538 = vld [vmem:[#allocation2 + $0x40] sm:$0xf]
      %v539 = vld [vmem:[#allocation2 + $0x48] sm:$0xf]
      %v540 = vld [vmem:[#allocation2 + $0x50] sm:$0xf]
      %s541 = scalar_lea.vmem %s1, 16
      %v542 = vld [vmem:[%s541] sm:$0xff]
      %v544 = vcombine.high %v542, %v542
      %545 = vrot.lane.b32.xlu0 %v542, 113
      %v546 = vpop.permute.xlu0 %545
      %547 = vrot.lane.b32.xlu0 %v544, 113
      %v548 = vpop.permute.xlu0 %547
      %vm549 = vcmask 924672
      %v550 = vsel %vm549, %v546, %v548
      %v554 = vmul.f32 %v538, %v546
      %v555 = vmul.f32 %v539, %v550
      %v556 = vmul.f32 %v540, %v548
      %560 = vrot.lane.b32.xlu0 %v554, 15
      %v561 = vpop.permute.xlu0 %560
      %562 = vrot.lane.b32.xlu0 %v555, 15
      %v563 = vpop.permute.xlu0 %562
      %564 = vrot.lane.b32.xlu0 %v556, 15
      %v565 = vpop.permute.xlu0 %564
      %vm566 = vcmask 121856
      %v567 = vsel %vm566, %v561, %v563
      %v568 = vsel %vm566, %v563, %v565
      %571 = vst [vmem:[#allocation3 + $0x10] sm:$0xf] %v567
      %572 = vst [vmem:[#allocation3 + $0x18] sm:$0xf] %v568
      %v573 = vld [vmem:[#allocation2 + $0x40] sm:$0xf]
      %v574 = vld [vmem:[#allocation2 + $0x48] sm:$0xf]
      %v575 = vld [vmem:[#allocation2 + $0x50] sm:$0xf]
      %s576 = scalar_lea.vmem %s1, 24
      %v577 = vld [vmem:[%s576] sm:$0xff]
      %v579 = vcombine.high %v577, %v577
      %580 = vrot.lane.b32.xlu0 %v577, 127
      %v581 = vpop.permute.xlu0 %580
      %582 = vrot.lane.b32.xlu0 %v579, 127
      %v583 = vpop.permute.xlu0 %582
      %vm584 = vcmask 1039360
      %v585 = vsel %vm584, %v581, %v583
      %v589 = vmul.f32 %v573, %v581
      %v590 = vmul.f32 %v574, %v585
      %v591 = vmul.f32 %v575, %v583
      %v595 = vrot.slane %v589, 4
      %v596 = vrot.slane %v590, 4
      %v597 = vrot.slane %v591, 4
      %598 = vrot.lane.b32.xlu0 %v595, 1
      %v599 = vpop.permute.xlu0 %598
      %600 = vrot.lane.b32.xlu0 %v596, 1
      %v601 = vpop.permute.xlu0 %600
      %602 = vrot.lane.b32.xlu0 %v597, 1
      %v603 = vpop.permute.xlu0 %602
      %vm604 = vcmask 7168
      %v605 = vsel %vm604, %v599, %v601
      %v606 = vsel %vm604, %v601, %v603
      %609 = vst [vmem:[#allocation3 + $0x10] sm:$0xf0] %v605
      %610 = vst [vmem:[#allocation3 + $0x18] sm:$0xf0] %v606
      %v611 = vld [vmem:[#allocation2 + $0x48] sm:$0xf]
      %v612 = vld [vmem:[#allocation2 + $0x50] sm:$0xf]
      %613 = vst [vmem:[#allocation3 + $0x20] sm:$0xf] %v611
      %614 = vst [vmem:[#allocation3 + $0x28] sm:$0xf] %v612
      %v615 = vld [vmem:[#allocation2 + $0x48] sm:$0xf]
      %v616 = vld [vmem:[#allocation2 + $0x50] sm:$0xf]
      %v617 = vld [vmem:[#allocation2 + $0x58] sm:$0xf]
      %s618 = scalar_lea.vmem %s1, 40
      %v619 = vld [vmem:[%s618] sm:$0xff]
      %v621 = vcombine.high %v619, %v619
      %622 = vrot.lane.b32.xlu0 %v619, 1
      %v623 = vpop.permute.xlu0 %622
      %624 = vrot.lane.b32.xlu0 %v621, 1
      %v625 = vpop.permute.xlu0 %624
      %v626 = vsel %vm604, %v623, %v625
      %v630 = vmul.f32 %v615, %v623
      %v631 = vmul.f32 %v616, %v626
      %v632 = vmul.f32 %v617, %v625
      %v636 = vrot.slane %v630, 4
      %v637 = vrot.slane %v631, 4
      %v638 = vrot.slane %v632, 4
      %639 = vrot.lane.b32.xlu0 %v636, 127
      %v640 = vpop.permute.xlu0 %639
      %641 = vrot.lane.b32.xlu0 %v637, 127
      %v642 = vpop.permute.xlu0 %641
      %643 = vrot.lane.b32.xlu0 %v638, 127
      %v644 = vpop.permute.xlu0 %643
      %v645 = vsel %vm584, %v640, %v642
      %v646 = vsel %vm584, %v642, %v644
      %649 = vst [vmem:[#allocation3 + $0x20] sm:$0xf0] %v645
      %650 = vst [vmem:[#allocation3 + $0x28] sm:$0xf0] %v646
      %v651 = vld [vmem:[#allocation2 + $0x48] sm:$0xf]
      %v652 = vld [vmem:[#allocation2 + $0x50] sm:$0xf]
      %v653 = vld [vmem:[#allocation2 + $0x58] sm:$0xf]
      %s654 = scalar_lea.vmem %s1, 48
      %v655 = vld [vmem:[%s654] sm:$0xff]
      %v657 = vcombine.high %v655, %v655
      %658 = vrot.lane.b32.xlu0 %v655, 15
      %v659 = vpop.permute.xlu0 %658
      %660 = vrot.lane.b32.xlu0 %v657, 15
      %v661 = vpop.permute.xlu0 %660
      %v662 = vsel %vm566, %v659, %v661
      %v666 = vmul.f32 %v651, %v659
      %v667 = vmul.f32 %v652, %v662
      %v668 = vmul.f32 %v653, %v661
      %672 = vrot.lane.b32.xlu0 %v666, 113
      %v673 = vpop.permute.xlu0 %672
      %674 = vrot.lane.b32.xlu0 %v667, 113
      %v675 = vpop.permute.xlu0 %674
      %676 = vrot.lane.b32.xlu0 %v668, 113
      %v677 = vpop.permute.xlu0 %676
      %v678 = vsel %vm549, %v673, %v675
      %v679 = vsel %vm549, %v675, %v677
      %682 = vst [vmem:[#allocation3 + $0x30] sm:$0xf] %v678
      %683 = vst [vmem:[#allocation3 + $0x38] sm:$0xf] %v679
      %v684 = vld [vmem:[#allocation2 + $0x48] sm:$0xf]
      %v685 = vld [vmem:[#allocation2 + $0x50] sm:$0xf]
      %v686 = vld [vmem:[#allocation2 + $0x58] sm:$0xf]
      %s687 = scalar_lea.vmem %s1, 56
      %v688 = vld [vmem:[%s687] sm:$0xff]
      %v690 = vcombine.high %v688, %v688
      %691 = vrot.lane.b32.xlu0 %v688, 16
      %v692 = vpop.permute.xlu0 %691
      %693 = vrot.lane.b32.xlu0 %v690, 16
      %v694 = vpop.permute.xlu0 %693
      %v695 = vsel %vm531, %v692, %v694
      %v699 = vmul.f32 %v684, %v692
      %v700 = vmul.f32 %v685, %v695
      %v701 = vmul.f32 %v686, %v694
      %v705 = vrot.slane %v699, 4
      %v706 = vrot.slane %v700, 4
      %v707 = vrot.slane %v701, 4
      %708 = vrot.lane.b32.xlu0 %v705, 112
      %v709 = vpop.permute.xlu0 %708
      %710 = vrot.lane.b32.xlu0 %v706, 112
      %v711 = vpop.permute.xlu0 %710
      %712 = vrot.lane.b32.xlu0 %v707, 112
      %v713 = vpop.permute.xlu0 %712
      %v714 = vsel %vm511, %v709, %v711
      %v715 = vsel %vm511, %v711, %v713
      %718 = vst [vmem:[#allocation3 + $0x30] sm:$0xf0] %v714
      %719 = vst [vmem:[#allocation3 + $0x38] sm:$0xf0] %v715
      %v720 = vld [vmem:[#allocation2 + $0x48] sm:$0xf]
      %v721 = vld [vmem:[#allocation2 + $0x50] sm:$0xf]
      %v722 = vld [vmem:[#allocation2 + $0x58] sm:$0xf]
      %s723 = scalar_lea.vmem %s1, 64
      %v724 = vld [vmem:[%s723] sm:$0xff]
      %v726 = vcombine.high %v724, %v724
      %727 = vrot.lane.b32.xlu0 %v724, 17
      %v728 = vpop.permute.xlu0 %727
      %729 = vrot.lane.b32.xlu0 %v726, 17
      %v730 = vpop.permute.xlu0 %729
      %v731 = vsel %vm493, %v728, %v730
      %v735 = vmul.f32 %v720, %v728
      %v736 = vmul.f32 %v721, %v731
      %v737 = vmul.f32 %v722, %v730
      %741 = vrot.lane.b32.xlu0 %v735, 111
      %v742 = vpop.permute.xlu0 %741
      %743 = vrot.lane.b32.xlu0 %v736, 111
      %v744 = vpop.permute.xlu0 %743
      %745 = vrot.lane.b32.xlu0 %v737, 111
      %v746 = vpop.permute.xlu0 %745
      %v747 = vsel %vm476, %v742, %v744
      %v748 = vsel %vm476, %v744, %v746
      %751 = vst [vmem:[#allocation3 + $0x40] sm:$0xf] %v747
      %752 = vst [vmem:[#allocation3 + $0x48] sm:$0xf] %v748
      %v753 = vld [vmem:[#allocation2 + $0x48] sm:$0xf]
      %v754 = vld [vmem:[#allocation2 + $0x50] sm:$0xf]
      %v757 = vrot.slane %v753, 4
      %v758 = vrot.slane %v754, 4
      %761 = vst [vmem:[#allocation3 + $0x40] sm:$0xf0] %v757
      %762 = vst [vmem:[#allocation3 + $0x48] sm:$0xf0] %v758
      %v763 = vld [vmem:[%s2] sm:$0xff]
      %v764 = vld [vmem:[%s2 + $0x8] sm:$0xff]
      %v765 = vld [vmem:[#allocation3] sm:$0xff]
      %v766 = vld [vmem:[#allocation3 + $0x8] sm:$0xff]
      %v767 = vld [vmem:[#allocation3 + $0x10] sm:$0xff]
      %v768 = vld [vmem:[#allocation3 + $0x18] sm:$0xff]
      %v769 = vld [vmem:[#allocation3 + $0x20] sm:$0xff]
      %v770 = vld [vmem:[#allocation3 + $0x28] sm:$0xff]
      %v771 = vld [vmem:[#allocation3 + $0x30] sm:$0xff]
      %v772 = vld [vmem:[#allocation3 + $0x38] sm:$0xff]
      %v773 = vld [vmem:[#allocation3 + $0x40] sm:$0xff]
      %v774 = vld [vmem:[#allocation3 + $0x48] sm:$0xff]
      %v775 = vld [vmem:[%s3] sm:$0xff]
      %v776 = vld [vmem:[%s3 + $0x8] sm:$0xff]
      %778 = vset.pattern.permute.xlu0 0
      %779 = vperm.xlu0 %778, %v775
      %v780 = vpop.permute.xlu0 %779
      %783 = vset.pattern.permute.xlu0 0
      %784 = vperm.xlu0 %783, %v776
      %v785 = vpop.permute.xlu0 %784
      %vm787 = vcmask 326656
      %v789 = vsel %vm787, %v763, 0
      %v792 = vsel %vm787, %v764, 0
      %794 = vmatprep.subr.mxu0 %v766
      %795 = vmatpush1.msra.mxu0 %v765
      %796 = vmatprep.subr.mxu0 %v768
      %797 = vmatpush1.msra.mxu0 %v767
      %798 = vmatprep.subr.mxu0 %v770
      %799 = vmatpush1.msra.mxu0 %v769
      %800 = vmatprep.subr.mxu0 %v772
      %801 = vmatpush1.msra.mxu0 %v771
      %802 = vmatprep.subr.mxu0 %v774
      %803 = vmatpush1.msra.mxu0 %v773
      %804 = vmatprep.subr.mxu0 0.0
      %805 = vmatpush1.msra.mxu0 0.0
      %806 = vmatprep.subr.mxu0 0.0
      %807 = vmatpush1.msra.mxu0 0.0
      %808 = vmatprep.subr.mxu0 0.0
      %809 = vmatpush1.msra.mxu0 0.0
      %810 = vmatprep.subr.mxu0 0.0
      %811 = vmatpush1.msra.mxu0 0.0
      %812 = vmatprep.subr.mxu0 0.0
      %813 = vmatpush1.msra.mxu0 0.0
      %814 = vmatprep.subr.mxu0 0.0
      %815 = vmatpush1.msra.mxu0 0.0
      %816 = vmatprep.subr.mxu0 0.0
      %817 = vmatpush1.msra.mxu0 0.0
      %818 = vmatprep.subr.mxu0 0.0
      %819 = vmatpush1.msra.mxu0 0.0
      %820 = vmatprep.subr.mxu0 0.0
      %821 = vmatpush1.msra.mxu0 0.0
      %822 = vmatprep.subr.mxu0 0.0
      %823 = vmatpush1.msra.mxu0 0.0
      %824 = vmatprep.subr.mxu0 0.0
      %825 = vmatpush1.msra.mxu0 0.0
      %826 = vmatprep.subr.mxu0 0.0
      %827 = vmatpush1.msra.mxu0 0.0
      %828 = vmatprep.subr.mxu0 0.0
      %829 = vmatpush1.msra.mxu0 0.0
      %830 = vmatprep.subr.mxu0 0.0
      %831 = vmatpush1.msra.mxu0 0.0
      %832 = vmatprep.subr.mxu0 0.0
      %833 = vmatpush1.msra.mxu0 0.0
      %834 = vmatprep.subr.mxu0 0.0
      %835 = vmatpush1.msra.mxu0 0.0
      %836 = vmatprep.subr.mxu0 0.0
      %837 = vmatpush1.msra.mxu0 0.0
      %838 = vmatprep.subr.mxu0 0.0
      %839 = vmatpush1.msra.mxu0 0.0
      %840 = vmatprep.subr.mxu0 0.0
      %841 = vmatpush1.msra.mxu0 0.0
      %842 = vmatprep.subr.mxu0 0.0
      %843 = vmatpush1.msra.mxu0 0.0
      %844 = vmatprep.subr.mxu0 0.0
      %845 = vmatpush1.msra.mxu0 0.0
      %846 = vmatprep.subr.mxu0 0.0
      %847 = vmatpush1.msra.mxu0 0.0
      %848 = vmatprep.subr.mxu0 0.0
      %849 = vmatpush1.msra.mxu0 0.0
      %850 = vmatprep.subr.mxu0 0.0
      %851 = vmatpush1.msra.mxu0 0.0
      %852 = vmatprep.subr.mxu0 0.0
      %853 = vmatpush1.msra.mxu0 0.0
      %854 = vmatprep.subr.mxu0 0.0
      %855 = vmatpush1.msra.mxu0 0.0
      %856 = vmatprep.subr.mxu0 0.0
      %857 = vmatpush1.msra.mxu0 0.0
      %858 = vmatprep.mubr.f32.mxu0 0.0
      %859 = vmatmul.mubr.f32.gmra.mrb[0].mxu0 %v789
      %v860 = vpop.f32.mrb[0].mxu0
      %v861 = vadd.f32 %v780, %v860
      %v862 = vpop.f32.mrb[0].mxu0
      %v863 = vadd.f32 %v780, %v862
      %864 = vmatprep.mubr.f32.mxu0 0.0
      %865 = vmatmul.mubr.f32.gmra.mrb[0].mxu0 %v792
      %v866 = vpop.f32.mrb[0].mxu0
      %v867 = vadd.f32 %v785, %v866
      %v868 = vpop.f32.mrb[0].mxu0
      %v869 = vadd.f32 %v785, %v868
      %870 = vdwg.mxu0
      %871 = vst [vmem:[#allocation2 + $0x8] sm:$0xf] %v861
      %872 = vst [vmem:[#allocation2 + $0x10] sm:$0xf] %v863
      %873 = vst [vmem:[#allocation2 + $0x8] sm:$0xf0] %v861
      %874 = vst [vmem:[#allocation2 + $0x10] sm:$0xf0] %v863
      %875 = vst [vmem:[#allocation2 + $0x28] sm:$0xf] %v867
      %876 = vst [vmem:[#allocation2 + $0x30] sm:$0xf] %v869
      %877 = vst [vmem:[#allocation2 + $0x28] sm:$0xf0] %v867
      %878 = vst [vmem:[#allocation2 + $0x30] sm:$0xf0] %v869
      %v879 = vld [vmem:[#allocation2] sm:$0xf]
      %v880 = vld [vmem:[#allocation2 + $0x8] sm:$0xf]
      %v881 = vld [vmem:[#allocation2 + $0x10] sm:$0xf]
      %v882 = vld [vmem:[%s1] sm:$0xff]
      %v884 = vcombine.high %v882, %v882
      %885 = vrot.lane.b32.xlu0 %v882, 111
      %v886 = vpop.permute.xlu0 %885
      %887 = vrot.lane.b32.xlu0 %v884, 111
      %v888 = vpop.permute.xlu0 %887
      %v889 = vsel %vm476, %v886, %v888
      %v893 = vmul.f32 %v879, %v886
      %v894 = vmul.f32 %v880, %v889
      %v895 = vmul.f32 %v881, %v888
      %899 = vrot.lane.b32.xlu0 %v893, 17
      %v900 = vpop.permute.xlu0 %899
      %901 = vrot.lane.b32.xlu0 %v894, 17
      %v902 = vpop.permute.xlu0 %901
      %903 = vrot.lane.b32.xlu0 %v895, 17
      %v904 = vpop.permute.xlu0 %903
      %v905 = vsel %vm493, %v900, %v902
      %v906 = vsel %vm493, %v902, %v904
      %909 = vst [vmem:[#allocation3] sm:$0xf] %v905
      %910 = vst [vmem:[#allocation3 + $0x8] sm:$0xf] %v906
      %v911 = vld [vmem:[#allocation2] sm:$0xf]
      %v912 = vld [vmem:[#allocation2 + $0x8] sm:$0xf]
      %v913 = vld [vmem:[#allocation2 + $0x10] sm:$0xf]
      %v914 = vld [vmem:[%s503] sm:$0xff]
      %v916 = vcombine.high %v914, %v914
      %917 = vrot.lane.b32.xlu0 %v914, 112
      %v918 = vpop.permute.xlu0 %917
      %919 = vrot.lane.b32.xlu0 %v916, 112
      %v920 = vpop.permute.xlu0 %919
      %v921 = vsel %vm511, %v918, %v920
      %v925 = vmul.f32 %v911, %v918
      %v926 = vmul.f32 %v912, %v921
      %v927 = vmul.f32 %v913, %v920
      %v931 = vrot.slane %v925, 4
      %v932 = vrot.slane %v926, 4
      %v933 = vrot.slane %v927, 4
      %934 = vrot.lane.b32.xlu0 %v931, 16
      %v935 = vpop.permute.xlu0 %934
      %936 = vrot.lane.b32.xlu0 %v932, 16
      %v937 = vpop.permute.xlu0 %936
      %938 = vrot.lane.b32.xlu0 %v933, 16
      %v939 = vpop.permute.xlu0 %938
      %v940 = vsel %vm531, %v935, %v937
      %v941 = vsel %vm531, %v937, %v939
      %944 = vst [vmem:[#allocation3] sm:$0xf0] %v940
      %945 = vst [vmem:[#allocation3 + $0x8] sm:$0xf0] %v941
      %v946 = vld [vmem:[#allocation2] sm:$0xf]
      %v947 = vld [vmem:[#allocation2 + $0x8] sm:$0xf]
      %v948 = vld [vmem:[#allocation2 + $0x10] sm:$0xf]
      %v949 = vld [vmem:[%s541] sm:$0xff]
      %v951 = vcombine.high %v949, %v949
      %952 = vrot.lane.b32.xlu0 %v949, 113
      %v953 = vpop.permute.xlu0 %952
      %954 = vrot.lane.b32.xlu0 %v951, 113
      %v955 = vpop.permute.xlu0 %954
      %v956 = vsel %vm549, %v953, %v955
      %v960 = vmul.f32 %v946, %v953
      %v961 = vmul.f32 %v947, %v956
      %v962 = vmul.f32 %v948, %v955
      %966 = vrot.lane.b32.xlu0 %v960, 15
      %v967 = vpop.permute.xlu0 %966
      %968 = vrot.lane.b32.xlu0 %v961, 15
      %v969 = vpop.permute.xlu0 %968
      %970 = vrot.lane.b32.xlu0 %v962, 15
      %v971 = vpop.permute.xlu0 %970
      %v972 = vsel %vm566, %v967, %v969
      %v973 = vsel %vm566, %v969, %v971
      %976 = vst [vmem:[#allocation3 + $0x10] sm:$0xf] %v972
      %977 = vst [vmem:[#allocation3 + $0x18] sm:$0xf] %v973
      %v978 = vld [vmem:[#allocation2] sm:$0xf]
      %v979 = vld [vmem:[#allocation2 + $0x8] sm:$0xf]
      %v980 = vld [vmem:[#allocation2 + $0x10] sm:$0xf]
      %v981 = vld [vmem:[%s576] sm:$0xff]
      %v983 = vcombine.high %v981, %v981
      %984 = vrot.lane.b32.xlu0 %v981, 127
      %v985 = vpop.permute.xlu0 %984
      %986 = vrot.lane.b32.xlu0 %v983, 127
      %v987 = vpop.permute.xlu0 %986
      %v988 = vsel %vm584, %v985, %v987
      %v992 = vmul.f32 %v978, %v985
      %v993 = vmul.f32 %v979, %v988
      %v994 = vmul.f32 %v980, %v987
      %v998 = vrot.slane %v992, 4
      %v999 = vrot.slane %v993, 4
      %v1000 = vrot.slane %v994, 4
      %1001 = vrot.lane.b32.xlu0 %v998, 1
      %v1002 = vpop.permute.xlu0 %1001
      %1003 = vrot.lane.b32.xlu0 %v999, 1
      %v1004 = vpop.permute.xlu0 %1003
      %1005 = vrot.lane.b32.xlu0 %v1000, 1
      %v1006 = vpop.permute.xlu0 %1005
      %v1007 = vsel %vm604, %v1002, %v1004
      %v1008 = vsel %vm604, %v1004, %v1006
      %1011 = vst [vmem:[#allocation3 + $0x10] sm:$0xf0] %v1007
      %1012 = vst [vmem:[#allocation3 + $0x18] sm:$0xf0] %v1008
      %v1013 = vld [vmem:[#allocation2 + $0x8] sm:$0xf]
      %v1014 = vld [vmem:[#allocation2 + $0x10] sm:$0xf]
      %1015 = vst [vmem:[#allocation3 + $0x20] sm:$0xf] %v1013
      %1016 = vst [vmem:[#allocation3 + $0x28] sm:$0xf] %v1014
      %v1017 = vld [vmem:[#allocation2 + $0x8] sm:$0xf]
      %v1018 = vld [vmem:[#allocation2 + $0x10] sm:$0xf]
      %v1019 = vld [vmem:[#allocation2 + $0x18] sm:$0xf]
      %v1020 = vld [vmem:[%s618] sm:$0xff]
      %v1022 = vcombine.high %v1020, %v1020
      %1023 = vrot.lane.b32.xlu0 %v1020, 1
      %v1024 = vpop.permute.xlu0 %1023
      %1025 = vrot.lane.b32.xlu0 %v1022, 1
      %v1026 = vpop.permute.xlu0 %1025
      %v1027 = vsel %vm604, %v1024, %v1026
      %v1031 = vmul.f32 %v1017, %v1024
      %v1032 = vmul.f32 %v1018, %v1027
      %v1033 = vmul.f32 %v1019, %v1026
      %v1037 = vrot.slane %v1031, 4
      %v1038 = vrot.slane %v1032, 4
      %v1039 = vrot.slane %v1033, 4
      %1040 = vrot.lane.b32.xlu0 %v1037, 127
      %v1041 = vpop.permute.xlu0 %1040
      %1042 = vrot.lane.b32.xlu0 %v1038, 127
      %v1043 = vpop.permute.xlu0 %1042
      %1044 = vrot.lane.b32.xlu0 %v1039, 127
      %v1045 = vpop.permute.xlu0 %1044
      %v1046 = vsel %vm584, %v1041, %v1043
      %v1047 = vsel %vm584, %v1043, %v1045
      %1050 = vst [vmem:[#allocation3 + $0x20] sm:$0xf0] %v1046
      %1051 = vst [vmem:[#allocation3 + $0x28] sm:$0xf0] %v1047
      %v1052 = vld [vmem:[#allocation2 + $0x8] sm:$0xf]
      %v1053 = vld [vmem:[#allocation2 + $0x10] sm:$0xf]
      %v1054 = vld [vmem:[#allocation2 + $0x18] sm:$0xf]
      %v1055 = vld [vmem:[%s654] sm:$0xff]
      %v1057 = vcombine.high %v1055, %v1055
      %1058 = vrot.lane.b32.xlu0 %v1055, 15
      %v1059 = vpop.permute.xlu0 %1058
      %1060 = vrot.lane.b32.xlu0 %v1057, 15
      %v1061 = vpop.permute.xlu0 %1060
      %v1062 = vsel %vm566, %v1059, %v1061
      %v1066 = vmul.f32 %v1052, %v1059
      %v1067 = vmul.f32 %v1053, %v1062
      %v1068 = vmul.f32 %v1054, %v1061
      %1072 = vrot.lane.b32.xlu0 %v1066, 113
      %v1073 = vpop.permute.xlu0 %1072
      %1074 = vrot.lane.b32.xlu0 %v1067, 113
      %v1075 = vpop.permute.xlu0 %1074
      %1076 = vrot.lane.b32.xlu0 %v1068, 113
      %v1077 = vpop.permute.xlu0 %1076
      %v1078 = vsel %vm549, %v1073, %v1075
      %v1079 = vsel %vm549, %v1075, %v1077
      %1082 = vst [vmem:[#allocation3 + $0x30] sm:$0xf] %v1078
      %1083 = vst [vmem:[#allocation3 + $0x38] sm:$0xf] %v1079
      %v1084 = vld [vmem:[#allocation2 + $0x8] sm:$0xf]
      %v1085 = vld [vmem:[#allocation2 + $0x10] sm:$0xf]
      %v1086 = vld [vmem:[#allocation2 + $0x18] sm:$0xf]
      %v1087 = vld [vmem:[%s687] sm:$0xff]
      %v1089 = vcombine.high %v1087, %v1087
      %1090 = vrot.lane.b32.xlu0 %v1087, 16
      %v1091 = vpop.permute.xlu0 %1090
      %1092 = vrot.lane.b32.xlu0 %v1089, 16
      %v1093 = vpop.permute.xlu0 %1092
      %v1094 = vsel %vm531, %v1091, %v1093
      %v1098 = vmul.f32 %v1084, %v1091
      %v1099 = vmul.f32 %v1085, %v1094
      %v1100 = vmul.f32 %v1086, %v1093
      %v1104 = vrot.slane %v1098, 4
      %v1105 = vrot.slane %v1099, 4
      %v1106 = vrot.slane %v1100, 4
      %1107 = vrot.lane.b32.xlu0 %v1104, 112
      %v1108 = vpop.permute.xlu0 %1107
      %1109 = vrot.lane.b32.xlu0 %v1105, 112
      %v1110 = vpop.permute.xlu0 %1109
      %1111 = vrot.lane.b32.xlu0 %v1106, 112
      %v1112 = vpop.permute.xlu0 %1111
      %v1113 = vsel %vm511, %v1108, %v1110
      %v1114 = vsel %vm511, %v1110, %v1112
      %1117 = vst [vmem:[#allocation3 + $0x30] sm:$0xf0] %v1113
      %1118 = vst [vmem:[#allocation3 + $0x38] sm:$0xf0] %v1114
      %v1119 = vld [vmem:[#allocation2 + $0x8] sm:$0xf]
      %v1120 = vld [vmem:[#allocation2 + $0x10] sm:$0xf]
      %v1121 = vld [vmem:[#allocation2 + $0x18] sm:$0xf]
      %v1122 = vld [vmem:[%s723] sm:$0xff]
      %v1124 = vcombine.high %v1122, %v1122
      %1125 = vrot.lane.b32.xlu0 %v1122, 17
      %v1126 = vpop.permute.xlu0 %1125
      %1127 = vrot.lane.b32.xlu0 %v1124, 17
      %v1128 = vpop.permute.xlu0 %1127
      %v1129 = vsel %vm493, %v1126, %v1128
      %v1133 = vmul.f32 %v1119, %v1126
      %v1134 = vmul.f32 %v1120, %v1129
      %v1135 = vmul.f32 %v1121, %v1128
      %1139 = vrot.lane.b32.xlu0 %v1133, 111
      %v1140 = vpop.permute.xlu0 %1139
      %1141 = vrot.lane.b32.xlu0 %v1134, 111
      %v1142 = vpop.permute.xlu0 %1141
      %1143 = vrot.lane.b32.xlu0 %v1135, 111
      %v1144 = vpop.permute.xlu0 %1143
      %v1145 = vsel %vm476, %v1140, %v1142
      %v1146 = vsel %vm476, %v1142, %v1144
      %1149 = vst [vmem:[#allocation3 + $0x40] sm:$0xf] %v1145
      %1150 = vst [vmem:[#allocation3 + $0x48] sm:$0xf] %v1146
      %v1151 = vld [vmem:[#allocation2] sm:$0xf0]
      %v1152 = vld [vmem:[#allocation2 + $0x8] sm:$0xf0]
      %v1153 = vld [vmem:[#allocation2 + $0x10] sm:$0xf0]
      %v1154 = vld [vmem:[%s1] sm:$0xff]
      %v1156 = vcombine.low %v1154, %v1154
      %1157 = vrot.lane.b32.xlu0 %v1156, 111
      %v1158 = vpop.permute.xlu0 %1157
      %1159 = vrot.lane.b32.xlu0 %v1154, 111
      %v1160 = vpop.permute.xlu0 %1159
      %v1161 = vsel %vm476, %v1158, %v1160
      %v1165 = vmul.f32 %v1151, %v1158
      %v1166 = vmul.f32 %v1152, %v1161
      %v1167 = vmul.f32 %v1153, %v1160
      %1171 = vrot.lane.b32.xlu0 %v1165, 17
      %v1172 = vpop.permute.xlu0 %1171
      %1173 = vrot.lane.b32.xlu0 %v1166, 17
      %v1174 = vpop.permute.xlu0 %1173
      %1175 = vrot.lane.b32.xlu0 %v1167, 17
      %v1176 = vpop.permute.xlu0 %1175
      %v1177 = vsel %vm493, %v1172, %v1174
      %v1178 = vsel %vm493, %v1174, %v1176
      %1181 = vst [vmem:[#allocation3 + $0x40] sm:$0xf0] %v1177
      %1182 = vst [vmem:[#allocation3 + $0x48] sm:$0xf0] %v1178
      %v1183 = vld [vmem:[#allocation2] sm:$0xf0]
      %v1184 = vld [vmem:[#allocation2 + $0x8] sm:$0xf0]
      %v1185 = vld [vmem:[#allocation2 + $0x10] sm:$0xf0]
      %v1186 = vld [vmem:[%s503] sm:$0xff]
      %v1188 = vcombine.low %v1186, %v1186
      %1189 = vrot.lane.b32.xlu0 %v1188, 112
      %v1190 = vpop.permute.xlu0 %1189
      %1191 = vrot.lane.b32.xlu0 %v1186, 112
      %v1192 = vpop.permute.xlu0 %1191
      %v1193 = vsel %vm511, %v1190, %v1192
      %v1197 = vmul.f32 %v1183, %v1190
      %v1198 = vmul.f32 %v1184, %v1193
      %v1199 = vmul.f32 %v1185, %v1192
      %v1203 = vrot.slane %v1197, 4
      %v1204 = vrot.slane %v1198, 4
      %v1205 = vrot.slane %v1199, 4
      %1206 = vrot.lane.b32.xlu0 %v1203, 16
      %v1207 = vpop.permute.xlu0 %1206
      %1208 = vrot.lane.b32.xlu0 %v1204, 16
      %v1209 = vpop.permute.xlu0 %1208
      %1210 = vrot.lane.b32.xlu0 %v1205, 16
      %v1211 = vpop.permute.xlu0 %1210
      %v1212 = vsel %vm531, %v1207, %v1209
      %v1213 = vsel %vm531, %v1209, %v1211
      %1216 = vst [vmem:[#allocation3 + $0x50] sm:$0xf] %v1212
      %1217 = vst [vmem:[#allocation3 + $0x58] sm:$0xf] %v1213
      %v1218 = vld [vmem:[#allocation2] sm:$0xf0]
      %v1219 = vld [vmem:[#allocation2 + $0x8] sm:$0xf0]
      %v1220 = vld [vmem:[#allocation2 + $0x10] sm:$0xf0]
      %v1221 = vld [vmem:[%s541] sm:$0xff]
      %v1223 = vcombine.low %v1221, %v1221
      %1224 = vrot.lane.b32.xlu0 %v1223, 113
      %v1225 = vpop.permute.xlu0 %1224
      %1226 = vrot.lane.b32.xlu0 %v1221, 113
      %v1227 = vpop.permute.xlu0 %1226
      %v1228 = vsel %vm549, %v1225, %v1227
      %v1232 = vmul.f32 %v1218, %v1225
      %v1233 = vmul.f32 %v1219, %v1228
      %v1234 = vmul.f32 %v1220, %v1227
      %1238 = vrot.lane.b32.xlu0 %v1232, 15
      %v1239 = vpop.permute.xlu0 %1238
      %1240 = vrot.lane.b32.xlu0 %v1233, 15
      %v1241 = vpop.permute.xlu0 %1240
      %1242 = vrot.lane.b32.xlu0 %v1234, 15
      %v1243 = vpop.permute.xlu0 %1242
      %v1244 = vsel %vm566, %v1239, %v1241
      %v1245 = vsel %vm566, %v1241, %v1243
      %1248 = vst [vmem:[#allocation3 + $0x50] sm:$0xf0] %v1244
      %1249 = vst [vmem:[#allocation3 + $0x58] sm:$0xf0] %v1245
      %v1250 = vld [vmem:[#allocation2] sm:$0xf0]
      %v1251 = vld [vmem:[#allocation2 + $0x8] sm:$0xf0]
      %v1252 = vld [vmem:[#allocation2 + $0x10] sm:$0xf0]
      %v1253 = vld [vmem:[%s576] sm:$0xff]
      %v1255 = vcombine.low %v1253, %v1253
      %1256 = vrot.lane.b32.xlu0 %v1255, 127
      %v1257 = vpop.permute.xlu0 %1256
      %1258 = vrot.lane.b32.xlu0 %v1253, 127
      %v1259 = vpop.permute.xlu0 %1258
      %v1260 = vsel %vm584, %v1257, %v1259
      %v1264 = vmul.f32 %v1250, %v1257
      %v1265 = vmul.f32 %v1251, %v1260
      %v1266 = vmul.f32 %v1252, %v1259
      %v1270 = vrot.slane %v1264, 4
      %v1271 = vrot.slane %v1265, 4
      %v1272 = vrot.slane %v1266, 4
      %1273 = vrot.lane.b32.xlu0 %v1270, 1
      %v1274 = vpop.permute.xlu0 %1273
      %1275 = vrot.lane.b32.xlu0 %v1271, 1
      %v1276 = vpop.permute.xlu0 %1275
      %1277 = vrot.lane.b32.xlu0 %v1272, 1
      %v1278 = vpop.permute.xlu0 %1277
      %v1279 = vsel %vm604, %v1274, %v1276
      %v1280 = vsel %vm604, %v1276, %v1278
      %1283 = vst [vmem:[#allocation3 + $0x60] sm:$0xf] %v1279
      %1284 = vst [vmem:[#allocation3 + $0x68] sm:$0xf] %v1280
      %v1285 = vld [vmem:[#allocation2 + $0x8] sm:$0xf0]
      %v1286 = vld [vmem:[#allocation2 + $0x10] sm:$0xf0]
      %1287 = vst [vmem:[#allocation3 + $0x60] sm:$0xf0] %v1285
      %1288 = vst [vmem:[#allocation3 + $0x68] sm:$0xf0] %v1286
      %v1289 = vld [vmem:[#allocation2 + $0x8] sm:$0xf0]
      %v1290 = vld [vmem:[#allocation2 + $0x10] sm:$0xf0]
      %v1291 = vld [vmem:[#allocation2 + $0x18] sm:$0xf0]
      %v1292 = vld [vmem:[%s618] sm:$0xff]
      %v1294 = vcombine.low %v1292, %v1292
      %1295 = vrot.lane.b32.xlu0 %v1294, 1
      %v1296 = vpop.permute.xlu0 %1295
      %1297 = vrot.lane.b32.xlu0 %v1292, 1
      %v1298 = vpop.permute.xlu0 %1297
      %v1299 = vsel %vm604, %v1296, %v1298
      %v1303 = vmul.f32 %v1289, %v1296
      %v1304 = vmul.f32 %v1290, %v1299
      %v1305 = vmul.f32 %v1291, %v1298
      %v1309 = vrot.slane %v1303, 4
      %v1310 = vrot.slane %v1304, 4
      %v1311 = vrot.slane %v1305, 4
      %1312 = vrot.lane.b32.xlu0 %v1309, 127
      %v1313 = vpop.permute.xlu0 %1312
      %1314 = vrot.lane.b32.xlu0 %v1310, 127
      %v1315 = vpop.permute.xlu0 %1314
      %1316 = vrot.lane.b32.xlu0 %v1311, 127
      %v1317 = vpop.permute.xlu0 %1316
      %v1318 = vsel %vm584, %v1313, %v1315
      %v1319 = vsel %vm584, %v1315, %v1317
      %1322 = vst [vmem:[#allocation3 + $0x70] sm:$0xf] %v1318
      %1323 = vst [vmem:[#allocation3 + $0x78] sm:$0xf] %v1319
      %v1324 = vld [vmem:[#allocation2 + $0x8] sm:$0xf0]
      %v1325 = vld [vmem:[#allocation2 + $0x10] sm:$0xf0]
      %v1326 = vld [vmem:[#allocation2 + $0x18] sm:$0xf0]
      %v1327 = vld [vmem:[%s654] sm:$0xff]
      %v1329 = vcombine.low %v1327, %v1327
      %1330 = vrot.lane.b32.xlu0 %v1329, 15
      %v1331 = vpop.permute.xlu0 %1330
      %1332 = vrot.lane.b32.xlu0 %v1327, 15
      %v1333 = vpop.permute.xlu0 %1332
      %v1334 = vsel %vm566, %v1331, %v1333
      %v1338 = vmul.f32 %v1324, %v1331
      %v1339 = vmul.f32 %v1325, %v1334
      %v1340 = vmul.f32 %v1326, %v1333
      %1344 = vrot.lane.b32.xlu0 %v1338, 113
      %v1345 = vpop.permute.xlu0 %1344
      %1346 = vrot.lane.b32.xlu0 %v1339, 113
      %v1347 = vpop.permute.xlu0 %1346
      %1348 = vrot.lane.b32.xlu0 %v1340, 113
      %v1349 = vpop.permute.xlu0 %1348
      %v1350 = vsel %vm549, %v1345, %v1347
      %v1351 = vsel %vm549, %v1347, %v1349
      %1354 = vst [vmem:[#allocation3 + $0x70] sm:$0xf0] %v1350
      %1355 = vst [vmem:[#allocation3 + $0x78] sm:$0xf0] %v1351
      %v1356 = vld [vmem:[#allocation2 + $0x8] sm:$0xf0]
      %v1357 = vld [vmem:[#allocation2 + $0x10] sm:$0xf0]
      %v1358 = vld [vmem:[#allocation2 + $0x18] sm:$0xf0]
      %v1359 = vld [vmem:[%s687] sm:$0xff]
      %v1361 = vcombine.low %v1359, %v1359
      %1362 = vrot.lane.b32.xlu0 %v1361, 16
      %v1363 = vpop.permute.xlu0 %1362
      %1364 = vrot.lane.b32.xlu0 %v1359, 16
      %v1365 = vpop.permute.xlu0 %1364
      %v1366 = vsel %vm531, %v1363, %v1365
      %v1370 = vmul.f32 %v1356, %v1363
      %v1371 = vmul.f32 %v1357, %v1366
      %v1372 = vmul.f32 %v1358, %v1365
      %v1376 = vrot.slane %v1370, 4
      %v1377 = vrot.slane %v1371, 4
      %v1378 = vrot.slane %v1372, 4
      %1379 = vrot.lane.b32.xlu0 %v1376, 112
      %v1380 = vpop.permute.xlu0 %1379
      %1381 = vrot.lane.b32.xlu0 %v1377, 112
      %v1382 = vpop.permute.xlu0 %1381
      %1383 = vrot.lane.b32.xlu0 %v1378, 112
      %v1384 = vpop.permute.xlu0 %1383
      %v1385 = vsel %vm511, %v1380, %v1382
      %v1386 = vsel %vm511, %v1382, %v1384
      %1389 = vst [vmem:[#allocation3 + $0x80] sm:$0xf] %v1385
      %1390 = vst [vmem:[#allocation3 + $0x88] sm:$0xf] %v1386
      %v1391 = vld [vmem:[#allocation2 + $0x8] sm:$0xf0]
      %v1392 = vld [vmem:[#allocation2 + $0x10] sm:$0xf0]
      %v1393 = vld [vmem:[#allocation2 + $0x18] sm:$0xf0]
      %v1394 = vld [vmem:[%s723] sm:$0xff]
      %v1396 = vcombine.low %v1394, %v1394
      %1397 = vrot.lane.b32.xlu0 %v1396, 17
      %v1398 = vpop.permute.xlu0 %1397
      %1399 = vrot.lane.b32.xlu0 %v1394, 17
      %v1400 = vpop.permute.xlu0 %1399
      %v1401 = vsel %vm493, %v1398, %v1400
      %v1405 = vmul.f32 %v1391, %v1398
      %v1406 = vmul.f32 %v1392, %v1401
      %v1407 = vmul.f32 %v1393, %v1400
      %1411 = vrot.lane.b32.xlu0 %v1405, 111
      %v1412 = vpop.permute.xlu0 %1411
      %1413 = vrot.lane.b32.xlu0 %v1406, 111
      %v1414 = vpop.permute.xlu0 %1413
      %1415 = vrot.lane.b32.xlu0 %v1407, 111
      %v1416 = vpop.permute.xlu0 %1415
      %v1417 = vsel %vm476, %v1412, %v1414
      %v1418 = vsel %vm476, %v1414, %v1416
      %1421 = vst [vmem:[#allocation3 + $0x80] sm:$0xf0] %v1417
      %1422 = vst [vmem:[#allocation3 + $0x88] sm:$0xf0] %v1418
      %v1423 = vld [vmem:[#allocation2 + $0x20] sm:$0xf]
      %v1424 = vld [vmem:[#allocation2 + $0x28] sm:$0xf]
      %v1425 = vld [vmem:[#allocation2 + $0x30] sm:$0xf]
      %v1426 = vld [vmem:[%s1] sm:$0xff]
      %v1428 = vcombine.high %v1426, %v1426
      %1429 = vrot.lane.b32.xlu0 %v1426, 111
      %v1430 = vpop.permute.xlu0 %1429
      %1431 = vrot.lane.b32.xlu0 %v1428, 111
      %v1432 = vpop.permute.xlu0 %1431
      %v1433 = vsel %vm476, %v1430, %v1432
      %v1437 = vmul.f32 %v1423, %v1430
      %v1438 = vmul.f32 %v1424, %v1433
      %v1439 = vmul.f32 %v1425, %v1432
      %1443 = vrot.lane.b32.xlu0 %v1437, 17
      %v1444 = vpop.permute.xlu0 %1443
      %1445 = vrot.lane.b32.xlu0 %v1438, 17
      %v1446 = vpop.permute.xlu0 %1445
      %1447 = vrot.lane.b32.xlu0 %v1439, 17
      %v1448 = vpop.permute.xlu0 %1447
      %v1449 = vsel %vm493, %v1444, %v1446
      %v1450 = vsel %vm493, %v1446, %v1448
      %1453 = vst [vmem:[#allocation3 + $0x90] sm:$0xf] %v1449
      %1454 = vst [vmem:[#allocation3 + $0x98] sm:$0xf] %v1450
      %v1455 = vld [vmem:[#allocation2 + $0x20] sm:$0xf]
      %v1456 = vld [vmem:[#allocation2 + $0x28] sm:$0xf]
      %v1457 = vld [vmem:[#allocation2 + $0x30] sm:$0xf]
      %v1458 = vld [vmem:[%s503] sm:$0xff]
      %v1460 = vcombine.high %v1458, %v1458
      %1461 = vrot.lane.b32.xlu0 %v1458, 112
      %v1462 = vpop.permute.xlu0 %1461
      %1463 = vrot.lane.b32.xlu0 %v1460, 112
      %v1464 = vpop.permute.xlu0 %1463
      %v1465 = vsel %vm511, %v1462, %v1464
      %v1469 = vmul.f32 %v1455, %v1462
      %v1470 = vmul.f32 %v1456, %v1465
      %v1471 = vmul.f32 %v1457, %v1464
      %v1475 = vrot.slane %v1469, 4
      %v1476 = vrot.slane %v1470, 4
      %v1477 = vrot.slane %v1471, 4
      %1478 = vrot.lane.b32.xlu0 %v1475, 16
      %v1479 = vpop.permute.xlu0 %1478
      %1480 = vrot.lane.b32.xlu0 %v1476, 16
      %v1481 = vpop.permute.xlu0 %1480
      %1482 = vrot.lane.b32.xlu0 %v1477, 16
      %v1483 = vpop.permute.xlu0 %1482
      %v1484 = vsel %vm531, %v1479, %v1481
      %v1485 = vsel %vm531, %v1481, %v1483
      %1488 = vst [vmem:[#allocation3 + $0x90] sm:$0xf0] %v1484
      %1489 = vst [vmem:[#allocation3 + $0x98] sm:$0xf0] %v1485
      %v1490 = vld [vmem:[#allocation2 + $0x20] sm:$0xf]
      %v1491 = vld [vmem:[#allocation2 + $0x28] sm:$0xf]
      %v1492 = vld [vmem:[#allocation2 + $0x30] sm:$0xf]
      %v1493 = vld [vmem:[%s541] sm:$0xff]
      %v1495 = vcombine.high %v1493, %v1493
      %1496 = vrot.lane.b32.xlu0 %v1493, 113
      %v1497 = vpop.permute.xlu0 %1496
      %1498 = vrot.lane.b32.xlu0 %v1495, 113
      %v1499 = vpop.permute.xlu0 %1498
      %v1500 = vsel %vm549, %v1497, %v1499
      %v1504 = vmul.f32 %v1490, %v1497
      %v1505 = vmul.f32 %v1491, %v1500
      %v1506 = vmul.f32 %v1492, %v1499
      %1510 = vrot.lane.b32.xlu0 %v1504, 15
      %v1511 = vpop.permute.xlu0 %1510
      %1512 = vrot.lane.b32.xlu0 %v1505, 15
      %v1513 = vpop.permute.xlu0 %1512
      %1514 = vrot.lane.b32.xlu0 %v1506, 15
      %v1515 = vpop.permute.xlu0 %1514
      %v1516 = vsel %vm566, %v1511, %v1513
      %v1517 = vsel %vm566, %v1513, %v1515
      %1520 = vst [vmem:[#allocation3 + $0xa0] sm:$0xf] %v1516
      %1521 = vst [vmem:[#allocation3 + $0xa8] sm:$0xf] %v1517
      %v1522 = vld [vmem:[#allocation2 + $0x20] sm:$0xf]
      %v1523 = vld [vmem:[#allocation2 + $0x28] sm:$0xf]
      %v1524 = vld [vmem:[#allocation2 + $0x30] sm:$0xf]
      %v1525 = vld [vmem:[%s576] sm:$0xff]
      %v1527 = vcombine.high %v1525, %v1525
      %1528 = vrot.lane.b32.xlu0 %v1525, 127
      %v1529 = vpop.permute.xlu0 %1528
      %1530 = vrot.lane.b32.xlu0 %v1527, 127
      %v1531 = vpop.permute.xlu0 %1530
      %v1532 = vsel %vm584, %v1529, %v1531
      %v1536 = vmul.f32 %v1522, %v1529
      %v1537 = vmul.f32 %v1523, %v1532
      %v1538 = vmul.f32 %v1524, %v1531
      %v1542 = vrot.slane %v1536, 4
      %v1543 = vrot.slane %v1537, 4
      %v1544 = vrot.slane %v1538, 4
      %1545 = vrot.lane.b32.xlu0 %v1542, 1
      %v1546 = vpop.permute.xlu0 %1545
      %1547 = vrot.lane.b32.xlu0 %v1543, 1
      %v1548 = vpop.permute.xlu0 %1547
      %1549 = vrot.lane.b32.xlu0 %v1544, 1
      %v1550 = vpop.permute.xlu0 %1549
      %v1551 = vsel %vm604, %v1546, %v1548
      %v1552 = vsel %vm604, %v1548, %v1550
      %1555 = vst [vmem:[#allocation3 + $0xa0] sm:$0xf0] %v1551
      %1556 = vst [vmem:[#allocation3 + $0xa8] sm:$0xf0] %v1552
      %v1557 = vld [vmem:[#allocation2 + $0x28] sm:$0xf]
      %v1558 = vld [vmem:[#allocation2 + $0x30] sm:$0xf]
      %1559 = vst [vmem:[#allocation3 + $0xb0] sm:$0xf] %v1557
      %1560 = vst [vmem:[#allocation3 + $0xb8] sm:$0xf] %v1558
      %v1561 = vld [vmem:[#allocation2 + $0x28] sm:$0xf]
      %v1562 = vld [vmem:[#allocation2 + $0x30] sm:$0xf]
      %v1563 = vld [vmem:[#allocation2 + $0x38] sm:$0xf]
      %v1564 = vld [vmem:[%s618] sm:$0xff]
      %v1566 = vcombine.high %v1564, %v1564
      %1567 = vrot.lane.b32.xlu0 %v1564, 1
      %v1568 = vpop.permute.xlu0 %1567
      %1569 = vrot.lane.b32.xlu0 %v1566, 1
      %v1570 = vpop.permute.xlu0 %1569
      %v1571 = vsel %vm604, %v1568, %v1570
      %v1575 = vmul.f32 %v1561, %v1568
      %v1576 = vmul.f32 %v1562, %v1571
      %v1577 = vmul.f32 %v1563, %v1570
      %v1581 = vrot.slane %v1575, 4
      %v1582 = vrot.slane %v1576, 4
      %v1583 = vrot.slane %v1577, 4
      %1584 = vrot.lane.b32.xlu0 %v1581, 127
      %v1585 = vpop.permute.xlu0 %1584
      %1586 = vrot.lane.b32.xlu0 %v1582, 127
      %v1587 = vpop.permute.xlu0 %1586
      %1588 = vrot.lane.b32.xlu0 %v1583, 127
      %v1589 = vpop.permute.xlu0 %1588
      %v1590 = vsel %vm584, %v1585, %v1587
      %v1591 = vsel %vm584, %v1587, %v1589
      %1594 = vst [vmem:[#allocation3 + $0xb0] sm:$0xf0] %v1590
      %1595 = vst [vmem:[#allocation3 + $0xb8] sm:$0xf0] %v1591
      %v1596 = vld [vmem:[#allocation2 + $0x28] sm:$0xf]
      %v1597 = vld [vmem:[#allocation2 + $0x30] sm:$0xf]
      %v1598 = vld [vmem:[#allocation2 + $0x38] sm:$0xf]
      %v1599 = vld [vmem:[%s654] sm:$0xff]
      %v1601 = vcombine.high %v1599, %v1599
      %1602 = vrot.lane.b32.xlu0 %v1599, 15
      %v1603 = vpop.permute.xlu0 %1602
      %1604 = vrot.lane.b32.xlu0 %v1601, 15
      %v1605 = vpop.permute.xlu0 %1604
      %v1606 = vsel %vm566, %v1603, %v1605
      %v1610 = vmul.f32 %v1596, %v1603
      %v1611 = vmul.f32 %v1597, %v1606
      %v1612 = vmul.f32 %v1598, %v1605
      %1616 = vrot.lane.b32.xlu0 %v1610, 113
      %v1617 = vpop.permute.xlu0 %1616
      %1618 = vrot.lane.b32.xlu0 %v1611, 113
      %v1619 = vpop.permute.xlu0 %1618
      %1620 = vrot.lane.b32.xlu0 %v1612, 113
      %v1621 = vpop.permute.xlu0 %1620
      %v1622 = vsel %vm549, %v1617, %v1619
      %v1623 = vsel %vm549, %v1619, %v1621
      %1626 = vst [vmem:[#allocation3 + $0xc0] sm:$0xf] %v1622
      %1627 = vst [vmem:[#allocation3 + $0xc8] sm:$0xf] %v1623
      %v1628 = vld [vmem:[#allocation2 + $0x28] sm:$0xf]
      %v1629 = vld [vmem:[#allocation2 + $0x30] sm:$0xf]
      %v1630 = vld [vmem:[#allocation2 + $0x38] sm:$0xf]
      %v1631 = vld [vmem:[%s687] sm:$0xff]
      %v1633 = vcombine.high %v1631, %v1631
      %1634 = vrot.lane.b32.xlu0 %v1631, 16
      %v1635 = vpop.permute.xlu0 %1634
      %1636 = vrot.lane.b32.xlu0 %v1633, 16
      %v1637 = vpop.permute.xlu0 %1636
      %v1638 = vsel %vm531, %v1635, %v1637
      %v1642 = vmul.f32 %v1628, %v1635
      %v1643 = vmul.f32 %v1629, %v1638
      %v1644 = vmul.f32 %v1630, %v1637
      %v1648 = vrot.slane %v1642, 4
      %v1649 = vrot.slane %v1643, 4
      %v1650 = vrot.slane %v1644, 4
      %1651 = vrot.lane.b32.xlu0 %v1648, 112
      %v1652 = vpop.permute.xlu0 %1651
      %1653 = vrot.lane.b32.xlu0 %v1649, 112
      %v1654 = vpop.permute.xlu0 %1653
      %1655 = vrot.lane.b32.xlu0 %v1650, 112
      %v1656 = vpop.permute.xlu0 %1655
      %v1657 = vsel %vm511, %v1652, %v1654
      %v1658 = vsel %vm511, %v1654, %v1656
      %1661 = vst [vmem:[#allocation3 + $0xc0] sm:$0xf0] %v1657
      %1662 = vst [vmem:[#allocation3 + $0xc8] sm:$0xf0] %v1658
      %v1663 = vld [vmem:[#allocation2 + $0x28] sm:$0xf]
      %v1664 = vld [vmem:[#allocation2 + $0x30] sm:$0xf]
      %v1665 = vld [vmem:[#allocation2 + $0x38] sm:$0xf]
      %v1666 = vld [vmem:[%s723] sm:$0xff]
      %v1668 = vcombine.high %v1666, %v1666
      %1669 = vrot.lane.b32.xlu0 %v1666, 17
      %v1670 = vpop.permute.xlu0 %1669
      %1671 = vrot.lane.b32.xlu0 %v1668, 17
      %v1672 = vpop.permute.xlu0 %1671
      %v1673 = vsel %vm493, %v1670, %v1672
      %v1677 = vmul.f32 %v1663, %v1670
      %v1678 = vmul.f32 %v1664, %v1673
      %v1679 = vmul.f32 %v1665, %v1672
      %1683 = vrot.lane.b32.xlu0 %v1677, 111
      %v1684 = vpop.permute.xlu0 %1683
      %1685 = vrot.lane.b32.xlu0 %v1678, 111
      %v1686 = vpop.permute.xlu0 %1685
      %1687 = vrot.lane.b32.xlu0 %v1679, 111
      %v1688 = vpop.permute.xlu0 %1687
      %v1689 = vsel %vm476, %v1684, %v1686
      %v1690 = vsel %vm476, %v1686, %v1688
      %1693 = vst [vmem:[#allocation3 + $0xd0] sm:$0xf] %v1689
      %1694 = vst [vmem:[#allocation3 + $0xd8] sm:$0xf] %v1690
      %v1695 = vld [vmem:[#allocation2 + $0x20] sm:$0xf0]
      %v1696 = vld [vmem:[#allocation2 + $0x28] sm:$0xf0]
      %v1697 = vld [vmem:[#allocation2 + $0x30] sm:$0xf0]
      %v1698 = vld [vmem:[%s1] sm:$0xff]
      %v1700 = vcombine.low %v1698, %v1698
      %1701 = vrot.lane.b32.xlu0 %v1700, 111
      %v1702 = vpop.permute.xlu0 %1701
      %1703 = vrot.lane.b32.xlu0 %v1698, 111
      %v1704 = vpop.permute.xlu0 %1703
      %v1705 = vsel %vm476, %v1702, %v1704
      %v1709 = vmul.f32 %v1695, %v1702
      %v1710 = vmul.f32 %v1696, %v1705
      %v1711 = vmul.f32 %v1697, %v1704
      %1715 = vrot.lane.b32.xlu0 %v1709, 17
      %v1716 = vpop.permute.xlu0 %1715
      %1717 = vrot.lane.b32.xlu0 %v1710, 17
      %v1718 = vpop.permute.xlu0 %1717
      %1719 = vrot.lane.b32.xlu0 %v1711, 17
      %v1720 = vpop.permute.xlu0 %1719
      %v1721 = vsel %vm493, %v1716, %v1718
      %v1722 = vsel %vm493, %v1718, %v1720
      %1725 = vst [vmem:[#allocation3 + $0xd0] sm:$0xf0] %v1721
      %1726 = vst [vmem:[#allocation3 + $0xd8] sm:$0xf0] %v1722
      %v1727 = vld [vmem:[#allocation2 + $0x20] sm:$0xf0]
      %v1728 = vld [vmem:[#allocation2 + $0x28] sm:$0xf0]
      %v1729 = vld [vmem:[#allocation2 + $0x30] sm:$0xf0]
      %v1730 = vld [vmem:[%s503] sm:$0xff]
      %v1732 = vcombine.low %v1730, %v1730
      %1733 = vrot.lane.b32.xlu0 %v1732, 112
      %v1734 = vpop.permute.xlu0 %1733
      %1735 = vrot.lane.b32.xlu0 %v1730, 112
      %v1736 = vpop.permute.xlu0 %1735
      %v1737 = vsel %vm511, %v1734, %v1736
      %v1741 = vmul.f32 %v1727, %v1734
      %v1742 = vmul.f32 %v1728, %v1737
      %v1743 = vmul.f32 %v1729, %v1736
      %v1747 = vrot.slane %v1741, 4
      %v1748 = vrot.slane %v1742, 4
      %v1749 = vrot.slane %v1743, 4
      %1750 = vrot.lane.b32.xlu0 %v1747, 16
      %v1751 = vpop.permute.xlu0 %1750
      %1752 = vrot.lane.b32.xlu0 %v1748, 16
      %v1753 = vpop.permute.xlu0 %1752
      %1754 = vrot.lane.b32.xlu0 %v1749, 16
      %v1755 = vpop.permute.xlu0 %1754
      %v1756 = vsel %vm531, %v1751, %v1753
      %v1757 = vsel %vm531, %v1753, %v1755
      %1760 = vst [vmem:[#allocation3 + $0xe0] sm:$0xf] %v1756
      %1761 = vst [vmem:[#allocation3 + $0xe8] sm:$0xf] %v1757
      %v1762 = vld [vmem:[#allocation2 + $0x20] sm:$0xf0]
      %v1763 = vld [vmem:[#allocation2 + $0x28] sm:$0xf0]
      %v1764 = vld [vmem:[#allocation2 + $0x30] sm:$0xf0]
      %v1765 = vld [vmem:[%s541] sm:$0xff]
      %v1767 = vcombine.low %v1765, %v1765
      %1768 = vrot.lane.b32.xlu0 %v1767, 113
      %v1769 = vpop.permute.xlu0 %1768
      %1770 = vrot.lane.b32.xlu0 %v1765, 113
      %v1771 = vpop.permute.xlu0 %1770
      %v1772 = vsel %vm549, %v1769, %v1771
      %v1776 = vmul.f32 %v1762, %v1769
      %v1777 = vmul.f32 %v1763, %v1772
      %v1778 = vmul.f32 %v1764, %v1771
      %1782 = vrot.lane.b32.xlu0 %v1776, 15
      %v1783 = vpop.permute.xlu0 %1782
      %1784 = vrot.lane.b32.xlu0 %v1777, 15
      %v1785 = vpop.permute.xlu0 %1784
      %1786 = vrot.lane.b32.xlu0 %v1778, 15
      %v1787 = vpop.permute.xlu0 %1786
      %v1788 = vsel %vm566, %v1783, %v1785
      %v1789 = vsel %vm566, %v1785, %v1787
      %1792 = vst [vmem:[#allocation3 + $0xe0] sm:$0xf0] %v1788
      %1793 = vst [vmem:[#allocation3 + $0xe8] sm:$0xf0] %v1789
      %v1794 = vld [vmem:[#allocation2 + $0x20] sm:$0xf0]
      %v1795 = vld [vmem:[#allocation2 + $0x28] sm:$0xf0]
      %v1796 = vld [vmem:[#allocation2 + $0x30] sm:$0xf0]
      %v1797 = vld [vmem:[%s576] sm:$0xff]
      %v1799 = vcombine.low %v1797, %v1797
      %1800 = vrot.lane.b32.xlu0 %v1799, 127
      %v1801 = vpop.permute.xlu0 %1800
      %1802 = vrot.lane.b32.xlu0 %v1797, 127
      %v1803 = vpop.permute.xlu0 %1802
      %v1804 = vsel %vm584, %v1801, %v1803
      %v1808 = vmul.f32 %v1794, %v1801
      %v1809 = vmul.f32 %v1795, %v1804
      %v1810 = vmul.f32 %v1796, %v1803
      %v1814 = vrot.slane %v1808, 4
      %v1815 = vrot.slane %v1809, 4
      %v1816 = vrot.slane %v1810, 4
      %1817 = vrot.lane.b32.xlu0 %v1814, 1
      %v1818 = vpop.permute.xlu0 %1817
      %1819 = vrot.lane.b32.xlu0 %v1815, 1
      %v1820 = vpop.permute.xlu0 %1819
      %1821 = vrot.lane.b32.xlu0 %v1816, 1
      %v1822 = vpop.permute.xlu0 %1821
      %v1823 = vsel %vm604, %v1818, %v1820
      %v1824 = vsel %vm604, %v1820, %v1822
      %1827 = vst [vmem:[#allocation3 + $0xf0] sm:$0xf] %v1823
      %1828 = vst [vmem:[#allocation3 + $0xf8] sm:$0xf] %v1824
      %v1829 = vld [vmem:[#allocation2 + $0x28] sm:$0xf0]
      %v1830 = vld [vmem:[#allocation2 + $0x30] sm:$0xf0]
      %1831 = vst [vmem:[#allocation3 + $0xf0] sm:$0xf0] %v1829
      %1832 = vst [vmem:[#allocation3 + $0xf8] sm:$0xf0] %v1830
      %v1833 = vld [vmem:[#allocation2 + $0x28] sm:$0xf0]
      %v1834 = vld [vmem:[#allocation2 + $0x30] sm:$0xf0]
      %v1835 = vld [vmem:[#allocation2 + $0x38] sm:$0xf0]
      %v1836 = vld [vmem:[%s618] sm:$0xff]
      %v1838 = vcombine.low %v1836, %v1836
      %1839 = vrot.lane.b32.xlu0 %v1838, 1
      %v1840 = vpop.permute.xlu0 %1839
      %1841 = vrot.lane.b32.xlu0 %v1836, 1
      %v1842 = vpop.permute.xlu0 %1841
      %v1843 = vsel %vm604, %v1840, %v1842
      %v1847 = vmul.f32 %v1833, %v1840
      %v1848 = vmul.f32 %v1834, %v1843
      %v1849 = vmul.f32 %v1835, %v1842
      %v1853 = vrot.slane %v1847, 4
      %v1854 = vrot.slane %v1848, 4
      %v1855 = vrot.slane %v1849, 4
      %1856 = vrot.lane.b32.xlu0 %v1853, 127
      %v1857 = vpop.permute.xlu0 %1856
      %1858 = vrot.lane.b32.xlu0 %v1854, 127
      %v1859 = vpop.permute.xlu0 %1858
      %1860 = vrot.lane.b32.xlu0 %v1855, 127
      %v1861 = vpop.permute.xlu0 %1860
      %v1862 = vsel %vm584, %v1857, %v1859
      %v1863 = vsel %vm584, %v1859, %v1861
      %1866 = vst [vmem:[#allocation3 + $0x100] sm:$0xf] %v1862
      %1867 = vst [vmem:[#allocation3 + $0x108] sm:$0xf] %v1863
      %v1868 = vld [vmem:[#allocation2 + $0x28] sm:$0xf0]
      %v1869 = vld [vmem:[#allocation2 + $0x30] sm:$0xf0]
      %v1870 = vld [vmem:[#allocation2 + $0x38] sm:$0xf0]
      %v1871 = vld [vmem:[%s654] sm:$0xff]
      %v1873 = vcombine.low %v1871, %v1871
      %1874 = vrot.lane.b32.xlu0 %v1873, 15
      %v1875 = vpop.permute.xlu0 %1874
      %1876 = vrot.lane.b32.xlu0 %v1871, 15
      %v1877 = vpop.permute.xlu0 %1876
      %v1878 = vsel %vm566, %v1875, %v1877
      %v1882 = vmul.f32 %v1868, %v1875
      %v1883 = vmul.f32 %v1869, %v1878
      %v1884 = vmul.f32 %v1870, %v1877
      %1888 = vrot.lane.b32.xlu0 %v1882, 113
      %v1889 = vpop.permute.xlu0 %1888
      %1890 = vrot.lane.b32.xlu0 %v1883, 113
      %v1891 = vpop.permute.xlu0 %1890
      %1892 = vrot.lane.b32.xlu0 %v1884, 113
      %v1893 = vpop.permute.xlu0 %1892
      %v1894 = vsel %vm549, %v1889, %v1891
      %v1895 = vsel %vm549, %v1891, %v1893
      %1898 = vst [vmem:[#allocation3 + $0x100] sm:$0xf0] %v1894
      %1899 = vst [vmem:[#allocation3 + $0x108] sm:$0xf0] %v1895
      %v1900 = vld [vmem:[#allocation2 + $0x28] sm:$0xf0]
      %v1901 = vld [vmem:[#allocation2 + $0x30] sm:$0xf0]
      %v1902 = vld [vmem:[#allocation2 + $0x38] sm:$0xf0]
      %v1903 = vld [vmem:[%s687] sm:$0xff]
      %v1905 = vcombine.low %v1903, %v1903
      %1906 = vrot.lane.b32.xlu0 %v1905, 16
      %v1907 = vpop.permute.xlu0 %1906
      %1908 = vrot.lane.b32.xlu0 %v1903, 16
      %v1909 = vpop.permute.xlu0 %1908
      %v1910 = vsel %vm531, %v1907, %v1909
      %v1914 = vmul.f32 %v1900, %v1907
      %v1915 = vmul.f32 %v1901, %v1910
      %v1916 = vmul.f32 %v1902, %v1909
      %v1920 = vrot.slane %v1914, 4
      %v1921 = vrot.slane %v1915, 4
      %v1922 = vrot.slane %v1916, 4
      %1923 = vrot.lane.b32.xlu0 %v1920, 112
      %v1924 = vpop.permute.xlu0 %1923
      %1925 = vrot.lane.b32.xlu0 %v1921, 112
      %v1926 = vpop.permute.xlu0 %1925
      %1927 = vrot.lane.b32.xlu0 %v1922, 112
      %v1928 = vpop.permute.xlu0 %1927
      %v1929 = vsel %vm511, %v1924, %v1926
      %v1930 = vsel %vm511, %v1926, %v1928
      %1933 = vst [vmem:[#allocation3 + $0x110] sm:$0xf] %v1929
      %1934 = vst [vmem:[#allocation3 + $0x118] sm:$0xf] %v1930
      %v1935 = vld [vmem:[#allocation2 + $0x28] sm:$0xf0]
      %v1936 = vld [vmem:[#allocation2 + $0x30] sm:$0xf0]
      %v1937 = vld [vmem:[#allocation2 + $0x38] sm:$0xf0]
      %v1938 = vld [vmem:[%s723] sm:$0xff]
      %v1940 = vcombine.low %v1938, %v1938
      %1941 = vrot.lane.b32.xlu0 %v1940, 17
      %v1942 = vpop.permute.xlu0 %1941
      %1943 = vrot.lane.b32.xlu0 %v1938, 17
      %v1944 = vpop.permute.xlu0 %1943
      %v1945 = vsel %vm493, %v1942, %v1944
      %v1949 = vmul.f32 %v1935, %v1942
      %v1950 = vmul.f32 %v1936, %v1945
      %v1951 = vmul.f32 %v1937, %v1944
      %1955 = vrot.lane.b32.xlu0 %v1949, 111
      %v1956 = vpop.permute.xlu0 %1955
      %1957 = vrot.lane.b32.xlu0 %v1950, 111
      %v1958 = vpop.permute.xlu0 %1957
      %1959 = vrot.lane.b32.xlu0 %v1951, 111
      %v1960 = vpop.permute.xlu0 %1959
      %v1961 = vsel %vm476, %v1956, %v1958
      %v1962 = vsel %vm476, %v1958, %v1960
      %1965 = vst [vmem:[#allocation3 + $0x110] sm:$0xf0] %v1961
      %1966 = vst [vmem:[#allocation3 + $0x118] sm:$0xf0] %v1962
      %v1967 = vld [vmem:[%s4] sm:$0xff]
      %v1968 = vld [vmem:[#allocation3] sm:$0xff]
      %v1969 = vld [vmem:[#allocation3 + $0x8] sm:$0xff]
      %v1970 = vld [vmem:[#allocation3 + $0x10] sm:$0xff]
      %v1971 = vld [vmem:[#allocation3 + $0x18] sm:$0xff]
      %v1972 = vld [vmem:[#allocation3 + $0x20] sm:$0xff]
      %v1973 = vld [vmem:[#allocation3 + $0x28] sm:$0xff]
      %v1974 = vld [vmem:[#allocation3 + $0x30] sm:$0xff]
      %v1975 = vld [vmem:[#allocation3 + $0x38] sm:$0xff]
      %v1976 = vld [vmem:[#allocation3 + $0x40] sm:$0xff]
      %v1977 = vld [vmem:[#allocation3 + $0x48] sm:$0xff]
      %v1978 = vld [vmem:[#allocation3 + $0x50] sm:$0xff]
      %v1979 = vld [vmem:[#allocation3 + $0x58] sm:$0xff]
      %v1980 = vld [vmem:[#allocation3 + $0x60] sm:$0xff]
      %v1981 = vld [vmem:[#allocation3 + $0x68] sm:$0xff]
      %v1982 = vld [vmem:[#allocation3 + $0x70] sm:$0xff]
      %v1983 = vld [vmem:[#allocation3 + $0x78] sm:$0xff]
      %v1984 = vld [vmem:[#allocation3 + $0x80] sm:$0xff]
      %v1985 = vld [vmem:[#allocation3 + $0x88] sm:$0xff]
      %v1986 = vld [vmem:[#allocation3 + $0x90] sm:$0xff]
      %v1987 = vld [vmem:[#allocation3 + $0x98] sm:$0xff]
      %v1988 = vld [vmem:[#allocation3 + $0xa0] sm:$0xff]
      %v1989 = vld [vmem:[#allocation3 + $0xa8] sm:$0xff]
      %v1990 = vld [vmem:[#allocation3 + $0xb0] sm:$0xff]
      %v1991 = vld [vmem:[#allocation3 + $0xb8] sm:$0xff]
      %v1992 = vld [vmem:[#allocation3 + $0xc0] sm:$0xff]
      %v1993 = vld [vmem:[#allocation3 + $0xc8] sm:$0xff]
      %v1994 = vld [vmem:[#allocation3 + $0xd0] sm:$0xff]
      %v1995 = vld [vmem:[#allocation3 + $0xd8] sm:$0xff]
      %v1996 = vld [vmem:[#allocation3 + $0xe0] sm:$0xff]
      %v1997 = vld [vmem:[#allocation3 + $0xe8] sm:$0xff]
      %v1998 = vld [vmem:[#allocation3 + $0xf0] sm:$0xff]
      %v1999 = vld [vmem:[#allocation3 + $0xf8] sm:$0xff]
      %v2000 = vld [vmem:[#allocation3 + $0x100] sm:$0xff]
      %v2001 = vld [vmem:[#allocation3 + $0x108] sm:$0xff]
      %v2002 = vld [vmem:[#allocation3 + $0x110] sm:$0xff]
      %v2003 = vld [vmem:[#allocation3 + $0x118] sm:$0xff]
      %v2004 = vld [vmem:[%s5] sm:$0xf]
      %2006 = vset.pattern.permute.xlu0 0
      %2007 = vperm.xlu0 %2006, %v2004
      %v2008 = vpop.permute.xlu0 %2007
      %v2011 = vcombine.high %v1967, %v1967
      %v2012 = vsel %vm531, %v2011, 0
      %2014 = vmatprep.subr.mxu0 %v1969
      %2015 = vmatpush1.msra.mxu0 %v1968
      %2016 = vmatprep.subr.mxu0 %v1971
      %2017 = vmatpush1.msra.mxu0 %v1970
      %2018 = vmatprep.subr.mxu0 %v1973
      %2019 = vmatpush1.msra.mxu0 %v1972
      %2020 = vmatprep.subr.mxu0 %v1975
      %2021 = vmatpush1.msra.mxu0 %v1974
      %2022 = vmatprep.subr.mxu0 %v1977
      %2023 = vmatpush1.msra.mxu0 %v1976
      %2024 = vmatprep.subr.mxu0 %v1979
      %2025 = vmatpush1.msra.mxu0 %v1978
      %2026 = vmatprep.subr.mxu0 %v1981
      %2027 = vmatpush1.msra.mxu0 %v1980
      %2028 = vmatprep.subr.mxu0 %v1983
      %2029 = vmatpush1.msra.mxu0 %v1982
      %2030 = vmatprep.subr.mxu0 %v1985
      %2031 = vmatpush1.msra.mxu0 %v1984
      %2032 = vmatprep.subr.mxu0 %v1987
      %2033 = vmatpush1.msra.mxu0 %v1986
      %2034 = vmatprep.subr.mxu0 %v1989
      %2035 = vmatpush1.msra.mxu0 %v1988
      %2036 = vmatprep.subr.mxu0 %v1991
      %2037 = vmatpush1.msra.mxu0 %v1990
      %2038 = vmatprep.subr.mxu0 %v1993
      %2039 = vmatpush1.msra.mxu0 %v1992
      %2040 = vmatprep.subr.mxu0 %v1995
      %2041 = vmatpush1.msra.mxu0 %v1994
      %2042 = vmatprep.subr.mxu0 %v1997
      %2043 = vmatpush1.msra.mxu0 %v1996
      %2044 = vmatprep.subr.mxu0 %v1999
      %2045 = vmatpush1.msra.mxu0 %v1998
      %2046 = vmatprep.subr.mxu0 %v2001
      %2047 = vmatpush1.msra.mxu0 %v2000
      %2048 = vmatprep.subr.mxu0 %v2003
      %2049 = vmatpush1.msra.mxu0 %v2002
      %2050 = vmatprep.subr.mxu0 0.0
      %2051 = vmatpush1.msra.mxu0 0.0
      %2052 = vmatprep.subr.mxu0 0.0
      %2053 = vmatpush1.msra.mxu0 0.0
      %2054 = vmatprep.subr.mxu0 0.0
      %2055 = vmatpush1.msra.mxu0 0.0
      %2056 = vmatprep.subr.mxu0 0.0
      %2057 = vmatpush1.msra.mxu0 0.0
      %2058 = vmatprep.subr.mxu0 0.0
      %2059 = vmatpush1.msra.mxu0 0.0
      %2060 = vmatprep.subr.mxu0 0.0
      %2061 = vmatpush1.msra.mxu0 0.0
      %2062 = vmatprep.subr.mxu0 0.0
      %2063 = vmatpush1.msra.mxu0 0.0
      %2064 = vmatprep.subr.mxu0 0.0
      %2065 = vmatpush1.msra.mxu0 0.0
      %2066 = vmatprep.subr.mxu0 0.0
      %2067 = vmatpush1.msra.mxu0 0.0
      %2068 = vmatprep.subr.mxu0 0.0
      %2069 = vmatpush1.msra.mxu0 0.0
      %2070 = vmatprep.subr.mxu0 0.0
      %2071 = vmatpush1.msra.mxu0 0.0
      %2072 = vmatprep.subr.mxu0 0.0
      %2073 = vmatpush1.msra.mxu0 0.0
      %2074 = vmatprep.subr.mxu0 0.0
      %2075 = vmatpush1.msra.mxu0 0.0
      %2076 = vmatprep.subr.mxu0 0.0
      %2077 = vmatpush1.msra.mxu0 0.0
      %2078 = vmatprep.mubr.f32.mxu0 %v2012
      %2079 = vmatmul.mubr.f32.gmra.mrb[0].mxu0 %v1967
      %v2080 = vpop.f32.mrb[0].mxu0
      %v2081 = vadd.f32 %v2008, %v2080
      %v2082 = vpop.f32.mrb[0].mxu0
      %v2083 = vadd.f32 %v2008, %v2082
      %2084 = vdwg.mxu0
      %v2085 = vld [vmem:[%s6] sm:$0xff]
      %v2086 = vld [vmem:[%s6 + $0x8] sm:$0xff]
      %v2087 = vld [vmem:[%s6 + $0x10] sm:$0xff]
      %v2088 = vld [vmem:[%s6 + $0x18] sm:$0xff]
      %v2089 = vld [vmem:[%s7] sm:$0xff]
      %v2090 = vld [vmem:[%s7 + $0x8] sm:$0xff]
      %2092 = vset.pattern.permute.xlu0 0
      %2093 = vperm.xlu0 %2092, %v2089
      %v2094 = vpop.permute.xlu0 %2093
      %2097 = vset.pattern.permute.xlu0 0
      %2098 = vperm.xlu0 %2097, %v2090
      %v2099 = vpop.permute.xlu0 %2098
      %v2102 = vsel %vm531, %v2086, 0
      %v2105 = vsel %vm531, %v2088, 0
      %2107 = vmatprep.subr.mxu0 %v1969
      %2108 = vmatpush1.msra.mxu0 %v1968
      %2109 = vmatprep.subr.mxu0 %v1971
      %2110 = vmatpush1.msra.mxu0 %v1970
      %2111 = vmatprep.subr.mxu0 %v1973
      %2112 = vmatpush1.msra.mxu0 %v1972
      %2113 = vmatprep.subr.mxu0 %v1975
      %2114 = vmatpush1.msra.mxu0 %v1974
      %2115 = vmatprep.subr.mxu0 %v1977
      %2116 = vmatpush1.msra.mxu0 %v1976
      %2117 = vmatprep.subr.mxu0 %v1979
      %2118 = vmatpush1.msra.mxu0 %v1978
      %2119 = vmatprep.subr.mxu0 %v1981
      %2120 = vmatpush1.msra.mxu0 %v1980
      %2121 = vmatprep.subr.mxu0 %v1983
      %2122 = vmatpush1.msra.mxu0 %v1982
      %2123 = vmatprep.subr.mxu0 %v1985
      %2124 = vmatpush1.msra.mxu0 %v1984
      %2125 = vmatprep.subr.mxu0 %v1987
      %2126 = vmatpush1.msra.mxu0 %v1986
      %2127 = vmatprep.subr.mxu0 %v1989
      %2128 = vmatpush1.msra.mxu0 %v1988
      %2129 = vmatprep.subr.mxu0 %v1991
      %2130 = vmatpush1.msra.mxu0 %v1990
      %2131 = vmatprep.subr.mxu0 %v1993
      %2132 = vmatpush1.msra.mxu0 %v1992
      %2133 = vmatprep.subr.mxu0 %v1995
      %2134 = vmatpush1.msra.mxu0 %v1994
      %2135 = vmatprep.subr.mxu0 %v1997
      %2136 = vmatpush1.msra.mxu0 %v1996
      %2137 = vmatprep.subr.mxu0 %v1999
      %2138 = vmatpush1.msra.mxu0 %v1998
      %2139 = vmatprep.subr.mxu0 %v2001
      %2140 = vmatpush1.msra.mxu0 %v2000
      %2141 = vmatprep.subr.mxu0 %v2003
      %2142 = vmatpush1.msra.mxu0 %v2002
      %2143 = vmatprep.subr.mxu0 0.0
      %2144 = vmatpush1.msra.mxu0 0.0
      %2145 = vmatprep.subr.mxu0 0.0
      %2146 = vmatpush1.msra.mxu0 0.0
      %2147 = vmatprep.subr.mxu0 0.0
      %2148 = vmatpush1.msra.mxu0 0.0
      %2149 = vmatprep.subr.mxu0 0.0
      %2150 = vmatpush1.msra.mxu0 0.0
      %2151 = vmatprep.subr.mxu0 0.0
      %2152 = vmatpush1.msra.mxu0 0.0
      %2153 = vmatprep.subr.mxu0 0.0
      %2154 = vmatpush1.msra.mxu0 0.0
      %2155 = vmatprep.subr.mxu0 0.0
      %2156 = vmatpush1.msra.mxu0 0.0
      %2157 = vmatprep.subr.mxu0 0.0
      %2158 = vmatpush1.msra.mxu0 0.0
      %2159 = vmatprep.subr.mxu0 0.0
      %2160 = vmatpush1.msra.mxu0 0.0
      %2161 = vmatprep.subr.mxu0 0.0
      %2162 = vmatpush1.msra.mxu0 0.0
      %2163 = vmatprep.subr.mxu0 0.0
      %2164 = vmatpush1.msra.mxu0 0.0
      %2165 = vmatprep.subr.mxu0 0.0
      %2166 = vmatpush1.msra.mxu0 0.0
      %2167 = vmatprep.subr.mxu0 0.0
      %2168 = vmatpush1.msra.mxu0 0.0
      %2169 = vmatprep.subr.mxu0 0.0
      %2170 = vmatpush1.msra.mxu0 0.0
      %2171 = vmatprep.mubr.f32.mxu0 %v2102
      %2172 = vmatmul.mubr.f32.gmra.mrb[0].mxu0 %v2085
      %v2173 = vpop.f32.mrb[0].mxu0
      %v2174 = vadd.f32 %v2094, %v2173
      %v2175 = vpop.f32.mrb[0].mxu0
      %v2176 = vadd.f32 %v2094, %v2175
      %2177 = vmatprep.mubr.f32.mxu0 %v2105
      %2178 = vmatmul.mubr.f32.gmra.mrb[0].mxu0 %v2087
      %v2179 = vpop.f32.mrb[0].mxu0
      %v2180 = vadd.f32 %v2099, %v2179
      %v2181 = vpop.f32.mrb[0].mxu0
      %v2182 = vadd.f32 %v2099, %v2181
      %2183 = vdwg.mxu0
      %v2184 = vld [vmem:[%s8] sm:$0xff]
      %v2185 = vld [vmem:[%s8 + $0x8] sm:$0xff]
      %vm2186 = vcmp.ge.f32.partialorder %v2174, 0.0
      %vm2187 = vcmp.ge.f32.partialorder %v2176, 0.0
      %vm2188 = vcmp.ge.f32.partialorder %v2180, 0.0
      %vm2189 = vcmp.ge.f32.partialorder %v2182, 0.0
      %2191 = vset.pattern.permute.xlu0 0
      %2192 = vperm.xlu0 %2191, %v2184
      %v2193 = vpop.permute.xlu0 %2192
      %2196 = vset.pattern.permute.xlu0 0
      %2197 = vperm.xlu0 %2196, %v2185
      %v2198 = vpop.permute.xlu0 %2197
      %v2200 = vmul.f32 %v2193, %v2174
      %v2201 = vmul.f32 %v2193, %v2176
      %v2202 = vmul.f32 %v2198, %v2180
      %v2203 = vmul.f32 %v2198, %v2182
      %v2204 = vsel %vm2186, %v2174, %v2200
      %v2205 = vsel %vm2187, %v2176, %v2201
      %v2206 = vsel %vm2188, %v2180, %v2202
      %v2207 = vsel %vm2189, %v2182, %v2203
      %2208 = vst [vmem:[#allocation2 + $0x8] sm:$0xf] %v2204
      %2209 = vst [vmem:[#allocation2 + $0x10] sm:$0xf] %v2205
      %2210 = vst [vmem:[#allocation2 + $0x8] sm:$0xf0] %v2204
      %2211 = vst [vmem:[#allocation2 + $0x10] sm:$0xf0] %v2205
      %2212 = vst [vmem:[#allocation2 + $0x28] sm:$0xf] %v2206
      %2213 = vst [vmem:[#allocation2 + $0x30] sm:$0xf] %v2207
      %2214 = vst [vmem:[#allocation2 + $0x28] sm:$0xf0] %v2206
      %2215 = vst [vmem:[#allocation2 + $0x30] sm:$0xf0] %v2207
      %v2216 = vld [vmem:[#allocation2] sm:$0xf]
      %v2217 = vld [vmem:[#allocation2 + $0x8] sm:$0xf]
      %v2218 = vld [vmem:[#allocation2 + $0x10] sm:$0xf]
      %v2219 = vld [vmem:[%s1] sm:$0xff]
      %v2221 = vcombine.high %v2219, %v2219
      %2222 = vrot.lane.b32.xlu0 %v2219, 111
      %v2223 = vpop.permute.xlu0 %2222
      %2224 = vrot.lane.b32.xlu0 %v2221, 111
      %v2225 = vpop.permute.xlu0 %2224
      %v2226 = vsel %vm476, %v2223, %v2225
      %v2230 = vmul.f32 %v2216, %v2223
      %v2231 = vmul.f32 %v2217, %v2226
      %v2232 = vmul.f32 %v2218, %v2225
      %2236 = vrot.lane.b32.xlu0 %v2230, 17
      %v2237 = vpop.permute.xlu0 %2236
      %2238 = vrot.lane.b32.xlu0 %v2231, 17
      %v2239 = vpop.permute.xlu0 %2238
      %2240 = vrot.lane.b32.xlu0 %v2232, 17
      %v2241 = vpop.permute.xlu0 %2240
      %v2242 = vsel %vm493, %v2237, %v2239
      %v2243 = vsel %vm493, %v2239, %v2241
      %2246 = vst [vmem:[#allocation3] sm:$0xf] %v2242
      %2247 = vst [vmem:[#allocation3 + $0x8] sm:$0xf] %v2243
      %v2248 = vld [vmem:[#allocation2] sm:$0xf]
      %v2249 = vld [vmem:[#allocation2 + $0x8] sm:$0xf]
      %v2250 = vld [vmem:[#allocation2 + $0x10] sm:$0xf]
      %v2251 = vld [vmem:[%s503] sm:$0xff]
      %v2253 = vcombine.high %v2251, %v2251
      %2254 = vrot.lane.b32.xlu0 %v2251, 112
      %v2255 = vpop.permute.xlu0 %2254
      %2256 = vrot.lane.b32.xlu0 %v2253, 112
      %v2257 = vpop.permute.xlu0 %2256
      %v2258 = vsel %vm511, %v2255, %v2257
      %v2262 = vmul.f32 %v2248, %v2255
      %v2263 = vmul.f32 %v2249, %v2258
      %v2264 = vmul.f32 %v2250, %v2257
      %v2268 = vrot.slane %v2262, 4
      %v2269 = vrot.slane %v2263, 4
      %v2270 = vrot.slane %v2264, 4
      %2271 = vrot.lane.b32.xlu0 %v2268, 16
      %v2272 = vpop.permute.xlu0 %2271
      %2273 = vrot.lane.b32.xlu0 %v2269, 16
      %v2274 = vpop.permute.xlu0 %2273
      %2275 = vrot.lane.b32.xlu0 %v2270, 16
      %v2276 = vpop.permute.xlu0 %2275
      %v2277 = vsel %vm531, %v2272, %v2274
      %v2278 = vsel %vm531, %v2274, %v2276
      %2281 = vst [vmem:[#allocation3] sm:$0xf0] %v2277
      %2282 = vst [vmem:[#allocation3 + $0x8] sm:$0xf0] %v2278
      %v2283 = vld [vmem:[#allocation2] sm:$0xf]
      %v2284 = vld [vmem:[#allocation2 + $0x8] sm:$0xf]
      %v2285 = vld [vmem:[#allocation2 + $0x10] sm:$0xf]
      %v2286 = vld [vmem:[%s541] sm:$0xff]
      %v2288 = vcombine.high %v2286, %v2286
      %2289 = vrot.lane.b32.xlu0 %v2286, 113
      %v2290 = vpop.permute.xlu0 %2289
      %2291 = vrot.lane.b32.xlu0 %v2288, 113
      %v2292 = vpop.permute.xlu0 %2291
      %v2293 = vsel %vm549, %v2290, %v2292
      %v2297 = vmul.f32 %v2283, %v2290
      %v2298 = vmul.f32 %v2284, %v2293
      %v2299 = vmul.f32 %v2285, %v2292
      %2303 = vrot.lane.b32.xlu0 %v2297, 15
      %v2304 = vpop.permute.xlu0 %2303
      %2305 = vrot.lane.b32.xlu0 %v2298, 15
      %v2306 = vpop.permute.xlu0 %2305
      %2307 = vrot.lane.b32.xlu0 %v2299, 15
      %v2308 = vpop.permute.xlu0 %2307
      %v2309 = vsel %vm566, %v2304, %v2306
      %v2310 = vsel %vm566, %v2306, %v2308
      %2313 = vst [vmem:[#allocation3 + $0x10] sm:$0xf] %v2309
      %2314 = vst [vmem:[#allocation3 + $0x18] sm:$0xf] %v2310
      %v2315 = vld [vmem:[#allocation2] sm:$0xf]
      %v2316 = vld [vmem:[#allocation2 + $0x8] sm:$0xf]
      %v2317 = vld [vmem:[#allocation2 + $0x10] sm:$0xf]
      %v2318 = vld [vmem:[%s576] sm:$0xff]
      %v2320 = vcombine.high %v2318, %v2318
      %2321 = vrot.lane.b32.xlu0 %v2318, 127
      %v2322 = vpop.permute.xlu0 %2321
      %2323 = vrot.lane.b32.xlu0 %v2320, 127
      %v2324 = vpop.permute.xlu0 %2323
      %v2325 = vsel %vm584, %v2322, %v2324
      %v2329 = vmul.f32 %v2315, %v2322
      %v2330 = vmul.f32 %v2316, %v2325
      %v2331 = vmul.f32 %v2317, %v2324
      %v2335 = vrot.slane %v2329, 4
      %v2336 = vrot.slane %v2330, 4
      %v2337 = vrot.slane %v2331, 4
      %2338 = vrot.lane.b32.xlu0 %v2335, 1
      %v2339 = vpop.permute.xlu0 %2338
      %2340 = vrot.lane.b32.xlu0 %v2336, 1
      %v2341 = vpop.permute.xlu0 %2340
      %2342 = vrot.lane.b32.xlu0 %v2337, 1
      %v2343 = vpop.permute.xlu0 %2342
      %v2344 = vsel %vm604, %v2339, %v2341
      %v2345 = vsel %vm604, %v2341, %v2343
      %2348 = vst [vmem:[#allocation3 + $0x10] sm:$0xf0] %v2344
      %2349 = vst [vmem:[#allocation3 + $0x18] sm:$0xf0] %v2345
      %v2350 = vld [vmem:[#allocation2 + $0x8] sm:$0xf]
      %v2351 = vld [vmem:[#allocation2 + $0x10] sm:$0xf]
      %2352 = vst [vmem:[#allocation3 + $0x20] sm:$0xf] %v2350
      %2353 = vst [vmem:[#allocation3 + $0x28] sm:$0xf] %v2351
      %v2354 = vld [vmem:[#allocation2 + $0x8] sm:$0xf]
      %v2355 = vld [vmem:[#allocation2 + $0x10] sm:$0xf]
      %v2356 = vld [vmem:[#allocation2 + $0x18] sm:$0xf]
      %v2357 = vld [vmem:[%s618] sm:$0xff]
      %v2359 = vcombine.high %v2357, %v2357
      %2360 = vrot.lane.b32.xlu0 %v2357, 1
      %v2361 = vpop.permute.xlu0 %2360
      %2362 = vrot.lane.b32.xlu0 %v2359, 1
      %v2363 = vpop.permute.xlu0 %2362
      %v2364 = vsel %vm604, %v2361, %v2363
      %v2368 = vmul.f32 %v2354, %v2361
      %v2369 = vmul.f32 %v2355, %v2364
      %v2370 = vmul.f32 %v2356, %v2363
      %v2374 = vrot.slane %v2368, 4
      %v2375 = vrot.slane %v2369, 4
      %v2376 = vrot.slane %v2370, 4
      %2377 = vrot.lane.b32.xlu0 %v2374, 127
      %v2378 = vpop.permute.xlu0 %2377
      %2379 = vrot.lane.b32.xlu0 %v2375, 127
      %v2380 = vpop.permute.xlu0 %2379
      %2381 = vrot.lane.b32.xlu0 %v2376, 127
      %v2382 = vpop.permute.xlu0 %2381
      %v2383 = vsel %vm584, %v2378, %v2380
      %v2384 = vsel %vm584, %v2380, %v2382
      %2387 = vst [vmem:[#allocation3 + $0x20] sm:$0xf0] %v2383
      %2388 = vst [vmem:[#allocation3 + $0x28] sm:$0xf0] %v2384
      %v2389 = vld [vmem:[#allocation2 + $0x8] sm:$0xf]
      %v2390 = vld [vmem:[#allocation2 + $0x10] sm:$0xf]
      %v2391 = vld [vmem:[#allocation2 + $0x18] sm:$0xf]
      %v2392 = vld [vmem:[%s654] sm:$0xff]
      %v2394 = vcombine.high %v2392, %v2392
      %2395 = vrot.lane.b32.xlu0 %v2392, 15
      %v2396 = vpop.permute.xlu0 %2395
      %2397 = vrot.lane.b32.xlu0 %v2394, 15
      %v2398 = vpop.permute.xlu0 %2397
      %v2399 = vsel %vm566, %v2396, %v2398
      %v2403 = vmul.f32 %v2389, %v2396
      %v2404 = vmul.f32 %v2390, %v2399
      %v2405 = vmul.f32 %v2391, %v2398
      %2409 = vrot.lane.b32.xlu0 %v2403, 113
      %v2410 = vpop.permute.xlu0 %2409
      %2411 = vrot.lane.b32.xlu0 %v2404, 113
      %v2412 = vpop.permute.xlu0 %2411
      %2413 = vrot.lane.b32.xlu0 %v2405, 113
      %v2414 = vpop.permute.xlu0 %2413
      %v2415 = vsel %vm549, %v2410, %v2412
      %v2416 = vsel %vm549, %v2412, %v2414
      %2419 = vst [vmem:[#allocation3 + $0x30] sm:$0xf] %v2415
      %2420 = vst [vmem:[#allocation3 + $0x38] sm:$0xf] %v2416
      %v2421 = vld [vmem:[#allocation2 + $0x8] sm:$0xf]
      %v2422 = vld [vmem:[#allocation2 + $0x10] sm:$0xf]
      %v2423 = vld [vmem:[#allocation2 + $0x18] sm:$0xf]
      %v2424 = vld [vmem:[%s687] sm:$0xff]
      %v2426 = vcombine.high %v2424, %v2424
      %2427 = vrot.lane.b32.xlu0 %v2424, 16
      %v2428 = vpop.permute.xlu0 %2427
      %2429 = vrot.lane.b32.xlu0 %v2426, 16
      %v2430 = vpop.permute.xlu0 %2429
      %v2431 = vsel %vm531, %v2428, %v2430
      %v2435 = vmul.f32 %v2421, %v2428
      %v2436 = vmul.f32 %v2422, %v2431
      %v2437 = vmul.f32 %v2423, %v2430
      %v2441 = vrot.slane %v2435, 4
      %v2442 = vrot.slane %v2436, 4
      %v2443 = vrot.slane %v2437, 4
      %2444 = vrot.lane.b32.xlu0 %v2441, 112
      %v2445 = vpop.permute.xlu0 %2444
      %2446 = vrot.lane.b32.xlu0 %v2442, 112
      %v2447 = vpop.permute.xlu0 %2446
      %2448 = vrot.lane.b32.xlu0 %v2443, 112
      %v2449 = vpop.permute.xlu0 %2448
      %v2450 = vsel %vm511, %v2445, %v2447
      %v2451 = vsel %vm511, %v2447, %v2449
      %2454 = vst [vmem:[#allocation3 + $0x30] sm:$0xf0] %v2450
      %2455 = vst [vmem:[#allocation3 + $0x38] sm:$0xf0] %v2451
      %v2456 = vld [vmem:[#allocation2 + $0x8] sm:$0xf]
      %v2457 = vld [vmem:[#allocation2 + $0x10] sm:$0xf]
      %v2458 = vld [vmem:[#allocation2 + $0x18] sm:$0xf]
      %v2459 = vld [vmem:[%s723] sm:$0xff]
      %v2461 = vcombine.high %v2459, %v2459
      %2462 = vrot.lane.b32.xlu0 %v2459, 17
      %v2463 = vpop.permute.xlu0 %2462
      %2464 = vrot.lane.b32.xlu0 %v2461, 17
      %v2465 = vpop.permute.xlu0 %2464
      %v2466 = vsel %vm493, %v2463, %v2465
      %v2470 = vmul.f32 %v2456, %v2463
      %v2471 = vmul.f32 %v2457, %v2466
      %v2472 = vmul.f32 %v2458, %v2465
      %2476 = vrot.lane.b32.xlu0 %v2470, 111
      %v2477 = vpop.permute.xlu0 %2476
      %2478 = vrot.lane.b32.xlu0 %v2471, 111
      %v2479 = vpop.permute.xlu0 %2478
      %2480 = vrot.lane.b32.xlu0 %v2472, 111
      %v2481 = vpop.permute.xlu0 %2480
      %v2482 = vsel %vm476, %v2477, %v2479
      %v2483 = vsel %vm476, %v2479, %v2481
      %2486 = vst [vmem:[#allocation3 + $0x40] sm:$0xf] %v2482
      %2487 = vst [vmem:[#allocation3 + $0x48] sm:$0xf] %v2483
      %v2488 = vld [vmem:[#allocation2] sm:$0xf0]
      %v2489 = vld [vmem:[#allocation2 + $0x8] sm:$0xf0]
      %v2490 = vld [vmem:[#allocation2 + $0x10] sm:$0xf0]
      %v2491 = vld [vmem:[%s1] sm:$0xff]
      %v2493 = vcombine.low %v2491, %v2491
      %2494 = vrot.lane.b32.xlu0 %v2493, 111
      %v2495 = vpop.permute.xlu0 %2494
      %2496 = vrot.lane.b32.xlu0 %v2491, 111
      %v2497 = vpop.permute.xlu0 %2496
      %v2498 = vsel %vm476, %v2495, %v2497
      %v2502 = vmul.f32 %v2488, %v2495
      %v2503 = vmul.f32 %v2489, %v2498
      %v2504 = vmul.f32 %v2490, %v2497
      %2508 = vrot.lane.b32.xlu0 %v2502, 17
      %v2509 = vpop.permute.xlu0 %2508
      %2510 = vrot.lane.b32.xlu0 %v2503, 17
      %v2511 = vpop.permute.xlu0 %2510
      %2512 = vrot.lane.b32.xlu0 %v2504, 17
      %v2513 = vpop.permute.xlu0 %2512
      %v2514 = vsel %vm493, %v2509, %v2511
      %v2515 = vsel %vm493, %v2511, %v2513
      %2518 = vst [vmem:[#allocation3 + $0x40] sm:$0xf0] %v2514
      %2519 = vst [vmem:[#allocation3 + $0x48] sm:$0xf0] %v2515
      %v2520 = vld [vmem:[#allocation2] sm:$0xf0]
      %v2521 = vld [vmem:[#allocation2 + $0x8] sm:$0xf0]
      %v2522 = vld [vmem:[#allocation2 + $0x10] sm:$0xf0]
      %v2523 = vld [vmem:[%s503] sm:$0xff]
      %v2525 = vcombine.low %v2523, %v2523
      %2526 = vrot.lane.b32.xlu0 %v2525, 112
      %v2527 = vpop.permute.xlu0 %2526
      %2528 = vrot.lane.b32.xlu0 %v2523, 112
      %v2529 = vpop.permute.xlu0 %2528
      %v2530 = vsel %vm511, %v2527, %v2529
      %v2534 = vmul.f32 %v2520, %v2527
      %v2535 = vmul.f32 %v2521, %v2530
      %v2536 = vmul.f32 %v2522, %v2529
      %v2540 = vrot.slane %v2534, 4
      %v2541 = vrot.slane %v2535, 4
      %v2542 = vrot.slane %v2536, 4
      %2543 = vrot.lane.b32.xlu0 %v2540, 16
      %v2544 = vpop.permute.xlu0 %2543
      %2545 = vrot.lane.b32.xlu0 %v2541, 16
      %v2546 = vpop.permute.xlu0 %2545
      %2547 = vrot.lane.b32.xlu0 %v2542, 16
      %v2548 = vpop.permute.xlu0 %2547
      %v2549 = vsel %vm531, %v2544, %v2546
      %v2550 = vsel %vm531, %v2546, %v2548
      %2553 = vst [vmem:[#allocation3 + $0x50] sm:$0xf] %v2549
      %2554 = vst [vmem:[#allocation3 + $0x58] sm:$0xf] %v2550
      %v2555 = vld [vmem:[#allocation2] sm:$0xf0]
      %v2556 = vld [vmem:[#allocation2 + $0x8] sm:$0xf0]
      %v2557 = vld [vmem:[#allocation2 + $0x10] sm:$0xf0]
      %v2558 = vld [vmem:[%s541] sm:$0xff]
      %v2560 = vcombine.low %v2558, %v2558
      %2561 = vrot.lane.b32.xlu0 %v2560, 113
      %v2562 = vpop.permute.xlu0 %2561
      %2563 = vrot.lane.b32.xlu0 %v2558, 113
      %v2564 = vpop.permute.xlu0 %2563
      %v2565 = vsel %vm549, %v2562, %v2564
      %v2569 = vmul.f32 %v2555, %v2562
      %v2570 = vmul.f32 %v2556, %v2565
      %v2571 = vmul.f32 %v2557, %v2564
      %2575 = vrot.lane.b32.xlu0 %v2569, 15
      %v2576 = vpop.permute.xlu0 %2575
      %2577 = vrot.lane.b32.xlu0 %v2570, 15
      %v2578 = vpop.permute.xlu0 %2577
      %2579 = vrot.lane.b32.xlu0 %v2571, 15
      %v2580 = vpop.permute.xlu0 %2579
      %v2581 = vsel %vm566, %v2576, %v2578
      %v2582 = vsel %vm566, %v2578, %v2580
      %2585 = vst [vmem:[#allocation3 + $0x50] sm:$0xf0] %v2581
      %2586 = vst [vmem:[#allocation3 + $0x58] sm:$0xf0] %v2582
      %v2587 = vld [vmem:[#allocation2] sm:$0xf0]
      %v2588 = vld [vmem:[#allocation2 + $0x8] sm:$0xf0]
      %v2589 = vld [vmem:[#allocation2 + $0x10] sm:$0xf0]
      %v2590 = vld [vmem:[%s576] sm:$0xff]
      %v2592 = vcombine.low %v2590, %v2590
      %2593 = vrot.lane.b32.xlu0 %v2592, 127
      %v2594 = vpop.permute.xlu0 %2593
      %2595 = vrot.lane.b32.xlu0 %v2590, 127
      %v2596 = vpop.permute.xlu0 %2595
      %v2597 = vsel %vm584, %v2594, %v2596
      %v2601 = vmul.f32 %v2587, %v2594
      %v2602 = vmul.f32 %v2588, %v2597
      %v2603 = vmul.f32 %v2589, %v2596
      %v2607 = vrot.slane %v2601, 4
      %v2608 = vrot.slane %v2602, 4
      %v2609 = vrot.slane %v2603, 4
      %2610 = vrot.lane.b32.xlu0 %v2607, 1
      %v2611 = vpop.permute.xlu0 %2610
      %2612 = vrot.lane.b32.xlu0 %v2608, 1
      %v2613 = vpop.permute.xlu0 %2612
      %2614 = vrot.lane.b32.xlu0 %v2609, 1
      %v2615 = vpop.permute.xlu0 %2614
      %v2616 = vsel %vm604, %v2611, %v2613
      %v2617 = vsel %vm604, %v2613, %v2615
      %2620 = vst [vmem:[#allocation3 + $0x60] sm:$0xf] %v2616
      %2621 = vst [vmem:[#allocation3 + $0x68] sm:$0xf] %v2617
      %v2622 = vld [vmem:[#allocation2 + $0x8] sm:$0xf0]
      %v2623 = vld [vmem:[#allocation2 + $0x10] sm:$0xf0]
      %2624 = vst [vmem:[#allocation3 + $0x60] sm:$0xf0] %v2622
      %2625 = vst [vmem:[#allocation3 + $0x68] sm:$0xf0] %v2623
      %v2626 = vld [vmem:[#allocation2 + $0x8] sm:$0xf0]
      %v2627 = vld [vmem:[#allocation2 + $0x10] sm:$0xf0]
      %v2628 = vld [vmem:[#allocation2 + $0x18] sm:$0xf0]
      %v2629 = vld [vmem:[%s618] sm:$0xff]
      %v2631 = vcombine.low %v2629, %v2629
      %2632 = vrot.lane.b32.xlu0 %v2631, 1
      %v2633 = vpop.permute.xlu0 %2632
      %2634 = vrot.lane.b32.xlu0 %v2629, 1
      %v2635 = vpop.permute.xlu0 %2634
      %v2636 = vsel %vm604, %v2633, %v2635
      %v2640 = vmul.f32 %v2626, %v2633
      %v2641 = vmul.f32 %v2627, %v2636
      %v2642 = vmul.f32 %v2628, %v2635
      %v2646 = vrot.slane %v2640, 4
      %v2647 = vrot.slane %v2641, 4
      %v2648 = vrot.slane %v2642, 4
      %2649 = vrot.lane.b32.xlu0 %v2646, 127
      %v2650 = vpop.permute.xlu0 %2649
      %2651 = vrot.lane.b32.xlu0 %v2647, 127
      %v2652 = vpop.permute.xlu0 %2651
      %2653 = vrot.lane.b32.xlu0 %v2648, 127
      %v2654 = vpop.permute.xlu0 %2653
      %v2655 = vsel %vm584, %v2650, %v2652
      %v2656 = vsel %vm584, %v2652, %v2654
      %2659 = vst [vmem:[#allocation3 + $0x70] sm:$0xf] %v2655
      %2660 = vst [vmem:[#allocation3 + $0x78] sm:$0xf] %v2656
      %v2661 = vld [vmem:[#allocation2 + $0x8] sm:$0xf0]
      %v2662 = vld [vmem:[#allocation2 + $0x10] sm:$0xf0]
      %v2663 = vld [vmem:[#allocation2 + $0x18] sm:$0xf0]
      %v2664 = vld [vmem:[%s654] sm:$0xff]
      %v2666 = vcombine.low %v2664, %v2664
      %2667 = vrot.lane.b32.xlu0 %v2666, 15
      %v2668 = vpop.permute.xlu0 %2667
      %2669 = vrot.lane.b32.xlu0 %v2664, 15
      %v2670 = vpop.permute.xlu0 %2669
      %v2671 = vsel %vm566, %v2668, %v2670
      %v2675 = vmul.f32 %v2661, %v2668
      %v2676 = vmul.f32 %v2662, %v2671
      %v2677 = vmul.f32 %v2663, %v2670
      %2681 = vrot.lane.b32.xlu0 %v2675, 113
      %v2682 = vpop.permute.xlu0 %2681
      %2683 = vrot.lane.b32.xlu0 %v2676, 113
      %v2684 = vpop.permute.xlu0 %2683
      %2685 = vrot.lane.b32.xlu0 %v2677, 113
      %v2686 = vpop.permute.xlu0 %2685
      %v2687 = vsel %vm549, %v2682, %v2684
      %v2688 = vsel %vm549, %v2684, %v2686
      %2691 = vst [vmem:[#allocation3 + $0x70] sm:$0xf0] %v2687
      %2692 = vst [vmem:[#allocation3 + $0x78] sm:$0xf0] %v2688
      %v2693 = vld [vmem:[#allocation2 + $0x8] sm:$0xf0]
      %v2694 = vld [vmem:[#allocation2 + $0x10] sm:$0xf0]
      %v2695 = vld [vmem:[#allocation2 + $0x18] sm:$0xf0]
      %v2696 = vld [vmem:[%s687] sm:$0xff]
      %v2698 = vcombine.low %v2696, %v2696
      %2699 = vrot.lane.b32.xlu0 %v2698, 16
      %v2700 = vpop.permute.xlu0 %2699
      %2701 = vrot.lane.b32.xlu0 %v2696, 16
      %v2702 = vpop.permute.xlu0 %2701
      %v2703 = vsel %vm531, %v2700, %v2702
      %v2707 = vmul.f32 %v2693, %v2700
      %v2708 = vmul.f32 %v2694, %v2703
      %v2709 = vmul.f32 %v2695, %v2702
      %v2713 = vrot.slane %v2707, 4
      %v2714 = vrot.slane %v2708, 4
      %v2715 = vrot.slane %v2709, 4
      %2716 = vrot.lane.b32.xlu0 %v2713, 112
      %v2717 = vpop.permute.xlu0 %2716
      %2718 = vrot.lane.b32.xlu0 %v2714, 112
      %v2719 = vpop.permute.xlu0 %2718
      %2720 = vrot.lane.b32.xlu0 %v2715, 112
      %v2721 = vpop.permute.xlu0 %2720
      %v2722 = vsel %vm511, %v2717, %v2719
      %v2723 = vsel %vm511, %v2719, %v2721
      %2726 = vst [vmem:[#allocation3 + $0x80] sm:$0xf] %v2722
      %2727 = vst [vmem:[#allocation3 + $0x88] sm:$0xf] %v2723
      %v2728 = vld [vmem:[#allocation2 + $0x8] sm:$0xf0]
      %v2729 = vld [vmem:[#allocation2 + $0x10] sm:$0xf0]
      %v2730 = vld [vmem:[#allocation2 + $0x18] sm:$0xf0]
      %v2731 = vld [vmem:[%s723] sm:$0xff]
      %v2733 = vcombine.low %v2731, %v2731
      %2734 = vrot.lane.b32.xlu0 %v2733, 17
      %v2735 = vpop.permute.xlu0 %2734
      %2736 = vrot.lane.b32.xlu0 %v2731, 17
      %v2737 = vpop.permute.xlu0 %2736
      %v2738 = vsel %vm493, %v2735, %v2737
      %v2742 = vmul.f32 %v2728, %v2735
      %v2743 = vmul.f32 %v2729, %v2738
      %v2744 = vmul.f32 %v2730, %v2737
      %2748 = vrot.lane.b32.xlu0 %v2742, 111
      %v2749 = vpop.permute.xlu0 %2748
      %2750 = vrot.lane.b32.xlu0 %v2743, 111
      %v2751 = vpop.permute.xlu0 %2750
      %2752 = vrot.lane.b32.xlu0 %v2744, 111
      %v2753 = vpop.permute.xlu0 %2752
      %v2754 = vsel %vm476, %v2749, %v2751
      %v2755 = vsel %vm476, %v2751, %v2753
      %2758 = vst [vmem:[#allocation3 + $0x80] sm:$0xf0] %v2754
      %2759 = vst [vmem:[#allocation3 + $0x88] sm:$0xf0] %v2755
      %v2760 = vld [vmem:[#allocation2 + $0x20] sm:$0xf]
      %v2761 = vld [vmem:[#allocation2 + $0x28] sm:$0xf]
      %v2762 = vld [vmem:[#allocation2 + $0x30] sm:$0xf]
      %v2763 = vld [vmem:[%s1] sm:$0xff]
      %v2765 = vcombine.high %v2763, %v2763
      %2766 = vrot.lane.b32.xlu0 %v2763, 111
      %v2767 = vpop.permute.xlu0 %2766
      %2768 = vrot.lane.b32.xlu0 %v2765, 111
      %v2769 = vpop.permute.xlu0 %2768
      %v2770 = vsel %vm476, %v2767, %v2769
      %v2774 = vmul.f32 %v2760, %v2767
      %v2775 = vmul.f32 %v2761, %v2770
      %v2776 = vmul.f32 %v2762, %v2769
      %2780 = vrot.lane.b32.xlu0 %v2774, 17
      %v2781 = vpop.permute.xlu0 %2780
      %2782 = vrot.lane.b32.xlu0 %v2775, 17
      %v2783 = vpop.permute.xlu0 %2782
      %2784 = vrot.lane.b32.xlu0 %v2776, 17
      %v2785 = vpop.permute.xlu0 %2784
      %v2786 = vsel %vm493, %v2781, %v2783
      %v2787 = vsel %vm493, %v2783, %v2785
      %2790 = vst [vmem:[#allocation3 + $0x90] sm:$0xf] %v2786
      %2791 = vst [vmem:[#allocation3 + $0x98] sm:$0xf] %v2787
      %v2792 = vld [vmem:[#allocation2 + $0x20] sm:$0xf]
      %v2793 = vld [vmem:[#allocation2 + $0x28] sm:$0xf]
      %v2794 = vld [vmem:[#allocation2 + $0x30] sm:$0xf]
      %v2795 = vld [vmem:[%s503] sm:$0xff]
      %v2797 = vcombine.high %v2795, %v2795
      %2798 = vrot.lane.b32.xlu0 %v2795, 112
      %v2799 = vpop.permute.xlu0 %2798
      %2800 = vrot.lane.b32.xlu0 %v2797, 112
      %v2801 = vpop.permute.xlu0 %2800
      %v2802 = vsel %vm511, %v2799, %v2801
      %v2806 = vmul.f32 %v2792, %v2799
      %v2807 = vmul.f32 %v2793, %v2802
      %v2808 = vmul.f32 %v2794, %v2801
      %v2812 = vrot.slane %v2806, 4
      %v2813 = vrot.slane %v2807, 4
      %v2814 = vrot.slane %v2808, 4
      %2815 = vrot.lane.b32.xlu0 %v2812, 16
      %v2816 = vpop.permute.xlu0 %2815
      %2817 = vrot.lane.b32.xlu0 %v2813, 16
      %v2818 = vpop.permute.xlu0 %2817
      %2819 = vrot.lane.b32.xlu0 %v2814, 16
      %v2820 = vpop.permute.xlu0 %2819
      %v2821 = vsel %vm531, %v2816, %v2818
      %v2822 = vsel %vm531, %v2818, %v2820
      %2825 = vst [vmem:[#allocation3 + $0x90] sm:$0xf0] %v2821
      %2826 = vst [vmem:[#allocation3 + $0x98] sm:$0xf0] %v2822
      %v2827 = vld [vmem:[#allocation2 + $0x20] sm:$0xf]
      %v2828 = vld [vmem:[#allocation2 + $0x28] sm:$0xf]
      %v2829 = vld [vmem:[#allocation2 + $0x30] sm:$0xf]
      %v2830 = vld [vmem:[%s541] sm:$0xff]
      %v2832 = vcombine.high %v2830, %v2830
      %2833 = vrot.lane.b32.xlu0 %v2830, 113
      %v2834 = vpop.permute.xlu0 %2833
      %2835 = vrot.lane.b32.xlu0 %v2832, 113
      %v2836 = vpop.permute.xlu0 %2835
      %v2837 = vsel %vm549, %v2834, %v2836
      %v2841 = vmul.f32 %v2827, %v2834
      %v2842 = vmul.f32 %v2828, %v2837
      %v2843 = vmul.f32 %v2829, %v2836
      %2847 = vrot.lane.b32.xlu0 %v2841, 15
      %v2848 = vpop.permute.xlu0 %2847
      %2849 = vrot.lane.b32.xlu0 %v2842, 15
      %v2850 = vpop.permute.xlu0 %2849
      %2851 = vrot.lane.b32.xlu0 %v2843, 15
      %v2852 = vpop.permute.xlu0 %2851
      %v2853 = vsel %vm566, %v2848, %v2850
      %v2854 = vsel %vm566, %v2850, %v2852
      %2857 = vst [vmem:[#allocation3 + $0xa0] sm:$0xf] %v2853
      %2858 = vst [vmem:[#allocation3 + $0xa8] sm:$0xf] %v2854
      %v2859 = vld [vmem:[#allocation2 + $0x20] sm:$0xf]
      %v2860 = vld [vmem:[#allocation2 + $0x28] sm:$0xf]
      %v2861 = vld [vmem:[#allocation2 + $0x30] sm:$0xf]
      %v2862 = vld [vmem:[%s576] sm:$0xff]
      %v2864 = vcombine.high %v2862, %v2862
      %2865 = vrot.lane.b32.xlu0 %v2862, 127
      %v2866 = vpop.permute.xlu0 %2865
      %2867 = vrot.lane.b32.xlu0 %v2864, 127
      %v2868 = vpop.permute.xlu0 %2867
      %v2869 = vsel %vm584, %v2866, %v2868
      %v2873 = vmul.f32 %v2859, %v2866
      %v2874 = vmul.f32 %v2860, %v2869
      %v2875 = vmul.f32 %v2861, %v2868
      %v2879 = vrot.slane %v2873, 4
      %v2880 = vrot.slane %v2874, 4
      %v2881 = vrot.slane %v2875, 4
      %2882 = vrot.lane.b32.xlu0 %v2879, 1
      %v2883 = vpop.permute.xlu0 %2882
      %2884 = vrot.lane.b32.xlu0 %v2880, 1
      %v2885 = vpop.permute.xlu0 %2884
      %2886 = vrot.lane.b32.xlu0 %v2881, 1
      %v2887 = vpop.permute.xlu0 %2886
      %v2888 = vsel %vm604, %v2883, %v2885
      %v2889 = vsel %vm604, %v2885, %v2887
      %2892 = vst [vmem:[#allocation3 + $0xa0] sm:$0xf0] %v2888
      %2893 = vst [vmem:[#allocation3 + $0xa8] sm:$0xf0] %v2889
      %v2894 = vld [vmem:[#allocation2 + $0x28] sm:$0xf]
      %v2895 = vld [vmem:[#allocation2 + $0x30] sm:$0xf]
      %2896 = vst [vmem:[#allocation3 + $0xb0] sm:$0xf] %v2894
      %2897 = vst [vmem:[#allocation3 + $0xb8] sm:$0xf] %v2895
      %v2898 = vld [vmem:[#allocation2 + $0x28] sm:$0xf]
      %v2899 = vld [vmem:[#allocation2 + $0x30] sm:$0xf]
      %v2900 = vld [vmem:[#allocation2 + $0x38] sm:$0xf]
      %v2901 = vld [vmem:[%s618] sm:$0xff]
      %v2903 = vcombine.high %v2901, %v2901
      %2904 = vrot.lane.b32.xlu0 %v2901, 1
      %v2905 = vpop.permute.xlu0 %2904
      %2906 = vrot.lane.b32.xlu0 %v2903, 1
      %v2907 = vpop.permute.xlu0 %2906
      %v2908 = vsel %vm604, %v2905, %v2907
      %v2912 = vmul.f32 %v2898, %v2905
      %v2913 = vmul.f32 %v2899, %v2908
      %v2914 = vmul.f32 %v2900, %v2907
      %v2918 = vrot.slane %v2912, 4
      %v2919 = vrot.slane %v2913, 4
      %v2920 = vrot.slane %v2914, 4
      %2921 = vrot.lane.b32.xlu0 %v2918, 127
      %v2922 = vpop.permute.xlu0 %2921
      %2923 = vrot.lane.b32.xlu0 %v2919, 127
      %v2924 = vpop.permute.xlu0 %2923
      %2925 = vrot.lane.b32.xlu0 %v2920, 127
      %v2926 = vpop.permute.xlu0 %2925
      %v2927 = vsel %vm584, %v2922, %v2924
      %v2928 = vsel %vm584, %v2924, %v2926
      %2931 = vst [vmem:[#allocation3 + $0xb0] sm:$0xf0] %v2927
      %2932 = vst [vmem:[#allocation3 + $0xb8] sm:$0xf0] %v2928
      %v2933 = vld [vmem:[#allocation2 + $0x28] sm:$0xf]
      %v2934 = vld [vmem:[#allocation2 + $0x30] sm:$0xf]
      %v2935 = vld [vmem:[#allocation2 + $0x38] sm:$0xf]
      %v2936 = vld [vmem:[%s654] sm:$0xff]
      %v2938 = vcombine.high %v2936, %v2936
      %2939 = vrot.lane.b32.xlu0 %v2936, 15
      %v2940 = vpop.permute.xlu0 %2939
      %2941 = vrot.lane.b32.xlu0 %v2938, 15
      %v2942 = vpop.permute.xlu0 %2941
      %v2943 = vsel %vm566, %v2940, %v2942
      %v2947 = vmul.f32 %v2933, %v2940
      %v2948 = vmul.f32 %v2934, %v2943
      %v2949 = vmul.f32 %v2935, %v2942
      %2953 = vrot.lane.b32.xlu0 %v2947, 113
      %v2954 = vpop.permute.xlu0 %2953
      %2955 = vrot.lane.b32.xlu0 %v2948, 113
      %v2956 = vpop.permute.xlu0 %2955
      %2957 = vrot.lane.b32.xlu0 %v2949, 113
      %v2958 = vpop.permute.xlu0 %2957
      %v2959 = vsel %vm549, %v2954, %v2956
      %v2960 = vsel %vm549, %v2956, %v2958
      %2963 = vst [vmem:[#allocation3 + $0xc0] sm:$0xf] %v2959
      %2964 = vst [vmem:[#allocation3 + $0xc8] sm:$0xf] %v2960
      %v2965 = vld [vmem:[#allocation2 + $0x28] sm:$0xf]
      %v2966 = vld [vmem:[#allocation2 + $0x30] sm:$0xf]
      %v2967 = vld [vmem:[#allocation2 + $0x38] sm:$0xf]
      %v2968 = vld [vmem:[%s687] sm:$0xff]
      %v2970 = vcombine.high %v2968, %v2968
      %2971 = vrot.lane.b32.xlu0 %v2968, 16
      %v2972 = vpop.permute.xlu0 %2971
      %2973 = vrot.lane.b32.xlu0 %v2970, 16
      %v2974 = vpop.permute.xlu0 %2973
      %v2975 = vsel %vm531, %v2972, %v2974
      %v2979 = vmul.f32 %v2965, %v2972
      %v2980 = vmul.f32 %v2966, %v2975
      %v2981 = vmul.f32 %v2967, %v2974
      %v2985 = vrot.slane %v2979, 4
      %v2986 = vrot.slane %v2980, 4
      %v2987 = vrot.slane %v2981, 4
      %2988 = vrot.lane.b32.xlu0 %v2985, 112
      %v2989 = vpop.permute.xlu0 %2988
      %2990 = vrot.lane.b32.xlu0 %v2986, 112
      %v2991 = vpop.permute.xlu0 %2990
      %2992 = vrot.lane.b32.xlu0 %v2987, 112
      %v2993 = vpop.permute.xlu0 %2992
      %v2994 = vsel %vm511, %v2989, %v2991
      %v2995 = vsel %vm511, %v2991, %v2993
      %2998 = vst [vmem:[#allocation3 + $0xc0] sm:$0xf0] %v2994
      %2999 = vst [vmem:[#allocation3 + $0xc8] sm:$0xf0] %v2995
      %v3000 = vld [vmem:[#allocation2 + $0x28] sm:$0xf]
      %v3001 = vld [vmem:[#allocation2 + $0x30] sm:$0xf]
      %v3002 = vld [vmem:[#allocation2 + $0x38] sm:$0xf]
      %v3003 = vld [vmem:[%s723] sm:$0xff]
      %v3005 = vcombine.high %v3003, %v3003
      %3006 = vrot.lane.b32.xlu0 %v3003, 17
      %v3007 = vpop.permute.xlu0 %3006
      %3008 = vrot.lane.b32.xlu0 %v3005, 17
      %v3009 = vpop.permute.xlu0 %3008
      %v3010 = vsel %vm493, %v3007, %v3009
      %v3014 = vmul.f32 %v3000, %v3007
      %v3015 = vmul.f32 %v3001, %v3010
      %v3016 = vmul.f32 %v3002, %v3009
      %3020 = vrot.lane.b32.xlu0 %v3014, 111
      %v3021 = vpop.permute.xlu0 %3020
      %3022 = vrot.lane.b32.xlu0 %v3015, 111
      %v3023 = vpop.permute.xlu0 %3022
      %3024 = vrot.lane.b32.xlu0 %v3016, 111
      %v3025 = vpop.permute.xlu0 %3024
      %v3026 = vsel %vm476, %v3021, %v3023
      %v3027 = vsel %vm476, %v3023, %v3025
      %3030 = vst [vmem:[#allocation3 + $0xd0] sm:$0xf] %v3026
      %3031 = vst [vmem:[#allocation3 + $0xd8] sm:$0xf] %v3027
      %v3032 = vld [vmem:[#allocation2 + $0x20] sm:$0xf0]
      %v3033 = vld [vmem:[#allocation2 + $0x28] sm:$0xf0]
      %v3034 = vld [vmem:[#allocation2 + $0x30] sm:$0xf0]
      %v3035 = vld [vmem:[%s1] sm:$0xff]
      %v3037 = vcombine.low %v3035, %v3035
      %3038 = vrot.lane.b32.xlu0 %v3037, 111
      %v3039 = vpop.permute.xlu0 %3038
      %3040 = vrot.lane.b32.xlu0 %v3035, 111
      %v3041 = vpop.permute.xlu0 %3040
      %v3042 = vsel %vm476, %v3039, %v3041
      %v3046 = vmul.f32 %v3032, %v3039
      %v3047 = vmul.f32 %v3033, %v3042
      %v3048 = vmul.f32 %v3034, %v3041
      %3052 = vrot.lane.b32.xlu0 %v3046, 17
      %v3053 = vpop.permute.xlu0 %3052
      %3054 = vrot.lane.b32.xlu0 %v3047, 17
      %v3055 = vpop.permute.xlu0 %3054
      %3056 = vrot.lane.b32.xlu0 %v3048, 17
      %v3057 = vpop.permute.xlu0 %3056
      %v3058 = vsel %vm493, %v3053, %v3055
      %v3059 = vsel %vm493, %v3055, %v3057
      %3062 = vst [vmem:[#allocation3 + $0xd0] sm:$0xf0] %v3058
      %3063 = vst [vmem:[#allocation3 + $0xd8] sm:$0xf0] %v3059
      %v3064 = vld [vmem:[#allocation2 + $0x20] sm:$0xf0]
      %v3065 = vld [vmem:[#allocation2 + $0x28] sm:$0xf0]
      %v3066 = vld [vmem:[#allocation2 + $0x30] sm:$0xf0]
      %v3067 = vld [vmem:[%s503] sm:$0xff]
      %v3069 = vcombine.low %v3067, %v3067
      %3070 = vrot.lane.b32.xlu0 %v3069, 112
      %v3071 = vpop.permute.xlu0 %3070
      %3072 = vrot.lane.b32.xlu0 %v3067, 112
      %v3073 = vpop.permute.xlu0 %3072
      %v3074 = vsel %vm511, %v3071, %v3073
      %v3078 = vmul.f32 %v3064, %v3071
      %v3079 = vmul.f32 %v3065, %v3074
      %v3080 = vmul.f32 %v3066, %v3073
      %v3084 = vrot.slane %v3078, 4
      %v3085 = vrot.slane %v3079, 4
      %v3086 = vrot.slane %v3080, 4
      %3087 = vrot.lane.b32.xlu0 %v3084, 16
      %v3088 = vpop.permute.xlu0 %3087
      %3089 = vrot.lane.b32.xlu0 %v3085, 16
      %v3090 = vpop.permute.xlu0 %3089
      %3091 = vrot.lane.b32.xlu0 %v3086, 16
      %v3092 = vpop.permute.xlu0 %3091
      %v3093 = vsel %vm531, %v3088, %v3090
      %v3094 = vsel %vm531, %v3090, %v3092
      %3097 = vst [vmem:[#allocation3 + $0xe0] sm:$0xf] %v3093
      %3098 = vst [vmem:[#allocation3 + $0xe8] sm:$0xf] %v3094
      %v3099 = vld [vmem:[#allocation2 + $0x20] sm:$0xf0]
      %v3100 = vld [vmem:[#allocation2 + $0x28] sm:$0xf0]
      %v3101 = vld [vmem:[#allocation2 + $0x30] sm:$0xf0]
      %v3102 = vld [vmem:[%s541] sm:$0xff]
      %v3104 = vcombine.low %v3102, %v3102
      %3105 = vrot.lane.b32.xlu0 %v3104, 113
      %v3106 = vpop.permute.xlu0 %3105
      %3107 = vrot.lane.b32.xlu0 %v3102, 113
      %v3108 = vpop.permute.xlu0 %3107
      %v3109 = vsel %vm549, %v3106, %v3108
      %v3113 = vmul.f32 %v3099, %v3106
      %v3114 = vmul.f32 %v3100, %v3109
      %v3115 = vmul.f32 %v3101, %v3108
      %3119 = vrot.lane.b32.xlu0 %v3113, 15
      %v3120 = vpop.permute.xlu0 %3119
      %3121 = vrot.lane.b32.xlu0 %v3114, 15
      %v3122 = vpop.permute.xlu0 %3121
      %3123 = vrot.lane.b32.xlu0 %v3115, 15
      %v3124 = vpop.permute.xlu0 %3123
      %v3125 = vsel %vm566, %v3120, %v3122
      %v3126 = vsel %vm566, %v3122, %v3124
      %3129 = vst [vmem:[#allocation3 + $0xe0] sm:$0xf0] %v3125
      %3130 = vst [vmem:[#allocation3 + $0xe8] sm:$0xf0] %v3126
      %v3131 = vld [vmem:[#allocation2 + $0x20] sm:$0xf0]
      %v3132 = vld [vmem:[#allocation2 + $0x28] sm:$0xf0]
      %v3133 = vld [vmem:[#allocation2 + $0x30] sm:$0xf0]
      %v3134 = vld [vmem:[%s576] sm:$0xff]
      %v3136 = vcombine.low %v3134, %v3134
      %3137 = vrot.lane.b32.xlu0 %v3136, 127
      %v3138 = vpop.permute.xlu0 %3137
      %3139 = vrot.lane.b32.xlu0 %v3134, 127
      %v3140 = vpop.permute.xlu0 %3139
      %v3141 = vsel %vm584, %v3138, %v3140
      %v3145 = vmul.f32 %v3131, %v3138
      %v3146 = vmul.f32 %v3132, %v3141
      %v3147 = vmul.f32 %v3133, %v3140
      %v3151 = vrot.slane %v3145, 4
      %v3152 = vrot.slane %v3146, 4
      %v3153 = vrot.slane %v3147, 4
      %3154 = vrot.lane.b32.xlu0 %v3151, 1
      %v3155 = vpop.permute.xlu0 %3154
      %3156 = vrot.lane.b32.xlu0 %v3152, 1
      %v3157 = vpop.permute.xlu0 %3156
      %3158 = vrot.lane.b32.xlu0 %v3153, 1
      %v3159 = vpop.permute.xlu0 %3158
      %v3160 = vsel %vm604, %v3155, %v3157
      %v3161 = vsel %vm604, %v3157, %v3159
      %3164 = vst [vmem:[#allocation3 + $0xf0] sm:$0xf] %v3160
      %3165 = vst [vmem:[#allocation3 + $0xf8] sm:$0xf] %v3161
      %v3166 = vld [vmem:[#allocation2 + $0x28] sm:$0xf0]
      %v3167 = vld [vmem:[#allocation2 + $0x30] sm:$0xf0]
      %3168 = vst [vmem:[#allocation3 + $0xf0] sm:$0xf0] %v3166
      %3169 = vst [vmem:[#allocation3 + $0xf8] sm:$0xf0] %v3167
      %v3170 = vld [vmem:[#allocation2 + $0x28] sm:$0xf0]
      %v3171 = vld [vmem:[#allocation2 + $0x30] sm:$0xf0]
      %v3172 = vld [vmem:[#allocation2 + $0x38] sm:$0xf0]
      %v3173 = vld [vmem:[%s618] sm:$0xff]
      %v3175 = vcombine.low %v3173, %v3173
      %3176 = vrot.lane.b32.xlu0 %v3175, 1
      %v3177 = vpop.permute.xlu0 %3176
      %3178 = vrot.lane.b32.xlu0 %v3173, 1
      %v3179 = vpop.permute.xlu0 %3178
      %v3180 = vsel %vm604, %v3177, %v3179
      %v3184 = vmul.f32 %v3170, %v3177
      %v3185 = vmul.f32 %v3171, %v3180
      %v3186 = vmul.f32 %v3172, %v3179
      %v3190 = vrot.slane %v3184, 4
      %v3191 = vrot.slane %v3185, 4
      %v3192 = vrot.slane %v3186, 4
      %3193 = vrot.lane.b32.xlu0 %v3190, 127
      %v3194 = vpop.permute.xlu0 %3193
      %3195 = vrot.lane.b32.xlu0 %v3191, 127
      %v3196 = vpop.permute.xlu0 %3195
      %3197 = vrot.lane.b32.xlu0 %v3192, 127
      %v3198 = vpop.permute.xlu0 %3197
      %v3199 = vsel %vm584, %v3194, %v3196
      %v3200 = vsel %vm584, %v3196, %v3198
      %3203 = vst [vmem:[#allocation3 + $0x100] sm:$0xf] %v3199
      %3204 = vst [vmem:[#allocation3 + $0x108] sm:$0xf] %v3200
      %v3205 = vld [vmem:[#allocation2 + $0x28] sm:$0xf0]
      %v3206 = vld [vmem:[#allocation2 + $0x30] sm:$0xf0]
      %v3207 = vld [vmem:[#allocation2 + $0x38] sm:$0xf0]
      %v3208 = vld [vmem:[%s654] sm:$0xff]
      %v3210 = vcombine.low %v3208, %v3208
      %3211 = vrot.lane.b32.xlu0 %v3210, 15
      %v3212 = vpop.permute.xlu0 %3211
      %3213 = vrot.lane.b32.xlu0 %v3208, 15
      %v3214 = vpop.permute.xlu0 %3213
      %v3215 = vsel %vm566, %v3212, %v3214
      %v3219 = vmul.f32 %v3205, %v3212
      %v3220 = vmul.f32 %v3206, %v3215
      %v3221 = vmul.f32 %v3207, %v3214
      %3225 = vrot.lane.b32.xlu0 %v3219, 113
      %v3226 = vpop.permute.xlu0 %3225
      %3227 = vrot.lane.b32.xlu0 %v3220, 113
      %v3228 = vpop.permute.xlu0 %3227
      %3229 = vrot.lane.b32.xlu0 %v3221, 113
      %v3230 = vpop.permute.xlu0 %3229
      %v3231 = vsel %vm549, %v3226, %v3228
      %v3232 = vsel %vm549, %v3228, %v3230
      %3235 = vst [vmem:[#allocation3 + $0x100] sm:$0xf0] %v3231
      %3236 = vst [vmem:[#allocation3 + $0x108] sm:$0xf0] %v3232
      %v3237 = vld [vmem:[#allocation2 + $0x28] sm:$0xf0]
      %v3238 = vld [vmem:[#allocation2 + $0x30] sm:$0xf0]
      %v3239 = vld [vmem:[#allocation2 + $0x38] sm:$0xf0]
      %v3240 = vld [vmem:[%s687] sm:$0xff]
      %v3242 = vcombine.low %v3240, %v3240
      %3243 = vrot.lane.b32.xlu0 %v3242, 16
      %v3244 = vpop.permute.xlu0 %3243
      %3245 = vrot.lane.b32.xlu0 %v3240, 16
      %v3246 = vpop.permute.xlu0 %3245
      %v3247 = vsel %vm531, %v3244, %v3246
      %v3251 = vmul.f32 %v3237, %v3244
      %v3252 = vmul.f32 %v3238, %v3247
      %v3253 = vmul.f32 %v3239, %v3246
      %v3257 = vrot.slane %v3251, 4
      %v3258 = vrot.slane %v3252, 4
      %v3259 = vrot.slane %v3253, 4
      %3260 = vrot.lane.b32.xlu0 %v3257, 112
      %v3261 = vpop.permute.xlu0 %3260
      %3262 = vrot.lane.b32.xlu0 %v3258, 112
      %v3263 = vpop.permute.xlu0 %3262
      %3264 = vrot.lane.b32.xlu0 %v3259, 112
      %v3265 = vpop.permute.xlu0 %3264
      %v3266 = vsel %vm511, %v3261, %v3263
      %v3267 = vsel %vm511, %v3263, %v3265
      %3270 = vst [vmem:[#allocation3 + $0x110] sm:$0xf] %v3266
      %3271 = vst [vmem:[#allocation3 + $0x118] sm:$0xf] %v3267
      %v3272 = vld [vmem:[#allocation2 + $0x28] sm:$0xf0]
      %v3273 = vld [vmem:[#allocation2 + $0x30] sm:$0xf0]
      %v3274 = vld [vmem:[#allocation2 + $0x38] sm:$0xf0]
      %v3275 = vld [vmem:[%s723] sm:$0xff]
      %v3277 = vcombine.low %v3275, %v3275
      %3278 = vrot.lane.b32.xlu0 %v3277, 17
      %v3279 = vpop.permute.xlu0 %3278
      %3280 = vrot.lane.b32.xlu0 %v3275, 17
      %v3281 = vpop.permute.xlu0 %3280
      %v3282 = vsel %vm493, %v3279, %v3281
      %v3286 = vmul.f32 %v3272, %v3279
      %v3287 = vmul.f32 %v3273, %v3282
      %v3288 = vmul.f32 %v3274, %v3281
      %3292 = vrot.lane.b32.xlu0 %v3286, 111
      %v3293 = vpop.permute.xlu0 %3292
      %3294 = vrot.lane.b32.xlu0 %v3287, 111
      %v3295 = vpop.permute.xlu0 %3294
      %3296 = vrot.lane.b32.xlu0 %v3288, 111
      %v3297 = vpop.permute.xlu0 %3296
      %v3298 = vsel %vm476, %v3293, %v3295
      %v3299 = vsel %vm476, %v3295, %v3297
      %3302 = vst [vmem:[#allocation3 + $0x110] sm:$0xf0] %v3298
      %3303 = vst [vmem:[#allocation3 + $0x118] sm:$0xf0] %v3299
      %s3304 = scalar_lea.vmem %s6, 32
      %v3305 = vld [vmem:[%s3304] sm:$0xff]
      %v3306 = vld [vmem:[%s3304 + $0x8] sm:$0xff]
      %v3307 = vld [vmem:[%s3304 + $0x10] sm:$0xff]
      %v3308 = vld [vmem:[%s3304 + $0x18] sm:$0xff]
      %v3309 = vld [vmem:[#allocation3] sm:$0xff]
      %v3310 = vld [vmem:[#allocation3 + $0x8] sm:$0xff]
      %v3311 = vld [vmem:[#allocation3 + $0x10] sm:$0xff]
      %v3312 = vld [vmem:[#allocation3 + $0x18] sm:$0xff]
      %v3313 = vld [vmem:[#allocation3 + $0x20] sm:$0xff]
      %v3314 = vld [vmem:[#allocation3 + $0x28] sm:$0xff]
      %v3315 = vld [vmem:[#allocation3 + $0x30] sm:$0xff]
      %v3316 = vld [vmem:[#allocation3 + $0x38] sm:$0xff]
      %v3317 = vld [vmem:[#allocation3 + $0x40] sm:$0xff]
      %v3318 = vld [vmem:[#allocation3 + $0x48] sm:$0xff]
      %v3319 = vld [vmem:[#allocation3 + $0x50] sm:$0xff]
      %v3320 = vld [vmem:[#allocation3 + $0x58] sm:$0xff]
      %v3321 = vld [vmem:[#allocation3 + $0x60] sm:$0xff]
      %v3322 = vld [vmem:[#allocation3 + $0x68] sm:$0xff]
      %v3323 = vld [vmem:[#allocation3 + $0x70] sm:$0xff]
      %v3324 = vld [vmem:[#allocation3 + $0x78] sm:$0xff]
      %v3325 = vld [vmem:[#allocation3 + $0x80] sm:$0xff]
      %v3326 = vld [vmem:[#allocation3 + $0x88] sm:$0xff]
      %v3327 = vld [vmem:[#allocation3 + $0x90] sm:$0xff]
      %v3328 = vld [vmem:[#allocation3 + $0x98] sm:$0xff]
      %v3329 = vld [vmem:[#allocation3 + $0xa0] sm:$0xff]
      %v3330 = vld [vmem:[#allocation3 + $0xa8] sm:$0xff]
      %v3331 = vld [vmem:[#allocation3 + $0xb0] sm:$0xff]
      %v3332 = vld [vmem:[#allocation3 + $0xb8] sm:$0xff]
      %v3333 = vld [vmem:[#allocation3 + $0xc0] sm:$0xff]
      %v3334 = vld [vmem:[#allocation3 + $0xc8] sm:$0xff]
      %v3335 = vld [vmem:[#allocation3 + $0xd0] sm:$0xff]
      %v3336 = vld [vmem:[#allocation3 + $0xd8] sm:$0xff]
      %v3337 = vld [vmem:[#allocation3 + $0xe0] sm:$0xff]
      %v3338 = vld [vmem:[#allocation3 + $0xe8] sm:$0xff]
      %v3339 = vld [vmem:[#allocation3 + $0xf0] sm:$0xff]
      %v3340 = vld [vmem:[#allocation3 + $0xf8] sm:$0xff]
      %v3341 = vld [vmem:[#allocation3 + $0x100] sm:$0xff]
      %v3342 = vld [vmem:[#allocation3 + $0x108] sm:$0xff]
      %v3343 = vld [vmem:[#allocation3 + $0x110] sm:$0xff]
      %v3344 = vld [vmem:[#allocation3 + $0x118] sm:$0xff]
      %s3345 = scalar_lea.vmem %s7, 16
      %v3346 = vld [vmem:[%s3345] sm:$0xff]
      %v3347 = vld [vmem:[%s3345 + $0x8] sm:$0xff]
      %3349 = vset.pattern.permute.xlu0 0
      %3350 = vperm.xlu0 %3349, %v3346
      %v3351 = vpop.permute.xlu0 %3350
      %3354 = vset.pattern.permute.xlu0 0
      %3355 = vperm.xlu0 %3354, %v3347
      %v3356 = vpop.permute.xlu0 %3355
      %v3359 = vsel %vm531, %v3306, 0
      %v3362 = vsel %vm531, %v3308, 0
      %3364 = vmatprep.subr.mxu0 %v3310
      %3365 = vmatpush1.msra.mxu0 %v3309
      %3366 = vmatprep.subr.mxu0 %v3312
      %3367 = vmatpush1.msra.mxu0 %v3311
      %3368 = vmatprep.subr.mxu0 %v3314
      %3369 = vmatpush1.msra.mxu0 %v3313
      %3370 = vmatprep.subr.mxu0 %v3316
      %3371 = vmatpush1.msra.mxu0 %v3315
      %3372 = vmatprep.subr.mxu0 %v3318
      %3373 = vmatpush1.msra.mxu0 %v3317
      %3374 = vmatprep.subr.mxu0 %v3320
      %3375 = vmatpush1.msra.mxu0 %v3319
      %3376 = vmatprep.subr.mxu0 %v3322
      %3377 = vmatpush1.msra.mxu0 %v3321
      %3378 = vmatprep.subr.mxu0 %v3324
      %3379 = vmatpush1.msra.mxu0 %v3323
      %3380 = vmatprep.subr.mxu0 %v3326
      %3381 = vmatpush1.msra.mxu0 %v3325
      %3382 = vmatprep.subr.mxu0 %v3328
      %3383 = vmatpush1.msra.mxu0 %v3327
      %3384 = vmatprep.subr.mxu0 %v3330
      %3385 = vmatpush1.msra.mxu0 %v3329
      %3386 = vmatprep.subr.mxu0 %v3332
      %3387 = vmatpush1.msra.mxu0 %v3331
      %3388 = vmatprep.subr.mxu0 %v3334
      %3389 = vmatpush1.msra.mxu0 %v3333
      %3390 = vmatprep.subr.mxu0 %v3336
      %3391 = vmatpush1.msra.mxu0 %v3335
      %3392 = vmatprep.subr.mxu0 %v3338
      %3393 = vmatpush1.msra.mxu0 %v3337
      %3394 = vmatprep.subr.mxu0 %v3340
      %3395 = vmatpush1.msra.mxu0 %v3339
      %3396 = vmatprep.subr.mxu0 %v3342
      %3397 = vmatpush1.msra.mxu0 %v3341
      %3398 = vmatprep.subr.mxu0 %v3344
      %3399 = vmatpush1.msra.mxu0 %v3343
      %3400 = vmatprep.subr.mxu0 0.0
      %3401 = vmatpush1.msra.mxu0 0.0
      %3402 = vmatprep.subr.mxu0 0.0
      %3403 = vmatpush1.msra.mxu0 0.0
      %3404 = vmatprep.subr.mxu0 0.0
      %3405 = vmatpush1.msra.mxu0 0.0
      %3406 = vmatprep.subr.mxu0 0.0
      %3407 = vmatpush1.msra.mxu0 0.0
      %3408 = vmatprep.subr.mxu0 0.0
      %3409 = vmatpush1.msra.mxu0 0.0
      %3410 = vmatprep.subr.mxu0 0.0
      %3411 = vmatpush1.msra.mxu0 0.0
      %3412 = vmatprep.subr.mxu0 0.0
      %3413 = vmatpush1.msra.mxu0 0.0
      %3414 = vmatprep.subr.mxu0 0.0
      %3415 = vmatpush1.msra.mxu0 0.0
      %3416 = vmatprep.subr.mxu0 0.0
      %3417 = vmatpush1.msra.mxu0 0.0
      %3418 = vmatprep.subr.mxu0 0.0
      %3419 = vmatpush1.msra.mxu0 0.0
      %3420 = vmatprep.subr.mxu0 0.0
      %3421 = vmatpush1.msra.mxu0 0.0
      %3422 = vmatprep.subr.mxu0 0.0
      %3423 = vmatpush1.msra.mxu0 0.0
      %3424 = vmatprep.subr.mxu0 0.0
      %3425 = vmatpush1.msra.mxu0 0.0
      %3426 = vmatprep.subr.mxu0 0.0
      %3427 = vmatpush1.msra.mxu0 0.0
      %3428 = vmatprep.mubr.f32.mxu0 %v3359
      %3429 = vmatmul.mubr.f32.gmra.mrb[0].mxu0 %v3305
      %v3430 = vpop.f32.mrb[0].mxu0
      %v3431 = vadd.f32 %v3351, %v3430
      %v3432 = vpop.f32.mrb[0].mxu0
      %v3433 = vadd.f32 %v3351, %v3432
      %3434 = vmatprep.mubr.f32.mxu0 %v3362
      %3435 = vmatmul.mubr.f32.gmra.mrb[0].mxu0 %v3307
      %v3436 = vpop.f32.mrb[0].mxu0
      %v3437 = vadd.f32 %v3356, %v3436
      %v3438 = vpop.f32.mrb[0].mxu0
      %v3439 = vadd.f32 %v3356, %v3438
      %3440 = vdwg.mxu0
      %s3441 = scalar_lea.vmem %s8, 16
      %v3442 = vld [vmem:[%s3441] sm:$0xff]
      %v3443 = vld [vmem:[%s3441 + $0x8] sm:$0xff]
      %vm3444 = vcmp.ge.f32.partialorder %v3431, 0.0
      %vm3445 = vcmp.ge.f32.partialorder %v3433, 0.0
      %vm3446 = vcmp.ge.f32.partialorder %v3437, 0.0
      %vm3447 = vcmp.ge.f32.partialorder %v3439, 0.0
      %3449 = vset.pattern.permute.xlu0 0
      %3450 = vperm.xlu0 %3449, %v3442
      %v3451 = vpop.permute.xlu0 %3450
      %3454 = vset.pattern.permute.xlu0 0
      %3455 = vperm.xlu0 %3454, %v3443
      %v3456 = vpop.permute.xlu0 %3455
      %v3458 = vmul.f32 %v3451, %v3431
      %v3459 = vmul.f32 %v3451, %v3433
      %v3460 = vmul.f32 %v3456, %v3437
      %v3461 = vmul.f32 %v3456, %v3439
      %v3462 = vsel %vm3444, %v3431, %v3458
      %v3463 = vsel %vm3445, %v3433, %v3459
      %v3464 = vsel %vm3446, %v3437, %v3460
      %v3465 = vsel %vm3447, %v3439, %v3461
      %3466 = vst [vmem:[#allocation2 + $0x8] sm:$0xf] %v3462
      %3467 = vst [vmem:[#allocation2 + $0x10] sm:$0xf] %v3463
      %3468 = vst [vmem:[#allocation2 + $0x8] sm:$0xf0] %v3462
      %3469 = vst [vmem:[#allocation2 + $0x10] sm:$0xf0] %v3463
      %3470 = vst [vmem:[#allocation2 + $0x28] sm:$0xf] %v3464
      %3471 = vst [vmem:[#allocation2 + $0x30] sm:$0xf] %v3465
      %3472 = vst [vmem:[#allocation2 + $0x28] sm:$0xf0] %v3464
      %3473 = vst [vmem:[#allocation2 + $0x30] sm:$0xf0] %v3465
      %v3474 = vld [vmem:[#allocation2] sm:$0xf]
      %v3475 = vld [vmem:[#allocation2 + $0x8] sm:$0xf]
      %v3476 = vld [vmem:[#allocation2 + $0x10] sm:$0xf]
      %v3477 = vld [vmem:[%s1] sm:$0xff]
      %v3479 = vcombine.high %v3477, %v3477
      %3480 = vrot.lane.b32.xlu0 %v3477, 111
      %v3481 = vpop.permute.xlu0 %3480
      %3482 = vrot.lane.b32.xlu0 %v3479, 111
      %v3483 = vpop.permute.xlu0 %3482
      %v3484 = vsel %vm476, %v3481, %v3483
      %v3488 = vmul.f32 %v3474, %v3481
      %v3489 = vmul.f32 %v3475, %v3484
      %v3490 = vmul.f32 %v3476, %v3483
      %3494 = vrot.lane.b32.xlu0 %v3488, 17
      %v3495 = vpop.permute.xlu0 %3494
      %3496 = vrot.lane.b32.xlu0 %v3489, 17
      %v3497 = vpop.permute.xlu0 %3496
      %3498 = vrot.lane.b32.xlu0 %v3490, 17
      %v3499 = vpop.permute.xlu0 %3498
      %v3500 = vsel %vm493, %v3495, %v3497
      %v3501 = vsel %vm493, %v3497, %v3499
      %3504 = vst [vmem:[#allocation3] sm:$0xf] %v3500
      %3505 = vst [vmem:[#allocation3 + $0x8] sm:$0xf] %v3501
      %v3506 = vld [vmem:[#allocation2] sm:$0xf]
      %v3507 = vld [vmem:[#allocation2 + $0x8] sm:$0xf]
      %v3508 = vld [vmem:[#allocation2 + $0x10] sm:$0xf]
      %v3509 = vld [vmem:[%s503] sm:$0xff]
      %v3511 = vcombine.high %v3509, %v3509
      %3512 = vrot.lane.b32.xlu0 %v3509, 112
      %v3513 = vpop.permute.xlu0 %3512
      %3514 = vrot.lane.b32.xlu0 %v3511, 112
      %v3515 = vpop.permute.xlu0 %3514
      %v3516 = vsel %vm511, %v3513, %v3515
      %v3520 = vmul.f32 %v3506, %v3513
      %v3521 = vmul.f32 %v3507, %v3516
      %v3522 = vmul.f32 %v3508, %v3515
      %v3526 = vrot.slane %v3520, 4
      %v3527 = vrot.slane %v3521, 4
      %v3528 = vrot.slane %v3522, 4
      %3529 = vrot.lane.b32.xlu0 %v3526, 16
      %v3530 = vpop.permute.xlu0 %3529
      %3531 = vrot.lane.b32.xlu0 %v3527, 16
      %v3532 = vpop.permute.xlu0 %3531
      %3533 = vrot.lane.b32.xlu0 %v3528, 16
      %v3534 = vpop.permute.xlu0 %3533
      %v3535 = vsel %vm531, %v3530, %v3532
      %v3536 = vsel %vm531, %v3532, %v3534
      %3539 = vst [vmem:[#allocation3] sm:$0xf0] %v3535
      %3540 = vst [vmem:[#allocation3 + $0x8] sm:$0xf0] %v3536
      %v3541 = vld [vmem:[#allocation2] sm:$0xf]
      %v3542 = vld [vmem:[#allocation2 + $0x8] sm:$0xf]
      %v3543 = vld [vmem:[#allocation2 + $0x10] sm:$0xf]
      %v3544 = vld [vmem:[%s541] sm:$0xff]
      %v3546 = vcombine.high %v3544, %v3544
      %3547 = vrot.lane.b32.xlu0 %v3544, 113
      %v3548 = vpop.permute.xlu0 %3547
      %3549 = vrot.lane.b32.xlu0 %v3546, 113
      %v3550 = vpop.permute.xlu0 %3549
      %v3551 = vsel %vm549, %v3548, %v3550
      %v3555 = vmul.f32 %v3541, %v3548
      %v3556 = vmul.f32 %v3542, %v3551
      %v3557 = vmul.f32 %v3543, %v3550
      %3561 = vrot.lane.b32.xlu0 %v3555, 15
      %v3562 = vpop.permute.xlu0 %3561
      %3563 = vrot.lane.b32.xlu0 %v3556, 15
      %v3564 = vpop.permute.xlu0 %3563
      %3565 = vrot.lane.b32.xlu0 %v3557, 15
      %v3566 = vpop.permute.xlu0 %3565
      %v3567 = vsel %vm566, %v3562, %v3564
      %v3568 = vsel %vm566, %v3564, %v3566
      %3571 = vst [vmem:[#allocation3 + $0x10] sm:$0xf] %v3567
      %3572 = vst [vmem:[#allocation3 + $0x18] sm:$0xf] %v3568
      %v3573 = vld [vmem:[#allocation2] sm:$0xf]
      %v3574 = vld [vmem:[#allocation2 + $0x8] sm:$0xf]
      %v3575 = vld [vmem:[#allocation2 + $0x10] sm:$0xf]
      %v3576 = vld [vmem:[%s576] sm:$0xff]
      %v3578 = vcombine.high %v3576, %v3576
      %3579 = vrot.lane.b32.xlu0 %v3576, 127
      %v3580 = vpop.permute.xlu0 %3579
      %3581 = vrot.lane.b32.xlu0 %v3578, 127
      %v3582 = vpop.permute.xlu0 %3581
      %v3583 = vsel %vm584, %v3580, %v3582
      %v3587 = vmul.f32 %v3573, %v3580
      %v3588 = vmul.f32 %v3574, %v3583
      %v3589 = vmul.f32 %v3575, %v3582
      %v3593 = vrot.slane %v3587, 4
      %v3594 = vrot.slane %v3588, 4
      %v3595 = vrot.slane %v3589, 4
      %3596 = vrot.lane.b32.xlu0 %v3593, 1
      %v3597 = vpop.permute.xlu0 %3596
      %3598 = vrot.lane.b32.xlu0 %v3594, 1
      %v3599 = vpop.permute.xlu0 %3598
      %3600 = vrot.lane.b32.xlu0 %v3595, 1
      %v3601 = vpop.permute.xlu0 %3600
      %v3602 = vsel %vm604, %v3597, %v3599
      %v3603 = vsel %vm604, %v3599, %v3601
      %3606 = vst [vmem:[#allocation3 + $0x10] sm:$0xf0] %v3602
      %3607 = vst [vmem:[#allocation3 + $0x18] sm:$0xf0] %v3603
      %v3608 = vld [vmem:[#allocation2 + $0x8] sm:$0xf]
      %v3609 = vld [vmem:[#allocation2 + $0x10] sm:$0xf]
      %3610 = vst [vmem:[#allocation3 + $0x20] sm:$0xf] %v3608
      %3611 = vst [vmem:[#allocation3 + $0x28] sm:$0xf] %v3609
      %v3612 = vld [vmem:[#allocation2 + $0x8] sm:$0xf]
      %v3613 = vld [vmem:[#allocation2 + $0x10] sm:$0xf]
      %v3614 = vld [vmem:[#allocation2 + $0x18] sm:$0xf]
      %v3615 = vld [vmem:[%s618] sm:$0xff]
      %v3617 = vcombine.high %v3615, %v3615
      %3618 = vrot.lane.b32.xlu0 %v3615, 1
      %v3619 = vpop.permute.xlu0 %3618
      %3620 = vrot.lane.b32.xlu0 %v3617, 1
      %v3621 = vpop.permute.xlu0 %3620
      %v3622 = vsel %vm604, %v3619, %v3621
      %v3626 = vmul.f32 %v3612, %v3619
      %v3627 = vmul.f32 %v3613, %v3622
      %v3628 = vmul.f32 %v3614, %v3621
      %v3632 = vrot.slane %v3626, 4
      %v3633 = vrot.slane %v3627, 4
      %v3634 = vrot.slane %v3628, 4
      %3635 = vrot.lane.b32.xlu0 %v3632, 127
      %v3636 = vpop.permute.xlu0 %3635
      %3637 = vrot.lane.b32.xlu0 %v3633, 127
      %v3638 = vpop.permute.xlu0 %3637
      %3639 = vrot.lane.b32.xlu0 %v3634, 127
      %v3640 = vpop.permute.xlu0 %3639
      %v3641 = vsel %vm584, %v3636, %v3638
      %v3642 = vsel %vm584, %v3638, %v3640
      %3645 = vst [vmem:[#allocation3 + $0x20] sm:$0xf0] %v3641
      %3646 = vst [vmem:[#allocation3 + $0x28] sm:$0xf0] %v3642
      %v3647 = vld [vmem:[#allocation2 + $0x8] sm:$0xf]
      %v3648 = vld [vmem:[#allocation2 + $0x10] sm:$0xf]
      %v3649 = vld [vmem:[#allocation2 + $0x18] sm:$0xf]
      %v3650 = vld [vmem:[%s654] sm:$0xff]
      %v3652 = vcombine.high %v3650, %v3650
      %3653 = vrot.lane.b32.xlu0 %v3650, 15
      %v3654 = vpop.permute.xlu0 %3653
      %3655 = vrot.lane.b32.xlu0 %v3652, 15
      %v3656 = vpop.permute.xlu0 %3655
      %v3657 = vsel %vm566, %v3654, %v3656
      %v3661 = vmul.f32 %v3647, %v3654
      %v3662 = vmul.f32 %v3648, %v3657
      %v3663 = vmul.f32 %v3649, %v3656
      %3667 = vrot.lane.b32.xlu0 %v3661, 113
      %v3668 = vpop.permute.xlu0 %3667
      %3669 = vrot.lane.b32.xlu0 %v3662, 113
      %v3670 = vpop.permute.xlu0 %3669
      %3671 = vrot.lane.b32.xlu0 %v3663, 113
      %v3672 = vpop.permute.xlu0 %3671
      %v3673 = vsel %vm549, %v3668, %v3670
      %v3674 = vsel %vm549, %v3670, %v3672
      %3677 = vst [vmem:[#allocation3 + $0x30] sm:$0xf] %v3673
      %3678 = vst [vmem:[#allocation3 + $0x38] sm:$0xf] %v3674
      %v3679 = vld [vmem:[#allocation2 + $0x8] sm:$0xf]
      %v3680 = vld [vmem:[#allocation2 + $0x10] sm:$0xf]
      %v3681 = vld [vmem:[#allocation2 + $0x18] sm:$0xf]
      %v3682 = vld [vmem:[%s687] sm:$0xff]
      %v3684 = vcombine.high %v3682, %v3682
      %3685 = vrot.lane.b32.xlu0 %v3682, 16
      %v3686 = vpop.permute.xlu0 %3685
      %3687 = vrot.lane.b32.xlu0 %v3684, 16
      %v3688 = vpop.permute.xlu0 %3687
      %v3689 = vsel %vm531, %v3686, %v3688
      %v3693 = vmul.f32 %v3679, %v3686
      %v3694 = vmul.f32 %v3680, %v3689
      %v3695 = vmul.f32 %v3681, %v3688
      %v3699 = vrot.slane %v3693, 4
      %v3700 = vrot.slane %v3694, 4
      %v3701 = vrot.slane %v3695, 4
      %3702 = vrot.lane.b32.xlu0 %v3699, 112
      %v3703 = vpop.permute.xlu0 %3702
      %3704 = vrot.lane.b32.xlu0 %v3700, 112
      %v3705 = vpop.permute.xlu0 %3704
      %3706 = vrot.lane.b32.xlu0 %v3701, 112
      %v3707 = vpop.permute.xlu0 %3706
      %v3708 = vsel %vm511, %v3703, %v3705
      %v3709 = vsel %vm511, %v3705, %v3707
      %3712 = vst [vmem:[#allocation3 + $0x30] sm:$0xf0] %v3708
      %3713 = vst [vmem:[#allocation3 + $0x38] sm:$0xf0] %v3709
      %v3714 = vld [vmem:[#allocation2 + $0x8] sm:$0xf]
      %v3715 = vld [vmem:[#allocation2 + $0x10] sm:$0xf]
      %v3716 = vld [vmem:[#allocation2 + $0x18] sm:$0xf]
      %v3717 = vld [vmem:[%s723] sm:$0xff]
      %v3719 = vcombine.high %v3717, %v3717
      %3720 = vrot.lane.b32.xlu0 %v3717, 17
      %v3721 = vpop.permute.xlu0 %3720
      %3722 = vrot.lane.b32.xlu0 %v3719, 17
      %v3723 = vpop.permute.xlu0 %3722
      %v3724 = vsel %vm493, %v3721, %v3723
      %v3728 = vmul.f32 %v3714, %v3721
      %v3729 = vmul.f32 %v3715, %v3724
      %v3730 = vmul.f32 %v3716, %v3723
      %3734 = vrot.lane.b32.xlu0 %v3728, 111
      %v3735 = vpop.permute.xlu0 %3734
      %3736 = vrot.lane.b32.xlu0 %v3729, 111
      %v3737 = vpop.permute.xlu0 %3736
      %3738 = vrot.lane.b32.xlu0 %v3730, 111
      %v3739 = vpop.permute.xlu0 %3738
      %v3740 = vsel %vm476, %v3735, %v3737
      %v3741 = vsel %vm476, %v3737, %v3739
      %3744 = vst [vmem:[#allocation3 + $0x40] sm:$0xf] %v3740
      %3745 = vst [vmem:[#allocation3 + $0x48] sm:$0xf] %v3741
      %v3746 = vld [vmem:[#allocation2] sm:$0xf0]
      %v3747 = vld [vmem:[#allocation2 + $0x8] sm:$0xf0]
      %v3748 = vld [vmem:[#allocation2 + $0x10] sm:$0xf0]
      %v3749 = vld [vmem:[%s1] sm:$0xff]
      %v3751 = vcombine.low %v3749, %v3749
      %3752 = vrot.lane.b32.xlu0 %v3751, 111
      %v3753 = vpop.permute.xlu0 %3752
      %3754 = vrot.lane.b32.xlu0 %v3749, 111
      %v3755 = vpop.permute.xlu0 %3754
      %v3756 = vsel %vm476, %v3753, %v3755
      %v3760 = vmul.f32 %v3746, %v3753
      %v3761 = vmul.f32 %v3747, %v3756
      %v3762 = vmul.f32 %v3748, %v3755
      %3766 = vrot.lane.b32.xlu0 %v3760, 17
      %v3767 = vpop.permute.xlu0 %3766
      %3768 = vrot.lane.b32.xlu0 %v3761, 17
      %v3769 = vpop.permute.xlu0 %3768
      %3770 = vrot.lane.b32.xlu0 %v3762, 17
      %v3771 = vpop.permute.xlu0 %3770
      %v3772 = vsel %vm493, %v3767, %v3769
      %v3773 = vsel %vm493, %v3769, %v3771
      %3776 = vst [vmem:[#allocation3 + $0x40] sm:$0xf0] %v3772
      %3777 = vst [vmem:[#allocation3 + $0x48] sm:$0xf0] %v3773
      %v3778 = vld [vmem:[#allocation2] sm:$0xf0]
      %v3779 = vld [vmem:[#allocation2 + $0x8] sm:$0xf0]
      %v3780 = vld [vmem:[#allocation2 + $0x10] sm:$0xf0]
      %v3781 = vld [vmem:[%s503] sm:$0xff]
      %v3783 = vcombine.low %v3781, %v3781
      %3784 = vrot.lane.b32.xlu0 %v3783, 112
      %v3785 = vpop.permute.xlu0 %3784
      %3786 = vrot.lane.b32.xlu0 %v3781, 112
      %v3787 = vpop.permute.xlu0 %3786
      %v3788 = vsel %vm511, %v3785, %v3787
      %v3792 = vmul.f32 %v3778, %v3785
      %v3793 = vmul.f32 %v3779, %v3788
      %v3794 = vmul.f32 %v3780, %v3787
      %v3798 = vrot.slane %v3792, 4
      %v3799 = vrot.slane %v3793, 4
      %v3800 = vrot.slane %v3794, 4
      %3801 = vrot.lane.b32.xlu0 %v3798, 16
      %v3802 = vpop.permute.xlu0 %3801
      %3803 = vrot.lane.b32.xlu0 %v3799, 16
      %v3804 = vpop.permute.xlu0 %3803
      %3805 = vrot.lane.b32.xlu0 %v3800, 16
      %v3806 = vpop.permute.xlu0 %3805
      %v3807 = vsel %vm531, %v3802, %v3804
      %v3808 = vsel %vm531, %v3804, %v3806
      %3811 = vst [vmem:[#allocation3 + $0x50] sm:$0xf] %v3807
      %3812 = vst [vmem:[#allocation3 + $0x58] sm:$0xf] %v3808
      %v3813 = vld [vmem:[#allocation2] sm:$0xf0]
      %v3814 = vld [vmem:[#allocation2 + $0x8] sm:$0xf0]
      %v3815 = vld [vmem:[#allocation2 + $0x10] sm:$0xf0]
      %v3816 = vld [vmem:[%s541] sm:$0xff]
      %v3818 = vcombine.low %v3816, %v3816
      %3819 = vrot.lane.b32.xlu0 %v3818, 113
      %v3820 = vpop.permute.xlu0 %3819
      %3821 = vrot.lane.b32.xlu0 %v3816, 113
      %v3822 = vpop.permute.xlu0 %3821
      %v3823 = vsel %vm549, %v3820, %v3822
      %v3827 = vmul.f32 %v3813, %v3820
      %v3828 = vmul.f32 %v3814, %v3823
      %v3829 = vmul.f32 %v3815, %v3822
      %3833 = vrot.lane.b32.xlu0 %v3827, 15
      %v3834 = vpop.permute.xlu0 %3833
      %3835 = vrot.lane.b32.xlu0 %v3828, 15
      %v3836 = vpop.permute.xlu0 %3835
      %3837 = vrot.lane.b32.xlu0 %v3829, 15
      %v3838 = vpop.permute.xlu0 %3837
      %v3839 = vsel %vm566, %v3834, %v3836
      %v3840 = vsel %vm566, %v3836, %v3838
      %3843 = vst [vmem:[#allocation3 + $0x50] sm:$0xf0] %v3839
      %3844 = vst [vmem:[#allocation3 + $0x58] sm:$0xf0] %v3840
      %v3845 = vld [vmem:[#allocation2] sm:$0xf0]
      %v3846 = vld [vmem:[#allocation2 + $0x8] sm:$0xf0]
      %v3847 = vld [vmem:[#allocation2 + $0x10] sm:$0xf0]
      %v3848 = vld [vmem:[%s576] sm:$0xff]
      %v3850 = vcombine.low %v3848, %v3848
      %3851 = vrot.lane.b32.xlu0 %v3850, 127
      %v3852 = vpop.permute.xlu0 %3851
      %3853 = vrot.lane.b32.xlu0 %v3848, 127
      %v3854 = vpop.permute.xlu0 %3853
      %v3855 = vsel %vm584, %v3852, %v3854
      %v3859 = vmul.f32 %v3845, %v3852
      %v3860 = vmul.f32 %v3846, %v3855
      %v3861 = vmul.f32 %v3847, %v3854
      %v3865 = vrot.slane %v3859, 4
      %v3866 = vrot.slane %v3860, 4
      %v3867 = vrot.slane %v3861, 4
      %3868 = vrot.lane.b32.xlu0 %v3865, 1
      %v3869 = vpop.permute.xlu0 %3868
      %3870 = vrot.lane.b32.xlu0 %v3866, 1
      %v3871 = vpop.permute.xlu0 %3870
      %3872 = vrot.lane.b32.xlu0 %v3867, 1
      %v3873 = vpop.permute.xlu0 %3872
      %v3874 = vsel %vm604, %v3869, %v3871
      %v3875 = vsel %vm604, %v3871, %v3873
      %3878 = vst [vmem:[#allocation3 + $0x60] sm:$0xf] %v3874
      %3879 = vst [vmem:[#allocation3 + $0x68] sm:$0xf] %v3875
      %v3880 = vld [vmem:[#allocation2 + $0x8] sm:$0xf0]
      %v3881 = vld [vmem:[#allocation2 + $0x10] sm:$0xf0]
      %3882 = vst [vmem:[#allocation3 + $0x60] sm:$0xf0] %v3880
      %3883 = vst [vmem:[#allocation3 + $0x68] sm:$0xf0] %v3881
      %v3884 = vld [vmem:[#allocation2 + $0x8] sm:$0xf0]
      %v3885 = vld [vmem:[#allocation2 + $0x10] sm:$0xf0]
      %v3886 = vld [vmem:[#allocation2 + $0x18] sm:$0xf0]
      %v3887 = vld [vmem:[%s618] sm:$0xff]
      %v3889 = vcombine.low %v3887, %v3887
      %3890 = vrot.lane.b32.xlu0 %v3889, 1
      %v3891 = vpop.permute.xlu0 %3890
      %3892 = vrot.lane.b32.xlu0 %v3887, 1
      %v3893 = vpop.permute.xlu0 %3892
      %v3894 = vsel %vm604, %v3891, %v3893
      %v3898 = vmul.f32 %v3884, %v3891
      %v3899 = vmul.f32 %v3885, %v3894
      %v3900 = vmul.f32 %v3886, %v3893
      %v3904 = vrot.slane %v3898, 4
      %v3905 = vrot.slane %v3899, 4
      %v3906 = vrot.slane %v3900, 4
      %3907 = vrot.lane.b32.xlu0 %v3904, 127
      %v3908 = vpop.permute.xlu0 %3907
      %3909 = vrot.lane.b32.xlu0 %v3905, 127
      %v3910 = vpop.permute.xlu0 %3909
      %3911 = vrot.lane.b32.xlu0 %v3906, 127
      %v3912 = vpop.permute.xlu0 %3911
      %v3913 = vsel %vm584, %v3908, %v3910
      %v3914 = vsel %vm584, %v3910, %v3912
      %3917 = vst [vmem:[#allocation3 + $0x70] sm:$0xf] %v3913
      %3918 = vst [vmem:[#allocation3 + $0x78] sm:$0xf] %v3914
      %v3919 = vld [vmem:[#allocation2 + $0x8] sm:$0xf0]
      %v3920 = vld [vmem:[#allocation2 + $0x10] sm:$0xf0]
      %v3921 = vld [vmem:[#allocation2 + $0x18] sm:$0xf0]
      %v3922 = vld [vmem:[%s654] sm:$0xff]
      %v3924 = vcombine.low %v3922, %v3922
      %3925 = vrot.lane.b32.xlu0 %v3924, 15
      %v3926 = vpop.permute.xlu0 %3925
      %3927 = vrot.lane.b32.xlu0 %v3922, 15
      %v3928 = vpop.permute.xlu0 %3927
      %v3929 = vsel %vm566, %v3926, %v3928
      %v3933 = vmul.f32 %v3919, %v3926
      %v3934 = vmul.f32 %v3920, %v3929
      %v3935 = vmul.f32 %v3921, %v3928
      %3939 = vrot.lane.b32.xlu0 %v3933, 113
      %v3940 = vpop.permute.xlu0 %3939
      %3941 = vrot.lane.b32.xlu0 %v3934, 113
      %v3942 = vpop.permute.xlu0 %3941
      %3943 = vrot.lane.b32.xlu0 %v3935, 113
      %v3944 = vpop.permute.xlu0 %3943
      %v3945 = vsel %vm549, %v3940, %v3942
      %v3946 = vsel %vm549, %v3942, %v3944
      %3949 = vst [vmem:[#allocation3 + $0x70] sm:$0xf0] %v3945
      %3950 = vst [vmem:[#allocation3 + $0x78] sm:$0xf0] %v3946
      %v3951 = vld [vmem:[#allocation2 + $0x8] sm:$0xf0]
      %v3952 = vld [vmem:[#allocation2 + $0x10] sm:$0xf0]
      %v3953 = vld [vmem:[#allocation2 + $0x18] sm:$0xf0]
      %v3954 = vld [vmem:[%s687] sm:$0xff]
      %v3956 = vcombine.low %v3954, %v3954
      %3957 = vrot.lane.b32.xlu0 %v3956, 16
      %v3958 = vpop.permute.xlu0 %3957
      %3959 = vrot.lane.b32.xlu0 %v3954, 16
      %v3960 = vpop.permute.xlu0 %3959
      %v3961 = vsel %vm531, %v3958, %v3960
      %v3965 = vmul.f32 %v3951, %v3958
      %v3966 = vmul.f32 %v3952, %v3961
      %v3967 = vmul.f32 %v3953, %v3960
      %v3971 = vrot.slane %v3965, 4
      %v3972 = vrot.slane %v3966, 4
      %v3973 = vrot.slane %v3967, 4
      %3974 = vrot.lane.b32.xlu0 %v3971, 112
      %v3975 = vpop.permute.xlu0 %3974
      %3976 = vrot.lane.b32.xlu0 %v3972, 112
      %v3977 = vpop.permute.xlu0 %3976
      %3978 = vrot.lane.b32.xlu0 %v3973, 112
      %v3979 = vpop.permute.xlu0 %3978
      %v3980 = vsel %vm511, %v3975, %v3977
      %v3981 = vsel %vm511, %v3977, %v3979
      %3984 = vst [vmem:[#allocation3 + $0x80] sm:$0xf] %v3980
      %3985 = vst [vmem:[#allocation3 + $0x88] sm:$0xf] %v3981
      %v3986 = vld [vmem:[#allocation2 + $0x8] sm:$0xf0]
      %v3987 = vld [vmem:[#allocation2 + $0x10] sm:$0xf0]
      %v3988 = vld [vmem:[#allocation2 + $0x18] sm:$0xf0]
      %v3989 = vld [vmem:[%s723] sm:$0xff]
      %v3991 = vcombine.low %v3989, %v3989
      %3992 = vrot.lane.b32.xlu0 %v3991, 17
      %v3993 = vpop.permute.xlu0 %3992
      %3994 = vrot.lane.b32.xlu0 %v3989, 17
      %v3995 = vpop.permute.xlu0 %3994
      %v3996 = vsel %vm493, %v3993, %v3995
      %v4000 = vmul.f32 %v3986, %v3993
      %v4001 = vmul.f32 %v3987, %v3996
      %v4002 = vmul.f32 %v3988, %v3995
      %4006 = vrot.lane.b32.xlu0 %v4000, 111
      %v4007 = vpop.permute.xlu0 %4006
      %4008 = vrot.lane.b32.xlu0 %v4001, 111
      %v4009 = vpop.permute.xlu0 %4008
      %4010 = vrot.lane.b32.xlu0 %v4002, 111
      %v4011 = vpop.permute.xlu0 %4010
      %v4012 = vsel %vm476, %v4007, %v4009
      %v4013 = vsel %vm476, %v4009, %v4011
      %4016 = vst [vmem:[#allocation3 + $0x80] sm:$0xf0] %v4012
      %4017 = vst [vmem:[#allocation3 + $0x88] sm:$0xf0] %v4013
      %v4018 = vld [vmem:[#allocation2 + $0x20] sm:$0xf]
      %v4019 = vld [vmem:[#allocation2 + $0x28] sm:$0xf]
      %v4020 = vld [vmem:[#allocation2 + $0x30] sm:$0xf]
      %v4021 = vld [vmem:[%s1] sm:$0xff]
      %v4023 = vcombine.high %v4021, %v4021
      %4024 = vrot.lane.b32.xlu0 %v4021, 111
      %v4025 = vpop.permute.xlu0 %4024
      %4026 = vrot.lane.b32.xlu0 %v4023, 111
      %v4027 = vpop.permute.xlu0 %4026
      %v4028 = vsel %vm476, %v4025, %v4027
      %v4032 = vmul.f32 %v4018, %v4025
      %v4033 = vmul.f32 %v4019, %v4028
      %v4034 = vmul.f32 %v4020, %v4027
      %4038 = vrot.lane.b32.xlu0 %v4032, 17
      %v4039 = vpop.permute.xlu0 %4038
      %4040 = vrot.lane.b32.xlu0 %v4033, 17
      %v4041 = vpop.permute.xlu0 %4040
      %4042 = vrot.lane.b32.xlu0 %v4034, 17
      %v4043 = vpop.permute.xlu0 %4042
      %v4044 = vsel %vm493, %v4039, %v4041
      %v4045 = vsel %vm493, %v4041, %v4043
      %4048 = vst [vmem:[#allocation3 + $0x90] sm:$0xf] %v4044
      %4049 = vst [vmem:[#allocation3 + $0x98] sm:$0xf] %v4045
      %v4050 = vld [vmem:[#allocation2 + $0x20] sm:$0xf]
      %v4051 = vld [vmem:[#allocation2 + $0x28] sm:$0xf]
      %v4052 = vld [vmem:[#allocation2 + $0x30] sm:$0xf]
      %v4053 = vld [vmem:[%s503] sm:$0xff]
      %v4055 = vcombine.high %v4053, %v4053
      %4056 = vrot.lane.b32.xlu0 %v4053, 112
      %v4057 = vpop.permute.xlu0 %4056
      %4058 = vrot.lane.b32.xlu0 %v4055, 112
      %v4059 = vpop.permute.xlu0 %4058
      %v4060 = vsel %vm511, %v4057, %v4059
      %v4064 = vmul.f32 %v4050, %v4057
      %v4065 = vmul.f32 %v4051, %v4060
      %v4066 = vmul.f32 %v4052, %v4059
      %v4070 = vrot.slane %v4064, 4
      %v4071 = vrot.slane %v4065, 4
      %v4072 = vrot.slane %v4066, 4
      %4073 = vrot.lane.b32.xlu0 %v4070, 16
      %v4074 = vpop.permute.xlu0 %4073
      %4075 = vrot.lane.b32.xlu0 %v4071, 16
      %v4076 = vpop.permute.xlu0 %4075
      %4077 = vrot.lane.b32.xlu0 %v4072, 16
      %v4078 = vpop.permute.xlu0 %4077
      %v4079 = vsel %vm531, %v4074, %v4076
      %v4080 = vsel %vm531, %v4076, %v4078
      %4083 = vst [vmem:[#allocation3 + $0x90] sm:$0xf0] %v4079
      %4084 = vst [vmem:[#allocation3 + $0x98] sm:$0xf0] %v4080
      %v4085 = vld [vmem:[#allocation2 + $0x20] sm:$0xf]
      %v4086 = vld [vmem:[#allocation2 + $0x28] sm:$0xf]
      %v4087 = vld [vmem:[#allocation2 + $0x30] sm:$0xf]
      %v4088 = vld [vmem:[%s541] sm:$0xff]
      %v4090 = vcombine.high %v4088, %v4088
      %4091 = vrot.lane.b32.xlu0 %v4088, 113
      %v4092 = vpop.permute.xlu0 %4091
      %4093 = vrot.lane.b32.xlu0 %v4090, 113
      %v4094 = vpop.permute.xlu0 %4093
      %v4095 = vsel %vm549, %v4092, %v4094
      %v4099 = vmul.f32 %v4085, %v4092
      %v4100 = vmul.f32 %v4086, %v4095
      %v4101 = vmul.f32 %v4087, %v4094
      %4105 = vrot.lane.b32.xlu0 %v4099, 15
      %v4106 = vpop.permute.xlu0 %4105
      %4107 = vrot.lane.b32.xlu0 %v4100, 15
      %v4108 = vpop.permute.xlu0 %4107
      %4109 = vrot.lane.b32.xlu0 %v4101, 15
      %v4110 = vpop.permute.xlu0 %4109
      %v4111 = vsel %vm566, %v4106, %v4108
      %v4112 = vsel %vm566, %v4108, %v4110
      %4115 = vst [vmem:[#allocation3 + $0xa0] sm:$0xf] %v4111
      %4116 = vst [vmem:[#allocation3 + $0xa8] sm:$0xf] %v4112
      %v4117 = vld [vmem:[#allocation2 + $0x20] sm:$0xf]
      %v4118 = vld [vmem:[#allocation2 + $0x28] sm:$0xf]
      %v4119 = vld [vmem:[#allocation2 + $0x30] sm:$0xf]
      %v4120 = vld [vmem:[%s576] sm:$0xff]
      %v4122 = vcombine.high %v4120, %v4120
      %4123 = vrot.lane.b32.xlu0 %v4120, 127
      %v4124 = vpop.permute.xlu0 %4123
      %4125 = vrot.lane.b32.xlu0 %v4122, 127
      %v4126 = vpop.permute.xlu0 %4125
      %v4127 = vsel %vm584, %v4124, %v4126
      %v4131 = vmul.f32 %v4117, %v4124
      %v4132 = vmul.f32 %v4118, %v4127
      %v4133 = vmul.f32 %v4119, %v4126
      %v4137 = vrot.slane %v4131, 4
      %v4138 = vrot.slane %v4132, 4
      %v4139 = vrot.slane %v4133, 4
      %4140 = vrot.lane.b32.xlu0 %v4137, 1
      %v4141 = vpop.permute.xlu0 %4140
      %4142 = vrot.lane.b32.xlu0 %v4138, 1
      %v4143 = vpop.permute.xlu0 %4142
      %4144 = vrot.lane.b32.xlu0 %v4139, 1
      %v4145 = vpop.permute.xlu0 %4144
      %v4146 = vsel %vm604, %v4141, %v4143
      %v4147 = vsel %vm604, %v4143, %v4145
      %4150 = vst [vmem:[#allocation3 + $0xa0] sm:$0xf0] %v4146
      %4151 = vst [vmem:[#allocation3 + $0xa8] sm:$0xf0] %v4147
      %v4152 = vld [vmem:[#allocation2 + $0x28] sm:$0xf]
      %v4153 = vld [vmem:[#allocation2 + $0x30] sm:$0xf]
      %4154 = vst [vmem:[#allocation3 + $0xb0] sm:$0xf] %v4152
      %4155 = vst [vmem:[#allocation3 + $0xb8] sm:$0xf] %v4153
      %v4156 = vld [vmem:[#allocation2 + $0x28] sm:$0xf]
      %v4157 = vld [vmem:[#allocation2 + $0x30] sm:$0xf]
      %v4158 = vld [vmem:[#allocation2 + $0x38] sm:$0xf]
      %v4159 = vld [vmem:[%s618] sm:$0xff]
      %v4161 = vcombine.high %v4159, %v4159
      %4162 = vrot.lane.b32.xlu0 %v4159, 1
      %v4163 = vpop.permute.xlu0 %4162
      %4164 = vrot.lane.b32.xlu0 %v4161, 1
      %v4165 = vpop.permute.xlu0 %4164
      %v4166 = vsel %vm604, %v4163, %v4165
      %v4170 = vmul.f32 %v4156, %v4163
      %v4171 = vmul.f32 %v4157, %v4166
      %v4172 = vmul.f32 %v4158, %v4165
      %v4176 = vrot.slane %v4170, 4
      %v4177 = vrot.slane %v4171, 4
      %v4178 = vrot.slane %v4172, 4
      %4179 = vrot.lane.b32.xlu0 %v4176, 127
      %v4180 = vpop.permute.xlu0 %4179
      %4181 = vrot.lane.b32.xlu0 %v4177, 127
      %v4182 = vpop.permute.xlu0 %4181
      %4183 = vrot.lane.b32.xlu0 %v4178, 127
      %v4184 = vpop.permute.xlu0 %4183
      %v4185 = vsel %vm584, %v4180, %v4182
      %v4186 = vsel %vm584, %v4182, %v4184
      %4189 = vst [vmem:[#allocation3 + $0xb0] sm:$0xf0] %v4185
      %4190 = vst [vmem:[#allocation3 + $0xb8] sm:$0xf0] %v4186
      %v4191 = vld [vmem:[#allocation2 + $0x28] sm:$0xf]
      %v4192 = vld [vmem:[#allocation2 + $0x30] sm:$0xf]
      %v4193 = vld [vmem:[#allocation2 + $0x38] sm:$0xf]
      %v4194 = vld [vmem:[%s654] sm:$0xff]
      %v4196 = vcombine.high %v4194, %v4194
      %4197 = vrot.lane.b32.xlu0 %v4194, 15
      %v4198 = vpop.permute.xlu0 %4197
      %4199 = vrot.lane.b32.xlu0 %v4196, 15
      %v4200 = vpop.permute.xlu0 %4199
      %v4201 = vsel %vm566, %v4198, %v4200
      %v4205 = vmul.f32 %v4191, %v4198
      %v4206 = vmul.f32 %v4192, %v4201
      %v4207 = vmul.f32 %v4193, %v4200
      %4211 = vrot.lane.b32.xlu0 %v4205, 113
      %v4212 = vpop.permute.xlu0 %4211
      %4213 = vrot.lane.b32.xlu0 %v4206, 113
      %v4214 = vpop.permute.xlu0 %4213
      %4215 = vrot.lane.b32.xlu0 %v4207, 113
      %v4216 = vpop.permute.xlu0 %4215
      %v4217 = vsel %vm549, %v4212, %v4214
      %v4218 = vsel %vm549, %v4214, %v4216
      %4221 = vst [vmem:[#allocation3 + $0xc0] sm:$0xf] %v4217
      %4222 = vst [vmem:[#allocation3 + $0xc8] sm:$0xf] %v4218
      %v4223 = vld [vmem:[#allocation2 + $0x28] sm:$0xf]
      %v4224 = vld [vmem:[#allocation2 + $0x30] sm:$0xf]
      %v4225 = vld [vmem:[#allocation2 + $0x38] sm:$0xf]
      %v4226 = vld [vmem:[%s687] sm:$0xff]
      %v4228 = vcombine.high %v4226, %v4226
      %4229 = vrot.lane.b32.xlu0 %v4226, 16
      %v4230 = vpop.permute.xlu0 %4229
      %4231 = vrot.lane.b32.xlu0 %v4228, 16
      %v4232 = vpop.permute.xlu0 %4231
      %v4233 = vsel %vm531, %v4230, %v4232
      %v4237 = vmul.f32 %v4223, %v4230
      %v4238 = vmul.f32 %v4224, %v4233
      %v4239 = vmul.f32 %v4225, %v4232
      %v4243 = vrot.slane %v4237, 4
      %v4244 = vrot.slane %v4238, 4
      %v4245 = vrot.slane %v4239, 4
      %4246 = vrot.lane.b32.xlu0 %v4243, 112
      %v4247 = vpop.permute.xlu0 %4246
      %4248 = vrot.lane.b32.xlu0 %v4244, 112
      %v4249 = vpop.permute.xlu0 %4248
      %4250 = vrot.lane.b32.xlu0 %v4245, 112
      %v4251 = vpop.permute.xlu0 %4250
      %v4252 = vsel %vm511, %v4247, %v4249
      %v4253 = vsel %vm511, %v4249, %v4251
      %4256 = vst [vmem:[#allocation3 + $0xc0] sm:$0xf0] %v4252
      %4257 = vst [vmem:[#allocation3 + $0xc8] sm:$0xf0] %v4253
      %v4258 = vld [vmem:[#allocation2 + $0x28] sm:$0xf]
      %v4259 = vld [vmem:[#allocation2 + $0x30] sm:$0xf]
      %v4260 = vld [vmem:[#allocation2 + $0x38] sm:$0xf]
      %v4261 = vld [vmem:[%s723] sm:$0xff]
      %v4263 = vcombine.high %v4261, %v4261
      %4264 = vrot.lane.b32.xlu0 %v4261, 17
      %v4265 = vpop.permute.xlu0 %4264
      %4266 = vrot.lane.b32.xlu0 %v4263, 17
      %v4267 = vpop.permute.xlu0 %4266
      %v4268 = vsel %vm493, %v4265, %v4267
      %v4272 = vmul.f32 %v4258, %v4265
      %v4273 = vmul.f32 %v4259, %v4268
      %v4274 = vmul.f32 %v4260, %v4267
      %4278 = vrot.lane.b32.xlu0 %v4272, 111
      %v4279 = vpop.permute.xlu0 %4278
      %4280 = vrot.lane.b32.xlu0 %v4273, 111
      %v4281 = vpop.permute.xlu0 %4280
      %4282 = vrot.lane.b32.xlu0 %v4274, 111
      %v4283 = vpop.permute.xlu0 %4282
      %v4284 = vsel %vm476, %v4279, %v4281
      %v4285 = vsel %vm476, %v4281, %v4283
      %4288 = vst [vmem:[#allocation3 + $0xd0] sm:$0xf] %v4284
      %4289 = vst [vmem:[#allocation3 + $0xd8] sm:$0xf] %v4285
      %v4290 = vld [vmem:[#allocation2 + $0x20] sm:$0xf0]
      %v4291 = vld [vmem:[#allocation2 + $0x28] sm:$0xf0]
      %v4292 = vld [vmem:[#allocation2 + $0x30] sm:$0xf0]
      %v4293 = vld [vmem:[%s1] sm:$0xff]
      %v4295 = vcombine.low %v4293, %v4293
      %4296 = vrot.lane.b32.xlu0 %v4295, 111
      %v4297 = vpop.permute.xlu0 %4296
      %4298 = vrot.lane.b32.xlu0 %v4293, 111
      %v4299 = vpop.permute.xlu0 %4298
      %v4300 = vsel %vm476, %v4297, %v4299
      %v4304 = vmul.f32 %v4290, %v4297
      %v4305 = vmul.f32 %v4291, %v4300
      %v4306 = vmul.f32 %v4292, %v4299
      %4310 = vrot.lane.b32.xlu0 %v4304, 17
      %v4311 = vpop.permute.xlu0 %4310
      %4312 = vrot.lane.b32.xlu0 %v4305, 17
      %v4313 = vpop.permute.xlu0 %4312
      %4314 = vrot.lane.b32.xlu0 %v4306, 17
      %v4315 = vpop.permute.xlu0 %4314
      %v4316 = vsel %vm493, %v4311, %v4313
      %v4317 = vsel %vm493, %v4313, %v4315
      %4320 = vst [vmem:[#allocation3 + $0xd0] sm:$0xf0] %v4316
      %4321 = vst [vmem:[#allocation3 + $0xd8] sm:$0xf0] %v4317
      %v4322 = vld [vmem:[#allocation2 + $0x20] sm:$0xf0]
      %v4323 = vld [vmem:[#allocation2 + $0x28] sm:$0xf0]
      %v4324 = vld [vmem:[#allocation2 + $0x30] sm:$0xf0]
      %v4325 = vld [vmem:[%s503] sm:$0xff]
      %v4327 = vcombine.low %v4325, %v4325
      %4328 = vrot.lane.b32.xlu0 %v4327, 112
      %v4329 = vpop.permute.xlu0 %4328
      %4330 = vrot.lane.b32.xlu0 %v4325, 112
      %v4331 = vpop.permute.xlu0 %4330
      %v4332 = vsel %vm511, %v4329, %v4331
      %v4336 = vmul.f32 %v4322, %v4329
      %v4337 = vmul.f32 %v4323, %v4332
      %v4338 = vmul.f32 %v4324, %v4331
      %v4342 = vrot.slane %v4336, 4
      %v4343 = vrot.slane %v4337, 4
      %v4344 = vrot.slane %v4338, 4
      %4345 = vrot.lane.b32.xlu0 %v4342, 16
      %v4346 = vpop.permute.xlu0 %4345
      %4347 = vrot.lane.b32.xlu0 %v4343, 16
      %v4348 = vpop.permute.xlu0 %4347
      %4349 = vrot.lane.b32.xlu0 %v4344, 16
      %v4350 = vpop.permute.xlu0 %4349
      %v4351 = vsel %vm531, %v4346, %v4348
      %v4352 = vsel %vm531, %v4348, %v4350
      %4355 = vst [vmem:[#allocation3 + $0xe0] sm:$0xf] %v4351
      %4356 = vst [vmem:[#allocation3 + $0xe8] sm:$0xf] %v4352
      %v4357 = vld [vmem:[#allocation2 + $0x20] sm:$0xf0]
      %v4358 = vld [vmem:[#allocation2 + $0x28] sm:$0xf0]
      %v4359 = vld [vmem:[#allocation2 + $0x30] sm:$0xf0]
      %v4360 = vld [vmem:[%s541] sm:$0xff]
      %v4362 = vcombine.low %v4360, %v4360
      %4363 = vrot.lane.b32.xlu0 %v4362, 113
      %v4364 = vpop.permute.xlu0 %4363
      %4365 = vrot.lane.b32.xlu0 %v4360, 113
      %v4366 = vpop.permute.xlu0 %4365
      %v4367 = vsel %vm549, %v4364, %v4366
      %v4371 = vmul.f32 %v4357, %v4364
      %v4372 = vmul.f32 %v4358, %v4367
      %v4373 = vmul.f32 %v4359, %v4366
      %4377 = vrot.lane.b32.xlu0 %v4371, 15
      %v4378 = vpop.permute.xlu0 %4377
      %4379 = vrot.lane.b32.xlu0 %v4372, 15
      %v4380 = vpop.permute.xlu0 %4379
      %4381 = vrot.lane.b32.xlu0 %v4373, 15
      %v4382 = vpop.permute.xlu0 %4381
      %v4383 = vsel %vm566, %v4378, %v4380
      %v4384 = vsel %vm566, %v4380, %v4382
      %4387 = vst [vmem:[#allocation3 + $0xe0] sm:$0xf0] %v4383
      %4388 = vst [vmem:[#allocation3 + $0xe8] sm:$0xf0] %v4384
      %v4389 = vld [vmem:[#allocation2 + $0x20] sm:$0xf0]
      %v4390 = vld [vmem:[#allocation2 + $0x28] sm:$0xf0]
      %v4391 = vld [vmem:[#allocation2 + $0x30] sm:$0xf0]
      %v4392 = vld [vmem:[%s576] sm:$0xff]
      %v4394 = vcombine.low %v4392, %v4392
      %4395 = vrot.lane.b32.xlu0 %v4394, 127
      %v4396 = vpop.permute.xlu0 %4395
      %4397 = vrot.lane.b32.xlu0 %v4392, 127
      %v4398 = vpop.permute.xlu0 %4397
      %v4399 = vsel %vm584, %v4396, %v4398
      %v4403 = vmul.f32 %v4389, %v4396
      %v4404 = vmul.f32 %v4390, %v4399
      %v4405 = vmul.f32 %v4391, %v4398
      %v4409 = vrot.slane %v4403, 4
      %v4410 = vrot.slane %v4404, 4
      %v4411 = vrot.slane %v4405, 4
      %4412 = vrot.lane.b32.xlu0 %v4409, 1
      %v4413 = vpop.permute.xlu0 %4412
      %4414 = vrot.lane.b32.xlu0 %v4410, 1
      %v4415 = vpop.permute.xlu0 %4414
      %4416 = vrot.lane.b32.xlu0 %v4411, 1
      %v4417 = vpop.permute.xlu0 %4416
      %v4418 = vsel %vm604, %v4413, %v4415
      %v4419 = vsel %vm604, %v4415, %v4417
      %4422 = vst [vmem:[#allocation3 + $0xf0] sm:$0xf] %v4418
      %4423 = vst [vmem:[#allocation3 + $0xf8] sm:$0xf] %v4419
      %v4424 = vld [vmem:[#allocation2 + $0x28] sm:$0xf0]
      %v4425 = vld [vmem:[#allocation2 + $0x30] sm:$0xf0]
      %4426 = vst [vmem:[#allocation3 + $0xf0] sm:$0xf0] %v4424
      %4427 = vst [vmem:[#allocation3 + $0xf8] sm:$0xf0] %v4425
      %v4428 = vld [vmem:[#allocation2 + $0x28] sm:$0xf0]
      %v4429 = vld [vmem:[#allocation2 + $0x30] sm:$0xf0]
      %v4430 = vld [vmem:[#allocation2 + $0x38] sm:$0xf0]
      %v4431 = vld [vmem:[%s618] sm:$0xff]
      %v4433 = vcombine.low %v4431, %v4431
      %4434 = vrot.lane.b32.xlu0 %v4433, 1
      %v4435 = vpop.permute.xlu0 %4434
      %4436 = vrot.lane.b32.xlu0 %v4431, 1
      %v4437 = vpop.permute.xlu0 %4436
      %v4438 = vsel %vm604, %v4435, %v4437
      %v4442 = vmul.f32 %v4428, %v4435
      %v4443 = vmul.f32 %v4429, %v4438
      %v4444 = vmul.f32 %v4430, %v4437
      %v4448 = vrot.slane %v4442, 4
      %v4449 = vrot.slane %v4443, 4
      %v4450 = vrot.slane %v4444, 4
      %4451 = vrot.lane.b32.xlu0 %v4448, 127
      %v4452 = vpop.permute.xlu0 %4451
      %4453 = vrot.lane.b32.xlu0 %v4449, 127
      %v4454 = vpop.permute.xlu0 %4453
      %4455 = vrot.lane.b32.xlu0 %v4450, 127
      %v4456 = vpop.permute.xlu0 %4455
      %v4457 = vsel %vm584, %v4452, %v4454
      %v4458 = vsel %vm584, %v4454, %v4456
      %4461 = vst [vmem:[#allocation3 + $0x100] sm:$0xf] %v4457
      %4462 = vst [vmem:[#allocation3 + $0x108] sm:$0xf] %v4458
      %v4463 = vld [vmem:[#allocation2 + $0x28] sm:$0xf0]
      %v4464 = vld [vmem:[#allocation2 + $0x30] sm:$0xf0]
      %v4465 = vld [vmem:[#allocation2 + $0x38] sm:$0xf0]
      %v4466 = vld [vmem:[%s654] sm:$0xff]
      %v4468 = vcombine.low %v4466, %v4466
      %4469 = vrot.lane.b32.xlu0 %v4468, 15
      %v4470 = vpop.permute.xlu0 %4469
      %4471 = vrot.lane.b32.xlu0 %v4466, 15
      %v4472 = vpop.permute.xlu0 %4471
      %v4473 = vsel %vm566, %v4470, %v4472
      %v4477 = vmul.f32 %v4463, %v4470
      %v4478 = vmul.f32 %v4464, %v4473
      %v4479 = vmul.f32 %v4465, %v4472
      %4483 = vrot.lane.b32.xlu0 %v4477, 113
      %v4484 = vpop.permute.xlu0 %4483
      %4485 = vrot.lane.b32.xlu0 %v4478, 113
      %v4486 = vpop.permute.xlu0 %4485
      %4487 = vrot.lane.b32.xlu0 %v4479, 113
      %v4488 = vpop.permute.xlu0 %4487
      %v4489 = vsel %vm549, %v4484, %v4486
      %v4490 = vsel %vm549, %v4486, %v4488
      %4493 = vst [vmem:[#allocation3 + $0x100] sm:$0xf0] %v4489
      %4494 = vst [vmem:[#allocation3 + $0x108] sm:$0xf0] %v4490
      %v4495 = vld [vmem:[#allocation2 + $0x28] sm:$0xf0]
      %v4496 = vld [vmem:[#allocation2 + $0x30] sm:$0xf0]
      %v4497 = vld [vmem:[#allocation2 + $0x38] sm:$0xf0]
      %v4498 = vld [vmem:[%s687] sm:$0xff]
      %v4500 = vcombine.low %v4498, %v4498
      %4501 = vrot.lane.b32.xlu0 %v4500, 16
      %v4502 = vpop.permute.xlu0 %4501
      %4503 = vrot.lane.b32.xlu0 %v4498, 16
      %v4504 = vpop.permute.xlu0 %4503
      %v4505 = vsel %vm531, %v4502, %v4504
      %v4509 = vmul.f32 %v4495, %v4502
      %v4510 = vmul.f32 %v4496, %v4505
      %v4511 = vmul.f32 %v4497, %v4504
      %v4515 = vrot.slane %v4509, 4
      %v4516 = vrot.slane %v4510, 4
      %v4517 = vrot.slane %v4511, 4
      %4518 = vrot.lane.b32.xlu0 %v4515, 112
      %v4519 = vpop.permute.xlu0 %4518
      %4520 = vrot.lane.b32.xlu0 %v4516, 112
      %v4521 = vpop.permute.xlu0 %4520
      %4522 = vrot.lane.b32.xlu0 %v4517, 112
      %v4523 = vpop.permute.xlu0 %4522
      %v4524 = vsel %vm511, %v4519, %v4521
      %v4525 = vsel %vm511, %v4521, %v4523
      %4528 = vst [vmem:[#allocation3 + $0x110] sm:$0xf] %v4524
      %4529 = vst [vmem:[#allocation3 + $0x118] sm:$0xf] %v4525
      %v4530 = vld [vmem:[#allocation2 + $0x28] sm:$0xf0]
      %v4531 = vld [vmem:[#allocation2 + $0x30] sm:$0xf0]
      %v4532 = vld [vmem:[#allocation2 + $0x38] sm:$0xf0]
      %v4533 = vld [vmem:[%s723] sm:$0xff]
      %v4535 = vcombine.low %v4533, %v4533
      %4536 = vrot.lane.b32.xlu0 %v4535, 17
      %v4537 = vpop.permute.xlu0 %4536
      %4538 = vrot.lane.b32.xlu0 %v4533, 17
      %v4539 = vpop.permute.xlu0 %4538
      %v4540 = vsel %vm493, %v4537, %v4539
      %v4544 = vmul.f32 %v4530, %v4537
      %v4545 = vmul.f32 %v4531, %v4540
      %v4546 = vmul.f32 %v4532, %v4539
      %4550 = vrot.lane.b32.xlu0 %v4544, 111
      %v4551 = vpop.permute.xlu0 %4550
      %4552 = vrot.lane.b32.xlu0 %v4545, 111
      %v4553 = vpop.permute.xlu0 %4552
      %4554 = vrot.lane.b32.xlu0 %v4546, 111
      %v4555 = vpop.permute.xlu0 %4554
      %v4556 = vsel %vm476, %v4551, %v4553
      %v4557 = vsel %vm476, %v4553, %v4555
      %4560 = vst [vmem:[#allocation3 + $0x110] sm:$0xf0] %v4556
      %4561 = vst [vmem:[#allocation3 + $0x118] sm:$0xf0] %v4557
      %s4562 = scalar_lea.vmem %s6, 64
      %v4563 = vld [vmem:[%s4562] sm:$0xff]
      %v4564 = vld [vmem:[%s4562 + $0x8] sm:$0xff]
      %v4565 = vld [vmem:[%s4562 + $0x10] sm:$0xff]
      %v4566 = vld [vmem:[%s4562 + $0x18] sm:$0xff]
      %v4567 = vld [vmem:[#allocation3] sm:$0xff]
      %v4568 = vld [vmem:[#allocation3 + $0x8] sm:$0xff]
      %v4569 = vld [vmem:[#allocation3 + $0x10] sm:$0xff]
      %v4570 = vld [vmem:[#allocation3 + $0x18] sm:$0xff]
      %v4571 = vld [vmem:[#allocation3 + $0x20] sm:$0xff]
      %v4572 = vld [vmem:[#allocation3 + $0x28] sm:$0xff]
      %v4573 = vld [vmem:[#allocation3 + $0x30] sm:$0xff]
      %v4574 = vld [vmem:[#allocation3 + $0x38] sm:$0xff]
      %v4575 = vld [vmem:[#allocation3 + $0x40] sm:$0xff]
      %v4576 = vld [vmem:[#allocation3 + $0x48] sm:$0xff]
      %v4577 = vld [vmem:[#allocation3 + $0x50] sm:$0xff]
      %v4578 = vld [vmem:[#allocation3 + $0x58] sm:$0xff]
      %v4579 = vld [vmem:[#allocation3 + $0x60] sm:$0xff]
      %v4580 = vld [vmem:[#allocation3 + $0x68] sm:$0xff]
      %v4581 = vld [vmem:[#allocation3 + $0x70] sm:$0xff]
      %v4582 = vld [vmem:[#allocation3 + $0x78] sm:$0xff]
      %v4583 = vld [vmem:[#allocation3 + $0x80] sm:$0xff]
      %v4584 = vld [vmem:[#allocation3 + $0x88] sm:$0xff]
      %v4585 = vld [vmem:[#allocation3 + $0x90] sm:$0xff]
      %v4586 = vld [vmem:[#allocation3 + $0x98] sm:$0xff]
      %v4587 = vld [vmem:[#allocation3 + $0xa0] sm:$0xff]
      %v4588 = vld [vmem:[#allocation3 + $0xa8] sm:$0xff]
      %v4589 = vld [vmem:[#allocation3 + $0xb0] sm:$0xff]
      %v4590 = vld [vmem:[#allocation3 + $0xb8] sm:$0xff]
      %v4591 = vld [vmem:[#allocation3 + $0xc0] sm:$0xff]
      %v4592 = vld [vmem:[#allocation3 + $0xc8] sm:$0xff]
      %v4593 = vld [vmem:[#allocation3 + $0xd0] sm:$0xff]
      %v4594 = vld [vmem:[#allocation3 + $0xd8] sm:$0xff]
      %v4595 = vld [vmem:[#allocation3 + $0xe0] sm:$0xff]
      %v4596 = vld [vmem:[#allocation3 + $0xe8] sm:$0xff]
      %v4597 = vld [vmem:[#allocation3 + $0xf0] sm:$0xff]
      %v4598 = vld [vmem:[#allocation3 + $0xf8] sm:$0xff]
      %v4599 = vld [vmem:[#allocation3 + $0x100] sm:$0xff]
      %v4600 = vld [vmem:[#allocation3 + $0x108] sm:$0xff]
      %v4601 = vld [vmem:[#allocation3 + $0x110] sm:$0xff]
      %v4602 = vld [vmem:[#allocation3 + $0x118] sm:$0xff]
      %s4603 = scalar_lea.vmem %s7, 32
      %v4604 = vld [vmem:[%s4603] sm:$0xff]
      %v4605 = vld [vmem:[%s4603 + $0x8] sm:$0xff]
      %4607 = vset.pattern.permute.xlu0 0
      %4608 = vperm.xlu0 %4607, %v4604
      %v4609 = vpop.permute.xlu0 %4608
      %4612 = vset.pattern.permute.xlu0 0
      %4613 = vperm.xlu0 %4612, %v4605
      %v4614 = vpop.permute.xlu0 %4613
      %v4617 = vsel %vm531, %v4564, 0
      %v4620 = vsel %vm531, %v4566, 0
      %4622 = vmatprep.subr.mxu0 %v4568
      %4623 = vmatpush1.msra.mxu0 %v4567
      %4624 = vmatprep.subr.mxu0 %v4570
      %4625 = vmatpush1.msra.mxu0 %v4569
      %4626 = vmatprep.subr.mxu0 %v4572
      %4627 = vmatpush1.msra.mxu0 %v4571
      %4628 = vmatprep.subr.mxu0 %v4574
      %4629 = vmatpush1.msra.mxu0 %v4573
      %4630 = vmatprep.subr.mxu0 %v4576
      %4631 = vmatpush1.msra.mxu0 %v4575
      %4632 = vmatprep.subr.mxu0 %v4578
      %4633 = vmatpush1.msra.mxu0 %v4577
      %4634 = vmatprep.subr.mxu0 %v4580
      %4635 = vmatpush1.msra.mxu0 %v4579
      %4636 = vmatprep.subr.mxu0 %v4582
      %4637 = vmatpush1.msra.mxu0 %v4581
      %4638 = vmatprep.subr.mxu0 %v4584
      %4639 = vmatpush1.msra.mxu0 %v4583
      %4640 = vmatprep.subr.mxu0 %v4586
      %4641 = vmatpush1.msra.mxu0 %v4585
      %4642 = vmatprep.subr.mxu0 %v4588
      %4643 = vmatpush1.msra.mxu0 %v4587
      %4644 = vmatprep.subr.mxu0 %v4590
      %4645 = vmatpush1.msra.mxu0 %v4589
      %4646 = vmatprep.subr.mxu0 %v4592
      %4647 = vmatpush1.msra.mxu0 %v4591
      %4648 = vmatprep.subr.mxu0 %v4594
      %4649 = vmatpush1.msra.mxu0 %v4593
      %4650 = vmatprep.subr.mxu0 %v4596
      %4651 = vmatpush1.msra.mxu0 %v4595
      %4652 = vmatprep.subr.mxu0 %v4598
      %4653 = vmatpush1.msra.mxu0 %v4597
      %4654 = vmatprep.subr.mxu0 %v4600
      %4655 = vmatpush1.msra.mxu0 %v4599
      %4656 = vmatprep.subr.mxu0 %v4602
      %4657 = vmatpush1.msra.mxu0 %v4601
      %4658 = vmatprep.subr.mxu0 0.0
      %4659 = vmatpush1.msra.mxu0 0.0
      %4660 = vmatprep.subr.mxu0 0.0
      %4661 = vmatpush1.msra.mxu0 0.0
      %4662 = vmatprep.subr.mxu0 0.0
      %4663 = vmatpush1.msra.mxu0 0.0
      %4664 = vmatprep.subr.mxu0 0.0
      %4665 = vmatpush1.msra.mxu0 0.0
      %4666 = vmatprep.subr.mxu0 0.0
      %4667 = vmatpush1.msra.mxu0 0.0
      %4668 = vmatprep.subr.mxu0 0.0
      %4669 = vmatpush1.msra.mxu0 0.0
      %4670 = vmatprep.subr.mxu0 0.0
      %4671 = vmatpush1.msra.mxu0 0.0
      %4672 = vmatprep.subr.mxu0 0.0
      %4673 = vmatpush1.msra.mxu0 0.0
      %4674 = vmatprep.subr.mxu0 0.0
      %4675 = vmatpush1.msra.mxu0 0.0
      %4676 = vmatprep.subr.mxu0 0.0
      %4677 = vmatpush1.msra.mxu0 0.0
      %4678 = vmatprep.subr.mxu0 0.0
      %4679 = vmatpush1.msra.mxu0 0.0
      %4680 = vmatprep.subr.mxu0 0.0
      %4681 = vmatpush1.msra.mxu0 0.0
      %4682 = vmatprep.subr.mxu0 0.0
      %4683 = vmatpush1.msra.mxu0 0.0
      %4684 = vmatprep.subr.mxu0 0.0
      %4685 = vmatpush1.msra.mxu0 0.0
      %4686 = vmatprep.mubr.f32.mxu0 %v4617
      %4687 = vmatmul.mubr.f32.gmra.mrb[0].mxu0 %v4563
      %v4688 = vpop.f32.mrb[0].mxu0
      %v4689 = vadd.f32 %v4609, %v4688
      %v4690 = vpop.f32.mrb[0].mxu0
      %v4691 = vadd.f32 %v4609, %v4690
      %4692 = vmatprep.mubr.f32.mxu0 %v4620
      %4693 = vmatmul.mubr.f32.gmra.mrb[0].mxu0 %v4565
      %v4694 = vpop.f32.mrb[0].mxu0
      %v4695 = vadd.f32 %v4614, %v4694
      %v4696 = vpop.f32.mrb[0].mxu0
      %v4697 = vadd.f32 %v4614, %v4696
      %4698 = vdwg.mxu0
      %s4699 = scalar_lea.vmem %s8, 32
      %v4700 = vld [vmem:[%s4699] sm:$0xff]
      %v4701 = vld [vmem:[%s4699 + $0x8] sm:$0xff]
      %vm4702 = vcmp.ge.f32.partialorder %v4689, 0.0
      %vm4703 = vcmp.ge.f32.partialorder %v4691, 0.0
      %vm4704 = vcmp.ge.f32.partialorder %v4695, 0.0
      %vm4705 = vcmp.ge.f32.partialorder %v4697, 0.0
      %4707 = vset.pattern.permute.xlu0 0
      %4708 = vperm.xlu0 %4707, %v4700
      %v4709 = vpop.permute.xlu0 %4708
      %4712 = vset.pattern.permute.xlu0 0
      %4713 = vperm.xlu0 %4712, %v4701
      %v4714 = vpop.permute.xlu0 %4713
      %v4716 = vmul.f32 %v4709, %v4689
      %v4717 = vmul.f32 %v4709, %v4691
      %v4718 = vmul.f32 %v4714, %v4695
      %v4719 = vmul.f32 %v4714, %v4697
      %v4720 = vsel %vm4702, %v4689, %v4716
      %v4721 = vsel %vm4703, %v4691, %v4717
      %v4722 = vsel %vm4704, %v4695, %v4718
      %v4723 = vsel %vm4705, %v4697, %v4719
      %4724 = vst [vmem:[%s453] sm:$0xff] %v4720
      %4725 = vst [vmem:[%s453 + $0x8] sm:$0xff] %v4721
      %4726 = vst [vmem:[%s453 + $0x10] sm:$0xff] %v4722
      %4727 = vst [vmem:[%s453 + $0x18] sm:$0xff] %v4723
      %v4730 = vcombine.low %v2081, %v2083
      %v4732 = vsub.f32 %v460, %v4730
      %v4734 = vcombine.high %v4732, %v4732
      %4736 = vst [vmem:[#allocation2 + $0x48] sm:$0xf] %v4732
      %4737 = vst [vmem:[#allocation2 + $0x50] sm:$0xf] %v4734
      %v4738 = vld [vmem:[#allocation2 + $0x40] sm:$0xf]
      %v4739 = vld [vmem:[#allocation2 + $0x48] sm:$0xf]
      %v4740 = vld [vmem:[#allocation2 + $0x50] sm:$0xf]
      %v4741 = vld [vmem:[%s1] sm:$0xff]
      %v4743 = vcombine.high %v4741, %v4741
      %4744 = vrot.lane.b32.xlu0 %v4741, 111
      %v4745 = vpop.permute.xlu0 %4744
      %4746 = vrot.lane.b32.xlu0 %v4743, 111
      %v4747 = vpop.permute.xlu0 %4746
      %v4748 = vsel %vm476, %v4745, %v4747
      %v4752 = vmul.f32 %v4738, %v4745
      %v4753 = vmul.f32 %v4739, %v4748
      %v4754 = vmul.f32 %v4740, %v4747
      %4758 = vrot.lane.b32.xlu0 %v4752, 17
      %v4759 = vpop.permute.xlu0 %4758
      %4760 = vrot.lane.b32.xlu0 %v4753, 17
      %v4761 = vpop.permute.xlu0 %4760
      %4762 = vrot.lane.b32.xlu0 %v4754, 17
      %v4763 = vpop.permute.xlu0 %4762
      %v4764 = vsel %vm493, %v4759, %v4761
      %v4765 = vsel %vm493, %v4761, %v4763
      %4768 = vst [vmem:[#allocation3] sm:$0xf] %v4764
      %4769 = vst [vmem:[#allocation3 + $0x8] sm:$0xf] %v4765
      %v4770 = vld [vmem:[#allocation2 + $0x40] sm:$0xf]
      %v4771 = vld [vmem:[#allocation2 + $0x48] sm:$0xf]
      %v4772 = vld [vmem:[#allocation2 + $0x50] sm:$0xf]
      %v4773 = vld [vmem:[%s503] sm:$0xff]
      %v4775 = vcombine.high %v4773, %v4773
      %4776 = vrot.lane.b32.xlu0 %v4773, 112
      %v4777 = vpop.permute.xlu0 %4776
      %4778 = vrot.lane.b32.xlu0 %v4775, 112
      %v4779 = vpop.permute.xlu0 %4778
      %v4780 = vsel %vm511, %v4777, %v4779
      %v4784 = vmul.f32 %v4770, %v4777
      %v4785 = vmul.f32 %v4771, %v4780
      %v4786 = vmul.f32 %v4772, %v4779
      %v4790 = vrot.slane %v4784, 4
      %v4791 = vrot.slane %v4785, 4
      %v4792 = vrot.slane %v4786, 4
      %4793 = vrot.lane.b32.xlu0 %v4790, 16
      %v4794 = vpop.permute.xlu0 %4793
      %4795 = vrot.lane.b32.xlu0 %v4791, 16
      %v4796 = vpop.permute.xlu0 %4795
      %4797 = vrot.lane.b32.xlu0 %v4792, 16
      %v4798 = vpop.permute.xlu0 %4797
      %v4799 = vsel %vm531, %v4794, %v4796
      %v4800 = vsel %vm531, %v4796, %v4798
      %4803 = vst [vmem:[#allocation3] sm:$0xf0] %v4799
      %4804 = vst [vmem:[#allocation3 + $0x8] sm:$0xf0] %v4800
      %v4805 = vld [vmem:[#allocation2 + $0x40] sm:$0xf]
      %v4806 = vld [vmem:[#allocation2 + $0x48] sm:$0xf]
      %v4807 = vld [vmem:[#allocation2 + $0x50] sm:$0xf]
      %v4808 = vld [vmem:[%s541] sm:$0xff]
      %v4810 = vcombine.high %v4808, %v4808
      %4811 = vrot.lane.b32.xlu0 %v4808, 113
      %v4812 = vpop.permute.xlu0 %4811
      %4813 = vrot.lane.b32.xlu0 %v4810, 113
      %v4814 = vpop.permute.xlu0 %4813
      %v4815 = vsel %vm549, %v4812, %v4814
      %v4819 = vmul.f32 %v4805, %v4812
      %v4820 = vmul.f32 %v4806, %v4815
      %v4821 = vmul.f32 %v4807, %v4814
      %4825 = vrot.lane.b32.xlu0 %v4819, 15
      %v4826 = vpop.permute.xlu0 %4825
      %4827 = vrot.lane.b32.xlu0 %v4820, 15
      %v4828 = vpop.permute.xlu0 %4827
      %4829 = vrot.lane.b32.xlu0 %v4821, 15
      %v4830 = vpop.permute.xlu0 %4829
      %v4831 = vsel %vm566, %v4826, %v4828
      %v4832 = vsel %vm566, %v4828, %v4830
      %4835 = vst [vmem:[#allocation3 + $0x10] sm:$0xf] %v4831
      %4836 = vst [vmem:[#allocation3 + $0x18] sm:$0xf] %v4832
      %v4837 = vld [vmem:[#allocation2 + $0x40] sm:$0xf]
      %v4838 = vld [vmem:[#allocation2 + $0x48] sm:$0xf]
      %v4839 = vld [vmem:[#allocation2 + $0x50] sm:$0xf]
      %v4840 = vld [vmem:[%s576] sm:$0xff]
      %v4842 = vcombine.high %v4840, %v4840
      %4843 = vrot.lane.b32.xlu0 %v4840, 127
      %v4844 = vpop.permute.xlu0 %4843
      %4845 = vrot.lane.b32.xlu0 %v4842, 127
      %v4846 = vpop.permute.xlu0 %4845
      %v4847 = vsel %vm584, %v4844, %v4846
      %v4851 = vmul.f32 %v4837, %v4844
      %v4852 = vmul.f32 %v4838, %v4847
      %v4853 = vmul.f32 %v4839, %v4846
      %v4857 = vrot.slane %v4851, 4
      %v4858 = vrot.slane %v4852, 4
      %v4859 = vrot.slane %v4853, 4
      %4860 = vrot.lane.b32.xlu0 %v4857, 1
      %v4861 = vpop.permute.xlu0 %4860
      %4862 = vrot.lane.b32.xlu0 %v4858, 1
      %v4863 = vpop.permute.xlu0 %4862
      %4864 = vrot.lane.b32.xlu0 %v4859, 1
      %v4865 = vpop.permute.xlu0 %4864
      %v4866 = vsel %vm604, %v4861, %v4863
      %v4867 = vsel %vm604, %v4863, %v4865
      %4870 = vst [vmem:[#allocation3 + $0x10] sm:$0xf0] %v4866
      %4871 = vst [vmem:[#allocation3 + $0x18] sm:$0xf0] %v4867
      %v4872 = vld [vmem:[#allocation2 + $0x48] sm:$0xf]
      %v4873 = vld [vmem:[#allocation2 + $0x50] sm:$0xf]
      %4874 = vst [vmem:[#allocation3 + $0x20] sm:$0xf] %v4872
      %4875 = vst [vmem:[#allocation3 + $0x28] sm:$0xf] %v4873
      %v4876 = vld [vmem:[#allocation2 + $0x48] sm:$0xf]
      %v4877 = vld [vmem:[#allocation2 + $0x50] sm:$0xf]
      %v4878 = vld [vmem:[#allocation2 + $0x58] sm:$0xf]
      %v4879 = vld [vmem:[%s618] sm:$0xff]
      %v4881 = vcombine.high %v4879, %v4879
      %4882 = vrot.lane.b32.xlu0 %v4879, 1
      %v4883 = vpop.permute.xlu0 %4882
      %4884 = vrot.lane.b32.xlu0 %v4881, 1
      %v4885 = vpop.permute.xlu0 %4884
      %v4886 = vsel %vm604, %v4883, %v4885
      %v4890 = vmul.f32 %v4876, %v4883
      %v4891 = vmul.f32 %v4877, %v4886
      %v4892 = vmul.f32 %v4878, %v4885
      %v4896 = vrot.slane %v4890, 4
      %v4897 = vrot.slane %v4891, 4
      %v4898 = vrot.slane %v4892, 4
      %4899 = vrot.lane.b32.xlu0 %v4896, 127
      %v4900 = vpop.permute.xlu0 %4899
      %4901 = vrot.lane.b32.xlu0 %v4897, 127
      %v4902 = vpop.permute.xlu0 %4901
      %4903 = vrot.lane.b32.xlu0 %v4898, 127
      %v4904 = vpop.permute.xlu0 %4903
      %v4905 = vsel %vm584, %v4900, %v4902
      %v4906 = vsel %vm584, %v4902, %v4904
      %4909 = vst [vmem:[#allocation3 + $0x20] sm:$0xf0] %v4905
      %4910 = vst [vmem:[#allocation3 + $0x28] sm:$0xf0] %v4906
      %v4911 = vld [vmem:[#allocation2 + $0x48] sm:$0xf]
      %v4912 = vld [vmem:[#allocation2 + $0x50] sm:$0xf]
      %v4913 = vld [vmem:[#allocation2 + $0x58] sm:$0xf]
      %v4914 = vld [vmem:[%s654] sm:$0xff]
      %v4916 = vcombine.high %v4914, %v4914
      %4917 = vrot.lane.b32.xlu0 %v4914, 15
      %v4918 = vpop.permute.xlu0 %4917
      %4919 = vrot.lane.b32.xlu0 %v4916, 15
      %v4920 = vpop.permute.xlu0 %4919
      %v4921 = vsel %vm566, %v4918, %v4920
      %v4925 = vmul.f32 %v4911, %v4918
      %v4926 = vmul.f32 %v4912, %v4921
      %v4927 = vmul.f32 %v4913, %v4920
      %4931 = vrot.lane.b32.xlu0 %v4925, 113
      %v4932 = vpop.permute.xlu0 %4931
      %4933 = vrot.lane.b32.xlu0 %v4926, 113
      %v4934 = vpop.permute.xlu0 %4933
      %4935 = vrot.lane.b32.xlu0 %v4927, 113
      %v4936 = vpop.permute.xlu0 %4935
      %v4937 = vsel %vm549, %v4932, %v4934
      %v4938 = vsel %vm549, %v4934, %v4936
      %4941 = vst [vmem:[#allocation3 + $0x30] sm:$0xf] %v4937
      %4942 = vst [vmem:[#allocation3 + $0x38] sm:$0xf] %v4938
      %v4943 = vld [vmem:[#allocation2 + $0x48] sm:$0xf]
      %v4944 = vld [vmem:[#allocation2 + $0x50] sm:$0xf]
      %v4945 = vld [vmem:[#allocation2 + $0x58] sm:$0xf]
      %v4946 = vld [vmem:[%s687] sm:$0xff]
      %v4948 = vcombine.high %v4946, %v4946
      %4949 = vrot.lane.b32.xlu0 %v4946, 16
      %v4950 = vpop.permute.xlu0 %4949
      %4951 = vrot.lane.b32.xlu0 %v4948, 16
      %v4952 = vpop.permute.xlu0 %4951
      %v4953 = vsel %vm531, %v4950, %v4952
      %v4957 = vmul.f32 %v4943, %v4950
      %v4958 = vmul.f32 %v4944, %v4953
      %v4959 = vmul.f32 %v4945, %v4952
      %v4963 = vrot.slane %v4957, 4
      %v4964 = vrot.slane %v4958, 4
      %v4965 = vrot.slane %v4959, 4
      %4966 = vrot.lane.b32.xlu0 %v4963, 112
      %v4967 = vpop.permute.xlu0 %4966
      %4968 = vrot.lane.b32.xlu0 %v4964, 112
      %v4969 = vpop.permute.xlu0 %4968
      %4970 = vrot.lane.b32.xlu0 %v4965, 112
      %v4971 = vpop.permute.xlu0 %4970
      %v4972 = vsel %vm511, %v4967, %v4969
      %v4973 = vsel %vm511, %v4969, %v4971
      %4976 = vst [vmem:[#allocation3 + $0x30] sm:$0xf0] %v4972
      %4977 = vst [vmem:[#allocation3 + $0x38] sm:$0xf0] %v4973
      %v4978 = vld [vmem:[#allocation2 + $0x48] sm:$0xf]
      %v4979 = vld [vmem:[#allocation2 + $0x50] sm:$0xf]
      %v4980 = vld [vmem:[#allocation2 + $0x58] sm:$0xf]
      %v4981 = vld [vmem:[%s723] sm:$0xff]
      %v4983 = vcombine.high %v4981, %v4981
      %4984 = vrot.lane.b32.xlu0 %v4981, 17
      %v4985 = vpop.permute.xlu0 %4984
      %4986 = vrot.lane.b32.xlu0 %v4983, 17
      %v4987 = vpop.permute.xlu0 %4986
      %v4988 = vsel %vm493, %v4985, %v4987
      %v4992 = vmul.f32 %v4978, %v4985
      %v4993 = vmul.f32 %v4979, %v4988
      %v4994 = vmul.f32 %v4980, %v4987
      %4998 = vrot.lane.b32.xlu0 %v4992, 111
      %v4999 = vpop.permute.xlu0 %4998
      %5000 = vrot.lane.b32.xlu0 %v4993, 111
      %v5001 = vpop.permute.xlu0 %5000
      %5002 = vrot.lane.b32.xlu0 %v4994, 111
      %v5003 = vpop.permute.xlu0 %5002
      %v5004 = vsel %vm476, %v4999, %v5001
      %v5005 = vsel %vm476, %v5001, %v5003
      %5008 = vst [vmem:[#allocation3 + $0x40] sm:$0xf] %v5004
      %5009 = vst [vmem:[#allocation3 + $0x48] sm:$0xf] %v5005
      %v5010 = vld [vmem:[#allocation2 + $0x48] sm:$0xf]
      %v5011 = vld [vmem:[#allocation2 + $0x50] sm:$0xf]
      %v5014 = vrot.slane %v5010, 4
      %v5015 = vrot.slane %v5011, 4
      %5018 = vst [vmem:[#allocation3 + $0x40] sm:$0xf0] %v5014
      %5019 = vst [vmem:[#allocation3 + $0x48] sm:$0xf0] %v5015
      %v5020 = vld [vmem:[%s9] sm:$0xf]
      %v5021 = vld [vmem:[#allocation3] sm:$0xff]
      %v5022 = vld [vmem:[#allocation3 + $0x8] sm:$0xff]
      %v5023 = vld [vmem:[#allocation3 + $0x10] sm:$0xff]
      %v5024 = vld [vmem:[#allocation3 + $0x18] sm:$0xff]
      %v5025 = vld [vmem:[#allocation3 + $0x20] sm:$0xff]
      %v5026 = vld [vmem:[#allocation3 + $0x28] sm:$0xff]
      %v5027 = vld [vmem:[#allocation3 + $0x30] sm:$0xff]
      %v5028 = vld [vmem:[#allocation3 + $0x38] sm:$0xff]
      %v5029 = vld [vmem:[#allocation3 + $0x40] sm:$0xff]
      %v5030 = vld [vmem:[#allocation3 + $0x48] sm:$0xff]
      %v5031 = vld [vmem:[%s10] sm:$0xf]
      %5033 = vset.pattern.permute.xlu0 0
      %5034 = vperm.xlu0 %5033, %v5031
      %v5035 = vpop.permute.xlu0 %5034
      %v5038 = vsel %vm787, %v5020, 0
      %5040 = vmatprep.subr.mxu0 %v5022
      %5041 = vmatpush1.msra.mxu0 %v5021
      %5042 = vmatprep.subr.mxu0 %v5024
      %5043 = vmatpush1.msra.mxu0 %v5023
      %5044 = vmatprep.subr.mxu0 %v5026
      %5045 = vmatpush1.msra.mxu0 %v5025
      %5046 = vmatprep.subr.mxu0 %v5028
      %5047 = vmatpush1.msra.mxu0 %v5027
      %5048 = vmatprep.subr.mxu0 %v5030
      %5049 = vmatpush1.msra.mxu0 %v5029
      %5050 = vmatprep.subr.mxu0 0.0
      %5051 = vmatpush1.msra.mxu0 0.0
      %5052 = vmatprep.subr.mxu0 0.0
      %5053 = vmatpush1.msra.mxu0 0.0
      %5054 = vmatprep.subr.mxu0 0.0
      %5055 = vmatpush1.msra.mxu0 0.0
      %5056 = vmatprep.subr.mxu0 0.0
      %5057 = vmatpush1.msra.mxu0 0.0
      %5058 = vmatprep.subr.mxu0 0.0
      %5059 = vmatpush1.msra.mxu0 0.0
      %5060 = vmatprep.subr.mxu0 0.0
      %5061 = vmatpush1.msra.mxu0 0.0
      %5062 = vmatprep.subr.mxu0 0.0
      %5063 = vmatpush1.msra.mxu0 0.0
      %5064 = vmatprep.subr.mxu0 0.0
      %5065 = vmatpush1.msra.mxu0 0.0
      %5066 = vmatprep.subr.mxu0 0.0
      %5067 = vmatpush1.msra.mxu0 0.0
      %5068 = vmatprep.subr.mxu0 0.0
      %5069 = vmatpush1.msra.mxu0 0.0
      %5070 = vmatprep.subr.mxu0 0.0
      %5071 = vmatpush1.msra.mxu0 0.0
      %5072 = vmatprep.subr.mxu0 0.0
      %5073 = vmatpush1.msra.mxu0 0.0
      %5074 = vmatprep.subr.mxu0 0.0
      %5075 = vmatpush1.msra.mxu0 0.0
      %5076 = vmatprep.subr.mxu0 0.0
      %5077 = vmatpush1.msra.mxu0 0.0
      %5078 = vmatprep.subr.mxu0 0.0
      %5079 = vmatpush1.msra.mxu0 0.0
      %5080 = vmatprep.subr.mxu0 0.0
      %5081 = vmatpush1.msra.mxu0 0.0
      %5082 = vmatprep.subr.mxu0 0.0
      %5083 = vmatpush1.msra.mxu0 0.0
      %5084 = vmatprep.subr.mxu0 0.0
      %5085 = vmatpush1.msra.mxu0 0.0
      %5086 = vmatprep.subr.mxu0 0.0
      %5087 = vmatpush1.msra.mxu0 0.0
      %5088 = vmatprep.subr.mxu0 0.0
      %5089 = vmatpush1.msra.mxu0 0.0
      %5090 = vmatprep.subr.mxu0 0.0
      %5091 = vmatpush1.msra.mxu0 0.0
      %5092 = vmatprep.subr.mxu0 0.0
      %5093 = vmatpush1.msra.mxu0 0.0
      %5094 = vmatprep.subr.mxu0 0.0
      %5095 = vmatpush1.msra.mxu0 0.0
      %5096 = vmatprep.subr.mxu0 0.0
      %5097 = vmatpush1.msra.mxu0 0.0
      %5098 = vmatprep.subr.mxu0 0.0
      %5099 = vmatpush1.msra.mxu0 0.0
      %5100 = vmatprep.subr.mxu0 0.0
      %5101 = vmatpush1.msra.mxu0 0.0
      %5102 = vmatprep.subr.mxu0 0.0
      %5103 = vmatpush1.msra.mxu0 0.0
      %5104 = vmatprep.mubr.f32.mxu0 0.0
      %5105 = vmatmul.mubr.f32.gmra.mrb[0].mxu0 %v5038
      %v5106 = vpop.f32.mrb[0].mxu0
      %v5107 = vadd.f32 %v5035, %v5106
      %v5108 = vpop.f32.mrb[0].mxu0
      %v5109 = vadd.f32 %v5035, %v5108
      %5110 = vdwg.mxu0
      %v5111 = vld [vmem:[%s11] sm:$0xf]
      %vm5112 = vcmp.ge.f32.partialorder %v5107, 0.0
      %vm5113 = vcmp.ge.f32.partialorder %v5109, 0.0
      %5115 = vset.pattern.permute.xlu0 0
      %5116 = vperm.xlu0 %5115, %v5111
      %v5117 = vpop.permute.xlu0 %5116
      %v5119 = vmul.f32 %v5117, %v5107
      %v5120 = vmul.f32 %v5117, %v5109
      %v5121 = vsel %vm5112, %v5107, %v5119
      %v5122 = vsel %vm5113, %v5109, %v5120
      %5123 = vst [vmem:[#allocation2 + $0x48] sm:$0xf] %v5121
      %5124 = vst [vmem:[#allocation2 + $0x50] sm:$0xf] %v5122
      %v5125 = vld [vmem:[#allocation2 + $0x40] sm:$0xf]
      %v5126 = vld [vmem:[#allocation2 + $0x48] sm:$0xf]
      %v5127 = vld [vmem:[#allocation2 + $0x50] sm:$0xf]
      %v5128 = vld [vmem:[%s1] sm:$0xff]
      %v5130 = vcombine.high %v5128, %v5128
      %5131 = vrot.lane.b32.xlu0 %v5128, 111
      %v5132 = vpop.permute.xlu0 %5131
      %5133 = vrot.lane.b32.xlu0 %v5130, 111
      %v5134 = vpop.permute.xlu0 %5133
      %v5135 = vsel %vm476, %v5132, %v5134
      %v5139 = vmul.f32 %v5125, %v5132
      %v5140 = vmul.f32 %v5126, %v5135
      %v5141 = vmul.f32 %v5127, %v5134
      %5145 = vrot.lane.b32.xlu0 %v5139, 17
      %v5146 = vpop.permute.xlu0 %5145
      %5147 = vrot.lane.b32.xlu0 %v5140, 17
      %v5148 = vpop.permute.xlu0 %5147
      %5149 = vrot.lane.b32.xlu0 %v5141, 17
      %v5150 = vpop.permute.xlu0 %5149
      %v5151 = vsel %vm493, %v5146, %v5148
      %v5152 = vsel %vm493, %v5148, %v5150
      %5155 = vst [vmem:[#allocation3] sm:$0xf] %v5151
      %5156 = vst [vmem:[#allocation3 + $0x8] sm:$0xf] %v5152
      %v5157 = vld [vmem:[#allocation2 + $0x40] sm:$0xf]
      %v5158 = vld [vmem:[#allocation2 + $0x48] sm:$0xf]
      %v5159 = vld [vmem:[#allocation2 + $0x50] sm:$0xf]
      %v5160 = vld [vmem:[%s503] sm:$0xff]
      %v5162 = vcombine.high %v5160, %v5160
      %5163 = vrot.lane.b32.xlu0 %v5160, 112
      %v5164 = vpop.permute.xlu0 %5163
      %5165 = vrot.lane.b32.xlu0 %v5162, 112
      %v5166 = vpop.permute.xlu0 %5165
      %v5167 = vsel %vm511, %v5164, %v5166
      %v5171 = vmul.f32 %v5157, %v5164
      %v5172 = vmul.f32 %v5158, %v5167
      %v5173 = vmul.f32 %v5159, %v5166
      %v5177 = vrot.slane %v5171, 4
      %v5178 = vrot.slane %v5172, 4
      %v5179 = vrot.slane %v5173, 4
      %5180 = vrot.lane.b32.xlu0 %v5177, 16
      %v5181 = vpop.permute.xlu0 %5180
      %5182 = vrot.lane.b32.xlu0 %v5178, 16
      %v5183 = vpop.permute.xlu0 %5182
      %5184 = vrot.lane.b32.xlu0 %v5179, 16
      %v5185 = vpop.permute.xlu0 %5184
      %v5186 = vsel %vm531, %v5181, %v5183
      %v5187 = vsel %vm531, %v5183, %v5185
      %5190 = vst [vmem:[#allocation3] sm:$0xf0] %v5186
      %5191 = vst [vmem:[#allocation3 + $0x8] sm:$0xf0] %v5187
      %v5192 = vld [vmem:[#allocation2 + $0x40] sm:$0xf]
      %v5193 = vld [vmem:[#allocation2 + $0x48] sm:$0xf]
      %v5194 = vld [vmem:[#allocation2 + $0x50] sm:$0xf]
      %v5195 = vld [vmem:[%s541] sm:$0xff]
      %v5197 = vcombine.high %v5195, %v5195
      %5198 = vrot.lane.b32.xlu0 %v5195, 113
      %v5199 = vpop.permute.xlu0 %5198
      %5200 = vrot.lane.b32.xlu0 %v5197, 113
      %v5201 = vpop.permute.xlu0 %5200
      %v5202 = vsel %vm549, %v5199, %v5201
      %v5206 = vmul.f32 %v5192, %v5199
      %v5207 = vmul.f32 %v5193, %v5202
      %v5208 = vmul.f32 %v5194, %v5201
      %5212 = vrot.lane.b32.xlu0 %v5206, 15
      %v5213 = vpop.permute.xlu0 %5212
      %5214 = vrot.lane.b32.xlu0 %v5207, 15
      %v5215 = vpop.permute.xlu0 %5214
      %5216 = vrot.lane.b32.xlu0 %v5208, 15
      %v5217 = vpop.permute.xlu0 %5216
      %v5218 = vsel %vm566, %v5213, %v5215
      %v5219 = vsel %vm566, %v5215, %v5217
      %5222 = vst [vmem:[#allocation3 + $0x10] sm:$0xf] %v5218
      %5223 = vst [vmem:[#allocation3 + $0x18] sm:$0xf] %v5219
      %v5224 = vld [vmem:[#allocation2 + $0x40] sm:$0xf]
      %v5225 = vld [vmem:[#allocation2 + $0x48] sm:$0xf]
      %v5226 = vld [vmem:[#allocation2 + $0x50] sm:$0xf]
      %v5227 = vld [vmem:[%s576] sm:$0xff]
      %v5229 = vcombine.high %v5227, %v5227
      %5230 = vrot.lane.b32.xlu0 %v5227, 127
      %v5231 = vpop.permute.xlu0 %5230
      %5232 = vrot.lane.b32.xlu0 %v5229, 127
      %v5233 = vpop.permute.xlu0 %5232
      %v5234 = vsel %vm584, %v5231, %v5233
      %v5238 = vmul.f32 %v5224, %v5231
      %v5239 = vmul.f32 %v5225, %v5234
      %v5240 = vmul.f32 %v5226, %v5233
      %v5244 = vrot.slane %v5238, 4
      %v5245 = vrot.slane %v5239, 4
      %v5246 = vrot.slane %v5240, 4
      %5247 = vrot.lane.b32.xlu0 %v5244, 1
      %v5248 = vpop.permute.xlu0 %5247
      %5249 = vrot.lane.b32.xlu0 %v5245, 1
      %v5250 = vpop.permute.xlu0 %5249
      %5251 = vrot.lane.b32.xlu0 %v5246, 1
      %v5252 = vpop.permute.xlu0 %5251
      %v5253 = vsel %vm604, %v5248, %v5250
      %v5254 = vsel %vm604, %v5250, %v5252
      %5257 = vst [vmem:[#allocation3 + $0x10] sm:$0xf0] %v5253
      %5258 = vst [vmem:[#allocation3 + $0x18] sm:$0xf0] %v5254
      %v5259 = vld [vmem:[#allocation2 + $0x48] sm:$0xf]
      %v5260 = vld [vmem:[#allocation2 + $0x50] sm:$0xf]
      %5261 = vst [vmem:[#allocation3 + $0x20] sm:$0xf] %v5259
      %5262 = vst [vmem:[#allocation3 + $0x28] sm:$0xf] %v5260
      %v5263 = vld [vmem:[#allocation2 + $0x48] sm:$0xf]
      %v5264 = vld [vmem:[#allocation2 + $0x50] sm:$0xf]
      %v5265 = vld [vmem:[#allocation2 + $0x58] sm:$0xf]
      %v5266 = vld [vmem:[%s618] sm:$0xff]
      %v5268 = vcombine.high %v5266, %v5266
      %5269 = vrot.lane.b32.xlu0 %v5266, 1
      %v5270 = vpop.permute.xlu0 %5269
      %5271 = vrot.lane.b32.xlu0 %v5268, 1
      %v5272 = vpop.permute.xlu0 %5271
      %v5273 = vsel %vm604, %v5270, %v5272
      %v5277 = vmul.f32 %v5263, %v5270
      %v5278 = vmul.f32 %v5264, %v5273
      %v5279 = vmul.f32 %v5265, %v5272
      %v5283 = vrot.slane %v5277, 4
      %v5284 = vrot.slane %v5278, 4
      %v5285 = vrot.slane %v5279, 4
      %5286 = vrot.lane.b32.xlu0 %v5283, 127
      %v5287 = vpop.permute.xlu0 %5286
      %5288 = vrot.lane.b32.xlu0 %v5284, 127
      %v5289 = vpop.permute.xlu0 %5288
      %5290 = vrot.lane.b32.xlu0 %v5285, 127
      %v5291 = vpop.permute.xlu0 %5290
      %v5292 = vsel %vm584, %v5287, %v5289
      %v5293 = vsel %vm584, %v5289, %v5291
      %5296 = vst [vmem:[#allocation3 + $0x20] sm:$0xf0] %v5292
      %5297 = vst [vmem:[#allocation3 + $0x28] sm:$0xf0] %v5293
      %v5298 = vld [vmem:[#allocation2 + $0x48] sm:$0xf]
      %v5299 = vld [vmem:[#allocation2 + $0x50] sm:$0xf]
      %v5300 = vld [vmem:[#allocation2 + $0x58] sm:$0xf]
      %v5301 = vld [vmem:[%s654] sm:$0xff]
      %v5303 = vcombine.high %v5301, %v5301
      %5304 = vrot.lane.b32.xlu0 %v5301, 15
      %v5305 = vpop.permute.xlu0 %5304
      %5306 = vrot.lane.b32.xlu0 %v5303, 15
      %v5307 = vpop.permute.xlu0 %5306
      %v5308 = vsel %vm566, %v5305, %v5307
      %v5312 = vmul.f32 %v5298, %v5305
      %v5313 = vmul.f32 %v5299, %v5308
      %v5314 = vmul.f32 %v5300, %v5307
      %5318 = vrot.lane.b32.xlu0 %v5312, 113
      %v5319 = vpop.permute.xlu0 %5318
      %5320 = vrot.lane.b32.xlu0 %v5313, 113
      %v5321 = vpop.permute.xlu0 %5320
      %5322 = vrot.lane.b32.xlu0 %v5314, 113
      %v5323 = vpop.permute.xlu0 %5322
      %v5324 = vsel %vm549, %v5319, %v5321
      %v5325 = vsel %vm549, %v5321, %v5323
      %5328 = vst [vmem:[#allocation3 + $0x30] sm:$0xf] %v5324
      %5329 = vst [vmem:[#allocation3 + $0x38] sm:$0xf] %v5325
      %v5330 = vld [vmem:[#allocation2 + $0x48] sm:$0xf]
      %v5331 = vld [vmem:[#allocation2 + $0x50] sm:$0xf]
      %v5332 = vld [vmem:[#allocation2 + $0x58] sm:$0xf]
      %v5333 = vld [vmem:[%s687] sm:$0xff]
      %v5335 = vcombine.high %v5333, %v5333
      %5336 = vrot.lane.b32.xlu0 %v5333, 16
      %v5337 = vpop.permute.xlu0 %5336
      %5338 = vrot.lane.b32.xlu0 %v5335, 16
      %v5339 = vpop.permute.xlu0 %5338
      %v5340 = vsel %vm531, %v5337, %v5339
      %v5344 = vmul.f32 %v5330, %v5337
      %v5345 = vmul.f32 %v5331, %v5340
      %v5346 = vmul.f32 %v5332, %v5339
      %v5350 = vrot.slane %v5344, 4
      %v5351 = vrot.slane %v5345, 4
      %v5352 = vrot.slane %v5346, 4
      %5353 = vrot.lane.b32.xlu0 %v5350, 112
      %v5354 = vpop.permute.xlu0 %5353
      %5355 = vrot.lane.b32.xlu0 %v5351, 112
      %v5356 = vpop.permute.xlu0 %5355
      %5357 = vrot.lane.b32.xlu0 %v5352, 112
      %v5358 = vpop.permute.xlu0 %5357
      %v5359 = vsel %vm511, %v5354, %v5356
      %v5360 = vsel %vm511, %v5356, %v5358
      %5363 = vst [vmem:[#allocation3 + $0x30] sm:$0xf0] %v5359
      %5364 = vst [vmem:[#allocation3 + $0x38] sm:$0xf0] %v5360
      %v5365 = vld [vmem:[#allocation2 + $0x48] sm:$0xf]
      %v5366 = vld [vmem:[#allocation2 + $0x50] sm:$0xf]
      %v5367 = vld [vmem:[#allocation2 + $0x58] sm:$0xf]
      %v5368 = vld [vmem:[%s723] sm:$0xff]
      %v5370 = vcombine.high %v5368, %v5368
      %5371 = vrot.lane.b32.xlu0 %v5368, 17
      %v5372 = vpop.permute.xlu0 %5371
      %5373 = vrot.lane.b32.xlu0 %v5370, 17
      %v5374 = vpop.permute.xlu0 %5373
      %v5375 = vsel %vm493, %v5372, %v5374
      %v5379 = vmul.f32 %v5365, %v5372
      %v5380 = vmul.f32 %v5366, %v5375
      %v5381 = vmul.f32 %v5367, %v5374
      %5385 = vrot.lane.b32.xlu0 %v5379, 111
      %v5386 = vpop.permute.xlu0 %5385
      %5387 = vrot.lane.b32.xlu0 %v5380, 111
      %v5388 = vpop.permute.xlu0 %5387
      %5389 = vrot.lane.b32.xlu0 %v5381, 111
      %v5390 = vpop.permute.xlu0 %5389
      %v5391 = vsel %vm476, %v5386, %v5388
      %v5392 = vsel %vm476, %v5388, %v5390
      %5395 = vst [vmem:[#allocation3 + $0x40] sm:$0xf] %v5391
      %5396 = vst [vmem:[#allocation3 + $0x48] sm:$0xf] %v5392
      %v5397 = vld [vmem:[#allocation2 + $0x48] sm:$0xf]
      %v5398 = vld [vmem:[#allocation2 + $0x50] sm:$0xf]
      %v5401 = vrot.slane %v5397, 4
      %v5402 = vrot.slane %v5398, 4
      %5405 = vst [vmem:[#allocation3 + $0x40] sm:$0xf0] %v5401
      %5406 = vst [vmem:[#allocation3 + $0x48] sm:$0xf0] %v5402
      %s5407 = scalar_lea.vmem %s9, 4
      %v5408 = vld [vmem:[%s5407] sm:$0xf]
      %v5409 = vld [vmem:[#allocation3] sm:$0xff]
      %v5410 = vld [vmem:[#allocation3 + $0x8] sm:$0xff]
      %v5411 = vld [vmem:[#allocation3 + $0x10] sm:$0xff]
      %v5412 = vld [vmem:[#allocation3 + $0x18] sm:$0xff]
      %v5413 = vld [vmem:[#allocation3 + $0x20] sm:$0xff]
      %v5414 = vld [vmem:[#allocation3 + $0x28] sm:$0xff]
      %v5415 = vld [vmem:[#allocation3 + $0x30] sm:$0xff]
      %v5416 = vld [vmem:[#allocation3 + $0x38] sm:$0xff]
      %v5417 = vld [vmem:[#allocation3 + $0x40] sm:$0xff]
      %v5418 = vld [vmem:[#allocation3 + $0x48] sm:$0xff]
      %s5419 = scalar_lea.vmem %s10, 4
      %v5420 = vld [vmem:[%s5419] sm:$0xf]
      %5422 = vset.pattern.permute.xlu0 0
      %5423 = vperm.xlu0 %5422, %v5420
      %v5424 = vpop.permute.xlu0 %5423
      %v5427 = vsel %vm787, %v5408, 0
      %5429 = vmatprep.subr.mxu0 %v5410
      %5430 = vmatpush1.msra.mxu0 %v5409
      %5431 = vmatprep.subr.mxu0 %v5412
      %5432 = vmatpush1.msra.mxu0 %v5411
      %5433 = vmatprep.subr.mxu0 %v5414
      %5434 = vmatpush1.msra.mxu0 %v5413
      %5435 = vmatprep.subr.mxu0 %v5416
      %5436 = vmatpush1.msra.mxu0 %v5415
      %5437 = vmatprep.subr.mxu0 %v5418
      %5438 = vmatpush1.msra.mxu0 %v5417
      %5439 = vmatprep.subr.mxu0 0.0
      %5440 = vmatpush1.msra.mxu0 0.0
      %5441 = vmatprep.subr.mxu0 0.0
      %5442 = vmatpush1.msra.mxu0 0.0
      %5443 = vmatprep.subr.mxu0 0.0
      %5444 = vmatpush1.msra.mxu0 0.0
      %5445 = vmatprep.subr.mxu0 0.0
      %5446 = vmatpush1.msra.mxu0 0.0
      %5447 = vmatprep.subr.mxu0 0.0
      %5448 = vmatpush1.msra.mxu0 0.0
      %5449 = vmatprep.subr.mxu0 0.0
      %5450 = vmatpush1.msra.mxu0 0.0
      %5451 = vmatprep.subr.mxu0 0.0
      %5452 = vmatpush1.msra.mxu0 0.0
      %5453 = vmatprep.subr.mxu0 0.0
      %5454 = vmatpush1.msra.mxu0 0.0
      %5455 = vmatprep.subr.mxu0 0.0
      %5456 = vmatpush1.msra.mxu0 0.0
      %5457 = vmatprep.subr.mxu0 0.0
      %5458 = vmatpush1.msra.mxu0 0.0
      %5459 = vmatprep.subr.mxu0 0.0
      %5460 = vmatpush1.msra.mxu0 0.0
      %5461 = vmatprep.subr.mxu0 0.0
      %5462 = vmatpush1.msra.mxu0 0.0
      %5463 = vmatprep.subr.mxu0 0.0
      %5464 = vmatpush1.msra.mxu0 0.0
      %5465 = vmatprep.subr.mxu0 0.0
      %5466 = vmatpush1.msra.mxu0 0.0
      %5467 = vmatprep.subr.mxu0 0.0
      %5468 = vmatpush1.msra.mxu0 0.0
      %5469 = vmatprep.subr.mxu0 0.0
      %5470 = vmatpush1.msra.mxu0 0.0
      %5471 = vmatprep.subr.mxu0 0.0
      %5472 = vmatpush1.msra.mxu0 0.0
      %5473 = vmatprep.subr.mxu0 0.0
      %5474 = vmatpush1.msra.mxu0 0.0
      %5475 = vmatprep.subr.mxu0 0.0
      %5476 = vmatpush1.msra.mxu0 0.0
      %5477 = vmatprep.subr.mxu0 0.0
      %5478 = vmatpush1.msra.mxu0 0.0
      %5479 = vmatprep.subr.mxu0 0.0
      %5480 = vmatpush1.msra.mxu0 0.0
      %5481 = vmatprep.subr.mxu0 0.0
      %5482 = vmatpush1.msra.mxu0 0.0
      %5483 = vmatprep.subr.mxu0 0.0
      %5484 = vmatpush1.msra.mxu0 0.0
      %5485 = vmatprep.subr.mxu0 0.0
      %5486 = vmatpush1.msra.mxu0 0.0
      %5487 = vmatprep.subr.mxu0 0.0
      %5488 = vmatpush1.msra.mxu0 0.0
      %5489 = vmatprep.subr.mxu0 0.0
      %5490 = vmatpush1.msra.mxu0 0.0
      %5491 = vmatprep.subr.mxu0 0.0
      %5492 = vmatpush1.msra.mxu0 0.0
      %5493 = vmatprep.mubr.f32.mxu0 0.0
      %5494 = vmatmul.mubr.f32.gmra.mrb[0].mxu0 %v5427
      %v5495 = vpop.f32.mrb[0].mxu0
      %v5496 = vadd.f32 %v5424, %v5495
      %v5497 = vpop.f32.mrb[0].mxu0
      %v5498 = vadd.f32 %v5424, %v5497
      %5499 = vdwg.mxu0
      %s5500 = scalar_lea.vmem %s11, 4
      %v5501 = vld [vmem:[%s5500] sm:$0xf]
      %vm5502 = vcmp.ge.f32.partialorder %v5496, 0.0
      %vm5503 = vcmp.ge.f32.partialorder %v5498, 0.0
      %5505 = vset.pattern.permute.xlu0 0
      %5506 = vperm.xlu0 %5505, %v5501
      %v5507 = vpop.permute.xlu0 %5506
      %v5509 = vmul.f32 %v5507, %v5496
      %v5510 = vmul.f32 %v5507, %v5498
      %v5511 = vsel %vm5502, %v5496, %v5509
      %v5512 = vsel %vm5503, %v5498, %v5510
      %5513 = vst [vmem:[#allocation2 + $0x48] sm:$0xf] %v5511
      %5514 = vst [vmem:[#allocation2 + $0x50] sm:$0xf] %v5512
      %v5515 = vld [vmem:[#allocation2 + $0x40] sm:$0xf]
      %v5516 = vld [vmem:[#allocation2 + $0x48] sm:$0xf]
      %v5517 = vld [vmem:[#allocation2 + $0x50] sm:$0xf]
      %v5518 = vld [vmem:[%s1] sm:$0xff]
      %v5520 = vcombine.high %v5518, %v5518
      %5521 = vrot.lane.b32.xlu0 %v5518, 111
      %v5522 = vpop.permute.xlu0 %5521
      %5523 = vrot.lane.b32.xlu0 %v5520, 111
      %v5524 = vpop.permute.xlu0 %5523
      %v5525 = vsel %vm476, %v5522, %v5524
      %v5529 = vmul.f32 %v5515, %v5522
      %v5530 = vmul.f32 %v5516, %v5525
      %v5531 = vmul.f32 %v5517, %v5524
      %5535 = vrot.lane.b32.xlu0 %v5529, 17
      %v5536 = vpop.permute.xlu0 %5535
      %5537 = vrot.lane.b32.xlu0 %v5530, 17
      %v5538 = vpop.permute.xlu0 %5537
      %5539 = vrot.lane.b32.xlu0 %v5531, 17
      %v5540 = vpop.permute.xlu0 %5539
      %v5541 = vsel %vm493, %v5536, %v5538
      %v5542 = vsel %vm493, %v5538, %v5540
      %5545 = vst [vmem:[#allocation3] sm:$0xf] %v5541
      %5546 = vst [vmem:[#allocation3 + $0x8] sm:$0xf] %v5542
      %v5547 = vld [vmem:[#allocation2 + $0x40] sm:$0xf]
      %v5548 = vld [vmem:[#allocation2 + $0x48] sm:$0xf]
      %v5549 = vld [vmem:[#allocation2 + $0x50] sm:$0xf]
      %v5550 = vld [vmem:[%s503] sm:$0xff]
      %v5552 = vcombine.high %v5550, %v5550
      %5553 = vrot.lane.b32.xlu0 %v5550, 112
      %v5554 = vpop.permute.xlu0 %5553
      %5555 = vrot.lane.b32.xlu0 %v5552, 112
      %v5556 = vpop.permute.xlu0 %5555
      %v5557 = vsel %vm511, %v5554, %v5556
      %v5561 = vmul.f32 %v5547, %v5554
      %v5562 = vmul.f32 %v5548, %v5557
      %v5563 = vmul.f32 %v5549, %v5556
      %v5567 = vrot.slane %v5561, 4
      %v5568 = vrot.slane %v5562, 4
      %v5569 = vrot.slane %v5563, 4
      %5570 = vrot.lane.b32.xlu0 %v5567, 16
      %v5571 = vpop.permute.xlu0 %5570
      %5572 = vrot.lane.b32.xlu0 %v5568, 16
      %v5573 = vpop.permute.xlu0 %5572
      %5574 = vrot.lane.b32.xlu0 %v5569, 16
      %v5575 = vpop.permute.xlu0 %5574
      %v5576 = vsel %vm531, %v5571, %v5573
      %v5577 = vsel %vm531, %v5573, %v5575
      %5580 = vst [vmem:[#allocation3] sm:$0xf0] %v5576
      %5581 = vst [vmem:[#allocation3 + $0x8] sm:$0xf0] %v5577
      %v5582 = vld [vmem:[#allocation2 + $0x40] sm:$0xf]
      %v5583 = vld [vmem:[#allocation2 + $0x48] sm:$0xf]
      %v5584 = vld [vmem:[#allocation2 + $0x50] sm:$0xf]
      %v5585 = vld [vmem:[%s541] sm:$0xff]
      %v5587 = vcombine.high %v5585, %v5585
      %5588 = vrot.lane.b32.xlu0 %v5585, 113
      %v5589 = vpop.permute.xlu0 %5588
      %5590 = vrot.lane.b32.xlu0 %v5587, 113
      %v5591 = vpop.permute.xlu0 %5590
      %v5592 = vsel %vm549, %v5589, %v5591
      %v5596 = vmul.f32 %v5582, %v5589
      %v5597 = vmul.f32 %v5583, %v5592
      %v5598 = vmul.f32 %v5584, %v5591
      %5602 = vrot.lane.b32.xlu0 %v5596, 15
      %v5603 = vpop.permute.xlu0 %5602
      %5604 = vrot.lane.b32.xlu0 %v5597, 15
      %v5605 = vpop.permute.xlu0 %5604
      %5606 = vrot.lane.b32.xlu0 %v5598, 15
      %v5607 = vpop.permute.xlu0 %5606
      %v5608 = vsel %vm566, %v5603, %v5605
      %v5609 = vsel %vm566, %v5605, %v5607
      %5612 = vst [vmem:[#allocation3 + $0x10] sm:$0xf] %v5608
      %5613 = vst [vmem:[#allocation3 + $0x18] sm:$0xf] %v5609
      %v5614 = vld [vmem:[#allocation2 + $0x40] sm:$0xf]
      %v5615 = vld [vmem:[#allocation2 + $0x48] sm:$0xf]
      %v5616 = vld [vmem:[#allocation2 + $0x50] sm:$0xf]
      %v5617 = vld [vmem:[%s576] sm:$0xff]
      %v5619 = vcombine.high %v5617, %v5617
      %5620 = vrot.lane.b32.xlu0 %v5617, 127
      %v5621 = vpop.permute.xlu0 %5620
      %5622 = vrot.lane.b32.xlu0 %v5619, 127
      %v5623 = vpop.permute.xlu0 %5622
      %v5624 = vsel %vm584, %v5621, %v5623
      %v5628 = vmul.f32 %v5614, %v5621
      %v5629 = vmul.f32 %v5615, %v5624
      %v5630 = vmul.f32 %v5616, %v5623
      %v5634 = vrot.slane %v5628, 4
      %v5635 = vrot.slane %v5629, 4
      %v5636 = vrot.slane %v5630, 4
      %5637 = vrot.lane.b32.xlu0 %v5634, 1
      %v5638 = vpop.permute.xlu0 %5637
      %5639 = vrot.lane.b32.xlu0 %v5635, 1
      %v5640 = vpop.permute.xlu0 %5639
      %5641 = vrot.lane.b32.xlu0 %v5636, 1
      %v5642 = vpop.permute.xlu0 %5641
      %v5643 = vsel %vm604, %v5638, %v5640
      %v5644 = vsel %vm604, %v5640, %v5642
      %5647 = vst [vmem:[#allocation3 + $0x10] sm:$0xf0] %v5643
      %5648 = vst [vmem:[#allocation3 + $0x18] sm:$0xf0] %v5644
      %v5649 = vld [vmem:[#allocation2 + $0x48] sm:$0xf]
      %v5650 = vld [vmem:[#allocation2 + $0x50] sm:$0xf]
      %5651 = vst [vmem:[#allocation3 + $0x20] sm:$0xf] %v5649
      %5652 = vst [vmem:[#allocation3 + $0x28] sm:$0xf] %v5650
      %v5653 = vld [vmem:[#allocation2 + $0x48] sm:$0xf]
      %v5654 = vld [vmem:[#allocation2 + $0x50] sm:$0xf]
      %v5655 = vld [vmem:[#allocation2 + $0x58] sm:$0xf]
      %v5656 = vld [vmem:[%s618] sm:$0xff]
      %v5658 = vcombine.high %v5656, %v5656
      %5659 = vrot.lane.b32.xlu0 %v5656, 1
      %v5660 = vpop.permute.xlu0 %5659
      %5661 = vrot.lane.b32.xlu0 %v5658, 1
      %v5662 = vpop.permute.xlu0 %5661
      %v5663 = vsel %vm604, %v5660, %v5662
      %v5667 = vmul.f32 %v5653, %v5660
      %v5668 = vmul.f32 %v5654, %v5663
      %v5669 = vmul.f32 %v5655, %v5662
      %v5673 = vrot.slane %v5667, 4
      %v5674 = vrot.slane %v5668, 4
      %v5675 = vrot.slane %v5669, 4
      %5676 = vrot.lane.b32.xlu0 %v5673, 127
      %v5677 = vpop.permute.xlu0 %5676
      %5678 = vrot.lane.b32.xlu0 %v5674, 127
      %v5679 = vpop.permute.xlu0 %5678
      %5680 = vrot.lane.b32.xlu0 %v5675, 127
      %v5681 = vpop.permute.xlu0 %5680
      %v5682 = vsel %vm584, %v5677, %v5679
      %v5683 = vsel %vm584, %v5679, %v5681
      %5686 = vst [vmem:[#allocation3 + $0x20] sm:$0xf0] %v5682
      %5687 = vst [vmem:[#allocation3 + $0x28] sm:$0xf0] %v5683
      %v5688 = vld [vmem:[#allocation2 + $0x48] sm:$0xf]
      %v5689 = vld [vmem:[#allocation2 + $0x50] sm:$0xf]
      %v5690 = vld [vmem:[#allocation2 + $0x58] sm:$0xf]
      %v5691 = vld [vmem:[%s654] sm:$0xff]
      %v5693 = vcombine.high %v5691, %v5691
      %5694 = vrot.lane.b32.xlu0 %v5691, 15
      %v5695 = vpop.permute.xlu0 %5694
      %5696 = vrot.lane.b32.xlu0 %v5693, 15
      %v5697 = vpop.permute.xlu0 %5696
      %v5698 = vsel %vm566, %v5695, %v5697
      %v5702 = vmul.f32 %v5688, %v5695
      %v5703 = vmul.f32 %v5689, %v5698
      %v5704 = vmul.f32 %v5690, %v5697
      %5708 = vrot.lane.b32.xlu0 %v5702, 113
      %v5709 = vpop.permute.xlu0 %5708
      %5710 = vrot.lane.b32.xlu0 %v5703, 113
      %v5711 = vpop.permute.xlu0 %5710
      %5712 = vrot.lane.b32.xlu0 %v5704, 113
      %v5713 = vpop.permute.xlu0 %5712
      %v5714 = vsel %vm549, %v5709, %v5711
      %v5715 = vsel %vm549, %v5711, %v5713
      %5718 = vst [vmem:[#allocation3 + $0x30] sm:$0xf] %v5714
      %5719 = vst [vmem:[#allocation3 + $0x38] sm:$0xf] %v5715
      %v5720 = vld [vmem:[#allocation2 + $0x48] sm:$0xf]
      %v5721 = vld [vmem:[#allocation2 + $0x50] sm:$0xf]
      %v5722 = vld [vmem:[#allocation2 + $0x58] sm:$0xf]
      %v5723 = vld [vmem:[%s687] sm:$0xff]
      %v5725 = vcombine.high %v5723, %v5723
      %5726 = vrot.lane.b32.xlu0 %v5723, 16
      %v5727 = vpop.permute.xlu0 %5726
      %5728 = vrot.lane.b32.xlu0 %v5725, 16
      %v5729 = vpop.permute.xlu0 %5728
      %v5730 = vsel %vm531, %v5727, %v5729
      %v5734 = vmul.f32 %v5720, %v5727
      %v5735 = vmul.f32 %v5721, %v5730
      %v5736 = vmul.f32 %v5722, %v5729
      %v5740 = vrot.slane %v5734, 4
      %v5741 = vrot.slane %v5735, 4
      %v5742 = vrot.slane %v5736, 4
      %5743 = vrot.lane.b32.xlu0 %v5740, 112
      %v5744 = vpop.permute.xlu0 %5743
      %5745 = vrot.lane.b32.xlu0 %v5741, 112
      %v5746 = vpop.permute.xlu0 %5745
      %5747 = vrot.lane.b32.xlu0 %v5742, 112
      %v5748 = vpop.permute.xlu0 %5747
      %v5749 = vsel %vm511, %v5744, %v5746
      %v5750 = vsel %vm511, %v5746, %v5748
      %5753 = vst [vmem:[#allocation3 + $0x30] sm:$0xf0] %v5749
      %5754 = vst [vmem:[#allocation3 + $0x38] sm:$0xf0] %v5750
      %v5755 = vld [vmem:[#allocation2 + $0x48] sm:$0xf]
      %v5756 = vld [vmem:[#allocation2 + $0x50] sm:$0xf]
      %v5757 = vld [vmem:[#allocation2 + $0x58] sm:$0xf]
      %v5758 = vld [vmem:[%s723] sm:$0xff]
      %v5760 = vcombine.high %v5758, %v5758
      %5761 = vrot.lane.b32.xlu0 %v5758, 17
      %v5762 = vpop.permute.xlu0 %5761
      %5763 = vrot.lane.b32.xlu0 %v5760, 17
      %v5764 = vpop.permute.xlu0 %5763
      %v5765 = vsel %vm493, %v5762, %v5764
      %v5769 = vmul.f32 %v5755, %v5762
      %v5770 = vmul.f32 %v5756, %v5765
      %v5771 = vmul.f32 %v5757, %v5764
      %5775 = vrot.lane.b32.xlu0 %v5769, 111
      %v5776 = vpop.permute.xlu0 %5775
      %5777 = vrot.lane.b32.xlu0 %v5770, 111
      %v5778 = vpop.permute.xlu0 %5777
      %5779 = vrot.lane.b32.xlu0 %v5771, 111
      %v5780 = vpop.permute.xlu0 %5779
      %v5781 = vsel %vm476, %v5776, %v5778
      %v5782 = vsel %vm476, %v5778, %v5780
      %5785 = vst [vmem:[#allocation3 + $0x40] sm:$0xf] %v5781
      %5786 = vst [vmem:[#allocation3 + $0x48] sm:$0xf] %v5782
      %v5787 = vld [vmem:[#allocation2 + $0x48] sm:$0xf]
      %v5788 = vld [vmem:[#allocation2 + $0x50] sm:$0xf]
      %v5791 = vrot.slane %v5787, 4
      %v5792 = vrot.slane %v5788, 4
      %5795 = vst [vmem:[#allocation3 + $0x40] sm:$0xf0] %v5791
      %5796 = vst [vmem:[#allocation3 + $0x48] sm:$0xf0] %v5792
      %s5797 = scalar_lea.vmem %s9, 8
      %v5798 = vld [vmem:[%s5797] sm:$0xf]
      %v5799 = vld [vmem:[#allocation3] sm:$0xff]
      %v5800 = vld [vmem:[#allocation3 + $0x8] sm:$0xff]
      %v5801 = vld [vmem:[#allocation3 + $0x10] sm:$0xff]
      %v5802 = vld [vmem:[#allocation3 + $0x18] sm:$0xff]
      %v5803 = vld [vmem:[#allocation3 + $0x20] sm:$0xff]
      %v5804 = vld [vmem:[#allocation3 + $0x28] sm:$0xff]
      %v5805 = vld [vmem:[#allocation3 + $0x30] sm:$0xff]
      %v5806 = vld [vmem:[#allocation3 + $0x38] sm:$0xff]
      %v5807 = vld [vmem:[#allocation3 + $0x40] sm:$0xff]
      %v5808 = vld [vmem:[#allocation3 + $0x48] sm:$0xff]
      %s5809 = scalar_lea.vmem %s10, 8
      %v5810 = vld [vmem:[%s5809] sm:$0xf]
      %5812 = vset.pattern.permute.xlu0 0
      %5813 = vperm.xlu0 %5812, %v5810
      %v5814 = vpop.permute.xlu0 %5813
      %v5817 = vsel %vm787, %v5798, 0
      %5819 = vmatprep.subr.mxu0 %v5800
      %5820 = vmatpush1.msra.mxu0 %v5799
      %5821 = vmatprep.subr.mxu0 %v5802
      %5822 = vmatpush1.msra.mxu0 %v5801
      %5823 = vmatprep.subr.mxu0 %v5804
      %5824 = vmatpush1.msra.mxu0 %v5803
      %5825 = vmatprep.subr.mxu0 %v5806
      %5826 = vmatpush1.msra.mxu0 %v5805
      %5827 = vmatprep.subr.mxu0 %v5808
      %5828 = vmatpush1.msra.mxu0 %v5807
      %5829 = vmatprep.subr.mxu0 0.0
      %5830 = vmatpush1.msra.mxu0 0.0
      %5831 = vmatprep.subr.mxu0 0.0
      %5832 = vmatpush1.msra.mxu0 0.0
      %5833 = vmatprep.subr.mxu0 0.0
      %5834 = vmatpush1.msra.mxu0 0.0
      %5835 = vmatprep.subr.mxu0 0.0
      %5836 = vmatpush1.msra.mxu0 0.0
      %5837 = vmatprep.subr.mxu0 0.0
      %5838 = vmatpush1.msra.mxu0 0.0
      %5839 = vmatprep.subr.mxu0 0.0
      %5840 = vmatpush1.msra.mxu0 0.0
      %5841 = vmatprep.subr.mxu0 0.0
      %5842 = vmatpush1.msra.mxu0 0.0
      %5843 = vmatprep.subr.mxu0 0.0
      %5844 = vmatpush1.msra.mxu0 0.0
      %5845 = vmatprep.subr.mxu0 0.0
      %5846 = vmatpush1.msra.mxu0 0.0
      %5847 = vmatprep.subr.mxu0 0.0
      %5848 = vmatpush1.msra.mxu0 0.0
      %5849 = vmatprep.subr.mxu0 0.0
      %5850 = vmatpush1.msra.mxu0 0.0
      %5851 = vmatprep.subr.mxu0 0.0
      %5852 = vmatpush1.msra.mxu0 0.0
      %5853 = vmatprep.subr.mxu0 0.0
      %5854 = vmatpush1.msra.mxu0 0.0
      %5855 = vmatprep.subr.mxu0 0.0
      %5856 = vmatpush1.msra.mxu0 0.0
      %5857 = vmatprep.subr.mxu0 0.0
      %5858 = vmatpush1.msra.mxu0 0.0
      %5859 = vmatprep.subr.mxu0 0.0
      %5860 = vmatpush1.msra.mxu0 0.0
      %5861 = vmatprep.subr.mxu0 0.0
      %5862 = vmatpush1.msra.mxu0 0.0
      %5863 = vmatprep.subr.mxu0 0.0
      %5864 = vmatpush1.msra.mxu0 0.0
      %5865 = vmatprep.subr.mxu0 0.0
      %5866 = vmatpush1.msra.mxu0 0.0
      %5867 = vmatprep.subr.mxu0 0.0
      %5868 = vmatpush1.msra.mxu0 0.0
      %5869 = vmatprep.subr.mxu0 0.0
      %5870 = vmatpush1.msra.mxu0 0.0
      %5871 = vmatprep.subr.mxu0 0.0
      %5872 = vmatpush1.msra.mxu0 0.0
      %5873 = vmatprep.subr.mxu0 0.0
      %5874 = vmatpush1.msra.mxu0 0.0
      %5875 = vmatprep.subr.mxu0 0.0
      %5876 = vmatpush1.msra.mxu0 0.0
      %5877 = vmatprep.subr.mxu0 0.0
      %5878 = vmatpush1.msra.mxu0 0.0
      %5879 = vmatprep.subr.mxu0 0.0
      %5880 = vmatpush1.msra.mxu0 0.0
      %5881 = vmatprep.subr.mxu0 0.0
      %5882 = vmatpush1.msra.mxu0 0.0
      %5883 = vmatprep.mubr.f32.mxu0 0.0
      %5884 = vmatmul.mubr.f32.gmra.mrb[0].mxu0 %v5817
      %v5885 = vpop.f32.mrb[0].mxu0
      %v5886 = vadd.f32 %v5814, %v5885
      %v5887 = vpop.f32.mrb[0].mxu0
      %v5888 = vadd.f32 %v5814, %v5887
      %5889 = vdwg.mxu0
      %s5890 = scalar_lea.vmem %s11, 8
      %v5891 = vld [vmem:[%s5890] sm:$0xf]
      %vm5892 = vcmp.ge.f32.partialorder %v5886, 0.0
      %vm5893 = vcmp.ge.f32.partialorder %v5888, 0.0
      %5895 = vset.pattern.permute.xlu0 0
      %5896 = vperm.xlu0 %5895, %v5891
      %v5897 = vpop.permute.xlu0 %5896
      %v5899 = vmul.f32 %v5897, %v5886
      %v5900 = vmul.f32 %v5897, %v5888
      %v5901 = vsel %vm5892, %v5886, %v5899
      %v5902 = vsel %vm5893, %v5888, %v5900
      %v5903 = vadd.f32 %v5901, %v4732
      %v5904 = vadd.f32 %v5902, %v4734
      %v5907 = vcombine.low %v5903, %v5904
      %5909 = vst [vmem:[%s448] sm:$0xff] %v5907
      %p5910 = scmp.lt.s32.totalorder %s25, 1
      %s5911 = scalar_select %p5910, %s25, 1
      %s5912 = smul.addr %s5911, 2
      %s5913 = smul.addr %s5912, 4
      %s5914 = scalar_lea.vmem %s12, %s5913
      %p5915 = scmp.lt.s32.totalorder %s25, 1
      %s5916 = scalar_select %p5915, %s25, 1
      %s5917 = smul.addr %s5916, 4
      %s5918 = smul.addr %s5917, 8
      %s5919 = scalar_lea.vmem %s13, %s5918
      // Predicated region
      $region69: #{brm_forward.1} parent=67 // pred_check
        %p5920 = pneg %p300
      $region70: #{brm_forward.1} parent=67 // pred_check_branch
        %5922 = sbr.rel (%p5920) target = $region72
      $region71: #{brm_forward.1} parent=67 // pred_region
        _
      $region72: #{brm_forward.1} parent=67 // pred_fallthru
        _
      // Predicated region
      $region73: #{brm_forward.1} parent=67 // pred_check
        %p5923 = pneg %p326
      $region74: #{brm_forward.1} parent=67 // pred_check_branch
        %5925 = sbr.rel (%p5923) target = $region76
      $region75: #{brm_forward.1} parent=67 // pred_region
        _
      $region76: #{brm_forward.1} parent=67 // pred_fallthru
        _
    $region68: #{brm_forward.1} parent=5 // pred_fallthru
      _
    %p5926 = scmp.le.s32.totalorder 2, %s20
    // Predicated region
    $region77: #{brm_forward.1} parent=5 // pred_check
      %p5927 = pneg %p5926
    $region78: #{brm_forward.1} parent=5 // pred_check_branch
      %5929 = sbr.rel (%p5927) target = $region80
    $region79: #{brm_forward.1} parent=5 // pred_region
      %s5930 = ssub.s32 %s20, 2
      // Predicated region
      $region81: #{brm_forward.1} parent=79 // pred_check
        %p5931 = pneg %p306
      $region82: #{brm_forward.1} parent=79 // pred_check_branch
        %5933 = sbr.rel (%p5931) target = $region84
      $region83: #{brm_forward.1} parent=79 // pred_region
        %p5934 = scmp.lt.s32.totalorder %s26, 1
        %s5935 = scalar_select %p5934, %s26, 1
        %s5936 = smul.addr %s5935, 2
        %s5937 = smul.addr %s5936, 4
        %s5938 = scalar_lea.vmem %s12, %s5937
      $region84: #{brm_forward.1} parent=79 // pred_fallthru
        _
      // Predicated region
      $region85: #{brm_forward.1} parent=79 // pred_check
        %p5939 = pneg %p332
      $region86: #{brm_forward.1} parent=79 // pred_check_branch
        %5941 = sbr.rel (%p5939) target = $region88
      $region87: #{brm_forward.1} parent=79 // pred_region
        %p5942 = scmp.lt.s32.totalorder %s26, 1
        %s5943 = scalar_select %p5942, %s26, 1
        %s5944 = smul.addr %s5943, 4
        %s5945 = smul.addr %s5944, 8
        %s5946 = scalar_lea.vmem %s13, %s5945
      $region88: #{brm_forward.1} parent=79 // pred_fallthru
        _
    $region80: #{brm_forward.1} parent=5 // pred_fallthru
      _
  $region6: #{brm_forward.1} parent=0 // loop_footer
    %s24 = sadd.s32 1, %s20
  $region7: #{brm_forward.1} parent=0 // loop_footer_branch
    %19 = sbr.rel target = $region3
  $region8: #{brm_forward.1} parent=0 // loop_exit
    _

</llo_original>
